<compile_context>
chip_gen: v7x
topology: tpu7x:2x2x1
jax: 0.10.0
libtpu: 0.0.40
codegen_flags: <defaults>
</compile_context>

<pallas_src>
import functools

import jax
import jax.numpy as jnp
from jax.experimental import pallas as pl
from jax.experimental.pallas import tpu as pltpu

LANE = 128                                                   # TPU lane width
_TAPS = [(dy, dx) for dy in (-1, 0, 1) for dx in (-1, 0, 1)]  # tap-major order


def _round_up(x, m):
    return ((x + m - 1) // m) * m


# ---------------------------------------------------------------------------
# Pallas kernel: full RRCNN_block forward for one image per grid step.
# ---------------------------------------------------------------------------
def _rrcnn_kernel(x_ref, w1_ref, b1_ref, wa_ref, ba_ref, wb_ref, bb_ref, o_ref, *, t):
    _, H, W, Cin = x_ref.shape
    Cp = w1_ref.shape[1]
    HW = H * W

    # Column masks, hoisted once and shared by all six 3x3 convs.  They zero
    # the SOURCE columns that would otherwise wrap around a row boundary when
    # the tap is expressed as a flat shift of the (HW, Cp) slab.
    col = jax.lax.broadcasted_iota(jnp.int32, (HW, Cp), 0) % W
    keep_for_left = col < (W - 1)   # dx=-1 taps: source col W-1 must not wrap
    keep_for_right = col > 0        # dx=+1 taps: source col 0   must not wrap

    def shift(src, off):
        """src shifted so out[f] = src[f + off]; zero outside [0, HW)."""
        if off > 0:
            return jnp.concatenate(
                [src[off:], jnp.zeros((off, Cp), src.dtype)], axis=0)
        if off < 0:
            return jnp.concatenate(
                [jnp.zeros((-off, Cp), src.dtype), src[:off]], axis=0)
        return src

    def conv3x3_bn_relu(y, w_ref, b):
        """im2col 3x3 conv (stride 1, pad 1) + folded BN + ReLU. y: (HW, Cp) f32."""
        yb = y.astype(jnp.bfloat16)                       # cast once per conv
        yb_l = jnp.where(keep_for_left, yb, 0.0)          # used by dx == -1 taps
        yb_r = jnp.where(keep_for_right, yb, 0.0)         # used by dx == +1 taps
        src = {-1: yb_l, 0: yb, 1: yb_r}
        # Top/bottom image edges are handled by the zero fill of the shift;
        # left/right edges by the pre-masked sources above.
        patch = jnp.concatenate(
            [shift(src[dx], dy * W + dx) for dy, dx in _TAPS], axis=-1)
        acc = jnp.dot(patch, w_ref[...], preferred_element_type=jnp.float32)
        return jnp.maximum(acc + b, 0.0)                  # bias add + ReLU in f32

    def recurrent_block(y, w_ref, b):
        # Recurrent_block.forward: x1 = conv(x); repeat t times: x1 = conv(x + x1)
        x1 = conv3x3_bn_relu(y, w_ref, b)
        for _ in range(t):
            x1 = conv3x3_bn_relu(y + x1, w_ref, b)
        return x1

    # ---- Conv_1x1 : pointwise channel matmul (bf16 operands, f32 acc) ----
    xb = x_ref[...].reshape(HW, Cin).astype(jnp.bfloat16)
    x0 = jnp.dot(xb, w1_ref[...], preferred_element_type=jnp.float32) + b1_ref[...]

    # ---- RCNN = Recurrent_block -> Recurrent_block, then residual add ----
    r = recurrent_block(x0, wa_ref, ba_ref[...])
    r = recurrent_block(r, wb_ref, bb_ref[...])
    o_ref[...] = (x0 + r).reshape(o_ref.shape).astype(o_ref.dtype)


# ---------------------------------------------------------------------------
# Wrapper (NCHW in / NCHW out).  Takes kernel-layout ("packed") params.
# ---------------------------------------------------------------------------
@functools.partial(jax.jit, static_argnames=("ch_out", "t"))
def rrcnn_block(x_nchw, packed, *, ch_out, t=2):
    n, ch_in, h, w = x_nchw.shape
    cp_in, cp = packed["w1x1"].shape

    x = jnp.transpose(x_nchw, (0, 2, 3, 1))                         # NCHW -> NHWC
    x = jnp.pad(x, ((0, 0), (0, 0), (0, 0), (0, cp_in - ch_in)))    # lane-pad cin

    kernel = functools.partial(_rrcnn_kernel, t=t)
    out = pl.pallas_call(
        kernel,
        out_shape=jax.ShapeDtypeStruct((n, h, w, cp), jnp.float32),
        grid_spec=pltpu.PrefetchScalarGridSpec(
            num_scalar_prefetch=0,
            grid=(n,),                       # >= 2 steps feeds both v7x TCs
            in_specs=[
                pl.BlockSpec((1, h, w, cp_in), lambda i: (i, 0, 0, 0)),
                pl.BlockSpec((cp_in, cp), lambda i: (0, 0)),
                pl.BlockSpec((1, cp), lambda i: (0, 0)),
                pl.BlockSpec((9 * cp, cp), lambda i: (0, 0)),
                pl.BlockSpec((1, cp), lambda i: (0, 0)),
                pl.BlockSpec((9 * cp, cp), lambda i: (0, 0)),
                pl.BlockSpec((1, cp), lambda i: (0, 0)),
            ],
            out_specs=pl.BlockSpec((1, h, w, cp), lambda i: (i, 0, 0, 0)),
        ),
        compiler_params=pltpu.CompilerParams(
            dimension_semantics=("parallel",),
            vmem_limit_bytes=32 * 1024 * 1024,   # explicit, fits v5e/v6e/v7x
        ),
    )(x, packed["w1x1"], packed["b1x1"], packed["w3a"], packed["b3a"],
      packed["w3b"], packed["b3b"])

    return jnp.transpose(out[..., :ch_out], (0, 3, 1, 2))           # NHWC -> NCHW


# ---------------------------------------------------------------------------
# Deterministic parameters (BN folded into the 3x3 convs, eval mode) and the
# one-time packing into the kernel layout (pad to 128 lanes, im2col weights,
# bf16 matmul operands).
# ---------------------------------------------------------------------------
def init_params(key, ch_in, ch_out, eps=1e-5):
    keys = jax.random.split(key, 14)

    def conv3_folded(kw, kb, kg, kbt, km, kv):
        w = jax.random.normal(kw, (3, 3, ch_out, ch_out), jnp.float32)
        w = w * (1.0 / float(3 * (ch_out ** 0.5)))
        b = 0.1 * jax.random.normal(kb, (ch_out,), jnp.float32)
        gamma = 1.0 + 0.1 * jax.random.normal(kg, (ch_out,), jnp.float32)
        beta = 0.1 * jax.random.normal(kbt, (ch_out,), jnp.float32)
        mean = 0.1 * jax.random.normal(km, (ch_out,), jnp.float32)
        var = jax.random.uniform(kv, (ch_out,), jnp.float32, minval=0.5, maxval=1.5)
        scale = gamma / jnp.sqrt(var + eps)
        return w * scale[None, None, None, :], (b - mean) * scale + beta

    w1 = jax.random.normal(keys[0], (ch_in, ch_out), jnp.float32) / float(ch_in ** 0.5)
    b1 = 0.1 * jax.random.normal(keys[1], (ch_out,), jnp.float32)
    w3a, b3a = conv3_folded(*keys[2:8])
    w3b, b3b = conv3_folded(*keys[8:14])
    return dict(w1x1=w1, b1x1=b1, w3a=w3a, b3a=b3a, w3b=w3b, b3b=b3b)


def pack_params(params, ch_in, ch_out):
    cp_in = _round_up(ch_in, LANE)
    cp = _round_up(ch_out, LANE)

    def pad_to(a, shape):
        return jnp.pad(a, [(0, s - d) for d, s in zip(a.shape, shape)])

    w1 = pad_to(params["w1x1"], (cp_in, cp)).astype(jnp.bfloat16)
    b1 = pad_to(params["b1x1"], (cp,)).reshape(1, cp).astype(jnp.float32)

    def pack3(w, b):
        # (3,3,I,O) HWIO -> pad channels -> (9*Cp, Cp), rows ordered
        # (ky, kx, in_ch) to match the kernel's tap-major patch layout.
        wp = pad_to(w, (3, 3, cp, cp)).reshape(9 * cp, cp).astype(jnp.bfloat16)
        bp = pad_to(b, (cp,)).reshape(1, cp).astype(jnp.float32)
        return wp, bp

    w3a, b3a = pack3(params["w3a"], params["b3a"])
    w3b, b3b = pack3(params["w3b"], params["b3b"])
    return dict(w1x1=w1, b1x1=b1, w3a=w3a, b3a=b3a, w3b=w3b, b3b=b3b)


# ---------------------------------------------------------------------------
# Pure-JAX f32 reference (same folded-BN weights) for a correctness check.
# ---------------------------------------------------------------------------
def rrcnn_reference(x_nchw, params, *, t=2):
    x = jnp.transpose(x_nchw, (0, 2, 3, 1))

    def conv3(y, w, b):
        out = jax.lax.conv_general_dilated(
            y, w, window_strides=(1, 1), padding="SAME",
            dimension_numbers=("NHWC", "HWIO", "NHWC"))
        return jnp.maximum(out + b, 0.0)

    def rec(y, w, b):
        x1 = conv3(y, w, b)
        for _ in range(t):
            x1 = conv3(y + x1, w, b)
        return x1

    x0 = jnp.einsum("nhwc,cd->nhwd", x, params["w1x1"]) + params["b1x1"]
    r = rec(x0, params["w3a"], params["b3a"])
    r = rec(r, params["w3b"], params["b3b"])
    return jnp.transpose(x0 + r, (0, 3, 1, 2))


if __name__ == "__main__":
    key = jax.random.PRNGKey(0)
    kx, kp = jax.random.split(key)

    ch_in, ch_out, t = 4, 8, 2
    x = jax.random.normal(kx, (2, ch_in, 16, 16), jnp.float32)   # NCHW, like PyTorch
    params = init_params(kp, ch_in, ch_out)
    packed = pack_params(params, ch_in, ch_out)

    y = rrcnn_block(x, packed, ch_out=ch_out, t=t)
    jax.block_until_ready(y)
    assert y.shape == (2, ch_out, 16, 16) and y.dtype == jnp.float32

    y_ref = rrcnn_reference(x, params, t=t)
    err = float(jnp.max(jnp.abs(y - y_ref)))
    assert err < 5e-2, f"kernel/reference mismatch: max abs err = {err}"
    print("KERNEL_OK")
</pallas_src>

<mosaic_0001>
module attributes {stable_mosaic.version = 11 : i64} {
  func.func @_rrcnn_kernel(%arg0: i32, %arg1: memref<1x16x16x128xf32, #tpu.memory_space<vmem>>, %arg2: memref<128x128xbf16, #tpu.memory_space<vmem>>, %arg3: memref<1x128xf32, #tpu.memory_space<vmem>>, %arg4: memref<1152x128xbf16, #tpu.memory_space<vmem>>, %arg5: memref<1x128xf32, #tpu.memory_space<vmem>>, %arg6: memref<1152x128xbf16, #tpu.memory_space<vmem>>, %arg7: memref<1x128xf32, #tpu.memory_space<vmem>>, %arg8: memref<1x16x16x128xf32, #tpu.memory_space<vmem>>) attributes {dimension_semantics = [#tpu.dimension_semantics<parallel>], iteration_bounds = array<i64: 2>, scalar_prefetch = 0 : i64, scratch_operands = 0 : i64, tpu.core_type = #tpu.core_type<tc>, window_params = [{transform_indices = @transform_0, window_bounds = array<i64: 1, 16, 16, 128>}, {pipeline_mode = #tpu.pipeline_mode<synchronous>, transform_indices = @transform_1, window_bounds = array<i64: 128, 128>}, {pipeline_mode = #tpu.pipeline_mode<synchronous>, transform_indices = @transform_2, window_bounds = array<i64: 1, 128>}, {pipeline_mode = #tpu.pipeline_mode<synchronous>, transform_indices = @transform_3, window_bounds = array<i64: 1152, 128>}, {pipeline_mode = #tpu.pipeline_mode<synchronous>, transform_indices = @transform_4, window_bounds = array<i64: 1, 128>}, {pipeline_mode = #tpu.pipeline_mode<synchronous>, transform_indices = @transform_5, window_bounds = array<i64: 1152, 128>}, {pipeline_mode = #tpu.pipeline_mode<synchronous>, transform_indices = @transform_6, window_bounds = array<i64: 1, 128>}, {transform_indices = @transform_7, window_bounds = array<i64: 1, 16, 16, 128>}]} {
    %0 = tpu.iota {dimensions = array<i32: 0>} : vector<256x128xi32>
    %c16_i32 = arith.constant 16 : i32
    %c0_i32 = arith.constant 0 : i32
    %1 = arith.cmpi eq, %c16_i32, %c0_i32 : i32
    %c1_i32 = arith.constant 1 : i32
    %2 = arith.select %1, %c1_i32, %c16_i32 : i32
    %3 = vector.broadcast %2 : i32 to vector<256x128xi32>
    %4 = arith.remsi %0, %3 : vector<256x128xi32>
    %c0_i32_0 = arith.constant 0 : i32
    %5 = vector.broadcast %c0_i32_0 : i32 to vector<256x128xi32>
    %6 = arith.cmpi ne, %4, %5 : vector<256x128xi32>
    %c0_i32_1 = arith.constant 0 : i32
    %7 = vector.broadcast %c0_i32_1 : i32 to vector<256x128xi32>
    %8 = arith.cmpi slt, %4, %7 : vector<256x128xi32>
    %c0_i32_2 = arith.constant 0 : i32
    %9 = arith.cmpi slt, %2, %c0_i32_2 : i32
    %10 = vector.broadcast %9 : i1 to vector<256x128xi1>
    %11 = vector.broadcast %10 : vector<256x128xi1> to vector<256x128xi1>
    %12 = arith.xori %8, %11 : vector<256x128xi1>
    %13 = arith.andi %12, %6 : vector<256x128xi1>
    %14 = vector.broadcast %2 : i32 to vector<256x128xi32>
    %15 = arith.addi %4, %14 : vector<256x128xi32>
    %16 = arith.select %13, %15, %4 : vector<256x128xi1>, vector<256x128xi32>
    %c15_i32 = arith.constant 15 : i32
    %17 = vector.broadcast %c15_i32 : i32 to vector<256x128xi32>
    %18 = arith.cmpi slt, %16, %17 : vector<256x128xi32>
    %c0_i32_3 = arith.constant 0 : i32
    %19 = vector.broadcast %c0_i32_3 : i32 to vector<256x128xi32>
    %20 = arith.cmpi sgt, %16, %19 : vector<256x128xi32>
    %c0 = arith.constant 0 : index
    %c0_4 = arith.constant 0 : index
    %c0_5 = arith.constant 0 : index
    %c0_6 = arith.constant 0 : index
    %21 = vector.load %arg1[%c0, %c0_4, %c0_5, %c0_6] : memref<1x16x16x128xf32, #tpu.memory_space<vmem>>, vector<1x16x16x128xf32>
    %22 = vector.shape_cast %21 : vector<1x16x16x128xf32> to vector<256x128xf32>
    %23 = arith.truncf %22 : vector<256x128xf32> to vector<256x128xbf16>
    %c0_7 = arith.constant 0 : index
    %c0_8 = arith.constant 0 : index
    %24 = vector.load %arg2[%c0_7, %c0_8] : memref<128x128xbf16, #tpu.memory_space<vmem>>, vector<128x128xbf16>
    %cst = arith.constant dense<0.000000e+00> : vector<256x128xf32>
    %25 = tpu.matmul %23, %24, %cst {dimension_numbers = #tpu.dot_dimension_numbers<[1], [0], [0], [1], [0, 0, 1, 1], [], []>} : vector<256x128xbf16>, vector<128x128xbf16>, vector<256x128xf32> -> vector<256x128xf32>
    %c0_9 = arith.constant 0 : index
    %c0_10 = arith.constant 0 : index
    %26 = vector.load %arg3[%c0_9, %c0_10] : memref<1x128xf32, #tpu.memory_space<vmem>>, vector<1x128xf32>
    %27 = vector.broadcast %26 : vector<1x128xf32> to vector<256x128xf32>
    %28 = arith.addf %25, %27 : vector<256x128xf32>
    %c0_11 = arith.constant 0 : index
    %c0_12 = arith.constant 0 : index
    %29 = vector.load %arg5[%c0_11, %c0_12] : memref<1x128xf32, #tpu.memory_space<vmem>>, vector<1x128xf32>
    %30 = arith.truncf %28 : vector<256x128xf32> to vector<256x128xbf16>
    %cst_13 = arith.constant 0.000000e+00 : f32
    %31 = arith.truncf %cst_13 : f32 to bf16
    %32 = vector.broadcast %31 : bf16 to vector<256x128xbf16>
    %33 = arith.select %18, %30, %32 : vector<256x128xi1>, vector<256x128xbf16>
    %cst_14 = arith.constant 0.000000e+00 : f32
    %34 = arith.truncf %cst_14 : f32 to bf16
    %35 = vector.broadcast %34 : bf16 to vector<256x128xbf16>
    %36 = arith.select %20, %30, %35 : vector<256x128xi1>, vector<256x128xbf16>
    %cst_15 = arith.constant 0.000000e+00 : bf16
    %37 = vector.broadcast %cst_15 : bf16 to vector<17x128xbf16>
    %38 = vector.extract_strided_slice %33 {offsets = [0, 0], sizes = [239, 128], strides = [1, 1]} : vector<256x128xbf16> to vector<239x128xbf16>
    %39 = tpu.concatenate %37, %38 in 0 : vector<17x128xbf16>, vector<239x128xbf16> -> vector<256x128xbf16>
    %cst_16 = arith.constant 0.000000e+00 : bf16
    %40 = vector.broadcast %cst_16 : bf16 to vector<16x128xbf16>
    %41 = vector.extract_strided_slice %30 {offsets = [0, 0], sizes = [240, 128], strides = [1, 1]} : vector<256x128xbf16> to vector<240x128xbf16>
    %42 = tpu.concatenate %40, %41 in 0 : vector<16x128xbf16>, vector<240x128xbf16> -> vector<256x128xbf16>
    %cst_17 = arith.constant 0.000000e+00 : bf16
    %43 = vector.broadcast %cst_17 : bf16 to vector<15x128xbf16>
    %44 = vector.extract_strided_slice %36 {offsets = [0, 0], sizes = [241, 128], strides = [1, 1]} : vector<256x128xbf16> to vector<241x128xbf16>
    %45 = tpu.concatenate %43, %44 in 0 : vector<15x128xbf16>, vector<241x128xbf16> -> vector<256x128xbf16>
    %cst_18 = arith.constant 0.000000e+00 : bf16
    %46 = vector.broadcast %cst_18 : bf16 to vector<1x128xbf16>
    %47 = vector.extract_strided_slice %33 {offsets = [0, 0], sizes = [255, 128], strides = [1, 1]} : vector<256x128xbf16> to vector<255x128xbf16>
    %48 = tpu.concatenate %46, %47 in 0 : vector<1x128xbf16>, vector<255x128xbf16> -> vector<256x128xbf16>
    %49 = vector.extract_strided_slice %36 {offsets = [1, 0], sizes = [255, 128], strides = [1, 1]} : vector<256x128xbf16> to vector<255x128xbf16>
    %cst_19 = arith.constant 0.000000e+00 : bf16
    %50 = vector.broadcast %cst_19 : bf16 to vector<1x128xbf16>
    %51 = tpu.concatenate %49, %50 in 0 : vector<255x128xbf16>, vector<1x128xbf16> -> vector<256x128xbf16>
    %52 = vector.extract_strided_slice %33 {offsets = [15, 0], sizes = [241, 128], strides = [1, 1]} : vector<256x128xbf16> to vector<241x128xbf16>
    %cst_20 = arith.constant 0.000000e+00 : bf16
    %53 = vector.broadcast %cst_20 : bf16 to vector<15x128xbf16>
    %54 = tpu.concatenate %52, %53 in 0 : vector<241x128xbf16>, vector<15x128xbf16> -> vector<256x128xbf16>
    %55 = vector.extract_strided_slice %30 {offsets = [16, 0], sizes = [240, 128], strides = [1, 1]} : vector<256x128xbf16> to vector<240x128xbf16>
    %cst_21 = arith.constant 0.000000e+00 : bf16
    %56 = vector.broadcast %cst_21 : bf16 to vector<16x128xbf16>
    %57 = tpu.concatenate %55, %56 in 0 : vector<240x128xbf16>, vector<16x128xbf16> -> vector<256x128xbf16>
    %58 = vector.extract_strided_slice %36 {offsets = [17, 0], sizes = [239, 128], strides = [1, 1]} : vector<256x128xbf16> to vector<239x128xbf16>
    %cst_22 = arith.constant 0.000000e+00 : bf16
    %59 = vector.broadcast %cst_22 : bf16 to vector<17x128xbf16>
    %60 = tpu.concatenate %58, %59 in 0 : vector<239x128xbf16>, vector<17x128xbf16> -> vector<256x128xbf16>
    %61 = tpu.concatenate %39, %42, %45, %48, %30, %51, %54, %57, %60 in 1 : vector<256x128xbf16>, vector<256x128xbf16>, vector<256x128xbf16>, vector<256x128xbf16>, vector<256x128xbf16>, vector<256x128xbf16>, vector<256x128xbf16>, vector<256x128xbf16>, vector<256x128xbf16> -> vector<256x1152xbf16>
    %c0_23 = arith.constant 0 : index
    %c0_24 = arith.constant 0 : index
    %62 = vector.load %arg4[%c0_23, %c0_24] : memref<1152x128xbf16, #tpu.memory_space<vmem>>, vector<1152x128xbf16>
    %cst_25 = arith.constant dense<0.000000e+00> : vector<256x128xf32>
    %63 = tpu.matmul %61, %62, %cst_25 {dimension_numbers = #tpu.dot_dimension_numbers<[1], [0], [0], [1], [0, 0, 1, 1], [], []>} : vector<256x1152xbf16>, vector<1152x128xbf16>, vector<256x128xf32> -> vector<256x128xf32>
    %64 = vector.broadcast %29 : vector<1x128xf32> to vector<256x128xf32>
    %65 = arith.addf %63, %64 : vector<256x128xf32>
    %cst_26 = arith.constant 0.000000e+00 : f32
    %66 = vector.broadcast %cst_26 : f32 to vector<256x128xf32>
    %67 = arith.maximumf %65, %66 : vector<256x128xf32>
    %68 = arith.addf %28, %67 : vector<256x128xf32>
    %69 = arith.truncf %68 : vector<256x128xf32> to vector<256x128xbf16>
    %cst_27 = arith.constant 0.000000e+00 : f32
    %70 = arith.truncf %cst_27 : f32 to bf16
    %71 = vector.broadcast %70 : bf16 to vector<256x128xbf16>
    %72 = arith.select %18, %69, %71 : vector<256x128xi1>, vector<256x128xbf16>
    %cst_28 = arith.constant 0.000000e+00 : f32
    %73 = arith.truncf %cst_28 : f32 to bf16
    %74 = vector.broadcast %73 : bf16 to vector<256x128xbf16>
    %75 = arith.select %20, %69, %74 : vector<256x128xi1>, vector<256x128xbf16>
    %cst_29 = arith.constant 0.000000e+00 : bf16
    %76 = vector.broadcast %cst_29 : bf16 to vector<17x128xbf16>
    %77 = vector.extract_strided_slice %72 {offsets = [0, 0], sizes = [239, 128], strides = [1, 1]} : vector<256x128xbf16> to vector<239x128xbf16>
    %78 = tpu.concatenate %76, %77 in 0 : vector<17x128xbf16>, vector<239x128xbf16> -> vector<256x128xbf16>
    %cst_30 = arith.constant 0.000000e+00 : bf16
    %79 = vector.broadcast %cst_30 : bf16 to vector<16x128xbf16>
    %80 = vector.extract_strided_slice %69 {offsets = [0, 0], sizes = [240, 128], strides = [1, 1]} : vector<256x128xbf16> to vector<240x128xbf16>
    %81 = tpu.concatenate %79, %80 in 0 : vector<16x128xbf16>, vector<240x128xbf16> -> vector<256x128xbf16>
    %cst_31 = arith.constant 0.000000e+00 : bf16
    %82 = vector.broadcast %cst_31 : bf16 to vector<15x128xbf16>
    %83 = vector.extract_strided_slice %75 {offsets = [0, 0], sizes = [241, 128], strides = [1, 1]} : vector<256x128xbf16> to vector<241x128xbf16>
    %84 = tpu.concatenate %82, %83 in 0 : vector<15x128xbf16>, vector<241x128xbf16> -> vector<256x128xbf16>
    %cst_32 = arith.constant 0.000000e+00 : bf16
    %85 = vector.broadcast %cst_32 : bf16 to vector<1x128xbf16>
    %86 = vector.extract_strided_slice %72 {offsets = [0, 0], sizes = [255, 128], strides = [1, 1]} : vector<256x128xbf16> to vector<255x128xbf16>
    %87 = tpu.concatenate %85, %86 in 0 : vector<1x128xbf16>, vector<255x128xbf16> -> vector<256x128xbf16>
    %88 = vector.extract_strided_slice %75 {offsets = [1, 0], sizes = [255, 128], strides = [1, 1]} : vector<256x128xbf16> to vector<255x128xbf16>
    %cst_33 = arith.constant 0.000000e+00 : bf16
    %89 = vector.broadcast %cst_33 : bf16 to vector<1x128xbf16>
    %90 = tpu.concatenate %88, %89 in 0 : vector<255x128xbf16>, vector<1x128xbf16> -> vector<256x128xbf16>
    %91 = vector.extract_strided_slice %72 {offsets = [15, 0], sizes = [241, 128], strides = [1, 1]} : vector<256x128xbf16> to vector<241x128xbf16>
    %cst_34 = arith.constant 0.000000e+00 : bf16
    %92 = vector.broadcast %cst_34 : bf16 to vector<15x128xbf16>
    %93 = tpu.concatenate %91, %92 in 0 : vector<241x128xbf16>, vector<15x128xbf16> -> vector<256x128xbf16>
    %94 = vector.extract_strided_slice %69 {offsets = [16, 0], sizes = [240, 128], strides = [1, 1]} : vector<256x128xbf16> to vector<240x128xbf16>
    %cst_35 = arith.constant 0.000000e+00 : bf16
    %95 = vector.broadcast %cst_35 : bf16 to vector<16x128xbf16>
    %96 = tpu.concatenate %94, %95 in 0 : vector<240x128xbf16>, vector<16x128xbf16> -> vector<256x128xbf16>
    %97 = vector.extract_strided_slice %75 {offsets = [17, 0], sizes = [239, 128], strides = [1, 1]} : vector<256x128xbf16> to vector<239x128xbf16>
    %cst_36 = arith.constant 0.000000e+00 : bf16
    %98 = vector.broadcast %cst_36 : bf16 to vector<17x128xbf16>
    %99 = tpu.concatenate %97, %98 in 0 : vector<239x128xbf16>, vector<17x128xbf16> -> vector<256x128xbf16>
    %100 = tpu.concatenate %78, %81, %84, %87, %69, %90, %93, %96, %99 in 1 : vector<256x128xbf16>, vector<256x128xbf16>, vector<256x128xbf16>, vector<256x128xbf16>, vector<256x128xbf16>, vector<256x128xbf16>, vector<256x128xbf16>, vector<256x128xbf16>, vector<256x128xbf16> -> vector<256x1152xbf16>
    %c0_37 = arith.constant 0 : index
    %c0_38 = arith.constant 0 : index
    %101 = vector.load %arg4[%c0_37, %c0_38] : memref<1152x128xbf16, #tpu.memory_space<vmem>>, vector<1152x128xbf16>
    %cst_39 = arith.constant dense<0.000000e+00> : vector<256x128xf32>
    %102 = tpu.matmul %100, %101, %cst_39 {dimension_numbers = #tpu.dot_dimension_numbers<[1], [0], [0], [1], [0, 0, 1, 1], [], []>} : vector<256x1152xbf16>, vector<1152x128xbf16>, vector<256x128xf32> -> vector<256x128xf32>
    %103 = vector.broadcast %29 : vector<1x128xf32> to vector<256x128xf32>
    %104 = arith.addf %102, %103 : vector<256x128xf32>
    %cst_40 = arith.constant 0.000000e+00 : f32
    %105 = vector.broadcast %cst_40 : f32 to vector<256x128xf32>
    %106 = arith.maximumf %104, %105 : vector<256x128xf32>
    %107 = arith.addf %28, %106 : vector<256x128xf32>
    %108 = arith.truncf %107 : vector<256x128xf32> to vector<256x128xbf16>
    %cst_41 = arith.constant 0.000000e+00 : f32
    %109 = arith.truncf %cst_41 : f32 to bf16
    %110 = vector.broadcast %109 : bf16 to vector<256x128xbf16>
    %111 = arith.select %18, %108, %110 : vector<256x128xi1>, vector<256x128xbf16>
    %cst_42 = arith.constant 0.000000e+00 : f32
    %112 = arith.truncf %cst_42 : f32 to bf16
    %113 = vector.broadcast %112 : bf16 to vector<256x128xbf16>
    %114 = arith.select %20, %108, %113 : vector<256x128xi1>, vector<256x128xbf16>
    %cst_43 = arith.constant 0.000000e+00 : bf16
    %115 = vector.broadcast %cst_43 : bf16 to vector<17x128xbf16>
    %116 = vector.extract_strided_slice %111 {offsets = [0, 0], sizes = [239, 128], strides = [1, 1]} : vector<256x128xbf16> to vector<239x128xbf16>
    %117 = tpu.concatenate %115, %116 in 0 : vector<17x128xbf16>, vector<239x128xbf16> -> vector<256x128xbf16>
    %cst_44 = arith.constant 0.000000e+00 : bf16
    %118 = vector.broadcast %cst_44 : bf16 to vector<16x128xbf16>
    %119 = vector.extract_strided_slice %108 {offsets = [0, 0], sizes = [240, 128], strides = [1, 1]} : vector<256x128xbf16> to vector<240x128xbf16>
    %120 = tpu.concatenate %118, %119 in 0 : vector<16x128xbf16>, vector<240x128xbf16> -> vector<256x128xbf16>
    %cst_45 = arith.constant 0.000000e+00 : bf16
    %121 = vector.broadcast %cst_45 : bf16 to vector<15x128xbf16>
    %122 = vector.extract_strided_slice %114 {offsets = [0, 0], sizes = [241, 128], strides = [1, 1]} : vector<256x128xbf16> to vector<241x128xbf16>
    %123 = tpu.concatenate %121, %122 in 0 : vector<15x128xbf16>, vector<241x128xbf16> -> vector<256x128xbf16>
    %cst_46 = arith.constant 0.000000e+00 : bf16
    %124 = vector.broadcast %cst_46 : bf16 to vector<1x128xbf16>
    %125 = vector.extract_strided_slice %111 {offsets = [0, 0], sizes = [255, 128], strides = [1, 1]} : vector<256x128xbf16> to vector<255x128xbf16>
    %126 = tpu.concatenate %124, %125 in 0 : vector<1x128xbf16>, vector<255x128xbf16> -> vector<256x128xbf16>
    %127 = vector.extract_strided_slice %114 {offsets = [1, 0], sizes = [255, 128], strides = [1, 1]} : vector<256x128xbf16> to vector<255x128xbf16>
    %cst_47 = arith.constant 0.000000e+00 : bf16
    %128 = vector.broadcast %cst_47 : bf16 to vector<1x128xbf16>
    %129 = tpu.concatenate %127, %128 in 0 : vector<255x128xbf16>, vector<1x128xbf16> -> vector<256x128xbf16>
    %130 = vector.extract_strided_slice %111 {offsets = [15, 0], sizes = [241, 128], strides = [1, 1]} : vector<256x128xbf16> to vector<241x128xbf16>
    %cst_48 = arith.constant 0.000000e+00 : bf16
    %131 = vector.broadcast %cst_48 : bf16 to vector<15x128xbf16>
    %132 = tpu.concatenate %130, %131 in 0 : vector<241x128xbf16>, vector<15x128xbf16> -> vector<256x128xbf16>
    %133 = vector.extract_strided_slice %108 {offsets = [16, 0], sizes = [240, 128], strides = [1, 1]} : vector<256x128xbf16> to vector<240x128xbf16>
    %cst_49 = arith.constant 0.000000e+00 : bf16
    %134 = vector.broadcast %cst_49 : bf16 to vector<16x128xbf16>
    %135 = tpu.concatenate %133, %134 in 0 : vector<240x128xbf16>, vector<16x128xbf16> -> vector<256x128xbf16>
    %136 = vector.extract_strided_slice %114 {offsets = [17, 0], sizes = [239, 128], strides = [1, 1]} : vector<256x128xbf16> to vector<239x128xbf16>
    %cst_50 = arith.constant 0.000000e+00 : bf16
    %137 = vector.broadcast %cst_50 : bf16 to vector<17x128xbf16>
    %138 = tpu.concatenate %136, %137 in 0 : vector<239x128xbf16>, vector<17x128xbf16> -> vector<256x128xbf16>
    %139 = tpu.concatenate %117, %120, %123, %126, %108, %129, %132, %135, %138 in 1 : vector<256x128xbf16>, vector<256x128xbf16>, vector<256x128xbf16>, vector<256x128xbf16>, vector<256x128xbf16>, vector<256x128xbf16>, vector<256x128xbf16>, vector<256x128xbf16>, vector<256x128xbf16> -> vector<256x1152xbf16>
    %c0_51 = arith.constant 0 : index
    %c0_52 = arith.constant 0 : index
    %140 = vector.load %arg4[%c0_51, %c0_52] : memref<1152x128xbf16, #tpu.memory_space<vmem>>, vector<1152x128xbf16>
    %cst_53 = arith.constant dense<0.000000e+00> : vector<256x128xf32>
    %141 = tpu.matmul %139, %140, %cst_53 {dimension_numbers = #tpu.dot_dimension_numbers<[1], [0], [0], [1], [0, 0, 1, 1], [], []>} : vector<256x1152xbf16>, vector<1152x128xbf16>, vector<256x128xf32> -> vector<256x128xf32>
    %142 = vector.broadcast %29 : vector<1x128xf32> to vector<256x128xf32>
    %143 = arith.addf %141, %142 : vector<256x128xf32>
    %cst_54 = arith.constant 0.000000e+00 : f32
    %144 = vector.broadcast %cst_54 : f32 to vector<256x128xf32>
    %145 = arith.maximumf %143, %144 : vector<256x128xf32>
    %c0_55 = arith.constant 0 : index
    %c0_56 = arith.constant 0 : index
    %146 = vector.load %arg7[%c0_55, %c0_56] : memref<1x128xf32, #tpu.memory_space<vmem>>, vector<1x128xf32>
    %147 = arith.truncf %145 : vector<256x128xf32> to vector<256x128xbf16>
    %cst_57 = arith.constant 0.000000e+00 : f32
    %148 = arith.truncf %cst_57 : f32 to bf16
    %149 = vector.broadcast %148 : bf16 to vector<256x128xbf16>
    %150 = arith.select %18, %147, %149 : vector<256x128xi1>, vector<256x128xbf16>
    %cst_58 = arith.constant 0.000000e+00 : f32
    %151 = arith.truncf %cst_58 : f32 to bf16
    %152 = vector.broadcast %151 : bf16 to vector<256x128xbf16>
    %153 = arith.select %20, %147, %152 : vector<256x128xi1>, vector<256x128xbf16>
    %cst_59 = arith.constant 0.000000e+00 : bf16
    %154 = vector.broadcast %cst_59 : bf16 to vector<17x128xbf16>
    %155 = vector.extract_strided_slice %150 {offsets = [0, 0], sizes = [239, 128], strides = [1, 1]} : vector<256x128xbf16> to vector<239x128xbf16>
    %156 = tpu.concatenate %154, %155 in 0 : vector<17x128xbf16>, vector<239x128xbf16> -> vector<256x128xbf16>
    %cst_60 = arith.constant 0.000000e+00 : bf16
    %157 = vector.broadcast %cst_60 : bf16 to vector<16x128xbf16>
    %158 = vector.extract_strided_slice %147 {offsets = [0, 0], sizes = [240, 128], strides = [1, 1]} : vector<256x128xbf16> to vector<240x128xbf16>
    %159 = tpu.concatenate %157, %158 in 0 : vector<16x128xbf16>, vector<240x128xbf16> -> vector<256x128xbf16>
    %cst_61 = arith.constant 0.000000e+00 : bf16
    %160 = vector.broadcast %cst_61 : bf16 to vector<15x128xbf16>
    %161 = vector.extract_strided_slice %153 {offsets = [0, 0], sizes = [241, 128], strides = [1, 1]} : vector<256x128xbf16> to vector<241x128xbf16>
    %162 = tpu.concatenate %160, %161 in 0 : vector<15x128xbf16>, vector<241x128xbf16> -> vector<256x128xbf16>
    %cst_62 = arith.constant 0.000000e+00 : bf16
    %163 = vector.broadcast %cst_62 : bf16 to vector<1x128xbf16>
    %164 = vector.extract_strided_slice %150 {offsets = [0, 0], sizes = [255, 128], strides = [1, 1]} : vector<256x128xbf16> to vector<255x128xbf16>
    %165 = tpu.concatenate %163, %164 in 0 : vector<1x128xbf16>, vector<255x128xbf16> -> vector<256x128xbf16>
    %166 = vector.extract_strided_slice %153 {offsets = [1, 0], sizes = [255, 128], strides = [1, 1]} : vector<256x128xbf16> to vector<255x128xbf16>
    %cst_63 = arith.constant 0.000000e+00 : bf16
    %167 = vector.broadcast %cst_63 : bf16 to vector<1x128xbf16>
    %168 = tpu.concatenate %166, %167 in 0 : vector<255x128xbf16>, vector<1x128xbf16> -> vector<256x128xbf16>
    %169 = vector.extract_strided_slice %150 {offsets = [15, 0], sizes = [241, 128], strides = [1, 1]} : vector<256x128xbf16> to vector<241x128xbf16>
    %cst_64 = arith.constant 0.000000e+00 : bf16
    %170 = vector.broadcast %cst_64 : bf16 to vector<15x128xbf16>
    %171 = tpu.concatenate %169, %170 in 0 : vector<241x128xbf16>, vector<15x128xbf16> -> vector<256x128xbf16>
    %172 = vector.extract_strided_slice %147 {offsets = [16, 0], sizes = [240, 128], strides = [1, 1]} : vector<256x128xbf16> to vector<240x128xbf16>
    %cst_65 = arith.constant 0.000000e+00 : bf16
    %173 = vector.broadcast %cst_65 : bf16 to vector<16x128xbf16>
    %174 = tpu.concatenate %172, %173 in 0 : vector<240x128xbf16>, vector<16x128xbf16> -> vector<256x128xbf16>
    %175 = vector.extract_strided_slice %153 {offsets = [17, 0], sizes = [239, 128], strides = [1, 1]} : vector<256x128xbf16> to vector<239x128xbf16>
    %cst_66 = arith.constant 0.000000e+00 : bf16
    %176 = vector.broadcast %cst_66 : bf16 to vector<17x128xbf16>
    %177 = tpu.concatenate %175, %176 in 0 : vector<239x128xbf16>, vector<17x128xbf16> -> vector<256x128xbf16>
    %178 = tpu.concatenate %156, %159, %162, %165, %147, %168, %171, %174, %177 in 1 : vector<256x128xbf16>, vector<256x128xbf16>, vector<256x128xbf16>, vector<256x128xbf16>, vector<256x128xbf16>, vector<256x128xbf16>, vector<256x128xbf16>, vector<256x128xbf16>, vector<256x128xbf16> -> vector<256x1152xbf16>
    %c0_67 = arith.constant 0 : index
    %c0_68 = arith.constant 0 : index
    %179 = vector.load %arg6[%c0_67, %c0_68] : memref<1152x128xbf16, #tpu.memory_space<vmem>>, vector<1152x128xbf16>
    %cst_69 = arith.constant dense<0.000000e+00> : vector<256x128xf32>
    %180 = tpu.matmul %178, %179, %cst_69 {dimension_numbers = #tpu.dot_dimension_numbers<[1], [0], [0], [1], [0, 0, 1, 1], [], []>} : vector<256x1152xbf16>, vector<1152x128xbf16>, vector<256x128xf32> -> vector<256x128xf32>
    %181 = vector.broadcast %146 : vector<1x128xf32> to vector<256x128xf32>
    %182 = arith.addf %180, %181 : vector<256x128xf32>
    %cst_70 = arith.constant 0.000000e+00 : f32
    %183 = vector.broadcast %cst_70 : f32 to vector<256x128xf32>
    %184 = arith.maximumf %182, %183 : vector<256x128xf32>
    %185 = arith.addf %145, %184 : vector<256x128xf32>
    %186 = arith.truncf %185 : vector<256x128xf32> to vector<256x128xbf16>
    %cst_71 = arith.constant 0.000000e+00 : f32
    %187 = arith.truncf %cst_71 : f32 to bf16
    %188 = vector.broadcast %187 : bf16 to vector<256x128xbf16>
    %189 = arith.select %18, %186, %188 : vector<256x128xi1>, vector<256x128xbf16>
    %cst_72 = arith.constant 0.000000e+00 : f32
    %190 = arith.truncf %cst_72 : f32 to bf16
    %191 = vector.broadcast %190 : bf16 to vector<256x128xbf16>
    %192 = arith.select %20, %186, %191 : vector<256x128xi1>, vector<256x128xbf16>
    %cst_73 = arith.constant 0.000000e+00 : bf16
    %193 = vector.broadcast %cst_73 : bf16 to vector<17x128xbf16>
    %194 = vector.extract_strided_slice %189 {offsets = [0, 0], sizes = [239, 128], strides = [1, 1]} : vector<256x128xbf16> to vector<239x128xbf16>
    %195 = tpu.concatenate %193, %194 in 0 : vector<17x128xbf16>, vector<239x128xbf16> -> vector<256x128xbf16>
    %cst_74 = arith.constant 0.000000e+00 : bf16
    %196 = vector.broadcast %cst_74 : bf16 to vector<16x128xbf16>
    %197 = vector.extract_strided_slice %186 {offsets = [0, 0], sizes = [240, 128], strides = [1, 1]} : vector<256x128xbf16> to vector<240x128xbf16>
    %198 = tpu.concatenate %196, %197 in 0 : vector<16x128xbf16>, vector<240x128xbf16> -> vector<256x128xbf16>
    %cst_75 = arith.constant 0.000000e+00 : bf16
    %199 = vector.broadcast %cst_75 : bf16 to vector<15x128xbf16>
    %200 = vector.extract_strided_slice %192 {offsets = [0, 0], sizes = [241, 128], strides = [1, 1]} : vector<256x128xbf16> to vector<241x128xbf16>
    %201 = tpu.concatenate %199, %200 in 0 : vector<15x128xbf16>, vector<241x128xbf16> -> vector<256x128xbf16>
    %cst_76 = arith.constant 0.000000e+00 : bf16
    %202 = vector.broadcast %cst_76 : bf16 to vector<1x128xbf16>
    %203 = vector.extract_strided_slice %189 {offsets = [0, 0], sizes = [255, 128], strides = [1, 1]} : vector<256x128xbf16> to vector<255x128xbf16>
    %204 = tpu.concatenate %202, %203 in 0 : vector<1x128xbf16>, vector<255x128xbf16> -> vector<256x128xbf16>
    %205 = vector.extract_strided_slice %192 {offsets = [1, 0], sizes = [255, 128], strides = [1, 1]} : vector<256x128xbf16> to vector<255x128xbf16>
    %cst_77 = arith.constant 0.000000e+00 : bf16
    %206 = vector.broadcast %cst_77 : bf16 to vector<1x128xbf16>
    %207 = tpu.concatenate %205, %206 in 0 : vector<255x128xbf16>, vector<1x128xbf16> -> vector<256x128xbf16>
    %208 = vector.extract_strided_slice %189 {offsets = [15, 0], sizes = [241, 128], strides = [1, 1]} : vector<256x128xbf16> to vector<241x128xbf16>
    %cst_78 = arith.constant 0.000000e+00 : bf16
    %209 = vector.broadcast %cst_78 : bf16 to vector<15x128xbf16>
    %210 = tpu.concatenate %208, %209 in 0 : vector<241x128xbf16>, vector<15x128xbf16> -> vector<256x128xbf16>
    %211 = vector.extract_strided_slice %186 {offsets = [16, 0], sizes = [240, 128], strides = [1, 1]} : vector<256x128xbf16> to vector<240x128xbf16>
    %cst_79 = arith.constant 0.000000e+00 : bf16
    %212 = vector.broadcast %cst_79 : bf16 to vector<16x128xbf16>
    %213 = tpu.concatenate %211, %212 in 0 : vector<240x128xbf16>, vector<16x128xbf16> -> vector<256x128xbf16>
    %214 = vector.extract_strided_slice %192 {offsets = [17, 0], sizes = [239, 128], strides = [1, 1]} : vector<256x128xbf16> to vector<239x128xbf16>
    %cst_80 = arith.constant 0.000000e+00 : bf16
    %215 = vector.broadcast %cst_80 : bf16 to vector<17x128xbf16>
    %216 = tpu.concatenate %214, %215 in 0 : vector<239x128xbf16>, vector<17x128xbf16> -> vector<256x128xbf16>
    %217 = tpu.concatenate %195, %198, %201, %204, %186, %207, %210, %213, %216 in 1 : vector<256x128xbf16>, vector<256x128xbf16>, vector<256x128xbf16>, vector<256x128xbf16>, vector<256x128xbf16>, vector<256x128xbf16>, vector<256x128xbf16>, vector<256x128xbf16>, vector<256x128xbf16> -> vector<256x1152xbf16>
    %c0_81 = arith.constant 0 : index
    %c0_82 = arith.constant 0 : index
    %218 = vector.load %arg6[%c0_81, %c0_82] : memref<1152x128xbf16, #tpu.memory_space<vmem>>, vector<1152x128xbf16>
    %cst_83 = arith.constant dense<0.000000e+00> : vector<256x128xf32>
    %219 = tpu.matmul %217, %218, %cst_83 {dimension_numbers = #tpu.dot_dimension_numbers<[1], [0], [0], [1], [0, 0, 1, 1], [], []>} : vector<256x1152xbf16>, vector<1152x128xbf16>, vector<256x128xf32> -> vector<256x128xf32>
    %220 = vector.broadcast %146 : vector<1x128xf32> to vector<256x128xf32>
    %221 = arith.addf %219, %220 : vector<256x128xf32>
    %cst_84 = arith.constant 0.000000e+00 : f32
    %222 = vector.broadcast %cst_84 : f32 to vector<256x128xf32>
    %223 = arith.maximumf %221, %222 : vector<256x128xf32>
    %224 = arith.addf %145, %223 : vector<256x128xf32>
    %225 = arith.truncf %224 : vector<256x128xf32> to vector<256x128xbf16>
    %cst_85 = arith.constant 0.000000e+00 : f32
    %226 = arith.truncf %cst_85 : f32 to bf16
    %227 = vector.broadcast %226 : bf16 to vector<256x128xbf16>
    %228 = arith.select %18, %225, %227 : vector<256x128xi1>, vector<256x128xbf16>
    %cst_86 = arith.constant 0.000000e+00 : f32
    %229 = arith.truncf %cst_86 : f32 to bf16
    %230 = vector.broadcast %229 : bf16 to vector<256x128xbf16>
    %231 = arith.select %20, %225, %230 : vector<256x128xi1>, vector<256x128xbf16>
    %cst_87 = arith.constant 0.000000e+00 : bf16
    %232 = vector.broadcast %cst_87 : bf16 to vector<17x128xbf16>
    %233 = vector.extract_strided_slice %228 {offsets = [0, 0], sizes = [239, 128], strides = [1, 1]} : vector<256x128xbf16> to vector<239x128xbf16>
    %234 = tpu.concatenate %232, %233 in 0 : vector<17x128xbf16>, vector<239x128xbf16> -> vector<256x128xbf16>
    %cst_88 = arith.constant 0.000000e+00 : bf16
    %235 = vector.broadcast %cst_88 : bf16 to vector<16x128xbf16>
    %236 = vector.extract_strided_slice %225 {offsets = [0, 0], sizes = [240, 128], strides = [1, 1]} : vector<256x128xbf16> to vector<240x128xbf16>
    %237 = tpu.concatenate %235, %236 in 0 : vector<16x128xbf16>, vector<240x128xbf16> -> vector<256x128xbf16>
    %cst_89 = arith.constant 0.000000e+00 : bf16
    %238 = vector.broadcast %cst_89 : bf16 to vector<15x128xbf16>
    %239 = vector.extract_strided_slice %231 {offsets = [0, 0], sizes = [241, 128], strides = [1, 1]} : vector<256x128xbf16> to vector<241x128xbf16>
    %240 = tpu.concatenate %238, %239 in 0 : vector<15x128xbf16>, vector<241x128xbf16> -> vector<256x128xbf16>
    %cst_90 = arith.constant 0.000000e+00 : bf16
    %241 = vector.broadcast %cst_90 : bf16 to vector<1x128xbf16>
    %242 = vector.extract_strided_slice %228 {offsets = [0, 0], sizes = [255, 128], strides = [1, 1]} : vector<256x128xbf16> to vector<255x128xbf16>
    %243 = tpu.concatenate %241, %242 in 0 : vector<1x128xbf16>, vector<255x128xbf16> -> vector<256x128xbf16>
    %244 = vector.extract_strided_slice %231 {offsets = [1, 0], sizes = [255, 128], strides = [1, 1]} : vector<256x128xbf16> to vector<255x128xbf16>
    %cst_91 = arith.constant 0.000000e+00 : bf16
    %245 = vector.broadcast %cst_91 : bf16 to vector<1x128xbf16>
    %246 = tpu.concatenate %244, %245 in 0 : vector<255x128xbf16>, vector<1x128xbf16> -> vector<256x128xbf16>
    %247 = vector.extract_strided_slice %228 {offsets = [15, 0], sizes = [241, 128], strides = [1, 1]} : vector<256x128xbf16> to vector<241x128xbf16>
    %cst_92 = arith.constant 0.000000e+00 : bf16
    %248 = vector.broadcast %cst_92 : bf16 to vector<15x128xbf16>
    %249 = tpu.concatenate %247, %248 in 0 : vector<241x128xbf16>, vector<15x128xbf16> -> vector<256x128xbf16>
    %250 = vector.extract_strided_slice %225 {offsets = [16, 0], sizes = [240, 128], strides = [1, 1]} : vector<256x128xbf16> to vector<240x128xbf16>
    %cst_93 = arith.constant 0.000000e+00 : bf16
    %251 = vector.broadcast %cst_93 : bf16 to vector<16x128xbf16>
    %252 = tpu.concatenate %250, %251 in 0 : vector<240x128xbf16>, vector<16x128xbf16> -> vector<256x128xbf16>
    %253 = vector.extract_strided_slice %231 {offsets = [17, 0], sizes = [239, 128], strides = [1, 1]} : vector<256x128xbf16> to vector<239x128xbf16>
    %cst_94 = arith.constant 0.000000e+00 : bf16
    %254 = vector.broadcast %cst_94 : bf16 to vector<17x128xbf16>
    %255 = tpu.concatenate %253, %254 in 0 : vector<239x128xbf16>, vector<17x128xbf16> -> vector<256x128xbf16>
    %256 = tpu.concatenate %234, %237, %240, %243, %225, %246, %249, %252, %255 in 1 : vector<256x128xbf16>, vector<256x128xbf16>, vector<256x128xbf16>, vector<256x128xbf16>, vector<256x128xbf16>, vector<256x128xbf16>, vector<256x128xbf16>, vector<256x128xbf16>, vector<256x128xbf16> -> vector<256x1152xbf16>
    %c0_95 = arith.constant 0 : index
    %c0_96 = arith.constant 0 : index
    %257 = vector.load %arg6[%c0_95, %c0_96] : memref<1152x128xbf16, #tpu.memory_space<vmem>>, vector<1152x128xbf16>
    %cst_97 = arith.constant dense<0.000000e+00> : vector<256x128xf32>
    %258 = tpu.matmul %256, %257, %cst_97 {dimension_numbers = #tpu.dot_dimension_numbers<[1], [0], [0], [1], [0, 0, 1, 1], [], []>} : vector<256x1152xbf16>, vector<1152x128xbf16>, vector<256x128xf32> -> vector<256x128xf32>
    %259 = vector.broadcast %146 : vector<1x128xf32> to vector<256x128xf32>
    %260 = arith.addf %258, %259 : vector<256x128xf32>
    %cst_98 = arith.constant 0.000000e+00 : f32
    %261 = vector.broadcast %cst_98 : f32 to vector<256x128xf32>
    %262 = arith.maximumf %260, %261 : vector<256x128xf32>
    %263 = arith.addf %28, %262 : vector<256x128xf32>
    %264 = vector.shape_cast %263 : vector<256x128xf32> to vector<1x16x16x128xf32>
    %c0_99 = arith.constant 0 : index
    %c0_100 = arith.constant 0 : index
    %c0_101 = arith.constant 0 : index
    %c0_102 = arith.constant 0 : index
    %265 = vector.load %arg8[%c0_99, %c0_100, %c0_101, %c0_102] : memref<1x16x16x128xf32, #tpu.memory_space<vmem>>, vector<1x16x16x128xf32>
    tpu.vector_store %arg8[%c0_99, %c0_100, %c0_101, %c0_102], %264 {strides = array<i32>} : memref<1x16x16x128xf32, #tpu.memory_space<vmem>>, vector<1x16x16x128xf32>,
    return
  }
  func.func @transform_0(%arg0: i32) -> (i32, i32, i32, i32) {
    %c0_i32 = arith.constant 0 : i32
    %c0_i32_0 = arith.constant 0 : i32
    %c0_i32_1 = arith.constant 0 : i32
    %c0_i32_2 = arith.constant 0 : i32
    return %arg0, %c0_i32, %c0_i32_0, %c0_i32_1 : i32, i32, i32, i32
  }
  func.func @transform_1(%arg0: i32) -> (i32, i32) {
    %c0_i32 = arith.constant 0 : i32
    %c0_i32_0 = arith.constant 0 : i32
    %c0_i32_1 = arith.constant 0 : i32
    return %c0_i32, %c0_i32_0 : i32, i32
  }
  func.func @transform_2(%arg0: i32) -> (i32, i32) {
    %c0_i32 = arith.constant 0 : i32
    %c0_i32_0 = arith.constant 0 : i32
    %c0_i32_1 = arith.constant 0 : i32
    return %c0_i32, %c0_i32_0 : i32, i32
  }
  func.func @transform_3(%arg0: i32) -> (i32, i32) {
    %c0_i32 = arith.constant 0 : i32
    %c0_i32_0 = arith.constant 0 : i32
    %c0_i32_1 = arith.constant 0 : i32
    return %c0_i32, %c0_i32_0 : i32, i32
  }
  func.func @transform_4(%arg0: i32) -> (i32, i32) {
    %c0_i32 = arith.constant 0 : i32
    %c0_i32_0 = arith.constant 0 : i32
    %c0_i32_1 = arith.constant 0 : i32
    return %c0_i32, %c0_i32_0 : i32, i32
  }
  func.func @transform_5(%arg0: i32) -> (i32, i32) {
    %c0_i32 = arith.constant 0 : i32
    %c0_i32_0 = arith.constant 0 : i32
    %c0_i32_1 = arith.constant 0 : i32
    return %c0_i32, %c0_i32_0 : i32, i32
  }
  func.func @transform_6(%arg0: i32) -> (i32, i32) {
    %c0_i32 = arith.constant 0 : i32
    %c0_i32_0 = arith.constant 0 : i32
    %c0_i32_1 = arith.constant 0 : i32
    return %c0_i32, %c0_i32_0 : i32, i32
  }
  func.func @transform_7(%arg0: i32) -> (i32, i32, i32, i32) {
    %c0_i32 = arith.constant 0 : i32
    %c0_i32_0 = arith.constant 0 : i32
    %c0_i32_1 = arith.constant 0 : i32
    %c0_i32_2 = arith.constant 0 : i32
    return %arg0, %c0_i32, %c0_i32_0, %c0_i32_1 : i32, i32, i32, i32
  }
}

</mosaic_0001>

<llo_original>
// kernel: rrcnn_block.1
$region0: #{rrcnn_block.1}
  #allocation0 [shape = 'u32[]', space=smem, size = 0x4, offset = 0x4, fixed_abs, tag = 'smem constant byte address 0x4 - core index']
  #allocation1 [shape = 'u32[144,128]{1,0:T(1,128)}', space=vmem, size = 0x12000, scoped, tag = 'internal scratch']
  %s0 = inlined_call_operand.vmem [shape: f32[2,16,16,128], index: 0, kind: input, shape index: {}]
  %s1 = inlined_call_operand.vmem [shape: bf16[128,128], index: 1, kind: input, shape index: {}]
  %s2 = inlined_call_operand.vmem [shape: f32[1,128], index: 2, kind: input, shape index: {}]
  %s3 = inlined_call_operand.vmem [shape: bf16[1152,128], index: 3, kind: input, shape index: {}]
  %s4 = inlined_call_operand.vmem [shape: f32[1,128], index: 4, kind: input, shape index: {}]
  %s5 = inlined_call_operand.vmem [shape: bf16[1152,128], index: 5, kind: input, shape index: {}]
  %s6 = inlined_call_operand.vmem [shape: f32[1,128], index: 6, kind: input, shape index: {}]
  %s7 = inlined_call_operand.vmem [shape: f32[2,16,16,128], index: 7, kind: output, shape index: {}]
  %s8 = sld [smem:[#allocation0]]
  $region61: #{rrcnn_block.1} parent=0
    _
  %s10 = ssub.s32 1, %s8
  %s11 = scalar_select 0, %s10, %s8
  loop: start=0, step=1, limit=4
  $region2: #{rrcnn_block.1} parent=0 // loop_pre_header
    _
  $region3: #{rrcnn_block.1} parent=0 // loop_header
    %s13 = sphi 0, %s17
    %p14 = scmp.ge.s32.totalorder %s13, 4
    %s23 = sphi 0, %s25
    %s26 = sphi 0, %s23
    %s27 = sphi 0, %s26
    %s43 = sphi 0, %s27
    %s47 = sphi 0, %s47
    %s49 = sphi 0, %s47
    %s50 = sphi 0, %s49
    %s64 = sphi 0, %s50
    %s68 = sphi 0, %s68
    %s70 = sphi 0, %s68
    %s71 = sphi 0, %s70
    %s85 = sphi 0, %s71
    %s89 = sphi 0, %s89
    %s91 = sphi 0, %s89
    %s92 = sphi 0, %s91
    %s106 = sphi 0, %s92
    %s110 = sphi 0, %s110
    %s112 = sphi 0, %s110
    %s113 = sphi 0, %s112
    %s127 = sphi 0, %s113
    %s131 = sphi 0, %s131
    %s133 = sphi 0, %s131
    %s134 = sphi 0, %s133
    %s148 = sphi 0, %s134
    %s152 = sphi 0, %s152
    %s154 = sphi 0, %s152
    %s155 = sphi 0, %s154
    %s169 = sphi 0, %s155
    %s175 = sphi 0, %s177
    %s178 = sphi 0, %s175
    %s179 = sphi 0, %s178
    %s195 = sphi 0, %s179
  $region4: #{rrcnn_block.1} parent=0 // loop_header_branch
    %16 = sbr.rel (%p14) target = $region8
  $region5: #{rrcnn_block.1} parent=0 // loop_body
    %s18 = ssub.s32 %s13, 1
    %s19 = ssub.s32 %s13, 2
    %s20 = sadd.s32 %s13, 1
    %s21 = ssub.s32 %s13, %s20
    %p22 = scmp.eq.s32.totalorder %s21, 0
    %s24 = sadd.s32 %s23, 1
    %s25 = scalar_select %p22, %s23, %s24
    %p28 = pneg %p22
    %p29 = scmp.eq.s32.totalorder %s13, 1
    %p30 = por %p28, %p29
    %p31 = scmp.ne.s32.totalorder %s23, %s26
    %p32 = scmp.eq.s32.totalorder %s13, 0
    %p33 = por %p31, %p32
    %p34 = scmp.ne.s32.totalorder %s23, %s26
    %p35 = scmp.eq.s32.totalorder %s18, 1
    %p36 = por %p34, %p35
    %p37 = scmp.ne.s32.totalorder %s26, %s27
    %p38 = scmp.eq.s32.totalorder %s18, 0
    %p39 = por %p37, %p38
    %p40 = scmp.ne.s32.totalorder %s26, %s27
    %p41 = scmp.eq.s32.totalorder %s19, 1
    %p42 = por %p40, %p41
    %p44 = scmp.ne.s32.totalorder %s27, %s43
    %p45 = scmp.eq.s32.totalorder %s19, 0
    %p46 = por %p44, %p45
    %s48 = sadd.s32 %s47, 1
    %p51 = scmp.eq.s32.totalorder %s13, 1
    %p52 = scmp.ne.s32.totalorder %s47, %s49
    %p53 = scmp.eq.s32.totalorder %s13, 0
    %p54 = por %p52, %p53
    %p55 = scmp.ne.s32.totalorder %s47, %s49
    %p56 = scmp.eq.s32.totalorder %s18, 1
    %p57 = por %p55, %p56
    %p58 = scmp.ne.s32.totalorder %s49, %s50
    %p59 = scmp.eq.s32.totalorder %s18, 0
    %p60 = por %p58, %p59
    %p61 = scmp.ne.s32.totalorder %s49, %s50
    %p62 = scmp.eq.s32.totalorder %s19, 1
    %p63 = por %p61, %p62
    %p65 = scmp.ne.s32.totalorder %s50, %s64
    %p66 = scmp.eq.s32.totalorder %s19, 0
    %p67 = por %p65, %p66
    %s69 = sadd.s32 %s68, 1
    %p72 = scmp.eq.s32.totalorder %s13, 1
    %p73 = scmp.ne.s32.totalorder %s68, %s70
    %p74 = scmp.eq.s32.totalorder %s13, 0
    %p75 = por %p73, %p74
    %p76 = scmp.ne.s32.totalorder %s68, %s70
    %p77 = scmp.eq.s32.totalorder %s18, 1
    %p78 = por %p76, %p77
    %p79 = scmp.ne.s32.totalorder %s70, %s71
    %p80 = scmp.eq.s32.totalorder %s18, 0
    %p81 = por %p79, %p80
    %p82 = scmp.ne.s32.totalorder %s70, %s71
    %p83 = scmp.eq.s32.totalorder %s19, 1
    %p84 = por %p82, %p83
    %p86 = scmp.ne.s32.totalorder %s71, %s85
    %p87 = scmp.eq.s32.totalorder %s19, 0
    %p88 = por %p86, %p87
    %s90 = sadd.s32 %s89, 1
    %p93 = scmp.eq.s32.totalorder %s13, 1
    %p94 = scmp.ne.s32.totalorder %s89, %s91
    %p95 = scmp.eq.s32.totalorder %s13, 0
    %p96 = por %p94, %p95
    %p97 = scmp.ne.s32.totalorder %s89, %s91
    %p98 = scmp.eq.s32.totalorder %s18, 1
    %p99 = por %p97, %p98
    %p100 = scmp.ne.s32.totalorder %s91, %s92
    %p101 = scmp.eq.s32.totalorder %s18, 0
    %p102 = por %p100, %p101
    %p103 = scmp.ne.s32.totalorder %s91, %s92
    %p104 = scmp.eq.s32.totalorder %s19, 1
    %p105 = por %p103, %p104
    %p107 = scmp.ne.s32.totalorder %s92, %s106
    %p108 = scmp.eq.s32.totalorder %s19, 0
    %p109 = por %p107, %p108
    %s111 = sadd.s32 %s110, 1
    %p114 = scmp.eq.s32.totalorder %s13, 1
    %p115 = scmp.ne.s32.totalorder %s110, %s112
    %p116 = scmp.eq.s32.totalorder %s13, 0
    %p117 = por %p115, %p116
    %p118 = scmp.ne.s32.totalorder %s110, %s112
    %p119 = scmp.eq.s32.totalorder %s18, 1
    %p120 = por %p118, %p119
    %p121 = scmp.ne.s32.totalorder %s112, %s113
    %p122 = scmp.eq.s32.totalorder %s18, 0
    %p123 = por %p121, %p122
    %p124 = scmp.ne.s32.totalorder %s112, %s113
    %p125 = scmp.eq.s32.totalorder %s19, 1
    %p126 = por %p124, %p125
    %p128 = scmp.ne.s32.totalorder %s113, %s127
    %p129 = scmp.eq.s32.totalorder %s19, 0
    %p130 = por %p128, %p129
    %s132 = sadd.s32 %s131, 1
    %p135 = scmp.eq.s32.totalorder %s13, 1
    %p136 = scmp.ne.s32.totalorder %s131, %s133
    %p137 = scmp.eq.s32.totalorder %s13, 0
    %p138 = por %p136, %p137
    %p139 = scmp.ne.s32.totalorder %s131, %s133
    %p140 = scmp.eq.s32.totalorder %s18, 1
    %p141 = por %p139, %p140
    %p142 = scmp.ne.s32.totalorder %s133, %s134
    %p143 = scmp.eq.s32.totalorder %s18, 0
    %p144 = por %p142, %p143
    %p145 = scmp.ne.s32.totalorder %s133, %s134
    %p146 = scmp.eq.s32.totalorder %s19, 1
    %p147 = por %p145, %p146
    %p149 = scmp.ne.s32.totalorder %s134, %s148
    %p150 = scmp.eq.s32.totalorder %s19, 0
    %p151 = por %p149, %p150
    %s153 = sadd.s32 %s152, 1
    %p156 = scmp.eq.s32.totalorder %s13, 1
    %p157 = scmp.ne.s32.totalorder %s152, %s154
    %p158 = scmp.eq.s32.totalorder %s13, 0
    %p159 = por %p157, %p158
    %p160 = scmp.ne.s32.totalorder %s152, %s154
    %p161 = scmp.eq.s32.totalorder %s18, 1
    %p162 = por %p160, %p161
    %p163 = scmp.ne.s32.totalorder %s154, %s155
    %p164 = scmp.eq.s32.totalorder %s18, 0
    %p165 = por %p163, %p164
    %p166 = scmp.ne.s32.totalorder %s154, %s155
    %p167 = scmp.eq.s32.totalorder %s19, 1
    %p168 = por %p166, %p167
    %p170 = scmp.ne.s32.totalorder %s155, %s169
    %p171 = scmp.eq.s32.totalorder %s19, 0
    %p172 = por %p170, %p171
    %s173 = ssub.s32 %s13, %s20
    %p174 = scmp.eq.s32.totalorder %s173, 0
    %s176 = sadd.s32 %s175, 1
    %s177 = scalar_select %p174, %s175, %s176
    %p180 = pneg %p174
    %p181 = scmp.eq.s32.totalorder %s13, 1
    %p182 = por %p180, %p181
    %p183 = scmp.ne.s32.totalorder %s175, %s178
    %p184 = scmp.eq.s32.totalorder %s13, 0
    %p185 = por %p183, %p184
    %p186 = scmp.ne.s32.totalorder %s175, %s178
    %p187 = scmp.eq.s32.totalorder %s18, 1
    %p188 = por %p186, %p187
    %p189 = scmp.ne.s32.totalorder %s178, %s179
    %p190 = scmp.eq.s32.totalorder %s18, 0
    %p191 = por %p189, %p190
    %p192 = scmp.ne.s32.totalorder %s178, %s179
    %p193 = scmp.eq.s32.totalorder %s19, 1
    %p194 = por %p192, %p193
    %p196 = scmp.ne.s32.totalorder %s179, %s195
    %p197 = scmp.eq.s32.totalorder %s19, 0
    %p198 = por %p196, %p197
    %p199 = scmp.le.s32.totalorder 1, %s13
    %p200 = scmp.lt.s32.totalorder %s13, 3
    %p201 = pnand %p199, %p200
    %p202 = pneg %p201
    // Predicated region
    $region9: #{rrcnn_block.1} parent=5 // pred_check
      _
    $region10: #{rrcnn_block.1} parent=5 // pred_check_branch
      %204 = sbr.rel (%p201) target = $region12
    $region11: #{rrcnn_block.1} parent=5 // pred_region
      %s205 = ssub.s32 %s13, 1
      // Predicated region
      $region13: #{rrcnn_block.1} parent=11 // pred_check
        %p206 = pneg %p60
      $region14: #{rrcnn_block.1} parent=11 // pred_check_branch
        %208 = sbr.rel (%p206) target = $region16
      $region15: #{rrcnn_block.1} parent=11 // pred_region
        _
      $region16: #{rrcnn_block.1} parent=11 // pred_fallthru
        _
      // Predicated region
      $region17: #{rrcnn_block.1} parent=11 // pred_check
        %p209 = pneg %p81
      $region18: #{rrcnn_block.1} parent=11 // pred_check_branch
        %211 = sbr.rel (%p209) target = $region20
      $region19: #{rrcnn_block.1} parent=11 // pred_region
        _
      $region20: #{rrcnn_block.1} parent=11 // pred_fallthru
        _
      // Predicated region
      $region21: #{rrcnn_block.1} parent=11 // pred_check
        %p212 = pneg %p102
      $region22: #{rrcnn_block.1} parent=11 // pred_check_branch
        %214 = sbr.rel (%p212) target = $region24
      $region23: #{rrcnn_block.1} parent=11 // pred_region
        _
      $region24: #{rrcnn_block.1} parent=11 // pred_fallthru
        _
      // Predicated region
      $region25: #{rrcnn_block.1} parent=11 // pred_check
        %p215 = pneg %p123
      $region26: #{rrcnn_block.1} parent=11 // pred_check_branch
        %217 = sbr.rel (%p215) target = $region28
      $region27: #{rrcnn_block.1} parent=11 // pred_region
        _
      $region28: #{rrcnn_block.1} parent=11 // pred_fallthru
        _
      // Predicated region
      $region29: #{rrcnn_block.1} parent=11 // pred_check
        %p218 = pneg %p144
      $region30: #{rrcnn_block.1} parent=11 // pred_check_branch
        %220 = sbr.rel (%p218) target = $region32
      $region31: #{rrcnn_block.1} parent=11 // pred_region
        _
      $region32: #{rrcnn_block.1} parent=11 // pred_fallthru
        _
      // Predicated region
      $region33: #{rrcnn_block.1} parent=11 // pred_check
        %p221 = pneg %p165
      $region34: #{rrcnn_block.1} parent=11 // pred_check_branch
        %223 = sbr.rel (%p221) target = $region36
      $region35: #{rrcnn_block.1} parent=11 // pred_region
        _
      $region36: #{rrcnn_block.1} parent=11 // pred_fallthru
        _
    $region12: #{rrcnn_block.1} parent=5 // pred_fallthru
      _
    %p224 = scmp.lt.s32.totalorder %s13, 2
    // Predicated region
    $region37: #{rrcnn_block.1} parent=5 // pred_check
      %p225 = pneg %p224
    $region38: #{rrcnn_block.1} parent=5 // pred_check_branch
      %227 = sbr.rel (%p225) target = $region40
    $region39: #{rrcnn_block.1} parent=5 // pred_region
      // Predicated region
      $region41: #{rrcnn_block.1} parent=39 // pred_check
        %p228 = pneg %p33
      $region42: #{rrcnn_block.1} parent=39 // pred_check_branch
        %230 = sbr.rel (%p228) target = $region44
      $region43: #{rrcnn_block.1} parent=39 // pred_region
        %p231 = scmp.lt.s32.totalorder %s13, 1
        %s232 = scalar_select %p231, %s13, 1
        %s233 = smul.addr %s232, 32
        %s234 = smul.addr %s233, 8
        %s235 = scalar_lea.vmem %s0, %s234
      $region44: #{rrcnn_block.1} parent=39 // pred_fallthru
        _
    $region40: #{rrcnn_block.1} parent=5 // pred_fallthru
      _
    %p236 = scmp.le.s32.totalorder 1, %s13
    %p237 = scmp.lt.s32.totalorder %s13, 3
    %p238 = pnand %p236, %p237
    %p239 = pneg %p238
    // Predicated region
    $region45: #{rrcnn_block.1} parent=5 // pred_check
      _
    $region46: #{rrcnn_block.1} parent=5 // pred_check_branch
      %241 = sbr.rel (%p238) target = $region48
    $region47: #{rrcnn_block.1} parent=5 // pred_region
      %s242 = ssub.s32 %s13, 1
      %p243 = scmp.lt.s32.totalorder %s18, 1
      %s244 = scalar_select %p243, %s18, 1
      %s245 = smul.addr %s244, 32
      %s246 = smul.addr %s245, 8
      %s247 = scalar_lea.vmem %s0, %s246
      %p248 = pneg %p39
      %p249 = pneg %p36
      %p250 = pneg %p60
      %p251 = pneg %p57
      %p252 = pneg %p81
      %p253 = pneg %p78
      %p254 = pneg %p102
      %p255 = pneg %p99
      %p256 = pneg %p123
      %p257 = pneg %p120
      %p258 = pneg %p144
      %p259 = pneg %p141
      %p260 = pneg %p165
      %p261 = pneg %p162
      %p262 = pneg %p191
      %p263 = pneg %p188
      %p264 = scmp.lt.s32.totalorder %s18, 1
      %s265 = scalar_select %p264, %s18, 1
      %s266 = smul.addr %s265, 32
      %s267 = smul.addr %s266, 8
      %s268 = scalar_lea.vmem %s7, %s267
      %p269 = scmp.lt.s32.totalorder %s18, 1
      %s270 = scalar_select %p269, %s18, 1
      %s271 = smul.addr %s270, 32
      %s272 = smul.addr %s271, 8
      %s273 = scalar_lea.vmem %s0, %s272
      %p274 = scmp.lt.s32.totalorder %s18, 1
      %s275 = scalar_select %p274, %s18, 1
      %s276 = smul.addr %s275, 32
      %s277 = smul.addr %s276, 8
      %s278 = scalar_lea.vmem %s7, %s277
      %v282 = vlaneseq
      %v283 = vshrl.u32 %v282, 7
      %v284 = vadd.s32 %v283, 8
      %v285 = vadd.s32 %v283, 16
      %v286 = vadd.s32 %v283, 24
      %v287 = vadd.s32 %v283, 32
      %v288 = vadd.s32 %v283, 40
      %v289 = vadd.s32 %v283, 48
      %v290 = vadd.s32 %v283, 56
      %v291 = vadd.s32 %v283, 64
      %v292 = vadd.s32 %v283, 72
      %v293 = vadd.s32 %v283, 80
      %v294 = vadd.s32 %v283, 88
      %v295 = vadd.s32 %v283, 96
      %v296 = vadd.s32 %v283, 104
      %v297 = vadd.s32 %v283, 112
      %v298 = vadd.s32 %v283, 120
      %v299 = vadd.s32 %v283, 128
      %v300 = vadd.s32 %v283, 136
      %v301 = vadd.s32 %v283, 144
      %v302 = vadd.s32 %v283, 152
      %v303 = vadd.s32 %v283, 160
      %v304 = vadd.s32 %v283, 168
      %v305 = vadd.s32 %v283, 176
      %v306 = vadd.s32 %v283, 184
      %v307 = vadd.s32 %v283, 192
      %v308 = vadd.s32 %v283, 200
      %v309 = vadd.s32 %v283, 208
      %v310 = vadd.s32 %v283, 216
      %v311 = vadd.s32 %v283, 224
      %v312 = vadd.s32 %v283, 232
      %v313 = vadd.s32 %v283, 240
      %v314 = vadd.s32 %v283, 248
      %vm315 = vcmp.lt.s32.totalorder %v283, 0
      %v316 = vsub.s32 0, %v283
      %v317 = vsel %vm315, %v316, %v283
      %v318 = vshrl.u32 %v317, 4
      %v319 = vand.u32 %v317, 15
      %v320 = vsub.s32 0, %v319
      %v321 = vsel %vm315, %v320, %v319
      %vm322 = vcmp.lt.s32.totalorder %v284, 0
      %v323 = vsub.s32 0, %v284
      %v324 = vsel %vm322, %v323, %v284
      %v325 = vshrl.u32 %v324, 4
      %v326 = vand.u32 %v324, 15
      %v327 = vsub.s32 0, %v326
      %v328 = vsel %vm322, %v327, %v326
      %vm329 = vcmp.lt.s32.totalorder %v285, 0
      %v330 = vsub.s32 0, %v285
      %v331 = vsel %vm329, %v330, %v285
      %v332 = vshrl.u32 %v331, 4
      %v333 = vand.u32 %v331, 15
      %v334 = vsub.s32 0, %v333
      %v335 = vsel %vm329, %v334, %v333
      %vm336 = vcmp.lt.s32.totalorder %v286, 0
      %v337 = vsub.s32 0, %v286
      %v338 = vsel %vm336, %v337, %v286
      %v339 = vshrl.u32 %v338, 4
      %v340 = vand.u32 %v338, 15
      %v341 = vsub.s32 0, %v340
      %v342 = vsel %vm336, %v341, %v340
      %vm343 = vcmp.lt.s32.totalorder %v287, 0
      %v344 = vsub.s32 0, %v287
      %v345 = vsel %vm343, %v344, %v287
      %v346 = vshrl.u32 %v345, 4
      %v347 = vand.u32 %v345, 15
      %v348 = vsub.s32 0, %v347
      %v349 = vsel %vm343, %v348, %v347
      %vm350 = vcmp.lt.s32.totalorder %v288, 0
      %v351 = vsub.s32 0, %v288
      %v352 = vsel %vm350, %v351, %v288
      %v353 = vshrl.u32 %v352, 4
      %v354 = vand.u32 %v352, 15
      %v355 = vsub.s32 0, %v354
      %v356 = vsel %vm350, %v355, %v354
      %vm357 = vcmp.lt.s32.totalorder %v289, 0
      %v358 = vsub.s32 0, %v289
      %v359 = vsel %vm357, %v358, %v289
      %v360 = vshrl.u32 %v359, 4
      %v361 = vand.u32 %v359, 15
      %v362 = vsub.s32 0, %v361
      %v363 = vsel %vm357, %v362, %v361
      %vm364 = vcmp.lt.s32.totalorder %v290, 0
      %v365 = vsub.s32 0, %v290
      %v366 = vsel %vm364, %v365, %v290
      %v367 = vshrl.u32 %v366, 4
      %v368 = vand.u32 %v366, 15
      %v369 = vsub.s32 0, %v368
      %v370 = vsel %vm364, %v369, %v368
      %vm371 = vcmp.lt.s32.totalorder %v291, 0
      %v372 = vsub.s32 0, %v291
      %v373 = vsel %vm371, %v372, %v291
      %v374 = vshrl.u32 %v373, 4
      %v375 = vand.u32 %v373, 15
      %v376 = vsub.s32 0, %v375
      %v377 = vsel %vm371, %v376, %v375
      %vm378 = vcmp.lt.s32.totalorder %v292, 0
      %v379 = vsub.s32 0, %v292
      %v380 = vsel %vm378, %v379, %v292
      %v381 = vshrl.u32 %v380, 4
      %v382 = vand.u32 %v380, 15
      %v383 = vsub.s32 0, %v382
      %v384 = vsel %vm378, %v383, %v382
      %vm385 = vcmp.lt.s32.totalorder %v293, 0
      %v386 = vsub.s32 0, %v293
      %v387 = vsel %vm385, %v386, %v293
      %v388 = vshrl.u32 %v387, 4
      %v389 = vand.u32 %v387, 15
      %v390 = vsub.s32 0, %v389
      %v391 = vsel %vm385, %v390, %v389
      %vm392 = vcmp.lt.s32.totalorder %v294, 0
      %v393 = vsub.s32 0, %v294
      %v394 = vsel %vm392, %v393, %v294
      %v395 = vshrl.u32 %v394, 4
      %v396 = vand.u32 %v394, 15
      %v397 = vsub.s32 0, %v396
      %v398 = vsel %vm392, %v397, %v396
      %vm399 = vcmp.lt.s32.totalorder %v295, 0
      %v400 = vsub.s32 0, %v295
      %v401 = vsel %vm399, %v400, %v295
      %v402 = vshrl.u32 %v401, 4
      %v403 = vand.u32 %v401, 15
      %v404 = vsub.s32 0, %v403
      %v405 = vsel %vm399, %v404, %v403
      %vm406 = vcmp.lt.s32.totalorder %v296, 0
      %v407 = vsub.s32 0, %v296
      %v408 = vsel %vm406, %v407, %v296
      %v409 = vshrl.u32 %v408, 4
      %v410 = vand.u32 %v408, 15
      %v411 = vsub.s32 0, %v410
      %v412 = vsel %vm406, %v411, %v410
      %vm413 = vcmp.lt.s32.totalorder %v297, 0
      %v414 = vsub.s32 0, %v297
      %v415 = vsel %vm413, %v414, %v297
      %v416 = vshrl.u32 %v415, 4
      %v417 = vand.u32 %v415, 15
      %v418 = vsub.s32 0, %v417
      %v419 = vsel %vm413, %v418, %v417
      %vm420 = vcmp.lt.s32.totalorder %v298, 0
      %v421 = vsub.s32 0, %v298
      %v422 = vsel %vm420, %v421, %v298
      %v423 = vshrl.u32 %v422, 4
      %v424 = vand.u32 %v422, 15
      %v425 = vsub.s32 0, %v424
      %v426 = vsel %vm420, %v425, %v424
      %vm427 = vcmp.lt.s32.totalorder %v299, 0
      %v428 = vsub.s32 0, %v299
      %v429 = vsel %vm427, %v428, %v299
      %v430 = vshrl.u32 %v429, 4
      %v431 = vand.u32 %v429, 15
      %v432 = vsub.s32 0, %v431
      %v433 = vsel %vm427, %v432, %v431
      %vm434 = vcmp.lt.s32.totalorder %v300, 0
      %v435 = vsub.s32 0, %v300
      %v436 = vsel %vm434, %v435, %v300
      %v437 = vshrl.u32 %v436, 4
      %v438 = vand.u32 %v436, 15
      %v439 = vsub.s32 0, %v438
      %v440 = vsel %vm434, %v439, %v438
      %vm441 = vcmp.lt.s32.totalorder %v301, 0
      %v442 = vsub.s32 0, %v301
      %v443 = vsel %vm441, %v442, %v301
      %v444 = vshrl.u32 %v443, 4
      %v445 = vand.u32 %v443, 15
      %v446 = vsub.s32 0, %v445
      %v447 = vsel %vm441, %v446, %v445
      %vm448 = vcmp.lt.s32.totalorder %v302, 0
      %v449 = vsub.s32 0, %v302
      %v450 = vsel %vm448, %v449, %v302
      %v451 = vshrl.u32 %v450, 4
      %v452 = vand.u32 %v450, 15
      %v453 = vsub.s32 0, %v452
      %v454 = vsel %vm448, %v453, %v452
      %vm455 = vcmp.lt.s32.totalorder %v303, 0
      %v456 = vsub.s32 0, %v303
      %v457 = vsel %vm455, %v456, %v303
      %v458 = vshrl.u32 %v457, 4
      %v459 = vand.u32 %v457, 15
      %v460 = vsub.s32 0, %v459
      %v461 = vsel %vm455, %v460, %v459
      %vm462 = vcmp.lt.s32.totalorder %v304, 0
      %v463 = vsub.s32 0, %v304
      %v464 = vsel %vm462, %v463, %v304
      %v465 = vshrl.u32 %v464, 4
      %v466 = vand.u32 %v464, 15
      %v467 = vsub.s32 0, %v466
      %v468 = vsel %vm462, %v467, %v466
      %vm469 = vcmp.lt.s32.totalorder %v305, 0
      %v470 = vsub.s32 0, %v305
      %v471 = vsel %vm469, %v470, %v305
      %v472 = vshrl.u32 %v471, 4
      %v473 = vand.u32 %v471, 15
      %v474 = vsub.s32 0, %v473
      %v475 = vsel %vm469, %v474, %v473
      %vm476 = vcmp.lt.s32.totalorder %v306, 0
      %v477 = vsub.s32 0, %v306
      %v478 = vsel %vm476, %v477, %v306
      %v479 = vshrl.u32 %v478, 4
      %v480 = vand.u32 %v478, 15
      %v481 = vsub.s32 0, %v480
      %v482 = vsel %vm476, %v481, %v480
      %vm483 = vcmp.lt.s32.totalorder %v307, 0
      %v484 = vsub.s32 0, %v307
      %v485 = vsel %vm483, %v484, %v307
      %v486 = vshrl.u32 %v485, 4
      %v487 = vand.u32 %v485, 15
      %v488 = vsub.s32 0, %v487
      %v489 = vsel %vm483, %v488, %v487
      %vm490 = vcmp.lt.s32.totalorder %v308, 0
      %v491 = vsub.s32 0, %v308
      %v492 = vsel %vm490, %v491, %v308
      %v493 = vshrl.u32 %v492, 4
      %v494 = vand.u32 %v492, 15
      %v495 = vsub.s32 0, %v494
      %v496 = vsel %vm490, %v495, %v494
      %vm497 = vcmp.lt.s32.totalorder %v309, 0
      %v498 = vsub.s32 0, %v309
      %v499 = vsel %vm497, %v498, %v309
      %v500 = vshrl.u32 %v499, 4
      %v501 = vand.u32 %v499, 15
      %v502 = vsub.s32 0, %v501
      %v503 = vsel %vm497, %v502, %v501
      %vm504 = vcmp.lt.s32.totalorder %v310, 0
      %v505 = vsub.s32 0, %v310
      %v506 = vsel %vm504, %v505, %v310
      %v507 = vshrl.u32 %v506, 4
      %v508 = vand.u32 %v506, 15
      %v509 = vsub.s32 0, %v508
      %v510 = vsel %vm504, %v509, %v508
      %vm511 = vcmp.lt.s32.totalorder %v311, 0
      %v512 = vsub.s32 0, %v311
      %v513 = vsel %vm511, %v512, %v311
      %v514 = vshrl.u32 %v513, 4
      %v515 = vand.u32 %v513, 15
      %v516 = vsub.s32 0, %v515
      %v517 = vsel %vm511, %v516, %v515
      %vm518 = vcmp.lt.s32.totalorder %v312, 0
      %v519 = vsub.s32 0, %v312
      %v520 = vsel %vm518, %v519, %v312
      %v521 = vshrl.u32 %v520, 4
      %v522 = vand.u32 %v520, 15
      %v523 = vsub.s32 0, %v522
      %v524 = vsel %vm518, %v523, %v522
      %vm525 = vcmp.lt.s32.totalorder %v313, 0
      %v526 = vsub.s32 0, %v313
      %v527 = vsel %vm525, %v526, %v313
      %v528 = vshrl.u32 %v527, 4
      %v529 = vand.u32 %v527, 15
      %v530 = vsub.s32 0, %v529
      %v531 = vsel %vm525, %v530, %v529
      %vm532 = vcmp.lt.s32.totalorder %v314, 0
      %v533 = vsub.s32 0, %v314
      %v534 = vsel %vm532, %v533, %v314
      %v535 = vshrl.u32 %v534, 4
      %v536 = vand.u32 %v534, 15
      %v537 = vsub.s32 0, %v536
      %v538 = vsel %vm532, %v537, %v536
      %vm539 = vcmp.ne.s32.totalorder %v321, 0
      %vm540 = vcmp.ne.s32.totalorder %v328, 0
      %vm541 = vcmp.ne.s32.totalorder %v335, 0
      %vm542 = vcmp.ne.s32.totalorder %v342, 0
      %vm543 = vcmp.ne.s32.totalorder %v349, 0
      %vm544 = vcmp.ne.s32.totalorder %v356, 0
      %vm545 = vcmp.ne.s32.totalorder %v363, 0
      %vm546 = vcmp.ne.s32.totalorder %v370, 0
      %vm547 = vcmp.ne.s32.totalorder %v377, 0
      %vm548 = vcmp.ne.s32.totalorder %v384, 0
      %vm549 = vcmp.ne.s32.totalorder %v391, 0
      %vm550 = vcmp.ne.s32.totalorder %v398, 0
      %vm551 = vcmp.ne.s32.totalorder %v405, 0
      %vm552 = vcmp.ne.s32.totalorder %v412, 0
      %vm553 = vcmp.ne.s32.totalorder %v419, 0
      %vm554 = vcmp.ne.s32.totalorder %v426, 0
      %vm555 = vcmp.ne.s32.totalorder %v433, 0
      %vm556 = vcmp.ne.s32.totalorder %v440, 0
      %vm557 = vcmp.ne.s32.totalorder %v447, 0
      %vm558 = vcmp.ne.s32.totalorder %v454, 0
      %vm559 = vcmp.ne.s32.totalorder %v461, 0
      %vm560 = vcmp.ne.s32.totalorder %v468, 0
      %vm561 = vcmp.ne.s32.totalorder %v475, 0
      %vm562 = vcmp.ne.s32.totalorder %v482, 0
      %vm563 = vcmp.ne.s32.totalorder %v489, 0
      %vm564 = vcmp.ne.s32.totalorder %v496, 0
      %vm565 = vcmp.ne.s32.totalorder %v503, 0
      %vm566 = vcmp.ne.s32.totalorder %v510, 0
      %vm567 = vcmp.ne.s32.totalorder %v517, 0
      %vm568 = vcmp.ne.s32.totalorder %v524, 0
      %vm569 = vcmp.ne.s32.totalorder %v531, 0
      %vm570 = vcmp.ne.s32.totalorder %v538, 0
      %vm571 = vcmp.lt.s32.totalorder %v321, 0
      %vm572 = vcmp.lt.s32.totalorder %v328, 0
      %vm573 = vcmp.lt.s32.totalorder %v335, 0
      %vm574 = vcmp.lt.s32.totalorder %v342, 0
      %vm575 = vcmp.lt.s32.totalorder %v349, 0
      %vm576 = vcmp.lt.s32.totalorder %v356, 0
      %vm577 = vcmp.lt.s32.totalorder %v363, 0
      %vm578 = vcmp.lt.s32.totalorder %v370, 0
      %vm579 = vcmp.lt.s32.totalorder %v377, 0
      %vm580 = vcmp.lt.s32.totalorder %v384, 0
      %vm581 = vcmp.lt.s32.totalorder %v391, 0
      %vm582 = vcmp.lt.s32.totalorder %v398, 0
      %vm583 = vcmp.lt.s32.totalorder %v405, 0
      %vm584 = vcmp.lt.s32.totalorder %v412, 0
      %vm585 = vcmp.lt.s32.totalorder %v419, 0
      %vm586 = vcmp.lt.s32.totalorder %v426, 0
      %vm587 = vcmp.lt.s32.totalorder %v433, 0
      %vm588 = vcmp.lt.s32.totalorder %v440, 0
      %vm589 = vcmp.lt.s32.totalorder %v447, 0
      %vm590 = vcmp.lt.s32.totalorder %v454, 0
      %vm591 = vcmp.lt.s32.totalorder %v461, 0
      %vm592 = vcmp.lt.s32.totalorder %v468, 0
      %vm593 = vcmp.lt.s32.totalorder %v475, 0
      %vm594 = vcmp.lt.s32.totalorder %v482, 0
      %vm595 = vcmp.lt.s32.totalorder %v489, 0
      %vm596 = vcmp.lt.s32.totalorder %v496, 0
      %vm597 = vcmp.lt.s32.totalorder %v503, 0
      %vm598 = vcmp.lt.s32.totalorder %v510, 0
      %vm599 = vcmp.lt.s32.totalorder %v517, 0
      %vm600 = vcmp.lt.s32.totalorder %v524, 0
      %vm601 = vcmp.lt.s32.totalorder %v531, 0
      %vm602 = vcmp.lt.s32.totalorder %v538, 0
      %vm603 = vmand %vm571, %vm539
      %vm604 = vmand %vm572, %vm540
      %vm605 = vmand %vm573, %vm541
      %vm606 = vmand %vm574, %vm542
      %vm607 = vmand %vm575, %vm543
      %vm608 = vmand %vm576, %vm544
      %vm609 = vmand %vm577, %vm545
      %vm610 = vmand %vm578, %vm546
      %vm611 = vmand %vm579, %vm547
      %vm612 = vmand %vm580, %vm548
      %vm613 = vmand %vm581, %vm549
      %vm614 = vmand %vm582, %vm550
      %vm615 = vmand %vm583, %vm551
      %vm616 = vmand %vm584, %vm552
      %vm617 = vmand %vm585, %vm553
      %vm618 = vmand %vm586, %vm554
      %vm619 = vmand %vm587, %vm555
      %vm620 = vmand %vm588, %vm556
      %vm621 = vmand %vm589, %vm557
      %vm622 = vmand %vm590, %vm558
      %vm623 = vmand %vm591, %vm559
      %vm624 = vmand %vm592, %vm560
      %vm625 = vmand %vm593, %vm561
      %vm626 = vmand %vm594, %vm562
      %vm627 = vmand %vm595, %vm563
      %vm628 = vmand %vm596, %vm564
      %vm629 = vmand %vm597, %vm565
      %vm630 = vmand %vm598, %vm566
      %vm631 = vmand %vm599, %vm567
      %vm632 = vmand %vm600, %vm568
      %vm633 = vmand %vm601, %vm569
      %vm634 = vmand %vm602, %vm570
      %v635 = vadd.s32 %v321, 16
      %v636 = vadd.s32 %v328, 16
      %v637 = vadd.s32 %v335, 16
      %v638 = vadd.s32 %v342, 16
      %v639 = vadd.s32 %v349, 16
      %v640 = vadd.s32 %v356, 16
      %v641 = vadd.s32 %v363, 16
      %v642 = vadd.s32 %v370, 16
      %v643 = vadd.s32 %v377, 16
      %v644 = vadd.s32 %v384, 16
      %v645 = vadd.s32 %v391, 16
      %v646 = vadd.s32 %v398, 16
      %v647 = vadd.s32 %v405, 16
      %v648 = vadd.s32 %v412, 16
      %v649 = vadd.s32 %v419, 16
      %v650 = vadd.s32 %v426, 16
      %v651 = vadd.s32 %v433, 16
      %v652 = vadd.s32 %v440, 16
      %v653 = vadd.s32 %v447, 16
      %v654 = vadd.s32 %v454, 16
      %v655 = vadd.s32 %v461, 16
      %v656 = vadd.s32 %v468, 16
      %v657 = vadd.s32 %v475, 16
      %v658 = vadd.s32 %v482, 16
      %v659 = vadd.s32 %v489, 16
      %v660 = vadd.s32 %v496, 16
      %v661 = vadd.s32 %v503, 16
      %v662 = vadd.s32 %v510, 16
      %v663 = vadd.s32 %v517, 16
      %v664 = vadd.s32 %v524, 16
      %v665 = vadd.s32 %v531, 16
      %v666 = vadd.s32 %v538, 16
      %v667 = vsel %vm603, %v635, %v321
      %v668 = vsel %vm604, %v636, %v328
      %v669 = vsel %vm605, %v637, %v335
      %v670 = vsel %vm606, %v638, %v342
      %v671 = vsel %vm607, %v639, %v349
      %v672 = vsel %vm608, %v640, %v356
      %v673 = vsel %vm609, %v641, %v363
      %v674 = vsel %vm610, %v642, %v370
      %v675 = vsel %vm611, %v643, %v377
      %v676 = vsel %vm612, %v644, %v384
      %v677 = vsel %vm613, %v645, %v391
      %v678 = vsel %vm614, %v646, %v398
      %v679 = vsel %vm615, %v647, %v405
      %v680 = vsel %vm616, %v648, %v412
      %v681 = vsel %vm617, %v649, %v419
      %v682 = vsel %vm618, %v650, %v426
      %v683 = vsel %vm619, %v651, %v433
      %v684 = vsel %vm620, %v652, %v440
      %v685 = vsel %vm621, %v653, %v447
      %v686 = vsel %vm622, %v654, %v454
      %v687 = vsel %vm623, %v655, %v461
      %v688 = vsel %vm624, %v656, %v468
      %v689 = vsel %vm625, %v657, %v475
      %v690 = vsel %vm626, %v658, %v482
      %v691 = vsel %vm627, %v659, %v489
      %v692 = vsel %vm628, %v660, %v496
      %v693 = vsel %vm629, %v661, %v503
      %v694 = vsel %vm630, %v662, %v510
      %v695 = vsel %vm631, %v663, %v517
      %v696 = vsel %vm632, %v664, %v524
      %v697 = vsel %vm633, %v665, %v531
      %v698 = vsel %vm634, %v666, %v538
      %vm699 = vcmp.lt.s32.totalorder %v667, 15
      %vm700 = vcmp.lt.s32.totalorder %v668, 15
      %vm701 = vcmp.lt.s32.totalorder %v669, 15
      %vm702 = vcmp.lt.s32.totalorder %v670, 15
      %vm703 = vcmp.lt.s32.totalorder %v671, 15
      %vm704 = vcmp.lt.s32.totalorder %v672, 15
      %vm705 = vcmp.lt.s32.totalorder %v673, 15
      %vm706 = vcmp.lt.s32.totalorder %v674, 15
      %vm707 = vcmp.lt.s32.totalorder %v675, 15
      %vm708 = vcmp.lt.s32.totalorder %v676, 15
      %vm709 = vcmp.lt.s32.totalorder %v677, 15
      %vm710 = vcmp.lt.s32.totalorder %v678, 15
      %vm711 = vcmp.lt.s32.totalorder %v679, 15
      %vm712 = vcmp.lt.s32.totalorder %v680, 15
      %vm713 = vcmp.lt.s32.totalorder %v681, 15
      %vm714 = vcmp.lt.s32.totalorder %v682, 15
      %vm715 = vcmp.lt.s32.totalorder %v683, 15
      %vm716 = vcmp.lt.s32.totalorder %v684, 15
      %vm717 = vcmp.lt.s32.totalorder %v685, 15
      %vm718 = vcmp.lt.s32.totalorder %v686, 15
      %vm719 = vcmp.lt.s32.totalorder %v687, 15
      %vm720 = vcmp.lt.s32.totalorder %v688, 15
      %vm721 = vcmp.lt.s32.totalorder %v689, 15
      %vm722 = vcmp.lt.s32.totalorder %v690, 15
      %vm723 = vcmp.lt.s32.totalorder %v691, 15
      %vm724 = vcmp.lt.s32.totalorder %v692, 15
      %vm725 = vcmp.lt.s32.totalorder %v693, 15
      %vm726 = vcmp.lt.s32.totalorder %v694, 15
      %vm727 = vcmp.lt.s32.totalorder %v695, 15
      %vm728 = vcmp.lt.s32.totalorder %v696, 15
      %vm729 = vcmp.lt.s32.totalorder %v697, 15
      %vm730 = vcmp.lt.s32.totalorder %v698, 15
      %vm731 = vcmp.gt.s32.totalorder %v667, 0
      %vm732 = vcmp.gt.s32.totalorder %v668, 0
      %vm733 = vcmp.gt.s32.totalorder %v669, 0
      %vm734 = vcmp.gt.s32.totalorder %v670, 0
      %vm735 = vcmp.gt.s32.totalorder %v671, 0
      %vm736 = vcmp.gt.s32.totalorder %v672, 0
      %vm737 = vcmp.gt.s32.totalorder %v673, 0
      %vm738 = vcmp.gt.s32.totalorder %v674, 0
      %vm739 = vcmp.gt.s32.totalorder %v675, 0
      %vm740 = vcmp.gt.s32.totalorder %v676, 0
      %vm741 = vcmp.gt.s32.totalorder %v677, 0
      %vm742 = vcmp.gt.s32.totalorder %v678, 0
      %vm743 = vcmp.gt.s32.totalorder %v679, 0
      %vm744 = vcmp.gt.s32.totalorder %v680, 0
      %vm745 = vcmp.gt.s32.totalorder %v681, 0
      %vm746 = vcmp.gt.s32.totalorder %v682, 0
      %vm747 = vcmp.gt.s32.totalorder %v683, 0
      %vm748 = vcmp.gt.s32.totalorder %v684, 0
      %vm749 = vcmp.gt.s32.totalorder %v685, 0
      %vm750 = vcmp.gt.s32.totalorder %v686, 0
      %vm751 = vcmp.gt.s32.totalorder %v687, 0
      %vm752 = vcmp.gt.s32.totalorder %v688, 0
      %vm753 = vcmp.gt.s32.totalorder %v689, 0
      %vm754 = vcmp.gt.s32.totalorder %v690, 0
      %vm755 = vcmp.gt.s32.totalorder %v691, 0
      %vm756 = vcmp.gt.s32.totalorder %v692, 0
      %vm757 = vcmp.gt.s32.totalorder %v693, 0
      %vm758 = vcmp.gt.s32.totalorder %v694, 0
      %vm759 = vcmp.gt.s32.totalorder %v695, 0
      %vm760 = vcmp.gt.s32.totalorder %v696, 0
      %vm761 = vcmp.gt.s32.totalorder %v697, 0
      %vm762 = vcmp.gt.s32.totalorder %v698, 0
      %v763 = vld [vmem:[%s273] sm:$0xff]
      %v764 = vld [vmem:[%s273 + $0x8] sm:$0xff]
      %v765 = vld [vmem:[%s273 + $0x10] sm:$0xff]
      %v766 = vld [vmem:[%s273 + $0x18] sm:$0xff]
      %v767 = vld [vmem:[%s273 + $0x20] sm:$0xff]
      %v768 = vld [vmem:[%s273 + $0x28] sm:$0xff]
      %v769 = vld [vmem:[%s273 + $0x30] sm:$0xff]
      %v770 = vld [vmem:[%s273 + $0x38] sm:$0xff]
      %v771 = vld [vmem:[%s273 + $0x40] sm:$0xff]
      %v772 = vld [vmem:[%s273 + $0x48] sm:$0xff]
      %v773 = vld [vmem:[%s273 + $0x50] sm:$0xff]
      %v774 = vld [vmem:[%s273 + $0x58] sm:$0xff]
      %v775 = vld [vmem:[%s273 + $0x60] sm:$0xff]
      %v776 = vld [vmem:[%s273 + $0x68] sm:$0xff]
      %v777 = vld [vmem:[%s273 + $0x70] sm:$0xff]
      %v778 = vld [vmem:[%s273 + $0x78] sm:$0xff]
      %v779 = vld [vmem:[%s273 + $0x80] sm:$0xff]
      %v780 = vld [vmem:[%s273 + $0x88] sm:$0xff]
      %v781 = vld [vmem:[%s273 + $0x90] sm:$0xff]
      %v782 = vld [vmem:[%s273 + $0x98] sm:$0xff]
      %v783 = vld [vmem:[%s273 + $0xa0] sm:$0xff]
      %v784 = vld [vmem:[%s273 + $0xa8] sm:$0xff]
      %v785 = vld [vmem:[%s273 + $0xb0] sm:$0xff]
      %v786 = vld [vmem:[%s273 + $0xb8] sm:$0xff]
      %v787 = vld [vmem:[%s273 + $0xc0] sm:$0xff]
      %v788 = vld [vmem:[%s273 + $0xc8] sm:$0xff]
      %v789 = vld [vmem:[%s273 + $0xd0] sm:$0xff]
      %v790 = vld [vmem:[%s273 + $0xd8] sm:$0xff]
      %v791 = vld [vmem:[%s273 + $0xe0] sm:$0xff]
      %v792 = vld [vmem:[%s273 + $0xe8] sm:$0xff]
      %v793 = vld [vmem:[%s273 + $0xf0] sm:$0xff]
      %v794 = vld [vmem:[%s273 + $0xf8] sm:$0xff]
      %v795 = vpack.c.bf16 %v764, %v763
      %v796 = vpack.c.bf16 %v766, %v765
      %v797 = vpack.c.bf16 %v768, %v767
      %v798 = vpack.c.bf16 %v770, %v769
      %v799 = vpack.c.bf16 %v772, %v771
      %v800 = vpack.c.bf16 %v774, %v773
      %v801 = vpack.c.bf16 %v776, %v775
      %v802 = vpack.c.bf16 %v778, %v777
      %v803 = vpack.c.bf16 %v780, %v779
      %v804 = vpack.c.bf16 %v782, %v781
      %v805 = vpack.c.bf16 %v784, %v783
      %v806 = vpack.c.bf16 %v786, %v785
      %v807 = vpack.c.bf16 %v788, %v787
      %v808 = vpack.c.bf16 %v790, %v789
      %v809 = vpack.c.bf16 %v792, %v791
      %v810 = vpack.c.bf16 %v794, %v793
      %v811 = vld [vmem:[%s1] sm:$0xf]
      %v812 = vld [vmem:[%s1 + $0x4] sm:$0xf]
      %v813 = vld [vmem:[%s1 + $0x8] sm:$0xf]
      %v814 = vld [vmem:[%s1 + $0xc] sm:$0xf]
      %v815 = vld [vmem:[%s1 + $0x10] sm:$0xf]
      %v816 = vld [vmem:[%s1 + $0x14] sm:$0xf]
      %v817 = vld [vmem:[%s1 + $0x18] sm:$0xf]
      %v818 = vld [vmem:[%s1 + $0x1c] sm:$0xf]
      %v819 = vld [vmem:[%s1 + $0x20] sm:$0xf]
      %v820 = vld [vmem:[%s1 + $0x24] sm:$0xf]
      %v821 = vld [vmem:[%s1 + $0x28] sm:$0xf]
      %v822 = vld [vmem:[%s1 + $0x2c] sm:$0xf]
      %v823 = vld [vmem:[%s1 + $0x30] sm:$0xf]
      %v824 = vld [vmem:[%s1 + $0x34] sm:$0xf]
      %v825 = vld [vmem:[%s1 + $0x38] sm:$0xf]
      %v826 = vld [vmem:[%s1 + $0x3c] sm:$0xf]
      %v827 = vld [vmem:[%s2] sm:$0x1]
      %v829 = vlaneseq
      %v830 = vshrl.u32 %v829, 7
      %v831 = vsub.s32 0, %v830
      %v832 = vrot.slane %v827, %v831
      %v850 = vunpack.c.l.b16 %v811
      %v851 = vunpack.c.l.b16 %v812
      %v852 = vunpack.c.l.b16 %v813
      %v853 = vunpack.c.l.b16 %v814
      %v854 = vunpack.c.l.b16 %v815
      %v855 = vunpack.c.l.b16 %v816
      %v856 = vunpack.c.l.b16 %v817
      %v857 = vunpack.c.l.b16 %v818
      %v858 = vunpack.c.l.b16 %v819
      %v859 = vunpack.c.l.b16 %v820
      %v860 = vunpack.c.l.b16 %v821
      %v861 = vunpack.c.l.b16 %v822
      %v862 = vunpack.c.l.b16 %v823
      %v863 = vunpack.c.l.b16 %v824
      %v864 = vunpack.c.l.b16 %v825
      %v865 = vunpack.c.l.b16 %v826
      %v866 = vpack.c.b16 %v851, %v850
      %v867 = vpack.c.b16 %v853, %v852
      %v868 = vpack.c.b16 %v855, %v854
      %v869 = vpack.c.b16 %v857, %v856
      %v870 = vpack.c.b16 %v859, %v858
      %v871 = vpack.c.b16 %v861, %v860
      %v872 = vpack.c.b16 %v863, %v862
      %v873 = vpack.c.b16 %v865, %v864
      %882 = vmatprep.subr.bf16.mxu0 0
      %883 = vmatpush1.bf16.msra.mxu0 %v866
      %884 = vmatprep.subr.bf16.mxu0 0
      %885 = vmatpush1.bf16.msra.mxu0 %v867
      %886 = vmatprep.subr.bf16.mxu0 0
      %887 = vmatpush1.bf16.msra.mxu0 %v868
      %888 = vmatprep.subr.bf16.mxu0 0
      %889 = vmatpush1.bf16.msra.mxu0 %v869
      %890 = vmatprep.subr.bf16.mxu0 0
      %891 = vmatpush1.bf16.msra.mxu0 %v870
      %892 = vmatprep.subr.bf16.mxu0 0
      %893 = vmatpush1.bf16.msra.mxu0 %v871
      %894 = vmatprep.subr.bf16.mxu0 0
      %895 = vmatpush1.bf16.msra.mxu0 %v872
      %896 = vmatprep.subr.bf16.mxu0 0
      %897 = vmatpush1.bf16.msra.mxu0 %v873
      %898 = vmatprep.subr.bf16.mxu0 0
      %899 = vmatpush1.bf16.msra.mxu0 0
      %900 = vmatprep.subr.bf16.mxu0 0
      %901 = vmatpush1.bf16.msra.mxu0 0
      %902 = vmatprep.subr.bf16.mxu0 0
      %903 = vmatpush1.bf16.msra.mxu0 0
      %904 = vmatprep.subr.bf16.mxu0 0
      %905 = vmatpush1.bf16.msra.mxu0 0
      %906 = vmatprep.subr.bf16.mxu0 0
      %907 = vmatpush1.bf16.msra.mxu0 0
      %908 = vmatprep.subr.bf16.mxu0 0
      %909 = vmatpush1.bf16.msra.mxu0 0
      %910 = vmatprep.subr.bf16.mxu0 0
      %911 = vmatpush1.bf16.msra.mxu0 0
      %912 = vmatprep.subr.bf16.mxu0 0
      %913 = vmatpush1.bf16.msra.mxu0 0
      %914 = vmatprep.mubr.bf16.mxu0 0
      %915 = vmatmul.mubr.bf16.gmra.mrb[0].mxu0 %v795
      %v916 = vpop.f32.mrb[0].mxu0
      %v917 = vadd.f32 %v832, %v916
      %v918 = vpop.f32.mrb[0].mxu0
      %v919 = vpop.f32.mrb[0].mxu0
      %v920 = vadd.f32 %v832, %v919
      %v921 = vpop.f32.mrb[0].mxu0
      %922 = vmatprep.mubr.bf16.mxu0 0
      %923 = vmatmul.mubr.bf16.gmra.mrb[0].mxu0 %v796
      %v924 = vpop.f32.mrb[0].mxu0
      %v925 = vadd.f32 %v832, %v924
      %v926 = vpop.f32.mrb[0].mxu0
      %v927 = vpop.f32.mrb[0].mxu0
      %v928 = vadd.f32 %v832, %v927
      %v929 = vpop.f32.mrb[0].mxu0
      %930 = vmatprep.mubr.bf16.mxu0 0
      %931 = vmatmul.mubr.bf16.gmra.mrb[0].mxu0 %v797
      %v932 = vpop.f32.mrb[0].mxu0
      %v933 = vadd.f32 %v832, %v932
      %v934 = vpop.f32.mrb[0].mxu0
      %v935 = vpop.f32.mrb[0].mxu0
      %v936 = vadd.f32 %v832, %v935
      %v937 = vpop.f32.mrb[0].mxu0
      %938 = vmatprep.mubr.bf16.mxu0 0
      %939 = vmatmul.mubr.bf16.gmra.mrb[0].mxu0 %v798
      %v940 = vpop.f32.mrb[0].mxu0
      %v941 = vadd.f32 %v832, %v940
      %v942 = vpop.f32.mrb[0].mxu0
      %v943 = vpop.f32.mrb[0].mxu0
      %v944 = vadd.f32 %v832, %v943
      %v945 = vpop.f32.mrb[0].mxu0
      %946 = vmatprep.mubr.bf16.mxu0 0
      %947 = vmatmul.mubr.bf16.gmra.mrb[0].mxu0 %v799
      %v948 = vpop.f32.mrb[0].mxu0
      %v949 = vadd.f32 %v832, %v948
      %v950 = vpop.f32.mrb[0].mxu0
      %v951 = vpop.f32.mrb[0].mxu0
      %v952 = vadd.f32 %v832, %v951
      %v953 = vpop.f32.mrb[0].mxu0
      %954 = vmatprep.mubr.bf16.mxu0 0
      %955 = vmatmul.mubr.bf16.gmra.mrb[0].mxu0 %v800
      %v956 = vpop.f32.mrb[0].mxu0
      %v957 = vadd.f32 %v832, %v956
      %v958 = vpop.f32.mrb[0].mxu0
      %v959 = vpop.f32.mrb[0].mxu0
      %v960 = vadd.f32 %v832, %v959
      %v961 = vpop.f32.mrb[0].mxu0
      %962 = vmatprep.mubr.bf16.mxu0 0
      %963 = vmatmul.mubr.bf16.gmra.mrb[0].mxu0 %v801
      %v964 = vpop.f32.mrb[0].mxu0
      %v965 = vadd.f32 %v832, %v964
      %v966 = vpop.f32.mrb[0].mxu0
      %v967 = vpop.f32.mrb[0].mxu0
      %v968 = vadd.f32 %v832, %v967
      %v969 = vpop.f32.mrb[0].mxu0
      %970 = vmatprep.mubr.bf16.mxu0 0
      %971 = vmatmul.mubr.bf16.gmra.mrb[0].mxu0 %v802
      %v972 = vpop.f32.mrb[0].mxu0
      %v973 = vadd.f32 %v832, %v972
      %v974 = vpop.f32.mrb[0].mxu0
      %v975 = vpop.f32.mrb[0].mxu0
      %v976 = vadd.f32 %v832, %v975
      %v977 = vpop.f32.mrb[0].mxu0
      %978 = vmatprep.mubr.bf16.mxu0 0
      %979 = vmatmul.mubr.bf16.gmra.mrb[0].mxu0 %v803
      %v980 = vpop.f32.mrb[0].mxu0
      %v981 = vadd.f32 %v832, %v980
      %v982 = vpop.f32.mrb[0].mxu0
      %v983 = vpop.f32.mrb[0].mxu0
      %v984 = vadd.f32 %v832, %v983
      %v985 = vpop.f32.mrb[0].mxu0
      %986 = vmatprep.mubr.bf16.mxu0 0
      %987 = vmatmul.mubr.bf16.gmra.mrb[0].mxu0 %v804
      %v988 = vpop.f32.mrb[0].mxu0
      %v989 = vadd.f32 %v832, %v988
      %v990 = vpop.f32.mrb[0].mxu0
      %v991 = vpop.f32.mrb[0].mxu0
      %v992 = vadd.f32 %v832, %v991
      %v993 = vpop.f32.mrb[0].mxu0
      %994 = vmatprep.mubr.bf16.mxu0 0
      %995 = vmatmul.mubr.bf16.gmra.mrb[0].mxu0 %v805
      %v996 = vpop.f32.mrb[0].mxu0
      %v997 = vadd.f32 %v832, %v996
      %v998 = vpop.f32.mrb[0].mxu0
      %v999 = vpop.f32.mrb[0].mxu0
      %v1000 = vadd.f32 %v832, %v999
      %v1001 = vpop.f32.mrb[0].mxu0
      %1002 = vmatprep.mubr.bf16.mxu0 0
      %1003 = vmatmul.mubr.bf16.gmra.mrb[0].mxu0 %v806
      %v1004 = vpop.f32.mrb[0].mxu0
      %v1005 = vadd.f32 %v832, %v1004
      %v1006 = vpop.f32.mrb[0].mxu0
      %v1007 = vpop.f32.mrb[0].mxu0
      %v1008 = vadd.f32 %v832, %v1007
      %v1009 = vpop.f32.mrb[0].mxu0
      %1010 = vmatprep.mubr.bf16.mxu0 0
      %1011 = vmatmul.mubr.bf16.gmra.mrb[0].mxu0 %v807
      %v1012 = vpop.f32.mrb[0].mxu0
      %v1013 = vadd.f32 %v832, %v1012
      %v1014 = vpop.f32.mrb[0].mxu0
      %v1015 = vpop.f32.mrb[0].mxu0
      %v1016 = vadd.f32 %v832, %v1015
      %v1017 = vpop.f32.mrb[0].mxu0
      %1018 = vmatprep.mubr.bf16.mxu0 0
      %1019 = vmatmul.mubr.bf16.gmra.mrb[0].mxu0 %v808
      %v1020 = vpop.f32.mrb[0].mxu0
      %v1021 = vadd.f32 %v832, %v1020
      %v1022 = vpop.f32.mrb[0].mxu0
      %v1023 = vpop.f32.mrb[0].mxu0
      %v1024 = vadd.f32 %v832, %v1023
      %v1025 = vpop.f32.mrb[0].mxu0
      %1026 = vmatprep.mubr.bf16.mxu0 0
      %1027 = vmatmul.mubr.bf16.gmra.mrb[0].mxu0 %v809
      %v1028 = vpop.f32.mrb[0].mxu0
      %v1029 = vadd.f32 %v832, %v1028
      %v1030 = vpop.f32.mrb[0].mxu0
      %v1031 = vpop.f32.mrb[0].mxu0
      %v1032 = vadd.f32 %v832, %v1031
      %v1033 = vpop.f32.mrb[0].mxu0
      %1034 = vmatprep.mubr.bf16.mxu0 0
      %1035 = vmatmul.mubr.bf16.gmra.mrb[0].mxu0 %v810
      %v1036 = vpop.f32.mrb[0].mxu0
      %v1037 = vadd.f32 %v832, %v1036
      %v1038 = vpop.f32.mrb[0].mxu0
      %v1039 = vpop.f32.mrb[0].mxu0
      %v1040 = vadd.f32 %v832, %v1039
      %v1041 = vpop.f32.mrb[0].mxu0
      %1042 = vdwg.mxu0
      %v1043 = vld [vmem:[%s4] sm:$0x1]
      %v1044 = vpack.c.bf16 %v920, %v917
      %v1045 = vpack.c.bf16 %v928, %v925
      %v1046 = vpack.c.bf16 %v936, %v933
      %v1047 = vpack.c.bf16 %v944, %v941
      %v1048 = vpack.c.bf16 %v952, %v949
      %v1049 = vpack.c.bf16 %v960, %v957
      %v1050 = vpack.c.bf16 %v968, %v965
      %v1051 = vpack.c.bf16 %v976, %v973
      %v1052 = vpack.c.bf16 %v984, %v981
      %v1053 = vpack.c.bf16 %v992, %v989
      %v1054 = vpack.c.bf16 %v1000, %v997
      %v1055 = vpack.c.bf16 %v1008, %v1005
      %v1056 = vpack.c.bf16 %v1016, %v1013
      %v1057 = vpack.c.bf16 %v1024, %v1021
      %v1058 = vpack.c.bf16 %v1032, %v1029
      %v1059 = vpack.c.bf16 %v1040, %v1037
      %vm1060 = vmpackc.low %vm699, %vm699
      %vm1061 = vmpackc.low %vm700, %vm700
      %vm1062 = vmpackc.low %vm701, %vm701
      %vm1063 = vmpackc.low %vm702, %vm702
      %vm1064 = vmpackc.low %vm703, %vm703
      %vm1065 = vmpackc.low %vm704, %vm704
      %vm1066 = vmpackc.low %vm705, %vm705
      %vm1067 = vmpackc.low %vm706, %vm706
      %vm1068 = vmpackc.low %vm707, %vm707
      %vm1069 = vmpackc.low %vm708, %vm708
      %vm1070 = vmpackc.low %vm709, %vm709
      %vm1071 = vmpackc.low %vm710, %vm710
      %vm1072 = vmpackc.low %vm711, %vm711
      %vm1073 = vmpackc.low %vm712, %vm712
      %vm1074 = vmpackc.low %vm713, %vm713
      %vm1075 = vmpackc.low %vm714, %vm714
      %vm1076 = vmpackc.low %vm715, %vm715
      %vm1077 = vmpackc.low %vm716, %vm716
      %vm1078 = vmpackc.low %vm717, %vm717
      %vm1079 = vmpackc.low %vm718, %vm718
      %vm1080 = vmpackc.low %vm719, %vm719
      %vm1081 = vmpackc.low %vm720, %vm720
      %vm1082 = vmpackc.low %vm721, %vm721
      %vm1083 = vmpackc.low %vm722, %vm722
      %vm1084 = vmpackc.low %vm723, %vm723
      %vm1085 = vmpackc.low %vm724, %vm724
      %vm1086 = vmpackc.low %vm725, %vm725
      %vm1087 = vmpackc.low %vm726, %vm726
      %vm1088 = vmpackc.low %vm727, %vm727
      %vm1089 = vmpackc.low %vm728, %vm728
      %vm1090 = vmpackc.low %vm729, %vm729
      %vm1091 = vmpackc.low %vm730, %vm730
      %v1092 = vsel %vm1060, 65537, 0
      %v1093 = vsel %vm1061, 65537, 0
      %v1094 = vsel %vm1062, 65537, 0
      %v1095 = vsel %vm1063, 65537, 0
      %v1096 = vsel %vm1064, 65537, 0
      %v1097 = vsel %vm1065, 65537, 0
      %v1098 = vsel %vm1066, 65537, 0
      %v1099 = vsel %vm1067, 65537, 0
      %v1100 = vsel %vm1068, 65537, 0
      %v1101 = vsel %vm1069, 65537, 0
      %v1102 = vsel %vm1070, 65537, 0
      %v1103 = vsel %vm1071, 65537, 0
      %v1104 = vsel %vm1072, 65537, 0
      %v1105 = vsel %vm1073, 65537, 0
      %v1106 = vsel %vm1074, 65537, 0
      %v1107 = vsel %vm1075, 65537, 0
      %v1108 = vsel %vm1076, 65537, 0
      %v1109 = vsel %vm1077, 65537, 0
      %v1110 = vsel %vm1078, 65537, 0
      %v1111 = vsel %vm1079, 65537, 0
      %v1112 = vsel %vm1080, 65537, 0
      %v1113 = vsel %vm1081, 65537, 0
      %v1114 = vsel %vm1082, 65537, 0
      %v1115 = vsel %vm1083, 65537, 0
      %v1116 = vsel %vm1084, 65537, 0
      %v1117 = vsel %vm1085, 65537, 0
      %v1118 = vsel %vm1086, 65537, 0
      %v1119 = vsel %vm1087, 65537, 0
      %v1120 = vsel %vm1088, 65537, 0
      %v1121 = vsel %vm1089, 65537, 0
      %v1122 = vsel %vm1090, 65537, 0
      %v1123 = vsel %vm1091, 65537, 0
      %v1124 = vunpack.c.l.b16 %v1092
      %v1125 = vunpack.c.l.b16 %v1093
      %v1126 = vunpack.c.l.b16 %v1094
      %v1127 = vunpack.c.l.b16 %v1095
      %v1128 = vunpack.c.l.b16 %v1096
      %v1129 = vunpack.c.l.b16 %v1097
      %v1130 = vunpack.c.l.b16 %v1098
      %v1131 = vunpack.c.l.b16 %v1099
      %v1132 = vunpack.c.l.b16 %v1100
      %v1133 = vunpack.c.l.b16 %v1101
      %v1134 = vunpack.c.l.b16 %v1102
      %v1135 = vunpack.c.l.b16 %v1103
      %v1136 = vunpack.c.l.b16 %v1104
      %v1137 = vunpack.c.l.b16 %v1105
      %v1138 = vunpack.c.l.b16 %v1106
      %v1139 = vunpack.c.l.b16 %v1107
      %v1140 = vunpack.c.l.b16 %v1108
      %v1141 = vunpack.c.l.b16 %v1109
      %v1142 = vunpack.c.l.b16 %v1110
      %v1143 = vunpack.c.l.b16 %v1111
      %v1144 = vunpack.c.l.b16 %v1112
      %v1145 = vunpack.c.l.b16 %v1113
      %v1146 = vunpack.c.l.b16 %v1114
      %v1147 = vunpack.c.l.b16 %v1115
      %v1148 = vunpack.c.l.b16 %v1116
      %v1149 = vunpack.c.l.b16 %v1117
      %v1150 = vunpack.c.l.b16 %v1118
      %v1151 = vunpack.c.l.b16 %v1119
      %v1152 = vunpack.c.l.b16 %v1120
      %v1153 = vunpack.c.l.b16 %v1121
      %v1154 = vunpack.c.l.b16 %v1122
      %v1155 = vunpack.c.l.b16 %v1123
      %v1156 = vpack.c.b16 %v1125, %v1124
      %v1157 = vpack.c.b16 %v1127, %v1126
      %v1158 = vpack.c.b16 %v1129, %v1128
      %v1159 = vpack.c.b16 %v1131, %v1130
      %v1160 = vpack.c.b16 %v1133, %v1132
      %v1161 = vpack.c.b16 %v1135, %v1134
      %v1162 = vpack.c.b16 %v1137, %v1136
      %v1163 = vpack.c.b16 %v1139, %v1138
      %v1164 = vpack.c.b16 %v1141, %v1140
      %v1165 = vpack.c.b16 %v1143, %v1142
      %v1166 = vpack.c.b16 %v1145, %v1144
      %v1167 = vpack.c.b16 %v1147, %v1146
      %v1168 = vpack.c.b16 %v1149, %v1148
      %v1169 = vpack.c.b16 %v1151, %v1150
      %v1170 = vpack.c.b16 %v1153, %v1152
      %v1171 = vpack.c.b16 %v1155, %v1154
      %vm1172 = vcmp.ne.s16.totalorder %v1156, 0
      %vm1173 = vcmp.ne.s16.totalorder %v1157, 0
      %vm1174 = vcmp.ne.s16.totalorder %v1158, 0
      %vm1175 = vcmp.ne.s16.totalorder %v1159, 0
      %vm1176 = vcmp.ne.s16.totalorder %v1160, 0
      %vm1177 = vcmp.ne.s16.totalorder %v1161, 0
      %vm1178 = vcmp.ne.s16.totalorder %v1162, 0
      %vm1179 = vcmp.ne.s16.totalorder %v1163, 0
      %vm1180 = vcmp.ne.s16.totalorder %v1164, 0
      %vm1181 = vcmp.ne.s16.totalorder %v1165, 0
      %vm1182 = vcmp.ne.s16.totalorder %v1166, 0
      %vm1183 = vcmp.ne.s16.totalorder %v1167, 0
      %vm1184 = vcmp.ne.s16.totalorder %v1168, 0
      %vm1185 = vcmp.ne.s16.totalorder %v1169, 0
      %vm1186 = vcmp.ne.s16.totalorder %v1170, 0
      %vm1187 = vcmp.ne.s16.totalorder %v1171, 0
      %v1188 = vsel %vm1172, %v1044, 0
      %v1189 = vsel %vm1173, %v1045, 0
      %v1190 = vsel %vm1174, %v1046, 0
      %v1191 = vsel %vm1175, %v1047, 0
      %v1192 = vsel %vm1176, %v1048, 0
      %v1193 = vsel %vm1177, %v1049, 0
      %v1194 = vsel %vm1178, %v1050, 0
      %v1195 = vsel %vm1179, %v1051, 0
      %v1196 = vsel %vm1180, %v1052, 0
      %v1197 = vsel %vm1181, %v1053, 0
      %v1198 = vsel %vm1182, %v1054, 0
      %v1199 = vsel %vm1183, %v1055, 0
      %v1200 = vsel %vm1184, %v1056, 0
      %v1201 = vsel %vm1185, %v1057, 0
      %v1202 = vsel %vm1186, %v1058, 0
      %v1203 = vsel %vm1187, %v1059, 0
      %vm1204 = vmpackc.low %vm731, %vm731
      %vm1205 = vmpackc.low %vm732, %vm732
      %vm1206 = vmpackc.low %vm733, %vm733
      %vm1207 = vmpackc.low %vm734, %vm734
      %vm1208 = vmpackc.low %vm735, %vm735
      %vm1209 = vmpackc.low %vm736, %vm736
      %vm1210 = vmpackc.low %vm737, %vm737
      %vm1211 = vmpackc.low %vm738, %vm738
      %vm1212 = vmpackc.low %vm739, %vm739
      %vm1213 = vmpackc.low %vm740, %vm740
      %vm1214 = vmpackc.low %vm741, %vm741
      %vm1215 = vmpackc.low %vm742, %vm742
      %vm1216 = vmpackc.low %vm743, %vm743
      %vm1217 = vmpackc.low %vm744, %vm744
      %vm1218 = vmpackc.low %vm745, %vm745
      %vm1219 = vmpackc.low %vm746, %vm746
      %vm1220 = vmpackc.low %vm747, %vm747
      %vm1221 = vmpackc.low %vm748, %vm748
      %vm1222 = vmpackc.low %vm749, %vm749
      %vm1223 = vmpackc.low %vm750, %vm750
      %vm1224 = vmpackc.low %vm751, %vm751
      %vm1225 = vmpackc.low %vm752, %vm752
      %vm1226 = vmpackc.low %vm753, %vm753
      %vm1227 = vmpackc.low %vm754, %vm754
      %vm1228 = vmpackc.low %vm755, %vm755
      %vm1229 = vmpackc.low %vm756, %vm756
      %vm1230 = vmpackc.low %vm757, %vm757
      %vm1231 = vmpackc.low %vm758, %vm758
      %vm1232 = vmpackc.low %vm759, %vm759
      %vm1233 = vmpackc.low %vm760, %vm760
      %vm1234 = vmpackc.low %vm761, %vm761
      %vm1235 = vmpackc.low %vm762, %vm762
      %v1236 = vsel %vm1204, 65537, 0
      %v1237 = vsel %vm1205, 65537, 0
      %v1238 = vsel %vm1206, 65537, 0
      %v1239 = vsel %vm1207, 65537, 0
      %v1240 = vsel %vm1208, 65537, 0
      %v1241 = vsel %vm1209, 65537, 0
      %v1242 = vsel %vm1210, 65537, 0
      %v1243 = vsel %vm1211, 65537, 0
      %v1244 = vsel %vm1212, 65537, 0
      %v1245 = vsel %vm1213, 65537, 0
      %v1246 = vsel %vm1214, 65537, 0
      %v1247 = vsel %vm1215, 65537, 0
      %v1248 = vsel %vm1216, 65537, 0
      %v1249 = vsel %vm1217, 65537, 0
      %v1250 = vsel %vm1218, 65537, 0
      %v1251 = vsel %vm1219, 65537, 0
      %v1252 = vsel %vm1220, 65537, 0
      %v1253 = vsel %vm1221, 65537, 0
      %v1254 = vsel %vm1222, 65537, 0
      %v1255 = vsel %vm1223, 65537, 0
      %v1256 = vsel %vm1224, 65537, 0
      %v1257 = vsel %vm1225, 65537, 0
      %v1258 = vsel %vm1226, 65537, 0
      %v1259 = vsel %vm1227, 65537, 0
      %v1260 = vsel %vm1228, 65537, 0
      %v1261 = vsel %vm1229, 65537, 0
      %v1262 = vsel %vm1230, 65537, 0
      %v1263 = vsel %vm1231, 65537, 0
      %v1264 = vsel %vm1232, 65537, 0
      %v1265 = vsel %vm1233, 65537, 0
      %v1266 = vsel %vm1234, 65537, 0
      %v1267 = vsel %vm1235, 65537, 0
      %v1268 = vunpack.c.l.b16 %v1236
      %v1269 = vunpack.c.l.b16 %v1237
      %v1270 = vunpack.c.l.b16 %v1238
      %v1271 = vunpack.c.l.b16 %v1239
      %v1272 = vunpack.c.l.b16 %v1240
      %v1273 = vunpack.c.l.b16 %v1241
      %v1274 = vunpack.c.l.b16 %v1242
      %v1275 = vunpack.c.l.b16 %v1243
      %v1276 = vunpack.c.l.b16 %v1244
      %v1277 = vunpack.c.l.b16 %v1245
      %v1278 = vunpack.c.l.b16 %v1246
      %v1279 = vunpack.c.l.b16 %v1247
      %v1280 = vunpack.c.l.b16 %v1248
      %v1281 = vunpack.c.l.b16 %v1249
      %v1282 = vunpack.c.l.b16 %v1250
      %v1283 = vunpack.c.l.b16 %v1251
      %v1284 = vunpack.c.l.b16 %v1252
      %v1285 = vunpack.c.l.b16 %v1253
      %v1286 = vunpack.c.l.b16 %v1254
      %v1287 = vunpack.c.l.b16 %v1255
      %v1288 = vunpack.c.l.b16 %v1256
      %v1289 = vunpack.c.l.b16 %v1257
      %v1290 = vunpack.c.l.b16 %v1258
      %v1291 = vunpack.c.l.b16 %v1259
      %v1292 = vunpack.c.l.b16 %v1260
      %v1293 = vunpack.c.l.b16 %v1261
      %v1294 = vunpack.c.l.b16 %v1262
      %v1295 = vunpack.c.l.b16 %v1263
      %v1296 = vunpack.c.l.b16 %v1264
      %v1297 = vunpack.c.l.b16 %v1265
      %v1298 = vunpack.c.l.b16 %v1266
      %v1299 = vunpack.c.l.b16 %v1267
      %v1300 = vpack.c.b16 %v1269, %v1268
      %v1301 = vpack.c.b16 %v1271, %v1270
      %v1302 = vpack.c.b16 %v1273, %v1272
      %v1303 = vpack.c.b16 %v1275, %v1274
      %v1304 = vpack.c.b16 %v1277, %v1276
      %v1305 = vpack.c.b16 %v1279, %v1278
      %v1306 = vpack.c.b16 %v1281, %v1280
      %v1307 = vpack.c.b16 %v1283, %v1282
      %v1308 = vpack.c.b16 %v1285, %v1284
      %v1309 = vpack.c.b16 %v1287, %v1286
      %v1310 = vpack.c.b16 %v1289, %v1288
      %v1311 = vpack.c.b16 %v1291, %v1290
      %v1312 = vpack.c.b16 %v1293, %v1292
      %v1313 = vpack.c.b16 %v1295, %v1294
      %v1314 = vpack.c.b16 %v1297, %v1296
      %v1315 = vpack.c.b16 %v1299, %v1298
      %vm1316 = vcmp.ne.s16.totalorder %v1300, 0
      %vm1317 = vcmp.ne.s16.totalorder %v1301, 0
      %vm1318 = vcmp.ne.s16.totalorder %v1302, 0
      %vm1319 = vcmp.ne.s16.totalorder %v1303, 0
      %vm1320 = vcmp.ne.s16.totalorder %v1304, 0
      %vm1321 = vcmp.ne.s16.totalorder %v1305, 0
      %vm1322 = vcmp.ne.s16.totalorder %v1306, 0
      %vm1323 = vcmp.ne.s16.totalorder %v1307, 0
      %vm1324 = vcmp.ne.s16.totalorder %v1308, 0
      %vm1325 = vcmp.ne.s16.totalorder %v1309, 0
      %vm1326 = vcmp.ne.s16.totalorder %v1310, 0
      %vm1327 = vcmp.ne.s16.totalorder %v1311, 0
      %vm1328 = vcmp.ne.s16.totalorder %v1312, 0
      %vm1329 = vcmp.ne.s16.totalorder %v1313, 0
      %vm1330 = vcmp.ne.s16.totalorder %v1314, 0
      %vm1331 = vcmp.ne.s16.totalorder %v1315, 0
      %v1332 = vsel %vm1316, %v1044, 0
      %v1333 = vsel %vm1317, %v1045, 0
      %v1334 = vsel %vm1318, %v1046, 0
      %v1335 = vsel %vm1319, %v1047, 0
      %v1336 = vsel %vm1320, %v1048, 0
      %v1337 = vsel %vm1321, %v1049, 0
      %v1338 = vsel %vm1322, %v1050, 0
      %v1339 = vsel %vm1323, %v1051, 0
      %v1340 = vsel %vm1324, %v1052, 0
      %v1341 = vsel %vm1325, %v1053, 0
      %v1342 = vsel %vm1326, %v1054, 0
      %v1343 = vsel %vm1327, %v1055, 0
      %v1344 = vsel %vm1328, %v1056, 0
      %v1345 = vsel %vm1329, %v1057, 0
      %v1346 = vsel %vm1330, %v1058, 0
      %v1347 = vsel %vm1331, %v1059, 0
      %vm1348 = vsmask.f32 256
      %v1350 = vshrl.u32 %v1188, 16
      %v1352 = vrot.slane %v1350, 7
      %v1353 = vshll.u32 %v1188, 16
      %v1355 = vor.u32 %v1352, %v1353
      %v1357 = vshrl.u32 %v1189, 16
      %v1359 = vrot.slane %v1357, 7
      %v1360 = vshll.u32 %v1189, 16
      %v1362 = vor.u32 %v1359, %v1360
      %v1363 = vsel %vm1348, %v1352, %v1362
      %v1365 = vshrl.u32 %v1190, 16
      %v1367 = vrot.slane %v1365, 7
      %v1368 = vshll.u32 %v1190, 16
      %v1370 = vor.u32 %v1367, %v1368
      %v1371 = vsel %vm1348, %v1359, %v1370
      %v1373 = vshrl.u32 %v1191, 16
      %v1375 = vrot.slane %v1373, 7
      %v1376 = vshll.u32 %v1191, 16
      %v1378 = vor.u32 %v1375, %v1376
      %v1379 = vsel %vm1348, %v1367, %v1378
      %v1381 = vshrl.u32 %v1192, 16
      %v1383 = vrot.slane %v1381, 7
      %v1384 = vshll.u32 %v1192, 16
      %v1386 = vor.u32 %v1383, %v1384
      %v1387 = vsel %vm1348, %v1375, %v1386
      %v1389 = vshrl.u32 %v1193, 16
      %v1391 = vrot.slane %v1389, 7
      %v1392 = vshll.u32 %v1193, 16
      %v1394 = vor.u32 %v1391, %v1392
      %v1395 = vsel %vm1348, %v1383, %v1394
      %v1397 = vshrl.u32 %v1194, 16
      %v1399 = vrot.slane %v1397, 7
      %v1400 = vshll.u32 %v1194, 16
      %v1402 = vor.u32 %v1399, %v1400
      %v1403 = vsel %vm1348, %v1391, %v1402
      %v1405 = vshrl.u32 %v1195, 16
      %v1407 = vrot.slane %v1405, 7
      %v1408 = vshll.u32 %v1195, 16
      %v1410 = vor.u32 %v1407, %v1408
      %v1411 = vsel %vm1348, %v1399, %v1410
      %v1413 = vshrl.u32 %v1196, 16
      %v1415 = vrot.slane %v1413, 7
      %v1416 = vshll.u32 %v1196, 16
      %v1418 = vor.u32 %v1415, %v1416
      %v1419 = vsel %vm1348, %v1407, %v1418
      %v1421 = vshrl.u32 %v1197, 16
      %v1423 = vrot.slane %v1421, 7
      %v1424 = vshll.u32 %v1197, 16
      %v1426 = vor.u32 %v1423, %v1424
      %v1427 = vsel %vm1348, %v1415, %v1426
      %v1429 = vshrl.u32 %v1198, 16
      %v1431 = vrot.slane %v1429, 7
      %v1432 = vshll.u32 %v1198, 16
      %v1434 = vor.u32 %v1431, %v1432
      %v1435 = vsel %vm1348, %v1423, %v1434
      %v1437 = vshrl.u32 %v1199, 16
      %v1439 = vrot.slane %v1437, 7
      %v1440 = vshll.u32 %v1199, 16
      %v1442 = vor.u32 %v1439, %v1440
      %v1443 = vsel %vm1348, %v1431, %v1442
      %v1445 = vshrl.u32 %v1200, 16
      %v1447 = vrot.slane %v1445, 7
      %v1448 = vshll.u32 %v1200, 16
      %v1450 = vor.u32 %v1447, %v1448
      %v1451 = vsel %vm1348, %v1439, %v1450
      %v1453 = vshrl.u32 %v1201, 16
      %v1455 = vrot.slane %v1453, 7
      %v1456 = vshll.u32 %v1201, 16
      %v1458 = vor.u32 %v1455, %v1456
      %v1459 = vsel %vm1348, %v1447, %v1458
      %v1461 = vshrl.u32 %v1202, 16
      %v1463 = vrot.slane %v1461, 7
      %v1464 = vshll.u32 %v1202, 16
      %v1466 = vor.u32 %v1463, %v1464
      %v1467 = vsel %vm1348, %v1455, %v1466
      %vm1483 = vcmask 1040384
      %vm1484 = vmand %vm1483, %vm1348
      %v1485 = vsel %vm1484, 0, %v1355
      %vm1486 = vsmask.f32 7424
      %v1488 = vshll.u32 %v1332, 16
      %v1490 = vrot.slane %v1488, 1
      %v1491 = vshrl.u32 %v1332, 16
      %v1493 = vor.u32 %v1491, %v1490
      %v1495 = vshll.u32 %v1333, 16
      %v1497 = vrot.slane %v1495, 1
      %v1498 = vsel %vm1486, %v1493, %v1497
      %v1499 = vshrl.u32 %v1333, 16
      %v1501 = vor.u32 %v1499, %v1497
      %v1503 = vshll.u32 %v1334, 16
      %v1505 = vrot.slane %v1503, 1
      %v1506 = vsel %vm1486, %v1501, %v1505
      %v1507 = vshrl.u32 %v1334, 16
      %v1509 = vor.u32 %v1507, %v1505
      %v1511 = vshll.u32 %v1335, 16
      %v1513 = vrot.slane %v1511, 1
      %v1514 = vsel %vm1486, %v1509, %v1513
      %v1515 = vshrl.u32 %v1335, 16
      %v1517 = vor.u32 %v1515, %v1513
      %v1519 = vshll.u32 %v1336, 16
      %v1521 = vrot.slane %v1519, 1
      %v1522 = vsel %vm1486, %v1517, %v1521
      %v1523 = vshrl.u32 %v1336, 16
      %v1525 = vor.u32 %v1523, %v1521
      %v1527 = vshll.u32 %v1337, 16
      %v1529 = vrot.slane %v1527, 1
      %v1530 = vsel %vm1486, %v1525, %v1529
      %v1531 = vshrl.u32 %v1337, 16
      %v1533 = vor.u32 %v1531, %v1529
      %v1535 = vshll.u32 %v1338, 16
      %v1537 = vrot.slane %v1535, 1
      %v1538 = vsel %vm1486, %v1533, %v1537
      %v1539 = vshrl.u32 %v1338, 16
      %v1541 = vor.u32 %v1539, %v1537
      %v1543 = vshll.u32 %v1339, 16
      %v1545 = vrot.slane %v1543, 1
      %v1546 = vsel %vm1486, %v1541, %v1545
      %v1547 = vshrl.u32 %v1339, 16
      %v1549 = vor.u32 %v1547, %v1545
      %v1551 = vshll.u32 %v1340, 16
      %v1553 = vrot.slane %v1551, 1
      %v1554 = vsel %vm1486, %v1549, %v1553
      %v1555 = vshrl.u32 %v1340, 16
      %v1557 = vor.u32 %v1555, %v1553
      %v1559 = vshll.u32 %v1341, 16
      %v1561 = vrot.slane %v1559, 1
      %v1562 = vsel %vm1486, %v1557, %v1561
      %v1563 = vshrl.u32 %v1341, 16
      %v1565 = vor.u32 %v1563, %v1561
      %v1567 = vshll.u32 %v1342, 16
      %v1569 = vrot.slane %v1567, 1
      %v1570 = vsel %vm1486, %v1565, %v1569
      %v1571 = vshrl.u32 %v1342, 16
      %v1573 = vor.u32 %v1571, %v1569
      %v1575 = vshll.u32 %v1343, 16
      %v1577 = vrot.slane %v1575, 1
      %v1578 = vsel %vm1486, %v1573, %v1577
      %v1579 = vshrl.u32 %v1343, 16
      %v1581 = vor.u32 %v1579, %v1577
      %v1583 = vshll.u32 %v1344, 16
      %v1585 = vrot.slane %v1583, 1
      %v1586 = vsel %vm1486, %v1581, %v1585
      %v1587 = vshrl.u32 %v1344, 16
      %v1589 = vor.u32 %v1587, %v1585
      %v1591 = vshll.u32 %v1345, 16
      %v1593 = vrot.slane %v1591, 1
      %v1594 = vsel %vm1486, %v1589, %v1593
      %v1595 = vshrl.u32 %v1345, 16
      %v1597 = vor.u32 %v1595, %v1593
      %v1599 = vshll.u32 %v1346, 16
      %v1601 = vrot.slane %v1599, 1
      %v1602 = vsel %vm1486, %v1597, %v1601
      %v1603 = vshrl.u32 %v1346, 16
      %v1605 = vor.u32 %v1603, %v1601
      %v1607 = vshll.u32 %v1347, 16
      %v1609 = vrot.slane %v1607, 1
      %v1610 = vsel %vm1486, %v1605, %v1609
      %vm1627 = vcmask 1047552
      %vm1628 = vmand %vm1627, %vm1486
      %v1629 = vsel %vm1628, 0, %v1490
      %v1631 = vshrl.u32 %v1203, 16
      %v1633 = vrot.slane %v1631, 7
      %v1634 = vshll.u32 %v1203, 16
      %v1636 = vor.u32 %v1633, %v1634
      %v1637 = vsel %vm1348, %v1463, %v1636
      %v1639 = vshrl.u32 %v1347, 16
      %v1641 = vor.u32 %v1639, %v1609
      %v1643 = vsel %vm1628, %v1641, 0
      %v1645 = vsel %vm1484, %v1633, 0
      %v1646 = vld [vmem:[%s3] sm:$0xf]
      %v1647 = vld [vmem:[%s3 + $0x4] sm:$0xf]
      %v1648 = vld [vmem:[%s3 + $0x8] sm:$0xf]
      %v1649 = vld [vmem:[%s3 + $0xc] sm:$0xf]
      %v1650 = vld [vmem:[%s3 + $0x10] sm:$0xf]
      %v1651 = vld [vmem:[%s3 + $0x14] sm:$0xf]
      %v1652 = vld [vmem:[%s3 + $0x18] sm:$0xf]
      %v1653 = vld [vmem:[%s3 + $0x1c] sm:$0xf]
      %v1654 = vld [vmem:[%s3 + $0x20] sm:$0xf]
      %v1655 = vld [vmem:[%s3 + $0x24] sm:$0xf]
      %v1656 = vld [vmem:[%s3 + $0x28] sm:$0xf]
      %v1657 = vld [vmem:[%s3 + $0x2c] sm:$0xf]
      %v1658 = vld [vmem:[%s3 + $0x30] sm:$0xf]
      %v1659 = vld [vmem:[%s3 + $0x34] sm:$0xf]
      %v1660 = vld [vmem:[%s3 + $0x38] sm:$0xf]
      %v1661 = vld [vmem:[%s3 + $0x3c] sm:$0xf]
      %v1662 = vld [vmem:[%s3 + $0x40] sm:$0xf]
      %v1663 = vld [vmem:[%s3 + $0x44] sm:$0xf]
      %v1664 = vld [vmem:[%s3 + $0x48] sm:$0xf]
      %v1665 = vld [vmem:[%s3 + $0x4c] sm:$0xf]
      %v1666 = vld [vmem:[%s3 + $0x50] sm:$0xf]
      %v1667 = vld [vmem:[%s3 + $0x54] sm:$0xf]
      %v1668 = vld [vmem:[%s3 + $0x58] sm:$0xf]
      %v1669 = vld [vmem:[%s3 + $0x5c] sm:$0xf]
      %v1670 = vld [vmem:[%s3 + $0x60] sm:$0xf]
      %v1671 = vld [vmem:[%s3 + $0x64] sm:$0xf]
      %v1672 = vld [vmem:[%s3 + $0x68] sm:$0xf]
      %v1673 = vld [vmem:[%s3 + $0x6c] sm:$0xf]
      %v1674 = vld [vmem:[%s3 + $0x70] sm:$0xf]
      %v1675 = vld [vmem:[%s3 + $0x74] sm:$0xf]
      %v1676 = vld [vmem:[%s3 + $0x78] sm:$0xf]
      %v1677 = vld [vmem:[%s3 + $0x7c] sm:$0xf]
      %v1678 = vld [vmem:[%s3 + $0x80] sm:$0xf]
      %v1679 = vld [vmem:[%s3 + $0x84] sm:$0xf]
      %v1680 = vld [vmem:[%s3 + $0x88] sm:$0xf]
      %v1681 = vld [vmem:[%s3 + $0x8c] sm:$0xf]
      %v1682 = vld [vmem:[%s3 + $0x90] sm:$0xf]
      %v1683 = vld [vmem:[%s3 + $0x94] sm:$0xf]
      %v1684 = vld [vmem:[%s3 + $0x98] sm:$0xf]
      %v1685 = vld [vmem:[%s3 + $0x9c] sm:$0xf]
      %v1686 = vld [vmem:[%s3 + $0xa0] sm:$0xf]
      %v1687 = vld [vmem:[%s3 + $0xa4] sm:$0xf]
      %v1688 = vld [vmem:[%s3 + $0xa8] sm:$0xf]
      %v1689 = vld [vmem:[%s3 + $0xac] sm:$0xf]
      %v1690 = vld [vmem:[%s3 + $0xb0] sm:$0xf]
      %v1691 = vld [vmem:[%s3 + $0xb4] sm:$0xf]
      %v1692 = vld [vmem:[%s3 + $0xb8] sm:$0xf]
      %v1693 = vld [vmem:[%s3 + $0xbc] sm:$0xf]
      %v1694 = vld [vmem:[%s3 + $0xc0] sm:$0xf]
      %v1695 = vld [vmem:[%s3 + $0xc4] sm:$0xf]
      %v1696 = vld [vmem:[%s3 + $0xc8] sm:$0xf]
      %v1697 = vld [vmem:[%s3 + $0xcc] sm:$0xf]
      %v1698 = vld [vmem:[%s3 + $0xd0] sm:$0xf]
      %v1699 = vld [vmem:[%s3 + $0xd4] sm:$0xf]
      %v1700 = vld [vmem:[%s3 + $0xd8] sm:$0xf]
      %v1701 = vld [vmem:[%s3 + $0xdc] sm:$0xf]
      %v1702 = vld [vmem:[%s3 + $0xe0] sm:$0xf]
      %v1703 = vld [vmem:[%s3 + $0xe4] sm:$0xf]
      %v1704 = vld [vmem:[%s3 + $0xe8] sm:$0xf]
      %v1705 = vld [vmem:[%s3 + $0xec] sm:$0xf]
      %v1706 = vld [vmem:[%s3 + $0xf0] sm:$0xf]
      %v1707 = vld [vmem:[%s3 + $0xf4] sm:$0xf]
      %v1708 = vld [vmem:[%s3 + $0xf8] sm:$0xf]
      %v1709 = vld [vmem:[%s3 + $0xfc] sm:$0xf]
      %v1710 = vld [vmem:[%s3 + $0x100] sm:$0xf]
      %v1711 = vld [vmem:[%s3 + $0x104] sm:$0xf]
      %v1712 = vld [vmem:[%s3 + $0x108] sm:$0xf]
      %v1713 = vld [vmem:[%s3 + $0x10c] sm:$0xf]
      %v1714 = vld [vmem:[%s3 + $0x110] sm:$0xf]
      %v1715 = vld [vmem:[%s3 + $0x114] sm:$0xf]
      %v1716 = vld [vmem:[%s3 + $0x118] sm:$0xf]
      %v1717 = vld [vmem:[%s3 + $0x11c] sm:$0xf]
      %v1718 = vld [vmem:[%s3 + $0x120] sm:$0xf]
      %v1719 = vld [vmem:[%s3 + $0x124] sm:$0xf]
      %v1720 = vld [vmem:[%s3 + $0x128] sm:$0xf]
      %v1721 = vld [vmem:[%s3 + $0x12c] sm:$0xf]
      %v1722 = vld [vmem:[%s3 + $0x130] sm:$0xf]
      %v1723 = vld [vmem:[%s3 + $0x134] sm:$0xf]
      %v1724 = vld [vmem:[%s3 + $0x138] sm:$0xf]
      %v1725 = vld [vmem:[%s3 + $0x13c] sm:$0xf]
      %v1726 = vld [vmem:[%s3 + $0x140] sm:$0xf]
      %v1727 = vld [vmem:[%s3 + $0x144] sm:$0xf]
      %v1728 = vld [vmem:[%s3 + $0x148] sm:$0xf]
      %v1729 = vld [vmem:[%s3 + $0x14c] sm:$0xf]
      %v1730 = vld [vmem:[%s3 + $0x150] sm:$0xf]
      %v1731 = vld [vmem:[%s3 + $0x154] sm:$0xf]
      %v1732 = vld [vmem:[%s3 + $0x158] sm:$0xf]
      %v1733 = vld [vmem:[%s3 + $0x15c] sm:$0xf]
      %v1734 = vld [vmem:[%s3 + $0x160] sm:$0xf]
      %v1735 = vld [vmem:[%s3 + $0x164] sm:$0xf]
      %v1736 = vld [vmem:[%s3 + $0x168] sm:$0xf]
      %v1737 = vld [vmem:[%s3 + $0x16c] sm:$0xf]
      %v1738 = vld [vmem:[%s3 + $0x170] sm:$0xf]
      %v1739 = vld [vmem:[%s3 + $0x174] sm:$0xf]
      %v1740 = vld [vmem:[%s3 + $0x178] sm:$0xf]
      %v1741 = vld [vmem:[%s3 + $0x17c] sm:$0xf]
      %v1742 = vld [vmem:[%s3 + $0x180] sm:$0xf]
      %v1743 = vld [vmem:[%s3 + $0x184] sm:$0xf]
      %v1744 = vld [vmem:[%s3 + $0x188] sm:$0xf]
      %v1745 = vld [vmem:[%s3 + $0x18c] sm:$0xf]
      %v1746 = vld [vmem:[%s3 + $0x190] sm:$0xf]
      %v1747 = vld [vmem:[%s3 + $0x194] sm:$0xf]
      %v1748 = vld [vmem:[%s3 + $0x198] sm:$0xf]
      %v1749 = vld [vmem:[%s3 + $0x19c] sm:$0xf]
      %v1750 = vld [vmem:[%s3 + $0x1a0] sm:$0xf]
      %v1751 = vld [vmem:[%s3 + $0x1a4] sm:$0xf]
      %v1752 = vld [vmem:[%s3 + $0x1a8] sm:$0xf]
      %v1753 = vld [vmem:[%s3 + $0x1ac] sm:$0xf]
      %v1754 = vld [vmem:[%s3 + $0x1b0] sm:$0xf]
      %v1755 = vld [vmem:[%s3 + $0x1b4] sm:$0xf]
      %v1756 = vld [vmem:[%s3 + $0x1b8] sm:$0xf]
      %v1757 = vld [vmem:[%s3 + $0x1bc] sm:$0xf]
      %v1758 = vld [vmem:[%s3 + $0x1c0] sm:$0xf]
      %v1759 = vld [vmem:[%s3 + $0x1c4] sm:$0xf]
      %v1760 = vld [vmem:[%s3 + $0x1c8] sm:$0xf]
      %v1761 = vld [vmem:[%s3 + $0x1cc] sm:$0xf]
      %v1762 = vld [vmem:[%s3 + $0x1d0] sm:$0xf]
      %v1763 = vld [vmem:[%s3 + $0x1d4] sm:$0xf]
      %v1764 = vld [vmem:[%s3 + $0x1d8] sm:$0xf]
      %v1765 = vld [vmem:[%s3 + $0x1dc] sm:$0xf]
      %v1766 = vld [vmem:[%s3 + $0x1e0] sm:$0xf]
      %v1767 = vld [vmem:[%s3 + $0x1e4] sm:$0xf]
      %v1768 = vld [vmem:[%s3 + $0x1e8] sm:$0xf]
      %v1769 = vld [vmem:[%s3 + $0x1ec] sm:$0xf]
      %v1770 = vld [vmem:[%s3 + $0x1f0] sm:$0xf]
      %v1771 = vld [vmem:[%s3 + $0x1f4] sm:$0xf]
      %v1772 = vld [vmem:[%s3 + $0x1f8] sm:$0xf]
      %v1773 = vld [vmem:[%s3 + $0x1fc] sm:$0xf]
      %v1774 = vld [vmem:[%s3 + $0x200] sm:$0xf]
      %v1775 = vld [vmem:[%s3 + $0x204] sm:$0xf]
      %v1776 = vld [vmem:[%s3 + $0x208] sm:$0xf]
      %v1777 = vld [vmem:[%s3 + $0x20c] sm:$0xf]
      %v1778 = vld [vmem:[%s3 + $0x210] sm:$0xf]
      %v1779 = vld [vmem:[%s3 + $0x214] sm:$0xf]
      %v1780 = vld [vmem:[%s3 + $0x218] sm:$0xf]
      %v1781 = vld [vmem:[%s3 + $0x21c] sm:$0xf]
      %v1782 = vld [vmem:[%s3 + $0x220] sm:$0xf]
      %v1783 = vld [vmem:[%s3 + $0x224] sm:$0xf]
      %v1784 = vld [vmem:[%s3 + $0x228] sm:$0xf]
      %v1785 = vld [vmem:[%s3 + $0x22c] sm:$0xf]
      %v1786 = vld [vmem:[%s3 + $0x230] sm:$0xf]
      %v1787 = vld [vmem:[%s3 + $0x234] sm:$0xf]
      %v1788 = vld [vmem:[%s3 + $0x238] sm:$0xf]
      %v1789 = vld [vmem:[%s3 + $0x23c] sm:$0xf]
      %v1791 = vlaneseq
      %v1792 = vshrl.u32 %v1791, 7
      %v1793 = vsub.s32 0, %v1792
      %v1794 = vrot.slane %v1043, %v1793
      %v1940 = vunpack.c.l.b16 %v1646
      %v1941 = vunpack.c.l.b16 %v1647
      %v1942 = vunpack.c.l.b16 %v1648
      %v1943 = vunpack.c.l.b16 %v1649
      %v1944 = vunpack.c.l.b16 %v1650
      %v1945 = vunpack.c.l.b16 %v1651
      %v1946 = vunpack.c.l.b16 %v1652
      %v1947 = vunpack.c.l.b16 %v1653
      %v1948 = vunpack.c.l.b16 %v1654
      %v1949 = vunpack.c.l.b16 %v1655
      %v1950 = vunpack.c.l.b16 %v1656
      %v1951 = vunpack.c.l.b16 %v1657
      %v1952 = vunpack.c.l.b16 %v1658
      %v1953 = vunpack.c.l.b16 %v1659
      %v1954 = vunpack.c.l.b16 %v1660
      %v1955 = vunpack.c.l.b16 %v1661
      %v1956 = vunpack.c.l.b16 %v1662
      %v1957 = vunpack.c.l.b16 %v1663
      %v1958 = vunpack.c.l.b16 %v1664
      %v1959 = vunpack.c.l.b16 %v1665
      %v1960 = vunpack.c.l.b16 %v1666
      %v1961 = vunpack.c.l.b16 %v1667
      %v1962 = vunpack.c.l.b16 %v1668
      %v1963 = vunpack.c.l.b16 %v1669
      %v1964 = vunpack.c.l.b16 %v1670
      %v1965 = vunpack.c.l.b16 %v1671
      %v1966 = vunpack.c.l.b16 %v1672
      %v1967 = vunpack.c.l.b16 %v1673
      %v1968 = vunpack.c.l.b16 %v1674
      %v1969 = vunpack.c.l.b16 %v1675
      %v1970 = vunpack.c.l.b16 %v1676
      %v1971 = vunpack.c.l.b16 %v1677
      %v1972 = vunpack.c.l.b16 %v1678
      %v1973 = vunpack.c.l.b16 %v1679
      %v1974 = vunpack.c.l.b16 %v1680
      %v1975 = vunpack.c.l.b16 %v1681
      %v1976 = vunpack.c.l.b16 %v1682
      %v1977 = vunpack.c.l.b16 %v1683
      %v1978 = vunpack.c.l.b16 %v1684
      %v1979 = vunpack.c.l.b16 %v1685
      %v1980 = vunpack.c.l.b16 %v1686
      %v1981 = vunpack.c.l.b16 %v1687
      %v1982 = vunpack.c.l.b16 %v1688
      %v1983 = vunpack.c.l.b16 %v1689
      %v1984 = vunpack.c.l.b16 %v1690
      %v1985 = vunpack.c.l.b16 %v1691
      %v1986 = vunpack.c.l.b16 %v1692
      %v1987 = vunpack.c.l.b16 %v1693
      %v1988 = vunpack.c.l.b16 %v1694
      %v1989 = vunpack.c.l.b16 %v1695
      %v1990 = vunpack.c.l.b16 %v1696
      %v1991 = vunpack.c.l.b16 %v1697
      %v1992 = vunpack.c.l.b16 %v1698
      %v1993 = vunpack.c.l.b16 %v1699
      %v1994 = vunpack.c.l.b16 %v1700
      %v1995 = vunpack.c.l.b16 %v1701
      %v1996 = vunpack.c.l.b16 %v1702
      %v1997 = vunpack.c.l.b16 %v1703
      %v1998 = vunpack.c.l.b16 %v1704
      %v1999 = vunpack.c.l.b16 %v1705
      %v2000 = vunpack.c.l.b16 %v1706
      %v2001 = vunpack.c.l.b16 %v1707
      %v2002 = vunpack.c.l.b16 %v1708
      %v2003 = vunpack.c.l.b16 %v1709
      %v2004 = vunpack.c.l.b16 %v1710
      %v2005 = vunpack.c.l.b16 %v1711
      %v2006 = vunpack.c.l.b16 %v1712
      %v2007 = vunpack.c.l.b16 %v1713
      %v2008 = vunpack.c.l.b16 %v1714
      %v2009 = vunpack.c.l.b16 %v1715
      %v2010 = vunpack.c.l.b16 %v1716
      %v2011 = vunpack.c.l.b16 %v1717
      %v2012 = vunpack.c.l.b16 %v1718
      %v2013 = vunpack.c.l.b16 %v1719
      %v2014 = vunpack.c.l.b16 %v1720
      %v2015 = vunpack.c.l.b16 %v1721
      %v2016 = vunpack.c.l.b16 %v1722
      %v2017 = vunpack.c.l.b16 %v1723
      %v2018 = vunpack.c.l.b16 %v1724
      %v2019 = vunpack.c.l.b16 %v1725
      %v2020 = vunpack.c.l.b16 %v1726
      %v2021 = vunpack.c.l.b16 %v1727
      %v2022 = vunpack.c.l.b16 %v1728
      %v2023 = vunpack.c.l.b16 %v1729
      %v2024 = vunpack.c.l.b16 %v1730
      %v2025 = vunpack.c.l.b16 %v1731
      %v2026 = vunpack.c.l.b16 %v1732
      %v2027 = vunpack.c.l.b16 %v1733
      %v2028 = vunpack.c.l.b16 %v1734
      %v2029 = vunpack.c.l.b16 %v1735
      %v2030 = vunpack.c.l.b16 %v1736
      %v2031 = vunpack.c.l.b16 %v1737
      %v2032 = vunpack.c.l.b16 %v1738
      %v2033 = vunpack.c.l.b16 %v1739
      %v2034 = vunpack.c.l.b16 %v1740
      %v2035 = vunpack.c.l.b16 %v1741
      %v2036 = vunpack.c.l.b16 %v1742
      %v2037 = vunpack.c.l.b16 %v1743
      %v2038 = vunpack.c.l.b16 %v1744
      %v2039 = vunpack.c.l.b16 %v1745
      %v2040 = vunpack.c.l.b16 %v1746
      %v2041 = vunpack.c.l.b16 %v1747
      %v2042 = vunpack.c.l.b16 %v1748
      %v2043 = vunpack.c.l.b16 %v1749
      %v2044 = vunpack.c.l.b16 %v1750
      %v2045 = vunpack.c.l.b16 %v1751
      %v2046 = vunpack.c.l.b16 %v1752
      %v2047 = vunpack.c.l.b16 %v1753
      %v2048 = vunpack.c.l.b16 %v1754
      %v2049 = vunpack.c.l.b16 %v1755
      %v2050 = vunpack.c.l.b16 %v1756
      %v2051 = vunpack.c.l.b16 %v1757
      %v2052 = vunpack.c.l.b16 %v1758
      %v2053 = vunpack.c.l.b16 %v1759
      %v2054 = vunpack.c.l.b16 %v1760
      %v2055 = vunpack.c.l.b16 %v1761
      %v2056 = vunpack.c.l.b16 %v1762
      %v2057 = vunpack.c.l.b16 %v1763
      %v2058 = vunpack.c.l.b16 %v1764
      %v2059 = vunpack.c.l.b16 %v1765
      %v2060 = vunpack.c.l.b16 %v1766
      %v2061 = vunpack.c.l.b16 %v1767
      %v2062 = vunpack.c.l.b16 %v1768
      %v2063 = vunpack.c.l.b16 %v1769
      %v2064 = vunpack.c.l.b16 %v1770
      %v2065 = vunpack.c.l.b16 %v1771
      %v2066 = vunpack.c.l.b16 %v1772
      %v2067 = vunpack.c.l.b16 %v1773
      %v2068 = vunpack.c.l.b16 %v1774
      %v2069 = vunpack.c.l.b16 %v1775
      %v2070 = vunpack.c.l.b16 %v1776
      %v2071 = vunpack.c.l.b16 %v1777
      %v2072 = vunpack.c.l.b16 %v1778
      %v2073 = vunpack.c.l.b16 %v1779
      %v2074 = vunpack.c.l.b16 %v1780
      %v2075 = vunpack.c.l.b16 %v1781
      %v2076 = vunpack.c.l.b16 %v1782
      %v2077 = vunpack.c.l.b16 %v1783
      %v2078 = vunpack.c.l.b16 %v1784
      %v2079 = vunpack.c.l.b16 %v1785
      %v2080 = vunpack.c.l.b16 %v1786
      %v2081 = vunpack.c.l.b16 %v1787
      %v2082 = vunpack.c.l.b16 %v1788
      %v2083 = vunpack.c.l.b16 %v1789
      %v2084 = vpack.c.b16 %v1941, %v1940
      %v2085 = vpack.c.b16 %v1943, %v1942
      %v2086 = vpack.c.b16 %v1945, %v1944
      %v2087 = vpack.c.b16 %v1947, %v1946
      %v2088 = vpack.c.b16 %v1949, %v1948
      %v2089 = vpack.c.b16 %v1951, %v1950
      %v2090 = vpack.c.b16 %v1953, %v1952
      %v2091 = vpack.c.b16 %v1955, %v1954
      %v2092 = vpack.c.b16 %v1957, %v1956
      %v2093 = vpack.c.b16 %v1959, %v1958
      %v2094 = vpack.c.b16 %v1961, %v1960
      %v2095 = vpack.c.b16 %v1963, %v1962
      %v2096 = vpack.c.b16 %v1965, %v1964
      %v2097 = vpack.c.b16 %v1967, %v1966
      %v2098 = vpack.c.b16 %v1969, %v1968
      %v2099 = vpack.c.b16 %v1971, %v1970
      %v2100 = vpack.c.b16 %v1973, %v1972
      %v2101 = vpack.c.b16 %v1975, %v1974
      %v2102 = vpack.c.b16 %v1977, %v1976
      %v2103 = vpack.c.b16 %v1979, %v1978
      %v2104 = vpack.c.b16 %v1981, %v1980
      %v2105 = vpack.c.b16 %v1983, %v1982
      %v2106 = vpack.c.b16 %v1985, %v1984
      %v2107 = vpack.c.b16 %v1987, %v1986
      %v2108 = vpack.c.b16 %v1989, %v1988
      %v2109 = vpack.c.b16 %v1991, %v1990
      %v2110 = vpack.c.b16 %v1993, %v1992
      %v2111 = vpack.c.b16 %v1995, %v1994
      %v2112 = vpack.c.b16 %v1997, %v1996
      %v2113 = vpack.c.b16 %v1999, %v1998
      %v2114 = vpack.c.b16 %v2001, %v2000
      %v2115 = vpack.c.b16 %v2003, %v2002
      %v2116 = vpack.c.b16 %v2005, %v2004
      %v2117 = vpack.c.b16 %v2007, %v2006
      %v2118 = vpack.c.b16 %v2009, %v2008
      %v2119 = vpack.c.b16 %v2011, %v2010
      %v2120 = vpack.c.b16 %v2013, %v2012
      %v2121 = vpack.c.b16 %v2015, %v2014
      %v2122 = vpack.c.b16 %v2017, %v2016
      %v2123 = vpack.c.b16 %v2019, %v2018
      %v2124 = vpack.c.b16 %v2021, %v2020
      %v2125 = vpack.c.b16 %v2023, %v2022
      %v2126 = vpack.c.b16 %v2025, %v2024
      %v2127 = vpack.c.b16 %v2027, %v2026
      %v2128 = vpack.c.b16 %v2029, %v2028
      %v2129 = vpack.c.b16 %v2031, %v2030
      %v2130 = vpack.c.b16 %v2033, %v2032
      %v2131 = vpack.c.b16 %v2035, %v2034
      %v2132 = vpack.c.b16 %v2037, %v2036
      %v2133 = vpack.c.b16 %v2039, %v2038
      %v2134 = vpack.c.b16 %v2041, %v2040
      %v2135 = vpack.c.b16 %v2043, %v2042
      %v2136 = vpack.c.b16 %v2045, %v2044
      %v2137 = vpack.c.b16 %v2047, %v2046
      %v2138 = vpack.c.b16 %v2049, %v2048
      %v2139 = vpack.c.b16 %v2051, %v2050
      %v2140 = vpack.c.b16 %v2053, %v2052
      %v2141 = vpack.c.b16 %v2055, %v2054
      %v2142 = vpack.c.b16 %v2057, %v2056
      %v2143 = vpack.c.b16 %v2059, %v2058
      %v2144 = vpack.c.b16 %v2061, %v2060
      %v2145 = vpack.c.b16 %v2063, %v2062
      %v2146 = vpack.c.b16 %v2065, %v2064
      %v2147 = vpack.c.b16 %v2067, %v2066
      %v2148 = vpack.c.b16 %v2069, %v2068
      %v2149 = vpack.c.b16 %v2071, %v2070
      %v2150 = vpack.c.b16 %v2073, %v2072
      %v2151 = vpack.c.b16 %v2075, %v2074
      %v2152 = vpack.c.b16 %v2077, %v2076
      %v2153 = vpack.c.b16 %v2079, %v2078
      %v2154 = vpack.c.b16 %v2081, %v2080
      %v2155 = vpack.c.b16 %v2083, %v2082
      %2228 = vmatprep.subr.bf16.mxu0 0
      %2229 = vmatpush1.bf16.msra.mxu0 %v2084
      %2230 = vmatprep.subr.bf16.mxu0 0
      %2231 = vmatpush1.bf16.msra.mxu0 %v2085
      %2232 = vmatprep.subr.bf16.mxu0 0
      %2233 = vmatpush1.bf16.msra.mxu0 %v2086
      %2234 = vmatprep.subr.bf16.mxu0 0
      %2235 = vmatpush1.bf16.msra.mxu0 %v2087
      %2236 = vmatprep.subr.bf16.mxu0 0
      %2237 = vmatpush1.bf16.msra.mxu0 %v2088
      %2238 = vmatprep.subr.bf16.mxu0 0
      %2239 = vmatpush1.bf16.msra.mxu0 %v2089
      %2240 = vmatprep.subr.bf16.mxu0 0
      %2241 = vmatpush1.bf16.msra.mxu0 %v2090
      %2242 = vmatprep.subr.bf16.mxu0 0
      %2243 = vmatpush1.bf16.msra.mxu0 %v2091
      %2244 = vmatprep.subr.bf16.mxu0 0
      %2245 = vmatpush1.bf16.msra.mxu0 %v2092
      %2246 = vmatprep.subr.bf16.mxu0 0
      %2247 = vmatpush1.bf16.msra.mxu0 %v2093
      %2248 = vmatprep.subr.bf16.mxu0 0
      %2249 = vmatpush1.bf16.msra.mxu0 %v2094
      %2250 = vmatprep.subr.bf16.mxu0 0
      %2251 = vmatpush1.bf16.msra.mxu0 %v2095
      %2252 = vmatprep.subr.bf16.mxu0 0
      %2253 = vmatpush1.bf16.msra.mxu0 %v2096
      %2254 = vmatprep.subr.bf16.mxu0 0
      %2255 = vmatpush1.bf16.msra.mxu0 %v2097
      %2256 = vmatprep.subr.bf16.mxu0 0
      %2257 = vmatpush1.bf16.msra.mxu0 %v2098
      %2258 = vmatprep.subr.bf16.mxu0 0
      %2259 = vmatpush1.bf16.msra.mxu0 %v2099
      %2260 = vmatprep.mubr.bf16.mxu0 0
      %2261 = vmatmul.mubr.bf16.gmra.mrb[0].mxu0 0
      %v2262 = vpop.f32.mrb[0].mxu0
      %v2263 = vadd.f32 %v1794, %v2262
      %v2264 = vpop.f32.mrb[0].mxu0
      %v2265 = vpop.f32.mrb[0].mxu0
      %v2266 = vadd.f32 %v1794, %v2265
      %v2267 = vpop.f32.mrb[0].mxu0
      %2268 = vmatprep.mubr.bf16.mxu0 %v1044
      %2269 = vmatmul.mubr.bf16.gmra.mrb[0].mxu0 %v1485
      %v2270 = vpop.f32.mrb[0].mxu0
      %v2271 = vadd.f32 %v1794, %v2270
      %v2272 = vpop.f32.mrb[0].mxu0
      %v2273 = vpop.f32.mrb[0].mxu0
      %v2274 = vadd.f32 %v1794, %v2273
      %v2275 = vpop.f32.mrb[0].mxu0
      %2276 = vmatprep.mubr.bf16.mxu0 %v1045
      %2277 = vmatmul.mubr.bf16.gmra.mrb[0].mxu0 %v1363
      %v2278 = vpop.f32.mrb[0].mxu0
      %v2279 = vadd.f32 %v1794, %v2278
      %v2280 = vpop.f32.mrb[0].mxu0
      %v2281 = vpop.f32.mrb[0].mxu0
      %v2282 = vadd.f32 %v1794, %v2281
      %v2283 = vpop.f32.mrb[0].mxu0
      %2284 = vmatprep.mubr.bf16.mxu0 %v1046
      %2285 = vmatmul.mubr.bf16.gmra.mrb[0].mxu0 %v1371
      %v2286 = vpop.f32.mrb[0].mxu0
      %v2287 = vadd.f32 %v1794, %v2286
      %v2288 = vpop.f32.mrb[0].mxu0
      %v2289 = vpop.f32.mrb[0].mxu0
      %v2290 = vadd.f32 %v1794, %v2289
      %v2291 = vpop.f32.mrb[0].mxu0
      %2292 = vmatprep.mubr.bf16.mxu0 %v1047
      %2293 = vmatmul.mubr.bf16.gmra.mrb[0].mxu0 %v1379
      %v2294 = vpop.f32.mrb[0].mxu0
      %v2295 = vadd.f32 %v1794, %v2294
      %v2296 = vpop.f32.mrb[0].mxu0
      %v2297 = vpop.f32.mrb[0].mxu0
      %v2298 = vadd.f32 %v1794, %v2297
      %v2299 = vpop.f32.mrb[0].mxu0
      %2300 = vmatprep.mubr.bf16.mxu0 %v1048
      %2301 = vmatmul.mubr.bf16.gmra.mrb[0].mxu0 %v1387
      %v2302 = vpop.f32.mrb[0].mxu0
      %v2303 = vadd.f32 %v1794, %v2302
      %v2304 = vpop.f32.mrb[0].mxu0
      %v2305 = vpop.f32.mrb[0].mxu0
      %v2306 = vadd.f32 %v1794, %v2305
      %v2307 = vpop.f32.mrb[0].mxu0
      %2308 = vmatprep.mubr.bf16.mxu0 %v1049
      %2309 = vmatmul.mubr.bf16.gmra.mrb[0].mxu0 %v1395
      %v2310 = vpop.f32.mrb[0].mxu0
      %v2311 = vadd.f32 %v1794, %v2310
      %v2312 = vpop.f32.mrb[0].mxu0
      %v2313 = vpop.f32.mrb[0].mxu0
      %v2314 = vadd.f32 %v1794, %v2313
      %v2315 = vpop.f32.mrb[0].mxu0
      %2316 = vmatprep.mubr.bf16.mxu0 %v1050
      %2317 = vmatmul.mubr.bf16.gmra.mrb[0].mxu0 %v1403
      %v2318 = vpop.f32.mrb[0].mxu0
      %v2319 = vadd.f32 %v1794, %v2318
      %v2320 = vpop.f32.mrb[0].mxu0
      %v2321 = vpop.f32.mrb[0].mxu0
      %v2322 = vadd.f32 %v1794, %v2321
      %v2323 = vpop.f32.mrb[0].mxu0
      %2324 = vmatprep.mubr.bf16.mxu0 %v1051
      %2325 = vmatmul.mubr.bf16.gmra.mrb[0].mxu0 %v1411
      %v2326 = vpop.f32.mrb[0].mxu0
      %v2327 = vadd.f32 %v1794, %v2326
      %v2328 = vpop.f32.mrb[0].mxu0
      %v2329 = vpop.f32.mrb[0].mxu0
      %v2330 = vadd.f32 %v1794, %v2329
      %v2331 = vpop.f32.mrb[0].mxu0
      %2332 = vmatprep.mubr.bf16.mxu0 %v1052
      %2333 = vmatmul.mubr.bf16.gmra.mrb[0].mxu0 %v1419
      %v2334 = vpop.f32.mrb[0].mxu0
      %v2335 = vadd.f32 %v1794, %v2334
      %v2336 = vpop.f32.mrb[0].mxu0
      %v2337 = vpop.f32.mrb[0].mxu0
      %v2338 = vadd.f32 %v1794, %v2337
      %v2339 = vpop.f32.mrb[0].mxu0
      %2340 = vmatprep.mubr.bf16.mxu0 %v1053
      %2341 = vmatmul.mubr.bf16.gmra.mrb[0].mxu0 %v1427
      %v2342 = vpop.f32.mrb[0].mxu0
      %v2343 = vadd.f32 %v1794, %v2342
      %v2344 = vpop.f32.mrb[0].mxu0
      %v2345 = vpop.f32.mrb[0].mxu0
      %v2346 = vadd.f32 %v1794, %v2345
      %v2347 = vpop.f32.mrb[0].mxu0
      %2348 = vmatprep.mubr.bf16.mxu0 %v1054
      %2349 = vmatmul.mubr.bf16.gmra.mrb[0].mxu0 %v1435
      %v2350 = vpop.f32.mrb[0].mxu0
      %v2351 = vadd.f32 %v1794, %v2350
      %v2352 = vpop.f32.mrb[0].mxu0
      %v2353 = vpop.f32.mrb[0].mxu0
      %v2354 = vadd.f32 %v1794, %v2353
      %v2355 = vpop.f32.mrb[0].mxu0
      %2356 = vmatprep.mubr.bf16.mxu0 %v1055
      %2357 = vmatmul.mubr.bf16.gmra.mrb[0].mxu0 %v1443
      %v2358 = vpop.f32.mrb[0].mxu0
      %v2359 = vadd.f32 %v1794, %v2358
      %v2360 = vpop.f32.mrb[0].mxu0
      %v2361 = vpop.f32.mrb[0].mxu0
      %v2362 = vadd.f32 %v1794, %v2361
      %v2363 = vpop.f32.mrb[0].mxu0
      %2364 = vmatprep.mubr.bf16.mxu0 %v1056
      %2365 = vmatmul.mubr.bf16.gmra.mrb[0].mxu0 %v1451
      %v2366 = vpop.f32.mrb[0].mxu0
      %v2367 = vadd.f32 %v1794, %v2366
      %v2368 = vpop.f32.mrb[0].mxu0
      %v2369 = vpop.f32.mrb[0].mxu0
      %v2370 = vadd.f32 %v1794, %v2369
      %v2371 = vpop.f32.mrb[0].mxu0
      %2372 = vmatprep.mubr.bf16.mxu0 %v1057
      %2373 = vmatmul.mubr.bf16.gmra.mrb[0].mxu0 %v1459
      %v2374 = vpop.f32.mrb[0].mxu0
      %v2375 = vadd.f32 %v1794, %v2374
      %v2376 = vpop.f32.mrb[0].mxu0
      %v2377 = vpop.f32.mrb[0].mxu0
      %v2378 = vadd.f32 %v1794, %v2377
      %v2379 = vpop.f32.mrb[0].mxu0
      %2380 = vmatprep.mubr.bf16.mxu0 %v1058
      %2381 = vmatmul.mubr.bf16.gmra.mrb[0].mxu0 %v1467
      %v2382 = vpop.f32.mrb[0].mxu0
      %v2383 = vadd.f32 %v1794, %v2382
      %v2384 = vpop.f32.mrb[0].mxu0
      %v2385 = vpop.f32.mrb[0].mxu0
      %v2386 = vadd.f32 %v1794, %v2385
      %v2387 = vpop.f32.mrb[0].mxu0
      %2388 = vdwg.mxu0
      %2389 = vmatprep.subr.bf16.mxu0 0
      %2390 = vmatpush1.bf16.msra.mxu0 %v2100
      %2391 = vmatprep.subr.bf16.mxu0 0
      %2392 = vmatpush1.bf16.msra.mxu0 %v2101
      %2393 = vmatprep.subr.bf16.mxu0 0
      %2394 = vmatpush1.bf16.msra.mxu0 %v2102
      %2395 = vmatprep.subr.bf16.mxu0 0
      %2396 = vmatpush1.bf16.msra.mxu0 %v2103
      %2397 = vmatprep.subr.bf16.mxu0 0
      %2398 = vmatpush1.bf16.msra.mxu0 %v2104
      %2399 = vmatprep.subr.bf16.mxu0 0
      %2400 = vmatpush1.bf16.msra.mxu0 %v2105
      %2401 = vmatprep.subr.bf16.mxu0 0
      %2402 = vmatpush1.bf16.msra.mxu0 %v2106
      %2403 = vmatprep.subr.bf16.mxu0 0
      %2404 = vmatpush1.bf16.msra.mxu0 %v2107
      %2405 = vmatprep.subr.bf16.mxu0 0
      %2406 = vmatpush1.bf16.msra.mxu0 %v2108
      %2407 = vmatprep.subr.bf16.mxu0 0
      %2408 = vmatpush1.bf16.msra.mxu0 %v2109
      %2409 = vmatprep.subr.bf16.mxu0 0
      %2410 = vmatpush1.bf16.msra.mxu0 %v2110
      %2411 = vmatprep.subr.bf16.mxu0 0
      %2412 = vmatpush1.bf16.msra.mxu0 %v2111
      %2413 = vmatprep.subr.bf16.mxu0 0
      %2414 = vmatpush1.bf16.msra.mxu0 %v2112
      %2415 = vmatprep.subr.bf16.mxu0 0
      %2416 = vmatpush1.bf16.msra.mxu0 %v2113
      %2417 = vmatprep.subr.bf16.mxu0 0
      %2418 = vmatpush1.bf16.msra.mxu0 %v2114
      %2419 = vmatprep.subr.bf16.mxu0 0
      %2420 = vmatpush1.bf16.msra.mxu0 %v2115
      %2421 = vmatprep.mubr.bf16.mxu0 %v1485
      %2422 = vmatmul.mubr.bf16.gmra.mrb[0].mxu0 %v1629
      %v2423 = vpop.f32.mrb[0].mxu0
      %v2424 = vadd.f32 %v2263, %v2423
      %v2425 = vpop.f32.mrb[0].mxu0
      %v2426 = vpop.f32.mrb[0].mxu0
      %v2427 = vadd.f32 %v2266, %v2426
      %v2428 = vpop.f32.mrb[0].mxu0
      %2429 = vmatprep.mubr.bf16.mxu0 %v1363
      %2430 = vmatmul.mubr.bf16.gmra.mrb[0].mxu0 %v1498
      %v2431 = vpop.f32.mrb[0].mxu0
      %v2432 = vadd.f32 %v2271, %v2431
      %v2433 = vpop.f32.mrb[0].mxu0
      %v2434 = vpop.f32.mrb[0].mxu0
      %v2435 = vadd.f32 %v2274, %v2434
      %v2436 = vpop.f32.mrb[0].mxu0
      %2437 = vmatprep.mubr.bf16.mxu0 %v1371
      %2438 = vmatmul.mubr.bf16.gmra.mrb[0].mxu0 %v1506
      %v2439 = vpop.f32.mrb[0].mxu0
      %v2440 = vadd.f32 %v2279, %v2439
      %v2441 = vpop.f32.mrb[0].mxu0
      %v2442 = vpop.f32.mrb[0].mxu0
      %v2443 = vadd.f32 %v2282, %v2442
      %v2444 = vpop.f32.mrb[0].mxu0
      %2445 = vmatprep.mubr.bf16.mxu0 %v1379
      %2446 = vmatmul.mubr.bf16.gmra.mrb[0].mxu0 %v1514
      %v2447 = vpop.f32.mrb[0].mxu0
      %v2448 = vadd.f32 %v2287, %v2447
      %v2449 = vpop.f32.mrb[0].mxu0
      %v2450 = vpop.f32.mrb[0].mxu0
      %v2451 = vadd.f32 %v2290, %v2450
      %v2452 = vpop.f32.mrb[0].mxu0
      %2453 = vmatprep.mubr.bf16.mxu0 %v1387
      %2454 = vmatmul.mubr.bf16.gmra.mrb[0].mxu0 %v1522
      %v2455 = vpop.f32.mrb[0].mxu0
      %v2456 = vadd.f32 %v2295, %v2455
      %v2457 = vpop.f32.mrb[0].mxu0
      %v2458 = vpop.f32.mrb[0].mxu0
      %v2459 = vadd.f32 %v2298, %v2458
      %v2460 = vpop.f32.mrb[0].mxu0
      %2461 = vmatprep.mubr.bf16.mxu0 %v1395
      %2462 = vmatmul.mubr.bf16.gmra.mrb[0].mxu0 %v1530
      %v2463 = vpop.f32.mrb[0].mxu0
      %v2464 = vadd.f32 %v2303, %v2463
      %v2465 = vpop.f32.mrb[0].mxu0
      %v2466 = vpop.f32.mrb[0].mxu0
      %v2467 = vadd.f32 %v2306, %v2466
      %v2468 = vpop.f32.mrb[0].mxu0
      %2469 = vmatprep.mubr.bf16.mxu0 %v1403
      %2470 = vmatmul.mubr.bf16.gmra.mrb[0].mxu0 %v1538
      %v2471 = vpop.f32.mrb[0].mxu0
      %v2472 = vadd.f32 %v2311, %v2471
      %v2473 = vpop.f32.mrb[0].mxu0
      %v2474 = vpop.f32.mrb[0].mxu0
      %v2475 = vadd.f32 %v2314, %v2474
      %v2476 = vpop.f32.mrb[0].mxu0
      %2477 = vmatprep.mubr.bf16.mxu0 %v1411
      %2478 = vmatmul.mubr.bf16.gmra.mrb[0].mxu0 %v1546
      %v2479 = vpop.f32.mrb[0].mxu0
      %v2480 = vadd.f32 %v2319, %v2479
      %v2481 = vpop.f32.mrb[0].mxu0
      %v2482 = vpop.f32.mrb[0].mxu0
      %v2483 = vadd.f32 %v2322, %v2482
      %v2484 = vpop.f32.mrb[0].mxu0
      %2485 = vmatprep.mubr.bf16.mxu0 %v1419
      %2486 = vmatmul.mubr.bf16.gmra.mrb[0].mxu0 %v1554
      %v2487 = vpop.f32.mrb[0].mxu0
      %v2488 = vadd.f32 %v2327, %v2487
      %v2489 = vpop.f32.mrb[0].mxu0
      %v2490 = vpop.f32.mrb[0].mxu0
      %v2491 = vadd.f32 %v2330, %v2490
      %v2492 = vpop.f32.mrb[0].mxu0
      %2493 = vmatprep.mubr.bf16.mxu0 %v1427
      %2494 = vmatmul.mubr.bf16.gmra.mrb[0].mxu0 %v1562
      %v2495 = vpop.f32.mrb[0].mxu0
      %v2496 = vadd.f32 %v2335, %v2495
      %v2497 = vpop.f32.mrb[0].mxu0
      %v2498 = vpop.f32.mrb[0].mxu0
      %v2499 = vadd.f32 %v2338, %v2498
      %v2500 = vpop.f32.mrb[0].mxu0
      %2501 = vmatprep.mubr.bf16.mxu0 %v1435
      %2502 = vmatmul.mubr.bf16.gmra.mrb[0].mxu0 %v1570
      %v2503 = vpop.f32.mrb[0].mxu0
      %v2504 = vadd.f32 %v2343, %v2503
      %v2505 = vpop.f32.mrb[0].mxu0
      %v2506 = vpop.f32.mrb[0].mxu0
      %v2507 = vadd.f32 %v2346, %v2506
      %v2508 = vpop.f32.mrb[0].mxu0
      %2509 = vmatprep.mubr.bf16.mxu0 %v1443
      %2510 = vmatmul.mubr.bf16.gmra.mrb[0].mxu0 %v1578
      %v2511 = vpop.f32.mrb[0].mxu0
      %v2512 = vadd.f32 %v2351, %v2511
      %v2513 = vpop.f32.mrb[0].mxu0
      %v2514 = vpop.f32.mrb[0].mxu0
      %v2515 = vadd.f32 %v2354, %v2514
      %v2516 = vpop.f32.mrb[0].mxu0
      %2517 = vmatprep.mubr.bf16.mxu0 %v1451
      %2518 = vmatmul.mubr.bf16.gmra.mrb[0].mxu0 %v1586
      %v2519 = vpop.f32.mrb[0].mxu0
      %v2520 = vadd.f32 %v2359, %v2519
      %v2521 = vpop.f32.mrb[0].mxu0
      %v2522 = vpop.f32.mrb[0].mxu0
      %v2523 = vadd.f32 %v2362, %v2522
      %v2524 = vpop.f32.mrb[0].mxu0
      %2525 = vmatprep.mubr.bf16.mxu0 %v1459
      %2526 = vmatmul.mubr.bf16.gmra.mrb[0].mxu0 %v1594
      %v2527 = vpop.f32.mrb[0].mxu0
      %v2528 = vadd.f32 %v2367, %v2527
      %v2529 = vpop.f32.mrb[0].mxu0
      %v2530 = vpop.f32.mrb[0].mxu0
      %v2531 = vadd.f32 %v2370, %v2530
      %v2532 = vpop.f32.mrb[0].mxu0
      %2533 = vmatprep.mubr.bf16.mxu0 %v1467
      %2534 = vmatmul.mubr.bf16.gmra.mrb[0].mxu0 %v1602
      %v2535 = vpop.f32.mrb[0].mxu0
      %v2536 = vadd.f32 %v2375, %v2535
      %v2537 = vpop.f32.mrb[0].mxu0
      %v2538 = vpop.f32.mrb[0].mxu0
      %v2539 = vadd.f32 %v2378, %v2538
      %v2540 = vpop.f32.mrb[0].mxu0
      %2541 = vmatprep.mubr.bf16.mxu0 %v1637
      %2542 = vmatmul.mubr.bf16.gmra.mrb[0].mxu0 %v1610
      %v2543 = vpop.f32.mrb[0].mxu0
      %v2544 = vadd.f32 %v2383, %v2543
      %v2545 = vpop.f32.mrb[0].mxu0
      %v2546 = vpop.f32.mrb[0].mxu0
      %v2547 = vadd.f32 %v2386, %v2546
      %v2548 = vpop.f32.mrb[0].mxu0
      %2549 = vdwg.mxu0
      %2550 = vmatprep.subr.bf16.mxu0 0
      %2551 = vmatpush1.bf16.msra.mxu0 %v2116
      %2552 = vmatprep.subr.bf16.mxu0 0
      %2553 = vmatpush1.bf16.msra.mxu0 %v2117
      %2554 = vmatprep.subr.bf16.mxu0 0
      %2555 = vmatpush1.bf16.msra.mxu0 %v2118
      %2556 = vmatprep.subr.bf16.mxu0 0
      %2557 = vmatpush1.bf16.msra.mxu0 %v2119
      %2558 = vmatprep.subr.bf16.mxu0 0
      %2559 = vmatpush1.bf16.msra.mxu0 %v2120
      %2560 = vmatprep.subr.bf16.mxu0 0
      %2561 = vmatpush1.bf16.msra.mxu0 %v2121
      %2562 = vmatprep.subr.bf16.mxu0 0
      %2563 = vmatpush1.bf16.msra.mxu0 %v2122
      %2564 = vmatprep.subr.bf16.mxu0 0
      %2565 = vmatpush1.bf16.msra.mxu0 %v2123
      %2566 = vmatprep.subr.bf16.mxu0 0
      %2567 = vmatpush1.bf16.msra.mxu0 %v2124
      %2568 = vmatprep.subr.bf16.mxu0 0
      %2569 = vmatpush1.bf16.msra.mxu0 %v2125
      %2570 = vmatprep.subr.bf16.mxu0 0
      %2571 = vmatpush1.bf16.msra.mxu0 %v2126
      %2572 = vmatprep.subr.bf16.mxu0 0
      %2573 = vmatpush1.bf16.msra.mxu0 %v2127
      %2574 = vmatprep.subr.bf16.mxu0 0
      %2575 = vmatpush1.bf16.msra.mxu0 %v2128
      %2576 = vmatprep.subr.bf16.mxu0 0
      %2577 = vmatpush1.bf16.msra.mxu0 %v2129
      %2578 = vmatprep.subr.bf16.mxu0 0
      %2579 = vmatpush1.bf16.msra.mxu0 %v2130
      %2580 = vmatprep.subr.bf16.mxu0 0
      %2581 = vmatpush1.bf16.msra.mxu0 %v2131
      %2582 = vmatprep.mubr.bf16.mxu0 %v1498
      %2583 = vmatmul.mubr.bf16.gmra.mrb[0].mxu0 %v1044
      %v2584 = vpop.f32.mrb[0].mxu0
      %v2585 = vadd.f32 %v2424, %v2584
      %v2586 = vpop.f32.mrb[0].mxu0
      %v2587 = vpop.f32.mrb[0].mxu0
      %v2588 = vadd.f32 %v2427, %v2587
      %v2589 = vpop.f32.mrb[0].mxu0
      %2590 = vmatprep.mubr.bf16.mxu0 %v1506
      %2591 = vmatmul.mubr.bf16.gmra.mrb[0].mxu0 %v1045
      %v2592 = vpop.f32.mrb[0].mxu0
      %v2593 = vadd.f32 %v2432, %v2592
      %v2594 = vpop.f32.mrb[0].mxu0
      %v2595 = vpop.f32.mrb[0].mxu0
      %v2596 = vadd.f32 %v2435, %v2595
      %v2597 = vpop.f32.mrb[0].mxu0
      %2598 = vmatprep.mubr.bf16.mxu0 %v1514
      %2599 = vmatmul.mubr.bf16.gmra.mrb[0].mxu0 %v1046
      %v2600 = vpop.f32.mrb[0].mxu0
      %v2601 = vadd.f32 %v2440, %v2600
      %v2602 = vpop.f32.mrb[0].mxu0
      %v2603 = vpop.f32.mrb[0].mxu0
      %v2604 = vadd.f32 %v2443, %v2603
      %v2605 = vpop.f32.mrb[0].mxu0
      %2606 = vmatprep.mubr.bf16.mxu0 %v1522
      %2607 = vmatmul.mubr.bf16.gmra.mrb[0].mxu0 %v1047
      %v2608 = vpop.f32.mrb[0].mxu0
      %v2609 = vadd.f32 %v2448, %v2608
      %v2610 = vpop.f32.mrb[0].mxu0
      %v2611 = vpop.f32.mrb[0].mxu0
      %v2612 = vadd.f32 %v2451, %v2611
      %v2613 = vpop.f32.mrb[0].mxu0
      %2614 = vmatprep.mubr.bf16.mxu0 %v1530
      %2615 = vmatmul.mubr.bf16.gmra.mrb[0].mxu0 %v1048
      %v2616 = vpop.f32.mrb[0].mxu0
      %v2617 = vadd.f32 %v2456, %v2616
      %v2618 = vpop.f32.mrb[0].mxu0
      %v2619 = vpop.f32.mrb[0].mxu0
      %v2620 = vadd.f32 %v2459, %v2619
      %v2621 = vpop.f32.mrb[0].mxu0
      %2622 = vmatprep.mubr.bf16.mxu0 %v1538
      %2623 = vmatmul.mubr.bf16.gmra.mrb[0].mxu0 %v1049
      %v2624 = vpop.f32.mrb[0].mxu0
      %v2625 = vadd.f32 %v2464, %v2624
      %v2626 = vpop.f32.mrb[0].mxu0
      %v2627 = vpop.f32.mrb[0].mxu0
      %v2628 = vadd.f32 %v2467, %v2627
      %v2629 = vpop.f32.mrb[0].mxu0
      %2630 = vmatprep.mubr.bf16.mxu0 %v1546
      %2631 = vmatmul.mubr.bf16.gmra.mrb[0].mxu0 %v1050
      %v2632 = vpop.f32.mrb[0].mxu0
      %v2633 = vadd.f32 %v2472, %v2632
      %v2634 = vpop.f32.mrb[0].mxu0
      %v2635 = vpop.f32.mrb[0].mxu0
      %v2636 = vadd.f32 %v2475, %v2635
      %v2637 = vpop.f32.mrb[0].mxu0
      %2638 = vmatprep.mubr.bf16.mxu0 %v1554
      %2639 = vmatmul.mubr.bf16.gmra.mrb[0].mxu0 %v1051
      %v2640 = vpop.f32.mrb[0].mxu0
      %v2641 = vadd.f32 %v2480, %v2640
      %v2642 = vpop.f32.mrb[0].mxu0
      %v2643 = vpop.f32.mrb[0].mxu0
      %v2644 = vadd.f32 %v2483, %v2643
      %v2645 = vpop.f32.mrb[0].mxu0
      %2646 = vmatprep.mubr.bf16.mxu0 %v1562
      %2647 = vmatmul.mubr.bf16.gmra.mrb[0].mxu0 %v1052
      %v2648 = vpop.f32.mrb[0].mxu0
      %v2649 = vadd.f32 %v2488, %v2648
      %v2650 = vpop.f32.mrb[0].mxu0
      %v2651 = vpop.f32.mrb[0].mxu0
      %v2652 = vadd.f32 %v2491, %v2651
      %v2653 = vpop.f32.mrb[0].mxu0
      %2654 = vmatprep.mubr.bf16.mxu0 %v1570
      %2655 = vmatmul.mubr.bf16.gmra.mrb[0].mxu0 %v1053
      %v2656 = vpop.f32.mrb[0].mxu0
      %v2657 = vadd.f32 %v2496, %v2656
      %v2658 = vpop.f32.mrb[0].mxu0
      %v2659 = vpop.f32.mrb[0].mxu0
      %v2660 = vadd.f32 %v2499, %v2659
      %v2661 = vpop.f32.mrb[0].mxu0
      %2662 = vmatprep.mubr.bf16.mxu0 %v1578
      %2663 = vmatmul.mubr.bf16.gmra.mrb[0].mxu0 %v1054
      %v2664 = vpop.f32.mrb[0].mxu0
      %v2665 = vadd.f32 %v2504, %v2664
      %v2666 = vpop.f32.mrb[0].mxu0
      %v2667 = vpop.f32.mrb[0].mxu0
      %v2668 = vadd.f32 %v2507, %v2667
      %v2669 = vpop.f32.mrb[0].mxu0
      %2670 = vmatprep.mubr.bf16.mxu0 %v1586
      %2671 = vmatmul.mubr.bf16.gmra.mrb[0].mxu0 %v1055
      %v2672 = vpop.f32.mrb[0].mxu0
      %v2673 = vadd.f32 %v2512, %v2672
      %v2674 = vpop.f32.mrb[0].mxu0
      %v2675 = vpop.f32.mrb[0].mxu0
      %v2676 = vadd.f32 %v2515, %v2675
      %v2677 = vpop.f32.mrb[0].mxu0
      %2678 = vmatprep.mubr.bf16.mxu0 %v1594
      %2679 = vmatmul.mubr.bf16.gmra.mrb[0].mxu0 %v1056
      %v2680 = vpop.f32.mrb[0].mxu0
      %v2681 = vadd.f32 %v2520, %v2680
      %v2682 = vpop.f32.mrb[0].mxu0
      %v2683 = vpop.f32.mrb[0].mxu0
      %v2684 = vadd.f32 %v2523, %v2683
      %v2685 = vpop.f32.mrb[0].mxu0
      %2686 = vmatprep.mubr.bf16.mxu0 %v1602
      %2687 = vmatmul.mubr.bf16.gmra.mrb[0].mxu0 %v1057
      %v2688 = vpop.f32.mrb[0].mxu0
      %v2689 = vadd.f32 %v2528, %v2688
      %v2690 = vpop.f32.mrb[0].mxu0
      %v2691 = vpop.f32.mrb[0].mxu0
      %v2692 = vadd.f32 %v2531, %v2691
      %v2693 = vpop.f32.mrb[0].mxu0
      %2694 = vmatprep.mubr.bf16.mxu0 %v1610
      %2695 = vmatmul.mubr.bf16.gmra.mrb[0].mxu0 %v1058
      %v2696 = vpop.f32.mrb[0].mxu0
      %v2697 = vadd.f32 %v2536, %v2696
      %v2698 = vpop.f32.mrb[0].mxu0
      %v2699 = vpop.f32.mrb[0].mxu0
      %v2700 = vadd.f32 %v2539, %v2699
      %v2701 = vpop.f32.mrb[0].mxu0
      %2702 = vmatprep.mubr.bf16.mxu0 %v1643
      %2703 = vmatmul.mubr.bf16.gmra.mrb[0].mxu0 %v1059
      %v2704 = vpop.f32.mrb[0].mxu0
      %v2705 = vadd.f32 %v2544, %v2704
      %v2706 = vpop.f32.mrb[0].mxu0
      %v2707 = vpop.f32.mrb[0].mxu0
      %v2708 = vadd.f32 %v2547, %v2707
      %v2709 = vpop.f32.mrb[0].mxu0
      %2710 = vdwg.mxu0
      %2711 = vmatprep.subr.bf16.mxu0 0
      %2712 = vmatpush1.bf16.msra.mxu0 %v2132
      %2713 = vmatprep.subr.bf16.mxu0 0
      %2714 = vmatpush1.bf16.msra.mxu0 %v2133
      %2715 = vmatprep.subr.bf16.mxu0 0
      %2716 = vmatpush1.bf16.msra.mxu0 %v2134
      %2717 = vmatprep.subr.bf16.mxu0 0
      %2718 = vmatpush1.bf16.msra.mxu0 %v2135
      %2719 = vmatprep.subr.bf16.mxu0 0
      %2720 = vmatpush1.bf16.msra.mxu0 %v2136
      %2721 = vmatprep.subr.bf16.mxu0 0
      %2722 = vmatpush1.bf16.msra.mxu0 %v2137
      %2723 = vmatprep.subr.bf16.mxu0 0
      %2724 = vmatpush1.bf16.msra.mxu0 %v2138
      %2725 = vmatprep.subr.bf16.mxu0 0
      %2726 = vmatpush1.bf16.msra.mxu0 %v2139
      %2727 = vmatprep.subr.bf16.mxu0 0
      %2728 = vmatpush1.bf16.msra.mxu0 %v2140
      %2729 = vmatprep.subr.bf16.mxu0 0
      %2730 = vmatpush1.bf16.msra.mxu0 %v2141
      %2731 = vmatprep.subr.bf16.mxu0 0
      %2732 = vmatpush1.bf16.msra.mxu0 %v2142
      %2733 = vmatprep.subr.bf16.mxu0 0
      %2734 = vmatpush1.bf16.msra.mxu0 %v2143
      %2735 = vmatprep.subr.bf16.mxu0 0
      %2736 = vmatpush1.bf16.msra.mxu0 %v2144
      %2737 = vmatprep.subr.bf16.mxu0 0
      %2738 = vmatpush1.bf16.msra.mxu0 %v2145
      %2739 = vmatprep.subr.bf16.mxu0 0
      %2740 = vmatpush1.bf16.msra.mxu0 %v2146
      %2741 = vmatprep.subr.bf16.mxu0 0
      %2742 = vmatpush1.bf16.msra.mxu0 %v2147
      %2743 = vmatprep.mubr.bf16.mxu0 %v1045
      %2744 = vmatmul.mubr.bf16.gmra.mrb[0].mxu0 %v1363
      %v2745 = vpop.f32.mrb[0].mxu0
      %v2746 = vadd.f32 %v2585, %v2745
      %v2747 = vpop.f32.mrb[0].mxu0
      %v2748 = vpop.f32.mrb[0].mxu0
      %v2749 = vadd.f32 %v2588, %v2748
      %v2750 = vpop.f32.mrb[0].mxu0
      %2751 = vmatprep.mubr.bf16.mxu0 %v1046
      %2752 = vmatmul.mubr.bf16.gmra.mrb[0].mxu0 %v1371
      %v2753 = vpop.f32.mrb[0].mxu0
      %v2754 = vadd.f32 %v2593, %v2753
      %v2755 = vpop.f32.mrb[0].mxu0
      %v2756 = vpop.f32.mrb[0].mxu0
      %v2757 = vadd.f32 %v2596, %v2756
      %v2758 = vpop.f32.mrb[0].mxu0
      %2759 = vmatprep.mubr.bf16.mxu0 %v1047
      %2760 = vmatmul.mubr.bf16.gmra.mrb[0].mxu0 %v1379
      %v2761 = vpop.f32.mrb[0].mxu0
      %v2762 = vadd.f32 %v2601, %v2761
      %v2763 = vpop.f32.mrb[0].mxu0
      %v2764 = vpop.f32.mrb[0].mxu0
      %v2765 = vadd.f32 %v2604, %v2764
      %v2766 = vpop.f32.mrb[0].mxu0
      %2767 = vmatprep.mubr.bf16.mxu0 %v1048
      %2768 = vmatmul.mubr.bf16.gmra.mrb[0].mxu0 %v1387
      %v2769 = vpop.f32.mrb[0].mxu0
      %v2770 = vadd.f32 %v2609, %v2769
      %v2771 = vpop.f32.mrb[0].mxu0
      %v2772 = vpop.f32.mrb[0].mxu0
      %v2773 = vadd.f32 %v2612, %v2772
      %v2774 = vpop.f32.mrb[0].mxu0
      %2775 = vmatprep.mubr.bf16.mxu0 %v1049
      %2776 = vmatmul.mubr.bf16.gmra.mrb[0].mxu0 %v1395
      %v2777 = vpop.f32.mrb[0].mxu0
      %v2778 = vadd.f32 %v2617, %v2777
      %v2779 = vpop.f32.mrb[0].mxu0
      %v2780 = vpop.f32.mrb[0].mxu0
      %v2781 = vadd.f32 %v2620, %v2780
      %v2782 = vpop.f32.mrb[0].mxu0
      %2783 = vmatprep.mubr.bf16.mxu0 %v1050
      %2784 = vmatmul.mubr.bf16.gmra.mrb[0].mxu0 %v1403
      %v2785 = vpop.f32.mrb[0].mxu0
      %v2786 = vadd.f32 %v2625, %v2785
      %v2787 = vpop.f32.mrb[0].mxu0
      %v2788 = vpop.f32.mrb[0].mxu0
      %v2789 = vadd.f32 %v2628, %v2788
      %v2790 = vpop.f32.mrb[0].mxu0
      %2791 = vmatprep.mubr.bf16.mxu0 %v1051
      %2792 = vmatmul.mubr.bf16.gmra.mrb[0].mxu0 %v1411
      %v2793 = vpop.f32.mrb[0].mxu0
      %v2794 = vadd.f32 %v2633, %v2793
      %v2795 = vpop.f32.mrb[0].mxu0
      %v2796 = vpop.f32.mrb[0].mxu0
      %v2797 = vadd.f32 %v2636, %v2796
      %v2798 = vpop.f32.mrb[0].mxu0
      %2799 = vmatprep.mubr.bf16.mxu0 %v1052
      %2800 = vmatmul.mubr.bf16.gmra.mrb[0].mxu0 %v1419
      %v2801 = vpop.f32.mrb[0].mxu0
      %v2802 = vadd.f32 %v2641, %v2801
      %v2803 = vpop.f32.mrb[0].mxu0
      %v2804 = vpop.f32.mrb[0].mxu0
      %v2805 = vadd.f32 %v2644, %v2804
      %v2806 = vpop.f32.mrb[0].mxu0
      %2807 = vmatprep.mubr.bf16.mxu0 %v1053
      %2808 = vmatmul.mubr.bf16.gmra.mrb[0].mxu0 %v1427
      %v2809 = vpop.f32.mrb[0].mxu0
      %v2810 = vadd.f32 %v2649, %v2809
      %v2811 = vpop.f32.mrb[0].mxu0
      %v2812 = vpop.f32.mrb[0].mxu0
      %v2813 = vadd.f32 %v2652, %v2812
      %v2814 = vpop.f32.mrb[0].mxu0
      %2815 = vmatprep.mubr.bf16.mxu0 %v1054
      %2816 = vmatmul.mubr.bf16.gmra.mrb[0].mxu0 %v1435
      %v2817 = vpop.f32.mrb[0].mxu0
      %v2818 = vadd.f32 %v2657, %v2817
      %v2819 = vpop.f32.mrb[0].mxu0
      %v2820 = vpop.f32.mrb[0].mxu0
      %v2821 = vadd.f32 %v2660, %v2820
      %v2822 = vpop.f32.mrb[0].mxu0
      %2823 = vmatprep.mubr.bf16.mxu0 %v1055
      %2824 = vmatmul.mubr.bf16.gmra.mrb[0].mxu0 %v1443
      %v2825 = vpop.f32.mrb[0].mxu0
      %v2826 = vadd.f32 %v2665, %v2825
      %v2827 = vpop.f32.mrb[0].mxu0
      %v2828 = vpop.f32.mrb[0].mxu0
      %v2829 = vadd.f32 %v2668, %v2828
      %v2830 = vpop.f32.mrb[0].mxu0
      %2831 = vmatprep.mubr.bf16.mxu0 %v1056
      %2832 = vmatmul.mubr.bf16.gmra.mrb[0].mxu0 %v1451
      %v2833 = vpop.f32.mrb[0].mxu0
      %v2834 = vadd.f32 %v2673, %v2833
      %v2835 = vpop.f32.mrb[0].mxu0
      %v2836 = vpop.f32.mrb[0].mxu0
      %v2837 = vadd.f32 %v2676, %v2836
      %v2838 = vpop.f32.mrb[0].mxu0
      %2839 = vmatprep.mubr.bf16.mxu0 %v1057
      %2840 = vmatmul.mubr.bf16.gmra.mrb[0].mxu0 %v1459
      %v2841 = vpop.f32.mrb[0].mxu0
      %v2842 = vadd.f32 %v2681, %v2841
      %v2843 = vpop.f32.mrb[0].mxu0
      %v2844 = vpop.f32.mrb[0].mxu0
      %v2845 = vadd.f32 %v2684, %v2844
      %v2846 = vpop.f32.mrb[0].mxu0
      %2847 = vmatprep.mubr.bf16.mxu0 %v1058
      %2848 = vmatmul.mubr.bf16.gmra.mrb[0].mxu0 %v1467
      %v2849 = vpop.f32.mrb[0].mxu0
      %v2850 = vadd.f32 %v2689, %v2849
      %v2851 = vpop.f32.mrb[0].mxu0
      %v2852 = vpop.f32.mrb[0].mxu0
      %v2853 = vadd.f32 %v2692, %v2852
      %v2854 = vpop.f32.mrb[0].mxu0
      %2855 = vmatprep.mubr.bf16.mxu0 %v1059
      %2856 = vmatmul.mubr.bf16.gmra.mrb[0].mxu0 %v1637
      %v2857 = vpop.f32.mrb[0].mxu0
      %v2858 = vadd.f32 %v2697, %v2857
      %v2859 = vpop.f32.mrb[0].mxu0
      %v2860 = vpop.f32.mrb[0].mxu0
      %v2861 = vadd.f32 %v2700, %v2860
      %v2862 = vpop.f32.mrb[0].mxu0
      %2863 = vmatprep.mubr.bf16.mxu0 0
      %2864 = vmatmul.mubr.bf16.gmra.mrb[0].mxu0 %v1645
      %v2865 = vpop.f32.mrb[0].mxu0
      %v2866 = vadd.f32 %v2705, %v2865
      %v2867 = vpop.f32.mrb[0].mxu0
      %v2868 = vpop.f32.mrb[0].mxu0
      %v2869 = vadd.f32 %v2708, %v2868
      %v2870 = vpop.f32.mrb[0].mxu0
      %2871 = vdwg.mxu0
      %2872 = vmatprep.subr.bf16.mxu0 0
      %2873 = vmatpush1.bf16.msra.mxu0 %v2148
      %2874 = vmatprep.subr.bf16.mxu0 0
      %2875 = vmatpush1.bf16.msra.mxu0 %v2149
      %2876 = vmatprep.subr.bf16.mxu0 0
      %2877 = vmatpush1.bf16.msra.mxu0 %v2150
      %2878 = vmatprep.subr.bf16.mxu0 0
      %2879 = vmatpush1.bf16.msra.mxu0 %v2151
      %2880 = vmatprep.subr.bf16.mxu0 0
      %2881 = vmatpush1.bf16.msra.mxu0 %v2152
      %2882 = vmatprep.subr.bf16.mxu0 0
      %2883 = vmatpush1.bf16.msra.mxu0 %v2153
      %2884 = vmatprep.subr.bf16.mxu0 0
      %2885 = vmatpush1.bf16.msra.mxu0 %v2154
      %2886 = vmatprep.subr.bf16.mxu0 0
      %2887 = vmatpush1.bf16.msra.mxu0 %v2155
      %2888 = vmatprep.subr.bf16.mxu0 0
      %2889 = vmatpush1.bf16.msra.mxu0 0
      %2890 = vmatprep.subr.bf16.mxu0 0
      %2891 = vmatpush1.bf16.msra.mxu0 0
      %2892 = vmatprep.subr.bf16.mxu0 0
      %2893 = vmatpush1.bf16.msra.mxu0 0
      %2894 = vmatprep.subr.bf16.mxu0 0
      %2895 = vmatpush1.bf16.msra.mxu0 0
      %2896 = vmatprep.subr.bf16.mxu0 0
      %2897 = vmatpush1.bf16.msra.mxu0 0
      %2898 = vmatprep.subr.bf16.mxu0 0
      %2899 = vmatpush1.bf16.msra.mxu0 0
      %2900 = vmatprep.subr.bf16.mxu0 0
      %2901 = vmatpush1.bf16.msra.mxu0 0
      %2902 = vmatprep.subr.bf16.mxu0 0
      %2903 = vmatpush1.bf16.msra.mxu0 0
      %2904 = vmatprep.mubr.bf16.mxu0 0
      %2905 = vmatmul.mubr.bf16.gmra.mrb[0].mxu0 %v1506
      %v2906 = vpop.f32.mrb[0].mxu0
      %v2907 = vadd.f32 %v2746, %v2906
      %v2908 = vpop.f32.mrb[0].mxu0
      %v2909 = vpop.f32.mrb[0].mxu0
      %v2910 = vadd.f32 %v2749, %v2909
      %v2911 = vpop.f32.mrb[0].mxu0
      %2912 = vmatprep.mubr.bf16.mxu0 0
      %2913 = vmatmul.mubr.bf16.gmra.mrb[0].mxu0 %v1514
      %v2914 = vpop.f32.mrb[0].mxu0
      %v2915 = vadd.f32 %v2754, %v2914
      %v2916 = vpop.f32.mrb[0].mxu0
      %v2917 = vpop.f32.mrb[0].mxu0
      %v2918 = vadd.f32 %v2757, %v2917
      %v2919 = vpop.f32.mrb[0].mxu0
      %2920 = vmatprep.mubr.bf16.mxu0 0
      %2921 = vmatmul.mubr.bf16.gmra.mrb[0].mxu0 %v1522
      %v2922 = vpop.f32.mrb[0].mxu0
      %v2923 = vadd.f32 %v2762, %v2922
      %v2924 = vpop.f32.mrb[0].mxu0
      %v2925 = vpop.f32.mrb[0].mxu0
      %v2926 = vadd.f32 %v2765, %v2925
      %v2927 = vpop.f32.mrb[0].mxu0
      %2928 = vmatprep.mubr.bf16.mxu0 0
      %2929 = vmatmul.mubr.bf16.gmra.mrb[0].mxu0 %v1530
      %v2930 = vpop.f32.mrb[0].mxu0
      %v2931 = vadd.f32 %v2770, %v2930
      %v2932 = vpop.f32.mrb[0].mxu0
      %v2933 = vpop.f32.mrb[0].mxu0
      %v2934 = vadd.f32 %v2773, %v2933
      %v2935 = vpop.f32.mrb[0].mxu0
      %2936 = vmatprep.mubr.bf16.mxu0 0
      %2937 = vmatmul.mubr.bf16.gmra.mrb[0].mxu0 %v1538
      %v2938 = vpop.f32.mrb[0].mxu0
      %v2939 = vadd.f32 %v2778, %v2938
      %v2940 = vpop.f32.mrb[0].mxu0
      %v2941 = vpop.f32.mrb[0].mxu0
      %v2942 = vadd.f32 %v2781, %v2941
      %v2943 = vpop.f32.mrb[0].mxu0
      %2944 = vmatprep.mubr.bf16.mxu0 0
      %2945 = vmatmul.mubr.bf16.gmra.mrb[0].mxu0 %v1546
      %v2946 = vpop.f32.mrb[0].mxu0
      %v2947 = vadd.f32 %v2786, %v2946
      %v2948 = vpop.f32.mrb[0].mxu0
      %v2949 = vpop.f32.mrb[0].mxu0
      %v2950 = vadd.f32 %v2789, %v2949
      %v2951 = vpop.f32.mrb[0].mxu0
      %2952 = vmatprep.mubr.bf16.mxu0 0
      %2953 = vmatmul.mubr.bf16.gmra.mrb[0].mxu0 %v1554
      %v2954 = vpop.f32.mrb[0].mxu0
      %v2955 = vadd.f32 %v2794, %v2954
      %v2956 = vpop.f32.mrb[0].mxu0
      %v2957 = vpop.f32.mrb[0].mxu0
      %v2958 = vadd.f32 %v2797, %v2957
      %v2959 = vpop.f32.mrb[0].mxu0
      %2960 = vmatprep.mubr.bf16.mxu0 0
      %2961 = vmatmul.mubr.bf16.gmra.mrb[0].mxu0 %v1562
      %v2962 = vpop.f32.mrb[0].mxu0
      %v2963 = vadd.f32 %v2802, %v2962
      %v2964 = vpop.f32.mrb[0].mxu0
      %v2965 = vpop.f32.mrb[0].mxu0
      %v2966 = vadd.f32 %v2805, %v2965
      %v2967 = vpop.f32.mrb[0].mxu0
      %2968 = vmatprep.mubr.bf16.mxu0 0
      %2969 = vmatmul.mubr.bf16.gmra.mrb[0].mxu0 %v1570
      %v2970 = vpop.f32.mrb[0].mxu0
      %v2971 = vadd.f32 %v2810, %v2970
      %v2972 = vpop.f32.mrb[0].mxu0
      %v2973 = vpop.f32.mrb[0].mxu0
      %v2974 = vadd.f32 %v2813, %v2973
      %v2975 = vpop.f32.mrb[0].mxu0
      %2976 = vmatprep.mubr.bf16.mxu0 0
      %2977 = vmatmul.mubr.bf16.gmra.mrb[0].mxu0 %v1578
      %v2978 = vpop.f32.mrb[0].mxu0
      %v2979 = vadd.f32 %v2818, %v2978
      %v2980 = vpop.f32.mrb[0].mxu0
      %v2981 = vpop.f32.mrb[0].mxu0
      %v2982 = vadd.f32 %v2821, %v2981
      %v2983 = vpop.f32.mrb[0].mxu0
      %2984 = vmatprep.mubr.bf16.mxu0 0
      %2985 = vmatmul.mubr.bf16.gmra.mrb[0].mxu0 %v1586
      %v2986 = vpop.f32.mrb[0].mxu0
      %v2987 = vadd.f32 %v2826, %v2986
      %v2988 = vpop.f32.mrb[0].mxu0
      %v2989 = vpop.f32.mrb[0].mxu0
      %v2990 = vadd.f32 %v2829, %v2989
      %v2991 = vpop.f32.mrb[0].mxu0
      %2992 = vmatprep.mubr.bf16.mxu0 0
      %2993 = vmatmul.mubr.bf16.gmra.mrb[0].mxu0 %v1594
      %v2994 = vpop.f32.mrb[0].mxu0
      %v2995 = vadd.f32 %v2834, %v2994
      %v2996 = vpop.f32.mrb[0].mxu0
      %v2997 = vpop.f32.mrb[0].mxu0
      %v2998 = vadd.f32 %v2837, %v2997
      %v2999 = vpop.f32.mrb[0].mxu0
      %3000 = vmatprep.mubr.bf16.mxu0 0
      %3001 = vmatmul.mubr.bf16.gmra.mrb[0].mxu0 %v1602
      %v3002 = vpop.f32.mrb[0].mxu0
      %v3003 = vadd.f32 %v2842, %v3002
      %v3004 = vpop.f32.mrb[0].mxu0
      %v3005 = vpop.f32.mrb[0].mxu0
      %v3006 = vadd.f32 %v2845, %v3005
      %v3007 = vpop.f32.mrb[0].mxu0
      %3008 = vmatprep.mubr.bf16.mxu0 0
      %3009 = vmatmul.mubr.bf16.gmra.mrb[0].mxu0 %v1610
      %v3010 = vpop.f32.mrb[0].mxu0
      %v3011 = vadd.f32 %v2850, %v3010
      %v3012 = vpop.f32.mrb[0].mxu0
      %v3013 = vpop.f32.mrb[0].mxu0
      %v3014 = vadd.f32 %v2853, %v3013
      %v3015 = vpop.f32.mrb[0].mxu0
      %3016 = vmatprep.mubr.bf16.mxu0 0
      %3017 = vmatmul.mubr.bf16.gmra.mrb[0].mxu0 %v1643
      %v3018 = vpop.f32.mrb[0].mxu0
      %v3019 = vadd.f32 %v2858, %v3018
      %v3020 = vpop.f32.mrb[0].mxu0
      %v3021 = vpop.f32.mrb[0].mxu0
      %v3022 = vadd.f32 %v2861, %v3021
      %v3023 = vpop.f32.mrb[0].mxu0
      %3024 = vmatprep.mubr.bf16.mxu0 0
      %3025 = vmatmul.mubr.bf16.gmra.mrb[0].mxu0 0
      %v3026 = vpop.f32.mrb[0].mxu0
      %v3027 = vadd.f32 %v2866, %v3026
      %v3028 = vpop.f32.mrb[0].mxu0
      %v3029 = vpop.f32.mrb[0].mxu0
      %v3030 = vadd.f32 %v2869, %v3029
      %v3031 = vpop.f32.mrb[0].mxu0
      %3032 = vdwg.mxu0
      %v3033 = vmax.f32 %v2907, 0.0
      %v3034 = vmax.f32 %v2910, 0.0
      %v3035 = vmax.f32 %v2915, 0.0
      %v3036 = vmax.f32 %v2918, 0.0
      %v3037 = vmax.f32 %v2923, 0.0
      %v3038 = vmax.f32 %v2926, 0.0
      %v3039 = vmax.f32 %v2931, 0.0
      %v3040 = vmax.f32 %v2934, 0.0
      %v3041 = vmax.f32 %v2939, 0.0
      %v3042 = vmax.f32 %v2942, 0.0
      %v3043 = vmax.f32 %v2947, 0.0
      %v3044 = vmax.f32 %v2950, 0.0
      %v3045 = vmax.f32 %v2955, 0.0
      %v3046 = vmax.f32 %v2958, 0.0
      %v3047 = vmax.f32 %v2963, 0.0
      %v3048 = vmax.f32 %v2966, 0.0
      %v3049 = vmax.f32 %v2971, 0.0
      %v3050 = vmax.f32 %v2974, 0.0
      %v3051 = vmax.f32 %v2979, 0.0
      %v3052 = vmax.f32 %v2982, 0.0
      %v3053 = vmax.f32 %v2987, 0.0
      %v3054 = vmax.f32 %v2990, 0.0
      %v3055 = vmax.f32 %v2995, 0.0
      %v3056 = vmax.f32 %v2998, 0.0
      %v3057 = vmax.f32 %v3003, 0.0
      %v3058 = vmax.f32 %v3006, 0.0
      %v3059 = vmax.f32 %v3011, 0.0
      %v3060 = vmax.f32 %v3014, 0.0
      %v3061 = vmax.f32 %v3019, 0.0
      %v3062 = vmax.f32 %v3022, 0.0
      %v3063 = vmax.f32 %v3027, 0.0
      %v3064 = vmax.f32 %v3030, 0.0
      %v3065 = vadd.f32 %v917, %v3033
      %v3066 = vadd.f32 %v920, %v3034
      %v3067 = vadd.f32 %v925, %v3035
      %v3068 = vadd.f32 %v928, %v3036
      %v3069 = vadd.f32 %v933, %v3037
      %v3070 = vadd.f32 %v936, %v3038
      %v3071 = vadd.f32 %v941, %v3039
      %v3072 = vadd.f32 %v944, %v3040
      %v3073 = vadd.f32 %v949, %v3041
      %v3074 = vadd.f32 %v952, %v3042
      %v3075 = vadd.f32 %v957, %v3043
      %v3076 = vadd.f32 %v960, %v3044
      %v3077 = vadd.f32 %v965, %v3045
      %v3078 = vadd.f32 %v968, %v3046
      %v3079 = vadd.f32 %v973, %v3047
      %v3080 = vadd.f32 %v976, %v3048
      %v3081 = vadd.f32 %v981, %v3049
      %v3082 = vadd.f32 %v984, %v3050
      %v3083 = vadd.f32 %v989, %v3051
      %v3084 = vadd.f32 %v992, %v3052
      %v3085 = vadd.f32 %v997, %v3053
      %v3086 = vadd.f32 %v1000, %v3054
      %v3087 = vadd.f32 %v1005, %v3055
      %v3088 = vadd.f32 %v1008, %v3056
      %v3089 = vadd.f32 %v1013, %v3057
      %v3090 = vadd.f32 %v1016, %v3058
      %v3091 = vadd.f32 %v1021, %v3059
      %v3092 = vadd.f32 %v1024, %v3060
      %v3093 = vadd.f32 %v1029, %v3061
      %v3094 = vadd.f32 %v1032, %v3062
      %v3095 = vadd.f32 %v1037, %v3063
      %v3096 = vadd.f32 %v1040, %v3064
      %v3097 = vpack.c.bf16 %v3066, %v3065
      %v3098 = vpack.c.bf16 %v3068, %v3067
      %v3099 = vpack.c.bf16 %v3070, %v3069
      %v3100 = vpack.c.bf16 %v3072, %v3071
      %v3101 = vpack.c.bf16 %v3074, %v3073
      %v3102 = vpack.c.bf16 %v3076, %v3075
      %v3103 = vpack.c.bf16 %v3078, %v3077
      %v3104 = vpack.c.bf16 %v3080, %v3079
      %v3105 = vpack.c.bf16 %v3082, %v3081
      %v3106 = vpack.c.bf16 %v3084, %v3083
      %v3107 = vpack.c.bf16 %v3086, %v3085
      %v3108 = vpack.c.bf16 %v3088, %v3087
      %v3109 = vpack.c.bf16 %v3090, %v3089
      %v3110 = vpack.c.bf16 %v3092, %v3091
      %v3111 = vpack.c.bf16 %v3094, %v3093
      %v3112 = vpack.c.bf16 %v3096, %v3095
      %v3113 = vsel %vm1172, %v3097, 0
      %v3114 = vsel %vm1173, %v3098, 0
      %v3115 = vsel %vm1174, %v3099, 0
      %v3116 = vsel %vm1175, %v3100, 0
      %v3117 = vsel %vm1176, %v3101, 0
      %v3118 = vsel %vm1177, %v3102, 0
      %v3119 = vsel %vm1178, %v3103, 0
      %v3120 = vsel %vm1179, %v3104, 0
      %v3121 = vsel %vm1180, %v3105, 0
      %v3122 = vsel %vm1181, %v3106, 0
      %v3123 = vsel %vm1182, %v3107, 0
      %v3124 = vsel %vm1183, %v3108, 0
      %v3125 = vsel %vm1184, %v3109, 0
      %v3126 = vsel %vm1185, %v3110, 0
      %v3127 = vsel %vm1186, %v3111, 0
      %v3128 = vsel %vm1187, %v3112, 0
      %v3129 = vsel %vm1316, %v3097, 0
      %v3130 = vsel %vm1317, %v3098, 0
      %v3131 = vsel %vm1318, %v3099, 0
      %v3132 = vsel %vm1319, %v3100, 0
      %v3133 = vsel %vm1320, %v3101, 0
      %v3134 = vsel %vm1321, %v3102, 0
      %v3135 = vsel %vm1322, %v3103, 0
      %v3136 = vsel %vm1323, %v3104, 0
      %v3137 = vsel %vm1324, %v3105, 0
      %v3138 = vsel %vm1325, %v3106, 0
      %v3139 = vsel %vm1326, %v3107, 0
      %v3140 = vsel %vm1327, %v3108, 0
      %v3141 = vsel %vm1328, %v3109, 0
      %v3142 = vsel %vm1329, %v3110, 0
      %v3143 = vsel %vm1330, %v3111, 0
      %v3144 = vsel %vm1331, %v3112, 0
      %v3146 = vshrl.u32 %v3113, 16
      %v3148 = vrot.slane %v3146, 7
      %v3149 = vshll.u32 %v3113, 16
      %v3151 = vor.u32 %v3148, %v3149
      %v3153 = vshrl.u32 %v3114, 16
      %v3155 = vrot.slane %v3153, 7
      %v3156 = vshll.u32 %v3114, 16
      %v3158 = vor.u32 %v3155, %v3156
      %v3159 = vsel %vm1348, %v3148, %v3158
      %v3161 = vshrl.u32 %v3115, 16
      %v3163 = vrot.slane %v3161, 7
      %v3164 = vshll.u32 %v3115, 16
      %v3166 = vor.u32 %v3163, %v3164
      %v3167 = vsel %vm1348, %v3155, %v3166
      %v3169 = vshrl.u32 %v3116, 16
      %v3171 = vrot.slane %v3169, 7
      %v3172 = vshll.u32 %v3116, 16
      %v3174 = vor.u32 %v3171, %v3172
      %v3175 = vsel %vm1348, %v3163, %v3174
      %v3177 = vshrl.u32 %v3117, 16
      %v3179 = vrot.slane %v3177, 7
      %v3180 = vshll.u32 %v3117, 16
      %v3182 = vor.u32 %v3179, %v3180
      %v3183 = vsel %vm1348, %v3171, %v3182
      %v3185 = vshrl.u32 %v3118, 16
      %v3187 = vrot.slane %v3185, 7
      %v3188 = vshll.u32 %v3118, 16
      %v3190 = vor.u32 %v3187, %v3188
      %v3191 = vsel %vm1348, %v3179, %v3190
      %v3193 = vshrl.u32 %v3119, 16
      %v3195 = vrot.slane %v3193, 7
      %v3196 = vshll.u32 %v3119, 16
      %v3198 = vor.u32 %v3195, %v3196
      %v3199 = vsel %vm1348, %v3187, %v3198
      %v3201 = vshrl.u32 %v3120, 16
      %v3203 = vrot.slane %v3201, 7
      %v3204 = vshll.u32 %v3120, 16
      %v3206 = vor.u32 %v3203, %v3204
      %v3207 = vsel %vm1348, %v3195, %v3206
      %v3209 = vshrl.u32 %v3121, 16
      %v3211 = vrot.slane %v3209, 7
      %v3212 = vshll.u32 %v3121, 16
      %v3214 = vor.u32 %v3211, %v3212
      %v3215 = vsel %vm1348, %v3203, %v3214
      %v3217 = vshrl.u32 %v3122, 16
      %v3219 = vrot.slane %v3217, 7
      %v3220 = vshll.u32 %v3122, 16
      %v3222 = vor.u32 %v3219, %v3220
      %v3223 = vsel %vm1348, %v3211, %v3222
      %v3225 = vshrl.u32 %v3123, 16
      %v3227 = vrot.slane %v3225, 7
      %v3228 = vshll.u32 %v3123, 16
      %v3230 = vor.u32 %v3227, %v3228
      %v3231 = vsel %vm1348, %v3219, %v3230
      %v3233 = vshrl.u32 %v3124, 16
      %v3235 = vrot.slane %v3233, 7
      %v3236 = vshll.u32 %v3124, 16
      %v3238 = vor.u32 %v3235, %v3236
      %v3239 = vsel %vm1348, %v3227, %v3238
      %v3241 = vshrl.u32 %v3125, 16
      %v3243 = vrot.slane %v3241, 7
      %v3244 = vshll.u32 %v3125, 16
      %v3246 = vor.u32 %v3243, %v3244
      %v3247 = vsel %vm1348, %v3235, %v3246
      %v3249 = vshrl.u32 %v3126, 16
      %v3251 = vrot.slane %v3249, 7
      %v3252 = vshll.u32 %v3126, 16
      %v3254 = vor.u32 %v3251, %v3252
      %v3255 = vsel %vm1348, %v3243, %v3254
      %v3257 = vshrl.u32 %v3127, 16
      %v3259 = vrot.slane %v3257, 7
      %v3260 = vshll.u32 %v3127, 16
      %v3262 = vor.u32 %v3259, %v3260
      %v3263 = vsel %vm1348, %v3251, %v3262
      %v3279 = vsel %vm1484, 0, %v3151
      %v3281 = vshll.u32 %v3129, 16
      %v3283 = vrot.slane %v3281, 1
      %v3284 = vshrl.u32 %v3129, 16
      %v3286 = vor.u32 %v3284, %v3283
      %v3288 = vshll.u32 %v3130, 16
      %v3290 = vrot.slane %v3288, 1
      %v3291 = vsel %vm1486, %v3286, %v3290
      %v3292 = vshrl.u32 %v3130, 16
      %v3294 = vor.u32 %v3292, %v3290
      %v3296 = vshll.u32 %v3131, 16
      %v3298 = vrot.slane %v3296, 1
      %v3299 = vsel %vm1486, %v3294, %v3298
      %v3300 = vshrl.u32 %v3131, 16
      %v3302 = vor.u32 %v3300, %v3298
      %v3304 = vshll.u32 %v3132, 16
      %v3306 = vrot.slane %v3304, 1
      %v3307 = vsel %vm1486, %v3302, %v3306
      %v3308 = vshrl.u32 %v3132, 16
      %v3310 = vor.u32 %v3308, %v3306
      %v3312 = vshll.u32 %v3133, 16
      %v3314 = vrot.slane %v3312, 1
      %v3315 = vsel %vm1486, %v3310, %v3314
      %v3316 = vshrl.u32 %v3133, 16
      %v3318 = vor.u32 %v3316, %v3314
      %v3320 = vshll.u32 %v3134, 16
      %v3322 = vrot.slane %v3320, 1
      %v3323 = vsel %vm1486, %v3318, %v3322
      %v3324 = vshrl.u32 %v3134, 16
      %v3326 = vor.u32 %v3324, %v3322
      %v3328 = vshll.u32 %v3135, 16
      %v3330 = vrot.slane %v3328, 1
      %v3331 = vsel %vm1486, %v3326, %v3330
      %v3332 = vshrl.u32 %v3135, 16
      %v3334 = vor.u32 %v3332, %v3330
      %v3336 = vshll.u32 %v3136, 16
      %v3338 = vrot.slane %v3336, 1
      %v3339 = vsel %vm1486, %v3334, %v3338
      %v3340 = vshrl.u32 %v3136, 16
      %v3342 = vor.u32 %v3340, %v3338
      %v3344 = vshll.u32 %v3137, 16
      %v3346 = vrot.slane %v3344, 1
      %v3347 = vsel %vm1486, %v3342, %v3346
      %v3348 = vshrl.u32 %v3137, 16
      %v3350 = vor.u32 %v3348, %v3346
      %v3352 = vshll.u32 %v3138, 16
      %v3354 = vrot.slane %v3352, 1
      %v3355 = vsel %vm1486, %v3350, %v3354
      %v3356 = vshrl.u32 %v3138, 16
      %v3358 = vor.u32 %v3356, %v3354
      %v3360 = vshll.u32 %v3139, 16
      %v3362 = vrot.slane %v3360, 1
      %v3363 = vsel %vm1486, %v3358, %v3362
      %v3364 = vshrl.u32 %v3139, 16
      %v3366 = vor.u32 %v3364, %v3362
      %v3368 = vshll.u32 %v3140, 16
      %v3370 = vrot.slane %v3368, 1
      %v3371 = vsel %vm1486, %v3366, %v3370
      %v3372 = vshrl.u32 %v3140, 16
      %v3374 = vor.u32 %v3372, %v3370
      %v3376 = vshll.u32 %v3141, 16
      %v3378 = vrot.slane %v3376, 1
      %v3379 = vsel %vm1486, %v3374, %v3378
      %v3380 = vshrl.u32 %v3141, 16
      %v3382 = vor.u32 %v3380, %v3378
      %v3384 = vshll.u32 %v3142, 16
      %v3386 = vrot.slane %v3384, 1
      %v3387 = vsel %vm1486, %v3382, %v3386
      %v3388 = vshrl.u32 %v3142, 16
      %v3390 = vor.u32 %v3388, %v3386
      %v3392 = vshll.u32 %v3143, 16
      %v3394 = vrot.slane %v3392, 1
      %v3395 = vsel %vm1486, %v3390, %v3394
      %v3396 = vshrl.u32 %v3143, 16
      %v3398 = vor.u32 %v3396, %v3394
      %v3400 = vshll.u32 %v3144, 16
      %v3402 = vrot.slane %v3400, 1
      %v3403 = vsel %vm1486, %v3398, %v3402
      %v3420 = vsel %vm1628, 0, %v3283
      %v3422 = vshrl.u32 %v3128, 16
      %v3424 = vrot.slane %v3422, 7
      %v3425 = vshll.u32 %v3128, 16
      %v3427 = vor.u32 %v3424, %v3425
      %v3428 = vsel %vm1348, %v3259, %v3427
      %v3430 = vshrl.u32 %v3144, 16
      %v3432 = vor.u32 %v3430, %v3402
      %v3434 = vsel %vm1628, %v3432, 0
      %v3436 = vsel %vm1484, %v3424, 0
      %3437 = vmatprep.subr.bf16.mxu0 0
      %3438 = vmatpush1.bf16.msra.mxu0 %v2084
      %3439 = vmatprep.subr.bf16.mxu0 0
      %3440 = vmatpush1.bf16.msra.mxu0 %v2085
      %3441 = vmatprep.subr.bf16.mxu0 0
      %3442 = vmatpush1.bf16.msra.mxu0 %v2086
      %3443 = vmatprep.subr.bf16.mxu0 0
      %3444 = vmatpush1.bf16.msra.mxu0 %v2087
      %3445 = vmatprep.subr.bf16.mxu0 0
      %3446 = vmatpush1.bf16.msra.mxu0 %v2088
      %3447 = vmatprep.subr.bf16.mxu0 0
      %3448 = vmatpush1.bf16.msra.mxu0 %v2089
      %3449 = vmatprep.subr.bf16.mxu0 0
      %3450 = vmatpush1.bf16.msra.mxu0 %v2090
      %3451 = vmatprep.subr.bf16.mxu0 0
      %3452 = vmatpush1.bf16.msra.mxu0 %v2091
      %3453 = vmatprep.subr.bf16.mxu0 0
      %3454 = vmatpush1.bf16.msra.mxu0 %v2092
      %3455 = vmatprep.subr.bf16.mxu0 0
      %3456 = vmatpush1.bf16.msra.mxu0 %v2093
      %3457 = vmatprep.subr.bf16.mxu0 0
      %3458 = vmatpush1.bf16.msra.mxu0 %v2094
      %3459 = vmatprep.subr.bf16.mxu0 0
      %3460 = vmatpush1.bf16.msra.mxu0 %v2095
      %3461 = vmatprep.subr.bf16.mxu0 0
      %3462 = vmatpush1.bf16.msra.mxu0 %v2096
      %3463 = vmatprep.subr.bf16.mxu0 0
      %3464 = vmatpush1.bf16.msra.mxu0 %v2097
      %3465 = vmatprep.subr.bf16.mxu0 0
      %3466 = vmatpush1.bf16.msra.mxu0 %v2098
      %3467 = vmatprep.subr.bf16.mxu0 0
      %3468 = vmatpush1.bf16.msra.mxu0 %v2099
      %3469 = vmatprep.mubr.bf16.mxu0 0
      %3470 = vmatmul.mubr.bf16.gmra.mrb[0].mxu0 0
      %v3471 = vpop.f32.mrb[0].mxu0
      %v3472 = vadd.f32 %v1794, %v3471
      %v3473 = vpop.f32.mrb[0].mxu0
      %v3474 = vpop.f32.mrb[0].mxu0
      %v3475 = vadd.f32 %v1794, %v3474
      %v3476 = vpop.f32.mrb[0].mxu0
      %3477 = vmatprep.mubr.bf16.mxu0 %v3097
      %3478 = vmatmul.mubr.bf16.gmra.mrb[0].mxu0 %v3279
      %v3479 = vpop.f32.mrb[0].mxu0
      %v3480 = vadd.f32 %v1794, %v3479
      %v3481 = vpop.f32.mrb[0].mxu0
      %v3482 = vpop.f32.mrb[0].mxu0
      %v3483 = vadd.f32 %v1794, %v3482
      %v3484 = vpop.f32.mrb[0].mxu0
      %3485 = vmatprep.mubr.bf16.mxu0 %v3098
      %3486 = vmatmul.mubr.bf16.gmra.mrb[0].mxu0 %v3159
      %v3487 = vpop.f32.mrb[0].mxu0
      %v3488 = vadd.f32 %v1794, %v3487
      %v3489 = vpop.f32.mrb[0].mxu0
      %v3490 = vpop.f32.mrb[0].mxu0
      %v3491 = vadd.f32 %v1794, %v3490
      %v3492 = vpop.f32.mrb[0].mxu0
      %3493 = vmatprep.mubr.bf16.mxu0 %v3099
      %3494 = vmatmul.mubr.bf16.gmra.mrb[0].mxu0 %v3167
      %v3495 = vpop.f32.mrb[0].mxu0
      %v3496 = vadd.f32 %v1794, %v3495
      %v3497 = vpop.f32.mrb[0].mxu0
      %v3498 = vpop.f32.mrb[0].mxu0
      %v3499 = vadd.f32 %v1794, %v3498
      %v3500 = vpop.f32.mrb[0].mxu0
      %3501 = vmatprep.mubr.bf16.mxu0 %v3100
      %3502 = vmatmul.mubr.bf16.gmra.mrb[0].mxu0 %v3175
      %v3503 = vpop.f32.mrb[0].mxu0
      %v3504 = vadd.f32 %v1794, %v3503
      %v3505 = vpop.f32.mrb[0].mxu0
      %v3506 = vpop.f32.mrb[0].mxu0
      %v3507 = vadd.f32 %v1794, %v3506
      %v3508 = vpop.f32.mrb[0].mxu0
      %3509 = vmatprep.mubr.bf16.mxu0 %v3101
      %3510 = vmatmul.mubr.bf16.gmra.mrb[0].mxu0 %v3183
      %v3511 = vpop.f32.mrb[0].mxu0
      %v3512 = vadd.f32 %v1794, %v3511
      %v3513 = vpop.f32.mrb[0].mxu0
      %v3514 = vpop.f32.mrb[0].mxu0
      %v3515 = vadd.f32 %v1794, %v3514
      %v3516 = vpop.f32.mrb[0].mxu0
      %3517 = vmatprep.mubr.bf16.mxu0 %v3102
      %3518 = vmatmul.mubr.bf16.gmra.mrb[0].mxu0 %v3191
      %v3519 = vpop.f32.mrb[0].mxu0
      %v3520 = vadd.f32 %v1794, %v3519
      %v3521 = vpop.f32.mrb[0].mxu0
      %v3522 = vpop.f32.mrb[0].mxu0
      %v3523 = vadd.f32 %v1794, %v3522
      %v3524 = vpop.f32.mrb[0].mxu0
      %3525 = vmatprep.mubr.bf16.mxu0 %v3103
      %3526 = vmatmul.mubr.bf16.gmra.mrb[0].mxu0 %v3199
      %v3527 = vpop.f32.mrb[0].mxu0
      %v3528 = vadd.f32 %v1794, %v3527
      %v3529 = vpop.f32.mrb[0].mxu0
      %v3530 = vpop.f32.mrb[0].mxu0
      %v3531 = vadd.f32 %v1794, %v3530
      %v3532 = vpop.f32.mrb[0].mxu0
      %3533 = vmatprep.mubr.bf16.mxu0 %v3104
      %3534 = vmatmul.mubr.bf16.gmra.mrb[0].mxu0 %v3207
      %v3535 = vpop.f32.mrb[0].mxu0
      %v3536 = vadd.f32 %v1794, %v3535
      %v3537 = vpop.f32.mrb[0].mxu0
      %v3538 = vpop.f32.mrb[0].mxu0
      %v3539 = vadd.f32 %v1794, %v3538
      %v3540 = vpop.f32.mrb[0].mxu0
      %3541 = vmatprep.mubr.bf16.mxu0 %v3105
      %3542 = vmatmul.mubr.bf16.gmra.mrb[0].mxu0 %v3215
      %v3543 = vpop.f32.mrb[0].mxu0
      %v3544 = vadd.f32 %v1794, %v3543
      %v3545 = vpop.f32.mrb[0].mxu0
      %v3546 = vpop.f32.mrb[0].mxu0
      %v3547 = vadd.f32 %v1794, %v3546
      %v3548 = vpop.f32.mrb[0].mxu0
      %3549 = vmatprep.mubr.bf16.mxu0 %v3106
      %3550 = vmatmul.mubr.bf16.gmra.mrb[0].mxu0 %v3223
      %v3551 = vpop.f32.mrb[0].mxu0
      %v3552 = vadd.f32 %v1794, %v3551
      %v3553 = vpop.f32.mrb[0].mxu0
      %v3554 = vpop.f32.mrb[0].mxu0
      %v3555 = vadd.f32 %v1794, %v3554
      %v3556 = vpop.f32.mrb[0].mxu0
      %3557 = vmatprep.mubr.bf16.mxu0 %v3107
      %3558 = vmatmul.mubr.bf16.gmra.mrb[0].mxu0 %v3231
      %v3559 = vpop.f32.mrb[0].mxu0
      %v3560 = vadd.f32 %v1794, %v3559
      %v3561 = vpop.f32.mrb[0].mxu0
      %v3562 = vpop.f32.mrb[0].mxu0
      %v3563 = vadd.f32 %v1794, %v3562
      %v3564 = vpop.f32.mrb[0].mxu0
      %3565 = vmatprep.mubr.bf16.mxu0 %v3108
      %3566 = vmatmul.mubr.bf16.gmra.mrb[0].mxu0 %v3239
      %v3567 = vpop.f32.mrb[0].mxu0
      %v3568 = vadd.f32 %v1794, %v3567
      %v3569 = vpop.f32.mrb[0].mxu0
      %v3570 = vpop.f32.mrb[0].mxu0
      %v3571 = vadd.f32 %v1794, %v3570
      %v3572 = vpop.f32.mrb[0].mxu0
      %3573 = vmatprep.mubr.bf16.mxu0 %v3109
      %3574 = vmatmul.mubr.bf16.gmra.mrb[0].mxu0 %v3247
      %v3575 = vpop.f32.mrb[0].mxu0
      %v3576 = vadd.f32 %v1794, %v3575
      %v3577 = vpop.f32.mrb[0].mxu0
      %v3578 = vpop.f32.mrb[0].mxu0
      %v3579 = vadd.f32 %v1794, %v3578
      %v3580 = vpop.f32.mrb[0].mxu0
      %3581 = vmatprep.mubr.bf16.mxu0 %v3110
      %3582 = vmatmul.mubr.bf16.gmra.mrb[0].mxu0 %v3255
      %v3583 = vpop.f32.mrb[0].mxu0
      %v3584 = vadd.f32 %v1794, %v3583
      %v3585 = vpop.f32.mrb[0].mxu0
      %v3586 = vpop.f32.mrb[0].mxu0
      %v3587 = vadd.f32 %v1794, %v3586
      %v3588 = vpop.f32.mrb[0].mxu0
      %3589 = vmatprep.mubr.bf16.mxu0 %v3111
      %3590 = vmatmul.mubr.bf16.gmra.mrb[0].mxu0 %v3263
      %v3591 = vpop.f32.mrb[0].mxu0
      %v3592 = vadd.f32 %v1794, %v3591
      %v3593 = vpop.f32.mrb[0].mxu0
      %v3594 = vpop.f32.mrb[0].mxu0
      %v3595 = vadd.f32 %v1794, %v3594
      %v3596 = vpop.f32.mrb[0].mxu0
      %3597 = vdwg.mxu0
      %3598 = vmatprep.subr.bf16.mxu0 0
      %3599 = vmatpush1.bf16.msra.mxu0 %v2100
      %3600 = vmatprep.subr.bf16.mxu0 0
      %3601 = vmatpush1.bf16.msra.mxu0 %v2101
      %3602 = vmatprep.subr.bf16.mxu0 0
      %3603 = vmatpush1.bf16.msra.mxu0 %v2102
      %3604 = vmatprep.subr.bf16.mxu0 0
      %3605 = vmatpush1.bf16.msra.mxu0 %v2103
      %3606 = vmatprep.subr.bf16.mxu0 0
      %3607 = vmatpush1.bf16.msra.mxu0 %v2104
      %3608 = vmatprep.subr.bf16.mxu0 0
      %3609 = vmatpush1.bf16.msra.mxu0 %v2105
      %3610 = vmatprep.subr.bf16.mxu0 0
      %3611 = vmatpush1.bf16.msra.mxu0 %v2106
      %3612 = vmatprep.subr.bf16.mxu0 0
      %3613 = vmatpush1.bf16.msra.mxu0 %v2107
      %3614 = vmatprep.subr.bf16.mxu0 0
      %3615 = vmatpush1.bf16.msra.mxu0 %v2108
      %3616 = vmatprep.subr.bf16.mxu0 0
      %3617 = vmatpush1.bf16.msra.mxu0 %v2109
      %3618 = vmatprep.subr.bf16.mxu0 0
      %3619 = vmatpush1.bf16.msra.mxu0 %v2110
      %3620 = vmatprep.subr.bf16.mxu0 0
      %3621 = vmatpush1.bf16.msra.mxu0 %v2111
      %3622 = vmatprep.subr.bf16.mxu0 0
      %3623 = vmatpush1.bf16.msra.mxu0 %v2112
      %3624 = vmatprep.subr.bf16.mxu0 0
      %3625 = vmatpush1.bf16.msra.mxu0 %v2113
      %3626 = vmatprep.subr.bf16.mxu0 0
      %3627 = vmatpush1.bf16.msra.mxu0 %v2114
      %3628 = vmatprep.subr.bf16.mxu0 0
      %3629 = vmatpush1.bf16.msra.mxu0 %v2115
      %3630 = vmatprep.mubr.bf16.mxu0 %v3279
      %3631 = vmatmul.mubr.bf16.gmra.mrb[0].mxu0 %v3420
      %v3632 = vpop.f32.mrb[0].mxu0
      %v3633 = vadd.f32 %v3472, %v3632
      %v3634 = vpop.f32.mrb[0].mxu0
      %v3635 = vpop.f32.mrb[0].mxu0
      %v3636 = vadd.f32 %v3475, %v3635
      %v3637 = vpop.f32.mrb[0].mxu0
      %3638 = vmatprep.mubr.bf16.mxu0 %v3159
      %3639 = vmatmul.mubr.bf16.gmra.mrb[0].mxu0 %v3291
      %v3640 = vpop.f32.mrb[0].mxu0
      %v3641 = vadd.f32 %v3480, %v3640
      %v3642 = vpop.f32.mrb[0].mxu0
      %v3643 = vpop.f32.mrb[0].mxu0
      %v3644 = vadd.f32 %v3483, %v3643
      %v3645 = vpop.f32.mrb[0].mxu0
      %3646 = vmatprep.mubr.bf16.mxu0 %v3167
      %3647 = vmatmul.mubr.bf16.gmra.mrb[0].mxu0 %v3299
      %v3648 = vpop.f32.mrb[0].mxu0
      %v3649 = vadd.f32 %v3488, %v3648
      %v3650 = vpop.f32.mrb[0].mxu0
      %v3651 = vpop.f32.mrb[0].mxu0
      %v3652 = vadd.f32 %v3491, %v3651
      %v3653 = vpop.f32.mrb[0].mxu0
      %3654 = vmatprep.mubr.bf16.mxu0 %v3175
      %3655 = vmatmul.mubr.bf16.gmra.mrb[0].mxu0 %v3307
      %v3656 = vpop.f32.mrb[0].mxu0
      %v3657 = vadd.f32 %v3496, %v3656
      %v3658 = vpop.f32.mrb[0].mxu0
      %v3659 = vpop.f32.mrb[0].mxu0
      %v3660 = vadd.f32 %v3499, %v3659
      %v3661 = vpop.f32.mrb[0].mxu0
      %3662 = vmatprep.mubr.bf16.mxu0 %v3183
      %3663 = vmatmul.mubr.bf16.gmra.mrb[0].mxu0 %v3315
      %v3664 = vpop.f32.mrb[0].mxu0
      %v3665 = vadd.f32 %v3504, %v3664
      %v3666 = vpop.f32.mrb[0].mxu0
      %v3667 = vpop.f32.mrb[0].mxu0
      %v3668 = vadd.f32 %v3507, %v3667
      %v3669 = vpop.f32.mrb[0].mxu0
      %3670 = vmatprep.mubr.bf16.mxu0 %v3191
      %3671 = vmatmul.mubr.bf16.gmra.mrb[0].mxu0 %v3323
      %v3672 = vpop.f32.mrb[0].mxu0
      %v3673 = vadd.f32 %v3512, %v3672
      %v3674 = vpop.f32.mrb[0].mxu0
      %v3675 = vpop.f32.mrb[0].mxu0
      %v3676 = vadd.f32 %v3515, %v3675
      %v3677 = vpop.f32.mrb[0].mxu0
      %3678 = vmatprep.mubr.bf16.mxu0 %v3199
      %3679 = vmatmul.mubr.bf16.gmra.mrb[0].mxu0 %v3331
      %v3680 = vpop.f32.mrb[0].mxu0
      %v3681 = vadd.f32 %v3520, %v3680
      %v3682 = vpop.f32.mrb[0].mxu0
      %v3683 = vpop.f32.mrb[0].mxu0
      %v3684 = vadd.f32 %v3523, %v3683
      %v3685 = vpop.f32.mrb[0].mxu0
      %3686 = vmatprep.mubr.bf16.mxu0 %v3207
      %3687 = vmatmul.mubr.bf16.gmra.mrb[0].mxu0 %v3339
      %v3688 = vpop.f32.mrb[0].mxu0
      %v3689 = vadd.f32 %v3528, %v3688
      %v3690 = vpop.f32.mrb[0].mxu0
      %v3691 = vpop.f32.mrb[0].mxu0
      %v3692 = vadd.f32 %v3531, %v3691
      %v3693 = vpop.f32.mrb[0].mxu0
      %3694 = vmatprep.mubr.bf16.mxu0 %v3215
      %3695 = vmatmul.mubr.bf16.gmra.mrb[0].mxu0 %v3347
      %v3696 = vpop.f32.mrb[0].mxu0
      %v3697 = vadd.f32 %v3536, %v3696
      %v3698 = vpop.f32.mrb[0].mxu0
      %v3699 = vpop.f32.mrb[0].mxu0
      %v3700 = vadd.f32 %v3539, %v3699
      %v3701 = vpop.f32.mrb[0].mxu0
      %3702 = vmatprep.mubr.bf16.mxu0 %v3223
      %3703 = vmatmul.mubr.bf16.gmra.mrb[0].mxu0 %v3355
      %v3704 = vpop.f32.mrb[0].mxu0
      %v3705 = vadd.f32 %v3544, %v3704
      %v3706 = vpop.f32.mrb[0].mxu0
      %v3707 = vpop.f32.mrb[0].mxu0
      %v3708 = vadd.f32 %v3547, %v3707
      %v3709 = vpop.f32.mrb[0].mxu0
      %3710 = vmatprep.mubr.bf16.mxu0 %v3231
      %3711 = vmatmul.mubr.bf16.gmra.mrb[0].mxu0 %v3363
      %v3712 = vpop.f32.mrb[0].mxu0
      %v3713 = vadd.f32 %v3552, %v3712
      %v3714 = vpop.f32.mrb[0].mxu0
      %v3715 = vpop.f32.mrb[0].mxu0
      %v3716 = vadd.f32 %v3555, %v3715
      %v3717 = vpop.f32.mrb[0].mxu0
      %3718 = vmatprep.mubr.bf16.mxu0 %v3239
      %3719 = vmatmul.mubr.bf16.gmra.mrb[0].mxu0 %v3371
      %v3720 = vpop.f32.mrb[0].mxu0
      %v3721 = vadd.f32 %v3560, %v3720
      %v3722 = vpop.f32.mrb[0].mxu0
      %v3723 = vpop.f32.mrb[0].mxu0
      %v3724 = vadd.f32 %v3563, %v3723
      %v3725 = vpop.f32.mrb[0].mxu0
      %3726 = vmatprep.mubr.bf16.mxu0 %v3247
      %3727 = vmatmul.mubr.bf16.gmra.mrb[0].mxu0 %v3379
      %v3728 = vpop.f32.mrb[0].mxu0
      %v3729 = vadd.f32 %v3568, %v3728
      %v3730 = vpop.f32.mrb[0].mxu0
      %v3731 = vpop.f32.mrb[0].mxu0
      %v3732 = vadd.f32 %v3571, %v3731
      %v3733 = vpop.f32.mrb[0].mxu0
      %3734 = vmatprep.mubr.bf16.mxu0 %v3255
      %3735 = vmatmul.mubr.bf16.gmra.mrb[0].mxu0 %v3387
      %v3736 = vpop.f32.mrb[0].mxu0
      %v3737 = vadd.f32 %v3576, %v3736
      %v3738 = vpop.f32.mrb[0].mxu0
      %v3739 = vpop.f32.mrb[0].mxu0
      %v3740 = vadd.f32 %v3579, %v3739
      %v3741 = vpop.f32.mrb[0].mxu0
      %3742 = vmatprep.mubr.bf16.mxu0 %v3263
      %3743 = vmatmul.mubr.bf16.gmra.mrb[0].mxu0 %v3395
      %v3744 = vpop.f32.mrb[0].mxu0
      %v3745 = vadd.f32 %v3584, %v3744
      %v3746 = vpop.f32.mrb[0].mxu0
      %v3747 = vpop.f32.mrb[0].mxu0
      %v3748 = vadd.f32 %v3587, %v3747
      %v3749 = vpop.f32.mrb[0].mxu0
      %3750 = vmatprep.mubr.bf16.mxu0 %v3428
      %3751 = vmatmul.mubr.bf16.gmra.mrb[0].mxu0 %v3403
      %v3752 = vpop.f32.mrb[0].mxu0
      %v3753 = vadd.f32 %v3592, %v3752
      %v3754 = vpop.f32.mrb[0].mxu0
      %v3755 = vpop.f32.mrb[0].mxu0
      %v3756 = vadd.f32 %v3595, %v3755
      %v3757 = vpop.f32.mrb[0].mxu0
      %3758 = vdwg.mxu0
      %3759 = vmatprep.subr.bf16.mxu0 0
      %3760 = vmatpush1.bf16.msra.mxu0 %v2116
      %3761 = vmatprep.subr.bf16.mxu0 0
      %3762 = vmatpush1.bf16.msra.mxu0 %v2117
      %3763 = vmatprep.subr.bf16.mxu0 0
      %3764 = vmatpush1.bf16.msra.mxu0 %v2118
      %3765 = vmatprep.subr.bf16.mxu0 0
      %3766 = vmatpush1.bf16.msra.mxu0 %v2119
      %3767 = vmatprep.subr.bf16.mxu0 0
      %3768 = vmatpush1.bf16.msra.mxu0 %v2120
      %3769 = vmatprep.subr.bf16.mxu0 0
      %3770 = vmatpush1.bf16.msra.mxu0 %v2121
      %3771 = vmatprep.subr.bf16.mxu0 0
      %3772 = vmatpush1.bf16.msra.mxu0 %v2122
      %3773 = vmatprep.subr.bf16.mxu0 0
      %3774 = vmatpush1.bf16.msra.mxu0 %v2123
      %3775 = vmatprep.subr.bf16.mxu0 0
      %3776 = vmatpush1.bf16.msra.mxu0 %v2124
      %3777 = vmatprep.subr.bf16.mxu0 0
      %3778 = vmatpush1.bf16.msra.mxu0 %v2125
      %3779 = vmatprep.subr.bf16.mxu0 0
      %3780 = vmatpush1.bf16.msra.mxu0 %v2126
      %3781 = vmatprep.subr.bf16.mxu0 0
      %3782 = vmatpush1.bf16.msra.mxu0 %v2127
      %3783 = vmatprep.subr.bf16.mxu0 0
      %3784 = vmatpush1.bf16.msra.mxu0 %v2128
      %3785 = vmatprep.subr.bf16.mxu0 0
      %3786 = vmatpush1.bf16.msra.mxu0 %v2129
      %3787 = vmatprep.subr.bf16.mxu0 0
      %3788 = vmatpush1.bf16.msra.mxu0 %v2130
      %3789 = vmatprep.subr.bf16.mxu0 0
      %3790 = vmatpush1.bf16.msra.mxu0 %v2131
      %3791 = vmatprep.mubr.bf16.mxu0 %v3291
      %3792 = vmatmul.mubr.bf16.gmra.mrb[0].mxu0 %v3097
      %v3793 = vpop.f32.mrb[0].mxu0
      %v3794 = vadd.f32 %v3633, %v3793
      %v3795 = vpop.f32.mrb[0].mxu0
      %v3796 = vpop.f32.mrb[0].mxu0
      %v3797 = vadd.f32 %v3636, %v3796
      %v3798 = vpop.f32.mrb[0].mxu0
      %3799 = vmatprep.mubr.bf16.mxu0 %v3299
      %3800 = vmatmul.mubr.bf16.gmra.mrb[0].mxu0 %v3098
      %v3801 = vpop.f32.mrb[0].mxu0
      %v3802 = vadd.f32 %v3641, %v3801
      %v3803 = vpop.f32.mrb[0].mxu0
      %v3804 = vpop.f32.mrb[0].mxu0
      %v3805 = vadd.f32 %v3644, %v3804
      %v3806 = vpop.f32.mrb[0].mxu0
      %3807 = vmatprep.mubr.bf16.mxu0 %v3307
      %3808 = vmatmul.mubr.bf16.gmra.mrb[0].mxu0 %v3099
      %v3809 = vpop.f32.mrb[0].mxu0
      %v3810 = vadd.f32 %v3649, %v3809
      %v3811 = vpop.f32.mrb[0].mxu0
      %v3812 = vpop.f32.mrb[0].mxu0
      %v3813 = vadd.f32 %v3652, %v3812
      %v3814 = vpop.f32.mrb[0].mxu0
      %3815 = vmatprep.mubr.bf16.mxu0 %v3315
      %3816 = vmatmul.mubr.bf16.gmra.mrb[0].mxu0 %v3100
      %v3817 = vpop.f32.mrb[0].mxu0
      %v3818 = vadd.f32 %v3657, %v3817
      %v3819 = vpop.f32.mrb[0].mxu0
      %v3820 = vpop.f32.mrb[0].mxu0
      %v3821 = vadd.f32 %v3660, %v3820
      %v3822 = vpop.f32.mrb[0].mxu0
      %3823 = vmatprep.mubr.bf16.mxu0 %v3323
      %3824 = vmatmul.mubr.bf16.gmra.mrb[0].mxu0 %v3101
      %v3825 = vpop.f32.mrb[0].mxu0
      %v3826 = vadd.f32 %v3665, %v3825
      %v3827 = vpop.f32.mrb[0].mxu0
      %v3828 = vpop.f32.mrb[0].mxu0
      %v3829 = vadd.f32 %v3668, %v3828
      %v3830 = vpop.f32.mrb[0].mxu0
      %3831 = vmatprep.mubr.bf16.mxu0 %v3331
      %3832 = vmatmul.mubr.bf16.gmra.mrb[0].mxu0 %v3102
      %v3833 = vpop.f32.mrb[0].mxu0
      %v3834 = vadd.f32 %v3673, %v3833
      %v3835 = vpop.f32.mrb[0].mxu0
      %v3836 = vpop.f32.mrb[0].mxu0
      %v3837 = vadd.f32 %v3676, %v3836
      %v3838 = vpop.f32.mrb[0].mxu0
      %3839 = vmatprep.mubr.bf16.mxu0 %v3339
      %3840 = vmatmul.mubr.bf16.gmra.mrb[0].mxu0 %v3103
      %v3841 = vpop.f32.mrb[0].mxu0
      %v3842 = vadd.f32 %v3681, %v3841
      %v3843 = vpop.f32.mrb[0].mxu0
      %v3844 = vpop.f32.mrb[0].mxu0
      %v3845 = vadd.f32 %v3684, %v3844
      %v3846 = vpop.f32.mrb[0].mxu0
      %3847 = vmatprep.mubr.bf16.mxu0 %v3347
      %3848 = vmatmul.mubr.bf16.gmra.mrb[0].mxu0 %v3104
      %v3849 = vpop.f32.mrb[0].mxu0
      %v3850 = vadd.f32 %v3689, %v3849
      %v3851 = vpop.f32.mrb[0].mxu0
      %v3852 = vpop.f32.mrb[0].mxu0
      %v3853 = vadd.f32 %v3692, %v3852
      %v3854 = vpop.f32.mrb[0].mxu0
      %3855 = vmatprep.mubr.bf16.mxu0 %v3355
      %3856 = vmatmul.mubr.bf16.gmra.mrb[0].mxu0 %v3105
      %v3857 = vpop.f32.mrb[0].mxu0
      %v3858 = vadd.f32 %v3697, %v3857
      %v3859 = vpop.f32.mrb[0].mxu0
      %v3860 = vpop.f32.mrb[0].mxu0
      %v3861 = vadd.f32 %v3700, %v3860
      %v3862 = vpop.f32.mrb[0].mxu0
      %3863 = vmatprep.mubr.bf16.mxu0 %v3363
      %3864 = vmatmul.mubr.bf16.gmra.mrb[0].mxu0 %v3106
      %v3865 = vpop.f32.mrb[0].mxu0
      %v3866 = vadd.f32 %v3705, %v3865
      %v3867 = vpop.f32.mrb[0].mxu0
      %v3868 = vpop.f32.mrb[0].mxu0
      %v3869 = vadd.f32 %v3708, %v3868
      %v3870 = vpop.f32.mrb[0].mxu0
      %3871 = vmatprep.mubr.bf16.mxu0 %v3371
      %3872 = vmatmul.mubr.bf16.gmra.mrb[0].mxu0 %v3107
      %v3873 = vpop.f32.mrb[0].mxu0
      %v3874 = vadd.f32 %v3713, %v3873
      %v3875 = vpop.f32.mrb[0].mxu0
      %v3876 = vpop.f32.mrb[0].mxu0
      %v3877 = vadd.f32 %v3716, %v3876
      %v3878 = vpop.f32.mrb[0].mxu0
      %3879 = vmatprep.mubr.bf16.mxu0 %v3379
      %3880 = vmatmul.mubr.bf16.gmra.mrb[0].mxu0 %v3108
      %v3881 = vpop.f32.mrb[0].mxu0
      %v3882 = vadd.f32 %v3721, %v3881
      %v3883 = vpop.f32.mrb[0].mxu0
      %v3884 = vpop.f32.mrb[0].mxu0
      %v3885 = vadd.f32 %v3724, %v3884
      %v3886 = vpop.f32.mrb[0].mxu0
      %3887 = vmatprep.mubr.bf16.mxu0 %v3387
      %3888 = vmatmul.mubr.bf16.gmra.mrb[0].mxu0 %v3109
      %v3889 = vpop.f32.mrb[0].mxu0
      %v3890 = vadd.f32 %v3729, %v3889
      %v3891 = vpop.f32.mrb[0].mxu0
      %v3892 = vpop.f32.mrb[0].mxu0
      %v3893 = vadd.f32 %v3732, %v3892
      %v3894 = vpop.f32.mrb[0].mxu0
      %3895 = vmatprep.mubr.bf16.mxu0 %v3395
      %3896 = vmatmul.mubr.bf16.gmra.mrb[0].mxu0 %v3110
      %v3897 = vpop.f32.mrb[0].mxu0
      %v3898 = vadd.f32 %v3737, %v3897
      %v3899 = vpop.f32.mrb[0].mxu0
      %v3900 = vpop.f32.mrb[0].mxu0
      %v3901 = vadd.f32 %v3740, %v3900
      %v3902 = vpop.f32.mrb[0].mxu0
      %3903 = vmatprep.mubr.bf16.mxu0 %v3403
      %3904 = vmatmul.mubr.bf16.gmra.mrb[0].mxu0 %v3111
      %v3905 = vpop.f32.mrb[0].mxu0
      %v3906 = vadd.f32 %v3745, %v3905
      %v3907 = vpop.f32.mrb[0].mxu0
      %v3908 = vpop.f32.mrb[0].mxu0
      %v3909 = vadd.f32 %v3748, %v3908
      %v3910 = vpop.f32.mrb[0].mxu0
      %3911 = vmatprep.mubr.bf16.mxu0 %v3434
      %3912 = vmatmul.mubr.bf16.gmra.mrb[0].mxu0 %v3112
      %v3913 = vpop.f32.mrb[0].mxu0
      %v3914 = vadd.f32 %v3753, %v3913
      %v3915 = vpop.f32.mrb[0].mxu0
      %v3916 = vpop.f32.mrb[0].mxu0
      %v3917 = vadd.f32 %v3756, %v3916
      %v3918 = vpop.f32.mrb[0].mxu0
      %3919 = vdwg.mxu0
      %3920 = vmatprep.subr.bf16.mxu0 0
      %3921 = vmatpush1.bf16.msra.mxu0 %v2132
      %3922 = vmatprep.subr.bf16.mxu0 0
      %3923 = vmatpush1.bf16.msra.mxu0 %v2133
      %3924 = vmatprep.subr.bf16.mxu0 0
      %3925 = vmatpush1.bf16.msra.mxu0 %v2134
      %3926 = vmatprep.subr.bf16.mxu0 0
      %3927 = vmatpush1.bf16.msra.mxu0 %v2135
      %3928 = vmatprep.subr.bf16.mxu0 0
      %3929 = vmatpush1.bf16.msra.mxu0 %v2136
      %3930 = vmatprep.subr.bf16.mxu0 0
      %3931 = vmatpush1.bf16.msra.mxu0 %v2137
      %3932 = vmatprep.subr.bf16.mxu0 0
      %3933 = vmatpush1.bf16.msra.mxu0 %v2138
      %3934 = vmatprep.subr.bf16.mxu0 0
      %3935 = vmatpush1.bf16.msra.mxu0 %v2139
      %3936 = vmatprep.subr.bf16.mxu0 0
      %3937 = vmatpush1.bf16.msra.mxu0 %v2140
      %3938 = vmatprep.subr.bf16.mxu0 0
      %3939 = vmatpush1.bf16.msra.mxu0 %v2141
      %3940 = vmatprep.subr.bf16.mxu0 0
      %3941 = vmatpush1.bf16.msra.mxu0 %v2142
      %3942 = vmatprep.subr.bf16.mxu0 0
      %3943 = vmatpush1.bf16.msra.mxu0 %v2143
      %3944 = vmatprep.subr.bf16.mxu0 0
      %3945 = vmatpush1.bf16.msra.mxu0 %v2144
      %3946 = vmatprep.subr.bf16.mxu0 0
      %3947 = vmatpush1.bf16.msra.mxu0 %v2145
      %3948 = vmatprep.subr.bf16.mxu0 0
      %3949 = vmatpush1.bf16.msra.mxu0 %v2146
      %3950 = vmatprep.subr.bf16.mxu0 0
      %3951 = vmatpush1.bf16.msra.mxu0 %v2147
      %3952 = vmatprep.mubr.bf16.mxu0 %v3098
      %3953 = vmatmul.mubr.bf16.gmra.mrb[0].mxu0 %v3159
      %v3954 = vpop.f32.mrb[0].mxu0
      %v3955 = vadd.f32 %v3794, %v3954
      %v3956 = vpop.f32.mrb[0].mxu0
      %v3957 = vpop.f32.mrb[0].mxu0
      %v3958 = vadd.f32 %v3797, %v3957
      %v3959 = vpop.f32.mrb[0].mxu0
      %3960 = vmatprep.mubr.bf16.mxu0 %v3099
      %3961 = vmatmul.mubr.bf16.gmra.mrb[0].mxu0 %v3167
      %v3962 = vpop.f32.mrb[0].mxu0
      %v3963 = vadd.f32 %v3802, %v3962
      %v3964 = vpop.f32.mrb[0].mxu0
      %v3965 = vpop.f32.mrb[0].mxu0
      %v3966 = vadd.f32 %v3805, %v3965
      %v3967 = vpop.f32.mrb[0].mxu0
      %3968 = vmatprep.mubr.bf16.mxu0 %v3100
      %3969 = vmatmul.mubr.bf16.gmra.mrb[0].mxu0 %v3175
      %v3970 = vpop.f32.mrb[0].mxu0
      %v3971 = vadd.f32 %v3810, %v3970
      %v3972 = vpop.f32.mrb[0].mxu0
      %v3973 = vpop.f32.mrb[0].mxu0
      %v3974 = vadd.f32 %v3813, %v3973
      %v3975 = vpop.f32.mrb[0].mxu0
      %3976 = vmatprep.mubr.bf16.mxu0 %v3101
      %3977 = vmatmul.mubr.bf16.gmra.mrb[0].mxu0 %v3183
      %v3978 = vpop.f32.mrb[0].mxu0
      %v3979 = vadd.f32 %v3818, %v3978
      %v3980 = vpop.f32.mrb[0].mxu0
      %v3981 = vpop.f32.mrb[0].mxu0
      %v3982 = vadd.f32 %v3821, %v3981
      %v3983 = vpop.f32.mrb[0].mxu0
      %3984 = vmatprep.mubr.bf16.mxu0 %v3102
      %3985 = vmatmul.mubr.bf16.gmra.mrb[0].mxu0 %v3191
      %v3986 = vpop.f32.mrb[0].mxu0
      %v3987 = vadd.f32 %v3826, %v3986
      %v3988 = vpop.f32.mrb[0].mxu0
      %v3989 = vpop.f32.mrb[0].mxu0
      %v3990 = vadd.f32 %v3829, %v3989
      %v3991 = vpop.f32.mrb[0].mxu0
      %3992 = vmatprep.mubr.bf16.mxu0 %v3103
      %3993 = vmatmul.mubr.bf16.gmra.mrb[0].mxu0 %v3199
      %v3994 = vpop.f32.mrb[0].mxu0
      %v3995 = vadd.f32 %v3834, %v3994
      %v3996 = vpop.f32.mrb[0].mxu0
      %v3997 = vpop.f32.mrb[0].mxu0
      %v3998 = vadd.f32 %v3837, %v3997
      %v3999 = vpop.f32.mrb[0].mxu0
      %4000 = vmatprep.mubr.bf16.mxu0 %v3104
      %4001 = vmatmul.mubr.bf16.gmra.mrb[0].mxu0 %v3207
      %v4002 = vpop.f32.mrb[0].mxu0
      %v4003 = vadd.f32 %v3842, %v4002
      %v4004 = vpop.f32.mrb[0].mxu0
      %v4005 = vpop.f32.mrb[0].mxu0
      %v4006 = vadd.f32 %v3845, %v4005
      %v4007 = vpop.f32.mrb[0].mxu0
      %4008 = vmatprep.mubr.bf16.mxu0 %v3105
      %4009 = vmatmul.mubr.bf16.gmra.mrb[0].mxu0 %v3215
      %v4010 = vpop.f32.mrb[0].mxu0
      %v4011 = vadd.f32 %v3850, %v4010
      %v4012 = vpop.f32.mrb[0].mxu0
      %v4013 = vpop.f32.mrb[0].mxu0
      %v4014 = vadd.f32 %v3853, %v4013
      %v4015 = vpop.f32.mrb[0].mxu0
      %4016 = vmatprep.mubr.bf16.mxu0 %v3106
      %4017 = vmatmul.mubr.bf16.gmra.mrb[0].mxu0 %v3223
      %v4018 = vpop.f32.mrb[0].mxu0
      %v4019 = vadd.f32 %v3858, %v4018
      %v4020 = vpop.f32.mrb[0].mxu0
      %v4021 = vpop.f32.mrb[0].mxu0
      %v4022 = vadd.f32 %v3861, %v4021
      %v4023 = vpop.f32.mrb[0].mxu0
      %4024 = vmatprep.mubr.bf16.mxu0 %v3107
      %4025 = vmatmul.mubr.bf16.gmra.mrb[0].mxu0 %v3231
      %v4026 = vpop.f32.mrb[0].mxu0
      %v4027 = vadd.f32 %v3866, %v4026
      %v4028 = vpop.f32.mrb[0].mxu0
      %v4029 = vpop.f32.mrb[0].mxu0
      %v4030 = vadd.f32 %v3869, %v4029
      %v4031 = vpop.f32.mrb[0].mxu0
      %4032 = vmatprep.mubr.bf16.mxu0 %v3108
      %4033 = vmatmul.mubr.bf16.gmra.mrb[0].mxu0 %v3239
      %v4034 = vpop.f32.mrb[0].mxu0
      %v4035 = vadd.f32 %v3874, %v4034
      %v4036 = vpop.f32.mrb[0].mxu0
      %v4037 = vpop.f32.mrb[0].mxu0
      %v4038 = vadd.f32 %v3877, %v4037
      %v4039 = vpop.f32.mrb[0].mxu0
      %4040 = vmatprep.mubr.bf16.mxu0 %v3109
      %4041 = vmatmul.mubr.bf16.gmra.mrb[0].mxu0 %v3247
      %v4042 = vpop.f32.mrb[0].mxu0
      %v4043 = vadd.f32 %v3882, %v4042
      %v4044 = vpop.f32.mrb[0].mxu0
      %v4045 = vpop.f32.mrb[0].mxu0
      %v4046 = vadd.f32 %v3885, %v4045
      %v4047 = vpop.f32.mrb[0].mxu0
      %4048 = vmatprep.mubr.bf16.mxu0 %v3110
      %4049 = vmatmul.mubr.bf16.gmra.mrb[0].mxu0 %v3255
      %v4050 = vpop.f32.mrb[0].mxu0
      %v4051 = vadd.f32 %v3890, %v4050
      %v4052 = vpop.f32.mrb[0].mxu0
      %v4053 = vpop.f32.mrb[0].mxu0
      %v4054 = vadd.f32 %v3893, %v4053
      %v4055 = vpop.f32.mrb[0].mxu0
      %4056 = vmatprep.mubr.bf16.mxu0 %v3111
      %4057 = vmatmul.mubr.bf16.gmra.mrb[0].mxu0 %v3263
      %v4058 = vpop.f32.mrb[0].mxu0
      %v4059 = vadd.f32 %v3898, %v4058
      %v4060 = vpop.f32.mrb[0].mxu0
      %v4061 = vpop.f32.mrb[0].mxu0
      %v4062 = vadd.f32 %v3901, %v4061
      %v4063 = vpop.f32.mrb[0].mxu0
      %4064 = vmatprep.mubr.bf16.mxu0 %v3112
      %4065 = vmatmul.mubr.bf16.gmra.mrb[0].mxu0 %v3428
      %v4066 = vpop.f32.mrb[0].mxu0
      %v4067 = vadd.f32 %v3906, %v4066
      %v4068 = vpop.f32.mrb[0].mxu0
      %v4069 = vpop.f32.mrb[0].mxu0
      %v4070 = vadd.f32 %v3909, %v4069
      %v4071 = vpop.f32.mrb[0].mxu0
      %4072 = vmatprep.mubr.bf16.mxu0 0
      %4073 = vmatmul.mubr.bf16.gmra.mrb[0].mxu0 %v3436
      %v4074 = vpop.f32.mrb[0].mxu0
      %v4075 = vadd.f32 %v3914, %v4074
      %v4076 = vpop.f32.mrb[0].mxu0
      %v4077 = vpop.f32.mrb[0].mxu0
      %v4078 = vadd.f32 %v3917, %v4077
      %v4079 = vpop.f32.mrb[0].mxu0
      %4080 = vdwg.mxu0
      %4081 = vmatprep.subr.bf16.mxu0 0
      %4082 = vmatpush1.bf16.msra.mxu0 %v2148
      %4083 = vmatprep.subr.bf16.mxu0 0
      %4084 = vmatpush1.bf16.msra.mxu0 %v2149
      %4085 = vmatprep.subr.bf16.mxu0 0
      %4086 = vmatpush1.bf16.msra.mxu0 %v2150
      %4087 = vmatprep.subr.bf16.mxu0 0
      %4088 = vmatpush1.bf16.msra.mxu0 %v2151
      %4089 = vmatprep.subr.bf16.mxu0 0
      %4090 = vmatpush1.bf16.msra.mxu0 %v2152
      %4091 = vmatprep.subr.bf16.mxu0 0
      %4092 = vmatpush1.bf16.msra.mxu0 %v2153
      %4093 = vmatprep.subr.bf16.mxu0 0
      %4094 = vmatpush1.bf16.msra.mxu0 %v2154
      %4095 = vmatprep.subr.bf16.mxu0 0
      %4096 = vmatpush1.bf16.msra.mxu0 %v2155
      %4097 = vmatprep.subr.bf16.mxu0 0
      %4098 = vmatpush1.bf16.msra.mxu0 0
      %4099 = vmatprep.subr.bf16.mxu0 0
      %4100 = vmatpush1.bf16.msra.mxu0 0
      %4101 = vmatprep.subr.bf16.mxu0 0
      %4102 = vmatpush1.bf16.msra.mxu0 0
      %4103 = vmatprep.subr.bf16.mxu0 0
      %4104 = vmatpush1.bf16.msra.mxu0 0
      %4105 = vmatprep.subr.bf16.mxu0 0
      %4106 = vmatpush1.bf16.msra.mxu0 0
      %4107 = vmatprep.subr.bf16.mxu0 0
      %4108 = vmatpush1.bf16.msra.mxu0 0
      %4109 = vmatprep.subr.bf16.mxu0 0
      %4110 = vmatpush1.bf16.msra.mxu0 0
      %4111 = vmatprep.subr.bf16.mxu0 0
      %4112 = vmatpush1.bf16.msra.mxu0 0
      %4113 = vmatprep.mubr.bf16.mxu0 0
      %4114 = vmatmul.mubr.bf16.gmra.mrb[0].mxu0 %v3299
      %v4115 = vpop.f32.mrb[0].mxu0
      %v4116 = vadd.f32 %v3955, %v4115
      %v4117 = vpop.f32.mrb[0].mxu0
      %v4118 = vpop.f32.mrb[0].mxu0
      %v4119 = vadd.f32 %v3958, %v4118
      %v4120 = vpop.f32.mrb[0].mxu0
      %4121 = vmatprep.mubr.bf16.mxu0 0
      %4122 = vmatmul.mubr.bf16.gmra.mrb[0].mxu0 %v3307
      %v4123 = vpop.f32.mrb[0].mxu0
      %v4124 = vadd.f32 %v3963, %v4123
      %v4125 = vpop.f32.mrb[0].mxu0
      %v4126 = vpop.f32.mrb[0].mxu0
      %v4127 = vadd.f32 %v3966, %v4126
      %v4128 = vpop.f32.mrb[0].mxu0
      %4129 = vmatprep.mubr.bf16.mxu0 0
      %4130 = vmatmul.mubr.bf16.gmra.mrb[0].mxu0 %v3315
      %v4131 = vpop.f32.mrb[0].mxu0
      %v4132 = vadd.f32 %v3971, %v4131
      %v4133 = vpop.f32.mrb[0].mxu0
      %v4134 = vpop.f32.mrb[0].mxu0
      %v4135 = vadd.f32 %v3974, %v4134
      %v4136 = vpop.f32.mrb[0].mxu0
      %4137 = vmatprep.mubr.bf16.mxu0 0
      %4138 = vmatmul.mubr.bf16.gmra.mrb[0].mxu0 %v3323
      %v4139 = vpop.f32.mrb[0].mxu0
      %v4140 = vadd.f32 %v3979, %v4139
      %v4141 = vpop.f32.mrb[0].mxu0
      %v4142 = vpop.f32.mrb[0].mxu0
      %v4143 = vadd.f32 %v3982, %v4142
      %v4144 = vpop.f32.mrb[0].mxu0
      %4145 = vmatprep.mubr.bf16.mxu0 0
      %4146 = vmatmul.mubr.bf16.gmra.mrb[0].mxu0 %v3331
      %v4147 = vpop.f32.mrb[0].mxu0
      %v4148 = vadd.f32 %v3987, %v4147
      %v4149 = vpop.f32.mrb[0].mxu0
      %v4150 = vpop.f32.mrb[0].mxu0
      %v4151 = vadd.f32 %v3990, %v4150
      %v4152 = vpop.f32.mrb[0].mxu0
      %4153 = vmatprep.mubr.bf16.mxu0 0
      %4154 = vmatmul.mubr.bf16.gmra.mrb[0].mxu0 %v3339
      %v4155 = vpop.f32.mrb[0].mxu0
      %v4156 = vadd.f32 %v3995, %v4155
      %v4157 = vpop.f32.mrb[0].mxu0
      %v4158 = vpop.f32.mrb[0].mxu0
      %v4159 = vadd.f32 %v3998, %v4158
      %v4160 = vpop.f32.mrb[0].mxu0
      %4161 = vmatprep.mubr.bf16.mxu0 0
      %4162 = vmatmul.mubr.bf16.gmra.mrb[0].mxu0 %v3347
      %v4163 = vpop.f32.mrb[0].mxu0
      %v4164 = vadd.f32 %v4003, %v4163
      %v4165 = vpop.f32.mrb[0].mxu0
      %v4166 = vpop.f32.mrb[0].mxu0
      %v4167 = vadd.f32 %v4006, %v4166
      %v4168 = vpop.f32.mrb[0].mxu0
      %4169 = vmatprep.mubr.bf16.mxu0 0
      %4170 = vmatmul.mubr.bf16.gmra.mrb[0].mxu0 %v3355
      %v4171 = vpop.f32.mrb[0].mxu0
      %v4172 = vadd.f32 %v4011, %v4171
      %v4173 = vpop.f32.mrb[0].mxu0
      %v4174 = vpop.f32.mrb[0].mxu0
      %v4175 = vadd.f32 %v4014, %v4174
      %v4176 = vpop.f32.mrb[0].mxu0
      %4177 = vmatprep.mubr.bf16.mxu0 0
      %4178 = vmatmul.mubr.bf16.gmra.mrb[0].mxu0 %v3363
      %v4179 = vpop.f32.mrb[0].mxu0
      %v4180 = vadd.f32 %v4019, %v4179
      %v4181 = vpop.f32.mrb[0].mxu0
      %v4182 = vpop.f32.mrb[0].mxu0
      %v4183 = vadd.f32 %v4022, %v4182
      %v4184 = vpop.f32.mrb[0].mxu0
      %4185 = vmatprep.mubr.bf16.mxu0 0
      %4186 = vmatmul.mubr.bf16.gmra.mrb[0].mxu0 %v3371
      %v4187 = vpop.f32.mrb[0].mxu0
      %v4188 = vadd.f32 %v4027, %v4187
      %v4189 = vpop.f32.mrb[0].mxu0
      %v4190 = vpop.f32.mrb[0].mxu0
      %v4191 = vadd.f32 %v4030, %v4190
      %v4192 = vpop.f32.mrb[0].mxu0
      %4193 = vmatprep.mubr.bf16.mxu0 0
      %4194 = vmatmul.mubr.bf16.gmra.mrb[0].mxu0 %v3379
      %v4195 = vpop.f32.mrb[0].mxu0
      %v4196 = vadd.f32 %v4035, %v4195
      %v4197 = vpop.f32.mrb[0].mxu0
      %v4198 = vpop.f32.mrb[0].mxu0
      %v4199 = vadd.f32 %v4038, %v4198
      %v4200 = vpop.f32.mrb[0].mxu0
      %4201 = vmatprep.mubr.bf16.mxu0 0
      %4202 = vmatmul.mubr.bf16.gmra.mrb[0].mxu0 %v3387
      %v4203 = vpop.f32.mrb[0].mxu0
      %v4204 = vadd.f32 %v4043, %v4203
      %v4205 = vpop.f32.mrb[0].mxu0
      %v4206 = vpop.f32.mrb[0].mxu0
      %v4207 = vadd.f32 %v4046, %v4206
      %v4208 = vpop.f32.mrb[0].mxu0
      %4209 = vmatprep.mubr.bf16.mxu0 0
      %4210 = vmatmul.mubr.bf16.gmra.mrb[0].mxu0 %v3395
      %v4211 = vpop.f32.mrb[0].mxu0
      %v4212 = vadd.f32 %v4051, %v4211
      %v4213 = vpop.f32.mrb[0].mxu0
      %v4214 = vpop.f32.mrb[0].mxu0
      %v4215 = vadd.f32 %v4054, %v4214
      %v4216 = vpop.f32.mrb[0].mxu0
      %4217 = vmatprep.mubr.bf16.mxu0 0
      %4218 = vmatmul.mubr.bf16.gmra.mrb[0].mxu0 %v3403
      %v4219 = vpop.f32.mrb[0].mxu0
      %v4220 = vadd.f32 %v4059, %v4219
      %v4221 = vpop.f32.mrb[0].mxu0
      %v4222 = vpop.f32.mrb[0].mxu0
      %v4223 = vadd.f32 %v4062, %v4222
      %v4224 = vpop.f32.mrb[0].mxu0
      %4225 = vmatprep.mubr.bf16.mxu0 0
      %4226 = vmatmul.mubr.bf16.gmra.mrb[0].mxu0 %v3434
      %v4227 = vpop.f32.mrb[0].mxu0
      %v4228 = vadd.f32 %v4067, %v4227
      %v4229 = vpop.f32.mrb[0].mxu0
      %v4230 = vpop.f32.mrb[0].mxu0
      %v4231 = vadd.f32 %v4070, %v4230
      %v4232 = vpop.f32.mrb[0].mxu0
      %4233 = vmatprep.mubr.bf16.mxu0 0
      %4234 = vmatmul.mubr.bf16.gmra.mrb[0].mxu0 0
      %v4235 = vpop.f32.mrb[0].mxu0
      %v4236 = vadd.f32 %v4075, %v4235
      %v4237 = vpop.f32.mrb[0].mxu0
      %v4238 = vpop.f32.mrb[0].mxu0
      %v4239 = vadd.f32 %v4078, %v4238
      %v4240 = vpop.f32.mrb[0].mxu0
      %4241 = vdwg.mxu0
      %v4242 = vmax.f32 %v4116, 0.0
      %v4243 = vmax.f32 %v4119, 0.0
      %v4244 = vmax.f32 %v4124, 0.0
      %v4245 = vmax.f32 %v4127, 0.0
      %v4246 = vmax.f32 %v4132, 0.0
      %v4247 = vmax.f32 %v4135, 0.0
      %v4248 = vmax.f32 %v4140, 0.0
      %v4249 = vmax.f32 %v4143, 0.0
      %v4250 = vmax.f32 %v4148, 0.0
      %v4251 = vmax.f32 %v4151, 0.0
      %v4252 = vmax.f32 %v4156, 0.0
      %v4253 = vmax.f32 %v4159, 0.0
      %v4254 = vmax.f32 %v4164, 0.0
      %v4255 = vmax.f32 %v4167, 0.0
      %v4256 = vmax.f32 %v4172, 0.0
      %v4257 = vmax.f32 %v4175, 0.0
      %v4258 = vmax.f32 %v4180, 0.0
      %v4259 = vmax.f32 %v4183, 0.0
      %v4260 = vmax.f32 %v4188, 0.0
      %v4261 = vmax.f32 %v4191, 0.0
      %v4262 = vmax.f32 %v4196, 0.0
      %v4263 = vmax.f32 %v4199, 0.0
      %v4264 = vmax.f32 %v4204, 0.0
      %v4265 = vmax.f32 %v4207, 0.0
      %v4266 = vmax.f32 %v4212, 0.0
      %v4267 = vmax.f32 %v4215, 0.0
      %v4268 = vmax.f32 %v4220, 0.0
      %v4269 = vmax.f32 %v4223, 0.0
      %v4270 = vmax.f32 %v4228, 0.0
      %v4271 = vmax.f32 %v4231, 0.0
      %v4272 = vmax.f32 %v4236, 0.0
      %v4273 = vmax.f32 %v4239, 0.0
      %v4274 = vadd.f32 %v917, %v4242
      %v4275 = vadd.f32 %v920, %v4243
      %v4276 = vadd.f32 %v925, %v4244
      %v4277 = vadd.f32 %v928, %v4245
      %v4278 = vadd.f32 %v933, %v4246
      %v4279 = vadd.f32 %v936, %v4247
      %v4280 = vadd.f32 %v941, %v4248
      %v4281 = vadd.f32 %v944, %v4249
      %v4282 = vadd.f32 %v949, %v4250
      %v4283 = vadd.f32 %v952, %v4251
      %v4284 = vadd.f32 %v957, %v4252
      %v4285 = vadd.f32 %v960, %v4253
      %v4286 = vadd.f32 %v965, %v4254
      %v4287 = vadd.f32 %v968, %v4255
      %v4288 = vadd.f32 %v973, %v4256
      %v4289 = vadd.f32 %v976, %v4257
      %v4290 = vadd.f32 %v981, %v4258
      %v4291 = vadd.f32 %v984, %v4259
      %v4292 = vadd.f32 %v989, %v4260
      %v4293 = vadd.f32 %v992, %v4261
      %v4294 = vadd.f32 %v997, %v4262
      %v4295 = vadd.f32 %v1000, %v4263
      %v4296 = vadd.f32 %v1005, %v4264
      %v4297 = vadd.f32 %v1008, %v4265
      %v4298 = vadd.f32 %v1013, %v4266
      %v4299 = vadd.f32 %v1016, %v4267
      %v4300 = vadd.f32 %v1021, %v4268
      %v4301 = vadd.f32 %v1024, %v4269
      %v4302 = vadd.f32 %v1029, %v4270
      %v4303 = vadd.f32 %v1032, %v4271
      %v4304 = vadd.f32 %v1037, %v4272
      %v4305 = vadd.f32 %v1040, %v4273
      %v4306 = vpack.c.bf16 %v4275, %v4274
      %v4307 = vpack.c.bf16 %v4277, %v4276
      %v4308 = vpack.c.bf16 %v4279, %v4278
      %v4309 = vpack.c.bf16 %v4281, %v4280
      %v4310 = vpack.c.bf16 %v4283, %v4282
      %v4311 = vpack.c.bf16 %v4285, %v4284
      %v4312 = vpack.c.bf16 %v4287, %v4286
      %v4313 = vpack.c.bf16 %v4289, %v4288
      %v4314 = vpack.c.bf16 %v4291, %v4290
      %v4315 = vpack.c.bf16 %v4293, %v4292
      %v4316 = vpack.c.bf16 %v4295, %v4294
      %v4317 = vpack.c.bf16 %v4297, %v4296
      %v4318 = vpack.c.bf16 %v4299, %v4298
      %v4319 = vpack.c.bf16 %v4301, %v4300
      %v4320 = vpack.c.bf16 %v4303, %v4302
      %v4321 = vpack.c.bf16 %v4305, %v4304
      %v4322 = vsel %vm1172, %v4306, 0
      %v4323 = vsel %vm1173, %v4307, 0
      %v4324 = vsel %vm1174, %v4308, 0
      %v4325 = vsel %vm1175, %v4309, 0
      %v4326 = vsel %vm1176, %v4310, 0
      %v4327 = vsel %vm1177, %v4311, 0
      %v4328 = vsel %vm1178, %v4312, 0
      %v4329 = vsel %vm1179, %v4313, 0
      %v4330 = vsel %vm1180, %v4314, 0
      %v4331 = vsel %vm1181, %v4315, 0
      %v4332 = vsel %vm1182, %v4316, 0
      %v4333 = vsel %vm1183, %v4317, 0
      %v4334 = vsel %vm1184, %v4318, 0
      %v4335 = vsel %vm1185, %v4319, 0
      %v4336 = vsel %vm1186, %v4320, 0
      %v4337 = vsel %vm1187, %v4321, 0
      %v4338 = vsel %vm1316, %v4306, 0
      %v4339 = vsel %vm1317, %v4307, 0
      %v4340 = vsel %vm1318, %v4308, 0
      %v4341 = vsel %vm1319, %v4309, 0
      %v4342 = vsel %vm1320, %v4310, 0
      %v4343 = vsel %vm1321, %v4311, 0
      %v4344 = vsel %vm1322, %v4312, 0
      %v4345 = vsel %vm1323, %v4313, 0
      %v4346 = vsel %vm1324, %v4314, 0
      %v4347 = vsel %vm1325, %v4315, 0
      %v4348 = vsel %vm1326, %v4316, 0
      %v4349 = vsel %vm1327, %v4317, 0
      %v4350 = vsel %vm1328, %v4318, 0
      %v4351 = vsel %vm1329, %v4319, 0
      %v4352 = vsel %vm1330, %v4320, 0
      %v4353 = vsel %vm1331, %v4321, 0
      %v4355 = vshrl.u32 %v4322, 16
      %v4357 = vrot.slane %v4355, 7
      %v4358 = vshll.u32 %v4322, 16
      %v4360 = vor.u32 %v4357, %v4358
      %v4362 = vshrl.u32 %v4323, 16
      %v4364 = vrot.slane %v4362, 7
      %v4365 = vshll.u32 %v4323, 16
      %v4367 = vor.u32 %v4364, %v4365
      %v4368 = vsel %vm1348, %v4357, %v4367
      %v4370 = vshrl.u32 %v4324, 16
      %v4372 = vrot.slane %v4370, 7
      %v4373 = vshll.u32 %v4324, 16
      %v4375 = vor.u32 %v4372, %v4373
      %v4376 = vsel %vm1348, %v4364, %v4375
      %v4378 = vshrl.u32 %v4325, 16
      %v4380 = vrot.slane %v4378, 7
      %v4381 = vshll.u32 %v4325, 16
      %v4383 = vor.u32 %v4380, %v4381
      %v4384 = vsel %vm1348, %v4372, %v4383
      %v4386 = vshrl.u32 %v4326, 16
      %v4388 = vrot.slane %v4386, 7
      %v4389 = vshll.u32 %v4326, 16
      %v4391 = vor.u32 %v4388, %v4389
      %v4392 = vsel %vm1348, %v4380, %v4391
      %v4394 = vshrl.u32 %v4327, 16
      %v4396 = vrot.slane %v4394, 7
      %v4397 = vshll.u32 %v4327, 16
      %v4399 = vor.u32 %v4396, %v4397
      %v4400 = vsel %vm1348, %v4388, %v4399
      %v4402 = vshrl.u32 %v4328, 16
      %v4404 = vrot.slane %v4402, 7
      %v4405 = vshll.u32 %v4328, 16
      %v4407 = vor.u32 %v4404, %v4405
      %v4408 = vsel %vm1348, %v4396, %v4407
      %v4410 = vshrl.u32 %v4329, 16
      %v4412 = vrot.slane %v4410, 7
      %v4413 = vshll.u32 %v4329, 16
      %v4415 = vor.u32 %v4412, %v4413
      %v4416 = vsel %vm1348, %v4404, %v4415
      %v4418 = vshrl.u32 %v4330, 16
      %v4420 = vrot.slane %v4418, 7
      %v4421 = vshll.u32 %v4330, 16
      %v4423 = vor.u32 %v4420, %v4421
      %v4424 = vsel %vm1348, %v4412, %v4423
      %v4426 = vshrl.u32 %v4331, 16
      %v4428 = vrot.slane %v4426, 7
      %v4429 = vshll.u32 %v4331, 16
      %v4431 = vor.u32 %v4428, %v4429
      %v4432 = vsel %vm1348, %v4420, %v4431
      %v4434 = vshrl.u32 %v4332, 16
      %v4436 = vrot.slane %v4434, 7
      %v4437 = vshll.u32 %v4332, 16
      %v4439 = vor.u32 %v4436, %v4437
      %v4440 = vsel %vm1348, %v4428, %v4439
      %v4442 = vshrl.u32 %v4333, 16
      %v4444 = vrot.slane %v4442, 7
      %v4445 = vshll.u32 %v4333, 16
      %v4447 = vor.u32 %v4444, %v4445
      %v4448 = vsel %vm1348, %v4436, %v4447
      %v4450 = vshrl.u32 %v4334, 16
      %v4452 = vrot.slane %v4450, 7
      %v4453 = vshll.u32 %v4334, 16
      %v4455 = vor.u32 %v4452, %v4453
      %v4456 = vsel %vm1348, %v4444, %v4455
      %v4458 = vshrl.u32 %v4335, 16
      %v4460 = vrot.slane %v4458, 7
      %v4461 = vshll.u32 %v4335, 16
      %v4463 = vor.u32 %v4460, %v4461
      %v4464 = vsel %vm1348, %v4452, %v4463
      %v4466 = vshrl.u32 %v4336, 16
      %v4468 = vrot.slane %v4466, 7
      %v4469 = vshll.u32 %v4336, 16
      %v4471 = vor.u32 %v4468, %v4469
      %v4472 = vsel %vm1348, %v4460, %v4471
      %v4488 = vsel %vm1484, 0, %v4360
      %v4490 = vshll.u32 %v4338, 16
      %v4492 = vrot.slane %v4490, 1
      %v4493 = vshrl.u32 %v4338, 16
      %v4495 = vor.u32 %v4493, %v4492
      %v4497 = vshll.u32 %v4339, 16
      %v4499 = vrot.slane %v4497, 1
      %v4500 = vsel %vm1486, %v4495, %v4499
      %v4501 = vshrl.u32 %v4339, 16
      %v4503 = vor.u32 %v4501, %v4499
      %v4505 = vshll.u32 %v4340, 16
      %v4507 = vrot.slane %v4505, 1
      %v4508 = vsel %vm1486, %v4503, %v4507
      %v4509 = vshrl.u32 %v4340, 16
      %v4511 = vor.u32 %v4509, %v4507
      %v4513 = vshll.u32 %v4341, 16
      %v4515 = vrot.slane %v4513, 1
      %v4516 = vsel %vm1486, %v4511, %v4515
      %v4517 = vshrl.u32 %v4341, 16
      %v4519 = vor.u32 %v4517, %v4515
      %v4521 = vshll.u32 %v4342, 16
      %v4523 = vrot.slane %v4521, 1
      %v4524 = vsel %vm1486, %v4519, %v4523
      %v4525 = vshrl.u32 %v4342, 16
      %v4527 = vor.u32 %v4525, %v4523
      %v4529 = vshll.u32 %v4343, 16
      %v4531 = vrot.slane %v4529, 1
      %v4532 = vsel %vm1486, %v4527, %v4531
      %v4533 = vshrl.u32 %v4343, 16
      %v4535 = vor.u32 %v4533, %v4531
      %v4537 = vshll.u32 %v4344, 16
      %v4539 = vrot.slane %v4537, 1
      %v4540 = vsel %vm1486, %v4535, %v4539
      %v4541 = vshrl.u32 %v4344, 16
      %v4543 = vor.u32 %v4541, %v4539
      %v4545 = vshll.u32 %v4345, 16
      %v4547 = vrot.slane %v4545, 1
      %v4548 = vsel %vm1486, %v4543, %v4547
      %v4549 = vshrl.u32 %v4345, 16
      %v4551 = vor.u32 %v4549, %v4547
      %v4553 = vshll.u32 %v4346, 16
      %v4555 = vrot.slane %v4553, 1
      %v4556 = vsel %vm1486, %v4551, %v4555
      %v4557 = vshrl.u32 %v4346, 16
      %v4559 = vor.u32 %v4557, %v4555
      %v4561 = vshll.u32 %v4347, 16
      %v4563 = vrot.slane %v4561, 1
      %v4564 = vsel %vm1486, %v4559, %v4563
      %v4565 = vshrl.u32 %v4347, 16
      %v4567 = vor.u32 %v4565, %v4563
      %v4569 = vshll.u32 %v4348, 16
      %v4571 = vrot.slane %v4569, 1
      %v4572 = vsel %vm1486, %v4567, %v4571
      %v4573 = vshrl.u32 %v4348, 16
      %v4575 = vor.u32 %v4573, %v4571
      %v4577 = vshll.u32 %v4349, 16
      %v4579 = vrot.slane %v4577, 1
      %v4580 = vsel %vm1486, %v4575, %v4579
      %v4581 = vshrl.u32 %v4349, 16
      %v4583 = vor.u32 %v4581, %v4579
      %v4585 = vshll.u32 %v4350, 16
      %v4587 = vrot.slane %v4585, 1
      %v4588 = vsel %vm1486, %v4583, %v4587
      %v4589 = vshrl.u32 %v4350, 16
      %v4591 = vor.u32 %v4589, %v4587
      %v4593 = vshll.u32 %v4351, 16
      %v4595 = vrot.slane %v4593, 1
      %v4596 = vsel %vm1486, %v4591, %v4595
      %v4597 = vshrl.u32 %v4351, 16
      %v4599 = vor.u32 %v4597, %v4595
      %v4601 = vshll.u32 %v4352, 16
      %v4603 = vrot.slane %v4601, 1
      %v4604 = vsel %vm1486, %v4599, %v4603
      %v4605 = vshrl.u32 %v4352, 16
      %v4607 = vor.u32 %v4605, %v4603
      %v4609 = vshll.u32 %v4353, 16
      %v4611 = vrot.slane %v4609, 1
      %v4612 = vsel %vm1486, %v4607, %v4611
      %v4629 = vsel %vm1628, 0, %v4492
      %v4631 = vshrl.u32 %v4337, 16
      %v4633 = vrot.slane %v4631, 7
      %v4634 = vshll.u32 %v4337, 16
      %v4636 = vor.u32 %v4633, %v4634
      %v4637 = vsel %vm1348, %v4468, %v4636
      %v4639 = vshrl.u32 %v4353, 16
      %v4641 = vor.u32 %v4639, %v4611
      %v4643 = vsel %vm1628, %v4641, 0
      %v4645 = vsel %vm1484, %v4633, 0
      %4646 = vmatprep.subr.bf16.mxu0 0
      %4647 = vmatpush1.bf16.msra.mxu0 %v2084
      %4648 = vmatprep.subr.bf16.mxu0 0
      %4649 = vmatpush1.bf16.msra.mxu0 %v2085
      %4650 = vmatprep.subr.bf16.mxu0 0
      %4651 = vmatpush1.bf16.msra.mxu0 %v2086
      %4652 = vmatprep.subr.bf16.mxu0 0
      %4653 = vmatpush1.bf16.msra.mxu0 %v2087
      %4654 = vmatprep.subr.bf16.mxu0 0
      %4655 = vmatpush1.bf16.msra.mxu0 %v2088
      %4656 = vmatprep.subr.bf16.mxu0 0
      %4657 = vmatpush1.bf16.msra.mxu0 %v2089
      %4658 = vmatprep.subr.bf16.mxu0 0
      %4659 = vmatpush1.bf16.msra.mxu0 %v2090
      %4660 = vmatprep.subr.bf16.mxu0 0
      %4661 = vmatpush1.bf16.msra.mxu0 %v2091
      %4662 = vmatprep.subr.bf16.mxu0 0
      %4663 = vmatpush1.bf16.msra.mxu0 %v2092
      %4664 = vmatprep.subr.bf16.mxu0 0
      %4665 = vmatpush1.bf16.msra.mxu0 %v2093
      %4666 = vmatprep.subr.bf16.mxu0 0
      %4667 = vmatpush1.bf16.msra.mxu0 %v2094
      %4668 = vmatprep.subr.bf16.mxu0 0
      %4669 = vmatpush1.bf16.msra.mxu0 %v2095
      %4670 = vmatprep.subr.bf16.mxu0 0
      %4671 = vmatpush1.bf16.msra.mxu0 %v2096
      %4672 = vmatprep.subr.bf16.mxu0 0
      %4673 = vmatpush1.bf16.msra.mxu0 %v2097
      %4674 = vmatprep.subr.bf16.mxu0 0
      %4675 = vmatpush1.bf16.msra.mxu0 %v2098
      %4676 = vmatprep.subr.bf16.mxu0 0
      %4677 = vmatpush1.bf16.msra.mxu0 %v2099
      %4678 = vmatprep.mubr.bf16.mxu0 0
      %4679 = vmatmul.mubr.bf16.gmra.mrb[0].mxu0 0
      %v4680 = vpop.f32.mrb[0].mxu0
      %v4681 = vadd.f32 %v1794, %v4680
      %v4682 = vpop.f32.mrb[0].mxu0
      %v4683 = vpop.f32.mrb[0].mxu0
      %v4684 = vadd.f32 %v1794, %v4683
      %v4685 = vpop.f32.mrb[0].mxu0
      %4686 = vmatprep.mubr.bf16.mxu0 %v4306
      %4687 = vmatmul.mubr.bf16.gmra.mrb[0].mxu0 %v4488
      %v4688 = vpop.f32.mrb[0].mxu0
      %v4689 = vadd.f32 %v1794, %v4688
      %v4690 = vpop.f32.mrb[0].mxu0
      %v4691 = vpop.f32.mrb[0].mxu0
      %v4692 = vadd.f32 %v1794, %v4691
      %v4693 = vpop.f32.mrb[0].mxu0
      %4694 = vmatprep.mubr.bf16.mxu0 %v4307
      %4695 = vmatmul.mubr.bf16.gmra.mrb[0].mxu0 %v4368
      %v4696 = vpop.f32.mrb[0].mxu0
      %v4697 = vadd.f32 %v1794, %v4696
      %v4698 = vpop.f32.mrb[0].mxu0
      %v4699 = vpop.f32.mrb[0].mxu0
      %v4700 = vadd.f32 %v1794, %v4699
      %v4701 = vpop.f32.mrb[0].mxu0
      %4702 = vmatprep.mubr.bf16.mxu0 %v4308
      %4703 = vmatmul.mubr.bf16.gmra.mrb[0].mxu0 %v4376
      %v4704 = vpop.f32.mrb[0].mxu0
      %v4705 = vadd.f32 %v1794, %v4704
      %v4706 = vpop.f32.mrb[0].mxu0
      %v4707 = vpop.f32.mrb[0].mxu0
      %v4708 = vadd.f32 %v1794, %v4707
      %v4709 = vpop.f32.mrb[0].mxu0
      %4710 = vmatprep.mubr.bf16.mxu0 %v4309
      %4711 = vmatmul.mubr.bf16.gmra.mrb[0].mxu0 %v4384
      %v4712 = vpop.f32.mrb[0].mxu0
      %v4713 = vadd.f32 %v1794, %v4712
      %v4714 = vpop.f32.mrb[0].mxu0
      %v4715 = vpop.f32.mrb[0].mxu0
      %v4716 = vadd.f32 %v1794, %v4715
      %v4717 = vpop.f32.mrb[0].mxu0
      %4718 = vmatprep.mubr.bf16.mxu0 %v4310
      %4719 = vmatmul.mubr.bf16.gmra.mrb[0].mxu0 %v4392
      %v4720 = vpop.f32.mrb[0].mxu0
      %v4721 = vadd.f32 %v1794, %v4720
      %v4722 = vpop.f32.mrb[0].mxu0
      %v4723 = vpop.f32.mrb[0].mxu0
      %v4724 = vadd.f32 %v1794, %v4723
      %v4725 = vpop.f32.mrb[0].mxu0
      %4726 = vmatprep.mubr.bf16.mxu0 %v4311
      %4727 = vmatmul.mubr.bf16.gmra.mrb[0].mxu0 %v4400
      %v4728 = vpop.f32.mrb[0].mxu0
      %v4729 = vadd.f32 %v1794, %v4728
      %v4730 = vpop.f32.mrb[0].mxu0
      %v4731 = vpop.f32.mrb[0].mxu0
      %v4732 = vadd.f32 %v1794, %v4731
      %v4733 = vpop.f32.mrb[0].mxu0
      %4734 = vmatprep.mubr.bf16.mxu0 %v4312
      %4735 = vmatmul.mubr.bf16.gmra.mrb[0].mxu0 %v4408
      %v4736 = vpop.f32.mrb[0].mxu0
      %v4737 = vadd.f32 %v1794, %v4736
      %v4738 = vpop.f32.mrb[0].mxu0
      %v4739 = vpop.f32.mrb[0].mxu0
      %v4740 = vadd.f32 %v1794, %v4739
      %v4741 = vpop.f32.mrb[0].mxu0
      %4742 = vmatprep.mubr.bf16.mxu0 %v4313
      %4743 = vmatmul.mubr.bf16.gmra.mrb[0].mxu0 %v4416
      %v4744 = vpop.f32.mrb[0].mxu0
      %v4745 = vadd.f32 %v1794, %v4744
      %v4746 = vpop.f32.mrb[0].mxu0
      %v4747 = vpop.f32.mrb[0].mxu0
      %v4748 = vadd.f32 %v1794, %v4747
      %v4749 = vpop.f32.mrb[0].mxu0
      %4750 = vmatprep.mubr.bf16.mxu0 %v4314
      %4751 = vmatmul.mubr.bf16.gmra.mrb[0].mxu0 %v4424
      %v4752 = vpop.f32.mrb[0].mxu0
      %v4753 = vadd.f32 %v1794, %v4752
      %v4754 = vpop.f32.mrb[0].mxu0
      %v4755 = vpop.f32.mrb[0].mxu0
      %v4756 = vadd.f32 %v1794, %v4755
      %v4757 = vpop.f32.mrb[0].mxu0
      %4758 = vmatprep.mubr.bf16.mxu0 %v4315
      %4759 = vmatmul.mubr.bf16.gmra.mrb[0].mxu0 %v4432
      %v4760 = vpop.f32.mrb[0].mxu0
      %v4761 = vadd.f32 %v1794, %v4760
      %v4762 = vpop.f32.mrb[0].mxu0
      %v4763 = vpop.f32.mrb[0].mxu0
      %v4764 = vadd.f32 %v1794, %v4763
      %v4765 = vpop.f32.mrb[0].mxu0
      %4766 = vmatprep.mubr.bf16.mxu0 %v4316
      %4767 = vmatmul.mubr.bf16.gmra.mrb[0].mxu0 %v4440
      %v4768 = vpop.f32.mrb[0].mxu0
      %v4769 = vadd.f32 %v1794, %v4768
      %v4770 = vpop.f32.mrb[0].mxu0
      %v4771 = vpop.f32.mrb[0].mxu0
      %v4772 = vadd.f32 %v1794, %v4771
      %v4773 = vpop.f32.mrb[0].mxu0
      %4774 = vmatprep.mubr.bf16.mxu0 %v4317
      %4775 = vmatmul.mubr.bf16.gmra.mrb[0].mxu0 %v4448
      %v4776 = vpop.f32.mrb[0].mxu0
      %v4777 = vadd.f32 %v1794, %v4776
      %v4778 = vpop.f32.mrb[0].mxu0
      %v4779 = vpop.f32.mrb[0].mxu0
      %v4780 = vadd.f32 %v1794, %v4779
      %v4781 = vpop.f32.mrb[0].mxu0
      %4782 = vmatprep.mubr.bf16.mxu0 %v4318
      %4783 = vmatmul.mubr.bf16.gmra.mrb[0].mxu0 %v4456
      %v4784 = vpop.f32.mrb[0].mxu0
      %v4785 = vadd.f32 %v1794, %v4784
      %v4786 = vpop.f32.mrb[0].mxu0
      %v4787 = vpop.f32.mrb[0].mxu0
      %v4788 = vadd.f32 %v1794, %v4787
      %v4789 = vpop.f32.mrb[0].mxu0
      %4790 = vmatprep.mubr.bf16.mxu0 %v4319
      %4791 = vmatmul.mubr.bf16.gmra.mrb[0].mxu0 %v4464
      %v4792 = vpop.f32.mrb[0].mxu0
      %v4793 = vadd.f32 %v1794, %v4792
      %v4794 = vpop.f32.mrb[0].mxu0
      %v4795 = vpop.f32.mrb[0].mxu0
      %v4796 = vadd.f32 %v1794, %v4795
      %v4797 = vpop.f32.mrb[0].mxu0
      %4798 = vmatprep.mubr.bf16.mxu0 %v4320
      %4799 = vmatmul.mubr.bf16.gmra.mrb[0].mxu0 %v4472
      %v4800 = vpop.f32.mrb[0].mxu0
      %v4801 = vadd.f32 %v1794, %v4800
      %v4802 = vpop.f32.mrb[0].mxu0
      %v4803 = vpop.f32.mrb[0].mxu0
      %v4804 = vadd.f32 %v1794, %v4803
      %v4805 = vpop.f32.mrb[0].mxu0
      %4806 = vdwg.mxu0
      %4807 = vmatprep.subr.bf16.mxu0 0
      %4808 = vmatpush1.bf16.msra.mxu0 %v2100
      %4809 = vmatprep.subr.bf16.mxu0 0
      %4810 = vmatpush1.bf16.msra.mxu0 %v2101
      %4811 = vmatprep.subr.bf16.mxu0 0
      %4812 = vmatpush1.bf16.msra.mxu0 %v2102
      %4813 = vmatprep.subr.bf16.mxu0 0
      %4814 = vmatpush1.bf16.msra.mxu0 %v2103
      %4815 = vmatprep.subr.bf16.mxu0 0
      %4816 = vmatpush1.bf16.msra.mxu0 %v2104
      %4817 = vmatprep.subr.bf16.mxu0 0
      %4818 = vmatpush1.bf16.msra.mxu0 %v2105
      %4819 = vmatprep.subr.bf16.mxu0 0
      %4820 = vmatpush1.bf16.msra.mxu0 %v2106
      %4821 = vmatprep.subr.bf16.mxu0 0
      %4822 = vmatpush1.bf16.msra.mxu0 %v2107
      %4823 = vmatprep.subr.bf16.mxu0 0
      %4824 = vmatpush1.bf16.msra.mxu0 %v2108
      %4825 = vmatprep.subr.bf16.mxu0 0
      %4826 = vmatpush1.bf16.msra.mxu0 %v2109
      %4827 = vmatprep.subr.bf16.mxu0 0
      %4828 = vmatpush1.bf16.msra.mxu0 %v2110
      %4829 = vmatprep.subr.bf16.mxu0 0
      %4830 = vmatpush1.bf16.msra.mxu0 %v2111
      %4831 = vmatprep.subr.bf16.mxu0 0
      %4832 = vmatpush1.bf16.msra.mxu0 %v2112
      %4833 = vmatprep.subr.bf16.mxu0 0
      %4834 = vmatpush1.bf16.msra.mxu0 %v2113
      %4835 = vmatprep.subr.bf16.mxu0 0
      %4836 = vmatpush1.bf16.msra.mxu0 %v2114
      %4837 = vmatprep.subr.bf16.mxu0 0
      %4838 = vmatpush1.bf16.msra.mxu0 %v2115
      %4839 = vmatprep.mubr.bf16.mxu0 %v4488
      %4840 = vmatmul.mubr.bf16.gmra.mrb[0].mxu0 %v4629
      %v4841 = vpop.f32.mrb[0].mxu0
      %v4842 = vadd.f32 %v4681, %v4841
      %v4843 = vpop.f32.mrb[0].mxu0
      %v4844 = vpop.f32.mrb[0].mxu0
      %v4845 = vadd.f32 %v4684, %v4844
      %v4846 = vpop.f32.mrb[0].mxu0
      %4847 = vmatprep.mubr.bf16.mxu0 %v4368
      %4848 = vmatmul.mubr.bf16.gmra.mrb[0].mxu0 %v4500
      %v4849 = vpop.f32.mrb[0].mxu0
      %v4850 = vadd.f32 %v4689, %v4849
      %v4851 = vpop.f32.mrb[0].mxu0
      %v4852 = vpop.f32.mrb[0].mxu0
      %v4853 = vadd.f32 %v4692, %v4852
      %v4854 = vpop.f32.mrb[0].mxu0
      %4855 = vmatprep.mubr.bf16.mxu0 %v4376
      %4856 = vmatmul.mubr.bf16.gmra.mrb[0].mxu0 %v4508
      %v4857 = vpop.f32.mrb[0].mxu0
      %v4858 = vadd.f32 %v4697, %v4857
      %v4859 = vpop.f32.mrb[0].mxu0
      %v4860 = vpop.f32.mrb[0].mxu0
      %v4861 = vadd.f32 %v4700, %v4860
      %v4862 = vpop.f32.mrb[0].mxu0
      %4863 = vmatprep.mubr.bf16.mxu0 %v4384
      %4864 = vmatmul.mubr.bf16.gmra.mrb[0].mxu0 %v4516
      %v4865 = vpop.f32.mrb[0].mxu0
      %v4866 = vadd.f32 %v4705, %v4865
      %v4867 = vpop.f32.mrb[0].mxu0
      %v4868 = vpop.f32.mrb[0].mxu0
      %v4869 = vadd.f32 %v4708, %v4868
      %v4870 = vpop.f32.mrb[0].mxu0
      %4871 = vmatprep.mubr.bf16.mxu0 %v4392
      %4872 = vmatmul.mubr.bf16.gmra.mrb[0].mxu0 %v4524
      %v4873 = vpop.f32.mrb[0].mxu0
      %v4874 = vadd.f32 %v4713, %v4873
      %v4875 = vpop.f32.mrb[0].mxu0
      %v4876 = vpop.f32.mrb[0].mxu0
      %v4877 = vadd.f32 %v4716, %v4876
      %v4878 = vpop.f32.mrb[0].mxu0
      %4879 = vmatprep.mubr.bf16.mxu0 %v4400
      %4880 = vmatmul.mubr.bf16.gmra.mrb[0].mxu0 %v4532
      %v4881 = vpop.f32.mrb[0].mxu0
      %v4882 = vadd.f32 %v4721, %v4881
      %v4883 = vpop.f32.mrb[0].mxu0
      %v4884 = vpop.f32.mrb[0].mxu0
      %v4885 = vadd.f32 %v4724, %v4884
      %v4886 = vpop.f32.mrb[0].mxu0
      %4887 = vmatprep.mubr.bf16.mxu0 %v4408
      %4888 = vmatmul.mubr.bf16.gmra.mrb[0].mxu0 %v4540
      %v4889 = vpop.f32.mrb[0].mxu0
      %v4890 = vadd.f32 %v4729, %v4889
      %v4891 = vpop.f32.mrb[0].mxu0
      %v4892 = vpop.f32.mrb[0].mxu0
      %v4893 = vadd.f32 %v4732, %v4892
      %v4894 = vpop.f32.mrb[0].mxu0
      %4895 = vmatprep.mubr.bf16.mxu0 %v4416
      %4896 = vmatmul.mubr.bf16.gmra.mrb[0].mxu0 %v4548
      %v4897 = vpop.f32.mrb[0].mxu0
      %v4898 = vadd.f32 %v4737, %v4897
      %v4899 = vpop.f32.mrb[0].mxu0
      %v4900 = vpop.f32.mrb[0].mxu0
      %v4901 = vadd.f32 %v4740, %v4900
      %v4902 = vpop.f32.mrb[0].mxu0
      %4903 = vmatprep.mubr.bf16.mxu0 %v4424
      %4904 = vmatmul.mubr.bf16.gmra.mrb[0].mxu0 %v4556
      %v4905 = vpop.f32.mrb[0].mxu0
      %v4906 = vadd.f32 %v4745, %v4905
      %v4907 = vpop.f32.mrb[0].mxu0
      %v4908 = vpop.f32.mrb[0].mxu0
      %v4909 = vadd.f32 %v4748, %v4908
      %v4910 = vpop.f32.mrb[0].mxu0
      %4911 = vmatprep.mubr.bf16.mxu0 %v4432
      %4912 = vmatmul.mubr.bf16.gmra.mrb[0].mxu0 %v4564
      %v4913 = vpop.f32.mrb[0].mxu0
      %v4914 = vadd.f32 %v4753, %v4913
      %v4915 = vpop.f32.mrb[0].mxu0
      %v4916 = vpop.f32.mrb[0].mxu0
      %v4917 = vadd.f32 %v4756, %v4916
      %v4918 = vpop.f32.mrb[0].mxu0
      %4919 = vmatprep.mubr.bf16.mxu0 %v4440
      %4920 = vmatmul.mubr.bf16.gmra.mrb[0].mxu0 %v4572
      %v4921 = vpop.f32.mrb[0].mxu0
      %v4922 = vadd.f32 %v4761, %v4921
      %v4923 = vpop.f32.mrb[0].mxu0
      %v4924 = vpop.f32.mrb[0].mxu0
      %v4925 = vadd.f32 %v4764, %v4924
      %v4926 = vpop.f32.mrb[0].mxu0
      %4927 = vmatprep.mubr.bf16.mxu0 %v4448
      %4928 = vmatmul.mubr.bf16.gmra.mrb[0].mxu0 %v4580
      %v4929 = vpop.f32.mrb[0].mxu0
      %v4930 = vadd.f32 %v4769, %v4929
      %v4931 = vpop.f32.mrb[0].mxu0
      %v4932 = vpop.f32.mrb[0].mxu0
      %v4933 = vadd.f32 %v4772, %v4932
      %v4934 = vpop.f32.mrb[0].mxu0
      %4935 = vmatprep.mubr.bf16.mxu0 %v4456
      %4936 = vmatmul.mubr.bf16.gmra.mrb[0].mxu0 %v4588
      %v4937 = vpop.f32.mrb[0].mxu0
      %v4938 = vadd.f32 %v4777, %v4937
      %v4939 = vpop.f32.mrb[0].mxu0
      %v4940 = vpop.f32.mrb[0].mxu0
      %v4941 = vadd.f32 %v4780, %v4940
      %v4942 = vpop.f32.mrb[0].mxu0
      %4943 = vmatprep.mubr.bf16.mxu0 %v4464
      %4944 = vmatmul.mubr.bf16.gmra.mrb[0].mxu0 %v4596
      %v4945 = vpop.f32.mrb[0].mxu0
      %v4946 = vadd.f32 %v4785, %v4945
      %v4947 = vpop.f32.mrb[0].mxu0
      %v4948 = vpop.f32.mrb[0].mxu0
      %v4949 = vadd.f32 %v4788, %v4948
      %v4950 = vpop.f32.mrb[0].mxu0
      %4951 = vmatprep.mubr.bf16.mxu0 %v4472
      %4952 = vmatmul.mubr.bf16.gmra.mrb[0].mxu0 %v4604
      %v4953 = vpop.f32.mrb[0].mxu0
      %v4954 = vadd.f32 %v4793, %v4953
      %v4955 = vpop.f32.mrb[0].mxu0
      %v4956 = vpop.f32.mrb[0].mxu0
      %v4957 = vadd.f32 %v4796, %v4956
      %v4958 = vpop.f32.mrb[0].mxu0
      %4959 = vmatprep.mubr.bf16.mxu0 %v4637
      %4960 = vmatmul.mubr.bf16.gmra.mrb[0].mxu0 %v4612
      %v4961 = vpop.f32.mrb[0].mxu0
      %v4962 = vadd.f32 %v4801, %v4961
      %v4963 = vpop.f32.mrb[0].mxu0
      %v4964 = vpop.f32.mrb[0].mxu0
      %v4965 = vadd.f32 %v4804, %v4964
      %v4966 = vpop.f32.mrb[0].mxu0
      %4967 = vdwg.mxu0
      %4968 = vmatprep.subr.bf16.mxu0 0
      %4969 = vmatpush1.bf16.msra.mxu0 %v2116
      %4970 = vmatprep.subr.bf16.mxu0 0
      %4971 = vmatpush1.bf16.msra.mxu0 %v2117
      %4972 = vmatprep.subr.bf16.mxu0 0
      %4973 = vmatpush1.bf16.msra.mxu0 %v2118
      %4974 = vmatprep.subr.bf16.mxu0 0
      %4975 = vmatpush1.bf16.msra.mxu0 %v2119
      %4976 = vmatprep.subr.bf16.mxu0 0
      %4977 = vmatpush1.bf16.msra.mxu0 %v2120
      %4978 = vmatprep.subr.bf16.mxu0 0
      %4979 = vmatpush1.bf16.msra.mxu0 %v2121
      %4980 = vmatprep.subr.bf16.mxu0 0
      %4981 = vmatpush1.bf16.msra.mxu0 %v2122
      %4982 = vmatprep.subr.bf16.mxu0 0
      %4983 = vmatpush1.bf16.msra.mxu0 %v2123
      %4984 = vmatprep.subr.bf16.mxu0 0
      %4985 = vmatpush1.bf16.msra.mxu0 %v2124
      %4986 = vmatprep.subr.bf16.mxu0 0
      %4987 = vmatpush1.bf16.msra.mxu0 %v2125
      %4988 = vmatprep.subr.bf16.mxu0 0
      %4989 = vmatpush1.bf16.msra.mxu0 %v2126
      %4990 = vmatprep.subr.bf16.mxu0 0
      %4991 = vmatpush1.bf16.msra.mxu0 %v2127
      %4992 = vmatprep.subr.bf16.mxu0 0
      %4993 = vmatpush1.bf16.msra.mxu0 %v2128
      %4994 = vmatprep.subr.bf16.mxu0 0
      %4995 = vmatpush1.bf16.msra.mxu0 %v2129
      %4996 = vmatprep.subr.bf16.mxu0 0
      %4997 = vmatpush1.bf16.msra.mxu0 %v2130
      %4998 = vmatprep.subr.bf16.mxu0 0
      %4999 = vmatpush1.bf16.msra.mxu0 %v2131
      %5000 = vmatprep.mubr.bf16.mxu0 %v4500
      %5001 = vmatmul.mubr.bf16.gmra.mrb[0].mxu0 %v4306
      %v5002 = vpop.f32.mrb[0].mxu0
      %v5003 = vadd.f32 %v4842, %v5002
      %v5004 = vpop.f32.mrb[0].mxu0
      %v5005 = vpop.f32.mrb[0].mxu0
      %v5006 = vadd.f32 %v4845, %v5005
      %v5007 = vpop.f32.mrb[0].mxu0
      %5008 = vmatprep.mubr.bf16.mxu0 %v4508
      %5009 = vmatmul.mubr.bf16.gmra.mrb[0].mxu0 %v4307
      %v5010 = vpop.f32.mrb[0].mxu0
      %v5011 = vadd.f32 %v4850, %v5010
      %v5012 = vpop.f32.mrb[0].mxu0
      %v5013 = vpop.f32.mrb[0].mxu0
      %v5014 = vadd.f32 %v4853, %v5013
      %v5015 = vpop.f32.mrb[0].mxu0
      %5016 = vmatprep.mubr.bf16.mxu0 %v4516
      %5017 = vmatmul.mubr.bf16.gmra.mrb[0].mxu0 %v4308
      %v5018 = vpop.f32.mrb[0].mxu0
      %v5019 = vadd.f32 %v4858, %v5018
      %v5020 = vpop.f32.mrb[0].mxu0
      %v5021 = vpop.f32.mrb[0].mxu0
      %v5022 = vadd.f32 %v4861, %v5021
      %v5023 = vpop.f32.mrb[0].mxu0
      %5024 = vmatprep.mubr.bf16.mxu0 %v4524
      %5025 = vmatmul.mubr.bf16.gmra.mrb[0].mxu0 %v4309
      %v5026 = vpop.f32.mrb[0].mxu0
      %v5027 = vadd.f32 %v4866, %v5026
      %v5028 = vpop.f32.mrb[0].mxu0
      %v5029 = vpop.f32.mrb[0].mxu0
      %v5030 = vadd.f32 %v4869, %v5029
      %v5031 = vpop.f32.mrb[0].mxu0
      %5032 = vmatprep.mubr.bf16.mxu0 %v4532
      %5033 = vmatmul.mubr.bf16.gmra.mrb[0].mxu0 %v4310
      %v5034 = vpop.f32.mrb[0].mxu0
      %v5035 = vadd.f32 %v4874, %v5034
      %v5036 = vpop.f32.mrb[0].mxu0
      %v5037 = vpop.f32.mrb[0].mxu0
      %v5038 = vadd.f32 %v4877, %v5037
      %v5039 = vpop.f32.mrb[0].mxu0
      %5040 = vmatprep.mubr.bf16.mxu0 %v4540
      %5041 = vmatmul.mubr.bf16.gmra.mrb[0].mxu0 %v4311
      %v5042 = vpop.f32.mrb[0].mxu0
      %v5043 = vadd.f32 %v4882, %v5042
      %v5044 = vpop.f32.mrb[0].mxu0
      %v5045 = vpop.f32.mrb[0].mxu0
      %v5046 = vadd.f32 %v4885, %v5045
      %v5047 = vpop.f32.mrb[0].mxu0
      %5048 = vmatprep.mubr.bf16.mxu0 %v4548
      %5049 = vmatmul.mubr.bf16.gmra.mrb[0].mxu0 %v4312
      %v5050 = vpop.f32.mrb[0].mxu0
      %v5051 = vadd.f32 %v4890, %v5050
      %v5052 = vpop.f32.mrb[0].mxu0
      %v5053 = vpop.f32.mrb[0].mxu0
      %v5054 = vadd.f32 %v4893, %v5053
      %v5055 = vpop.f32.mrb[0].mxu0
      %5056 = vmatprep.mubr.bf16.mxu0 %v4556
      %5057 = vmatmul.mubr.bf16.gmra.mrb[0].mxu0 %v4313
      %v5058 = vpop.f32.mrb[0].mxu0
      %v5059 = vadd.f32 %v4898, %v5058
      %v5060 = vpop.f32.mrb[0].mxu0
      %v5061 = vpop.f32.mrb[0].mxu0
      %v5062 = vadd.f32 %v4901, %v5061
      %v5063 = vpop.f32.mrb[0].mxu0
      %5064 = vmatprep.mubr.bf16.mxu0 %v4564
      %5065 = vmatmul.mubr.bf16.gmra.mrb[0].mxu0 %v4314
      %v5066 = vpop.f32.mrb[0].mxu0
      %v5067 = vadd.f32 %v4906, %v5066
      %v5068 = vpop.f32.mrb[0].mxu0
      %v5069 = vpop.f32.mrb[0].mxu0
      %v5070 = vadd.f32 %v4909, %v5069
      %v5071 = vpop.f32.mrb[0].mxu0
      %5072 = vmatprep.mubr.bf16.mxu0 %v4572
      %5073 = vmatmul.mubr.bf16.gmra.mrb[0].mxu0 %v4315
      %v5074 = vpop.f32.mrb[0].mxu0
      %v5075 = vadd.f32 %v4914, %v5074
      %v5076 = vpop.f32.mrb[0].mxu0
      %v5077 = vpop.f32.mrb[0].mxu0
      %v5078 = vadd.f32 %v4917, %v5077
      %v5079 = vpop.f32.mrb[0].mxu0
      %5080 = vmatprep.mubr.bf16.mxu0 %v4580
      %5081 = vmatmul.mubr.bf16.gmra.mrb[0].mxu0 %v4316
      %v5082 = vpop.f32.mrb[0].mxu0
      %v5083 = vadd.f32 %v4922, %v5082
      %v5084 = vpop.f32.mrb[0].mxu0
      %v5085 = vpop.f32.mrb[0].mxu0
      %v5086 = vadd.f32 %v4925, %v5085
      %v5087 = vpop.f32.mrb[0].mxu0
      %5088 = vmatprep.mubr.bf16.mxu0 %v4588
      %5089 = vmatmul.mubr.bf16.gmra.mrb[0].mxu0 %v4317
      %v5090 = vpop.f32.mrb[0].mxu0
      %v5091 = vadd.f32 %v4930, %v5090
      %v5092 = vpop.f32.mrb[0].mxu0
      %v5093 = vpop.f32.mrb[0].mxu0
      %v5094 = vadd.f32 %v4933, %v5093
      %v5095 = vpop.f32.mrb[0].mxu0
      %5096 = vmatprep.mubr.bf16.mxu0 %v4596
      %5097 = vmatmul.mubr.bf16.gmra.mrb[0].mxu0 %v4318
      %v5098 = vpop.f32.mrb[0].mxu0
      %v5099 = vadd.f32 %v4938, %v5098
      %v5100 = vpop.f32.mrb[0].mxu0
      %v5101 = vpop.f32.mrb[0].mxu0
      %v5102 = vadd.f32 %v4941, %v5101
      %v5103 = vpop.f32.mrb[0].mxu0
      %5104 = vmatprep.mubr.bf16.mxu0 %v4604
      %5105 = vmatmul.mubr.bf16.gmra.mrb[0].mxu0 %v4319
      %v5106 = vpop.f32.mrb[0].mxu0
      %v5107 = vadd.f32 %v4946, %v5106
      %v5108 = vpop.f32.mrb[0].mxu0
      %v5109 = vpop.f32.mrb[0].mxu0
      %v5110 = vadd.f32 %v4949, %v5109
      %v5111 = vpop.f32.mrb[0].mxu0
      %5112 = vmatprep.mubr.bf16.mxu0 %v4612
      %5113 = vmatmul.mubr.bf16.gmra.mrb[0].mxu0 %v4320
      %v5114 = vpop.f32.mrb[0].mxu0
      %v5115 = vadd.f32 %v4954, %v5114
      %v5116 = vpop.f32.mrb[0].mxu0
      %v5117 = vpop.f32.mrb[0].mxu0
      %v5118 = vadd.f32 %v4957, %v5117
      %v5119 = vpop.f32.mrb[0].mxu0
      %5120 = vmatprep.mubr.bf16.mxu0 %v4643
      %5121 = vmatmul.mubr.bf16.gmra.mrb[0].mxu0 %v4321
      %v5122 = vpop.f32.mrb[0].mxu0
      %v5123 = vadd.f32 %v4962, %v5122
      %v5124 = vpop.f32.mrb[0].mxu0
      %v5125 = vpop.f32.mrb[0].mxu0
      %v5126 = vadd.f32 %v4965, %v5125
      %v5127 = vpop.f32.mrb[0].mxu0
      %5128 = vdwg.mxu0
      %5129 = vmatprep.subr.bf16.mxu0 0
      %5130 = vmatpush1.bf16.msra.mxu0 %v2132
      %5131 = vmatprep.subr.bf16.mxu0 0
      %5132 = vmatpush1.bf16.msra.mxu0 %v2133
      %5133 = vmatprep.subr.bf16.mxu0 0
      %5134 = vmatpush1.bf16.msra.mxu0 %v2134
      %5135 = vmatprep.subr.bf16.mxu0 0
      %5136 = vmatpush1.bf16.msra.mxu0 %v2135
      %5137 = vmatprep.subr.bf16.mxu0 0
      %5138 = vmatpush1.bf16.msra.mxu0 %v2136
      %5139 = vmatprep.subr.bf16.mxu0 0
      %5140 = vmatpush1.bf16.msra.mxu0 %v2137
      %5141 = vmatprep.subr.bf16.mxu0 0
      %5142 = vmatpush1.bf16.msra.mxu0 %v2138
      %5143 = vmatprep.subr.bf16.mxu0 0
      %5144 = vmatpush1.bf16.msra.mxu0 %v2139
      %5145 = vmatprep.subr.bf16.mxu0 0
      %5146 = vmatpush1.bf16.msra.mxu0 %v2140
      %5147 = vmatprep.subr.bf16.mxu0 0
      %5148 = vmatpush1.bf16.msra.mxu0 %v2141
      %5149 = vmatprep.subr.bf16.mxu0 0
      %5150 = vmatpush1.bf16.msra.mxu0 %v2142
      %5151 = vmatprep.subr.bf16.mxu0 0
      %5152 = vmatpush1.bf16.msra.mxu0 %v2143
      %5153 = vmatprep.subr.bf16.mxu0 0
      %5154 = vmatpush1.bf16.msra.mxu0 %v2144
      %5155 = vmatprep.subr.bf16.mxu0 0
      %5156 = vmatpush1.bf16.msra.mxu0 %v2145
      %5157 = vmatprep.subr.bf16.mxu0 0
      %5158 = vmatpush1.bf16.msra.mxu0 %v2146
      %5159 = vmatprep.subr.bf16.mxu0 0
      %5160 = vmatpush1.bf16.msra.mxu0 %v2147
      %5161 = vmatprep.mubr.bf16.mxu0 %v4307
      %5162 = vmatmul.mubr.bf16.gmra.mrb[0].mxu0 %v4368
      %v5163 = vpop.f32.mrb[0].mxu0
      %v5164 = vadd.f32 %v5003, %v5163
      %v5165 = vpop.f32.mrb[0].mxu0
      %v5166 = vpop.f32.mrb[0].mxu0
      %v5167 = vadd.f32 %v5006, %v5166
      %v5168 = vpop.f32.mrb[0].mxu0
      %5169 = vmatprep.mubr.bf16.mxu0 %v4308
      %5170 = vmatmul.mubr.bf16.gmra.mrb[0].mxu0 %v4376
      %v5171 = vpop.f32.mrb[0].mxu0
      %v5172 = vadd.f32 %v5011, %v5171
      %v5173 = vpop.f32.mrb[0].mxu0
      %v5174 = vpop.f32.mrb[0].mxu0
      %v5175 = vadd.f32 %v5014, %v5174
      %v5176 = vpop.f32.mrb[0].mxu0
      %5177 = vmatprep.mubr.bf16.mxu0 %v4309
      %5178 = vmatmul.mubr.bf16.gmra.mrb[0].mxu0 %v4384
      %v5179 = vpop.f32.mrb[0].mxu0
      %v5180 = vadd.f32 %v5019, %v5179
      %v5181 = vpop.f32.mrb[0].mxu0
      %v5182 = vpop.f32.mrb[0].mxu0
      %v5183 = vadd.f32 %v5022, %v5182
      %v5184 = vpop.f32.mrb[0].mxu0
      %5185 = vmatprep.mubr.bf16.mxu0 %v4310
      %5186 = vmatmul.mubr.bf16.gmra.mrb[0].mxu0 %v4392
      %v5187 = vpop.f32.mrb[0].mxu0
      %v5188 = vadd.f32 %v5027, %v5187
      %v5189 = vpop.f32.mrb[0].mxu0
      %v5190 = vpop.f32.mrb[0].mxu0
      %v5191 = vadd.f32 %v5030, %v5190
      %v5192 = vpop.f32.mrb[0].mxu0
      %5193 = vmatprep.mubr.bf16.mxu0 %v4311
      %5194 = vmatmul.mubr.bf16.gmra.mrb[0].mxu0 %v4400
      %v5195 = vpop.f32.mrb[0].mxu0
      %v5196 = vadd.f32 %v5035, %v5195
      %v5197 = vpop.f32.mrb[0].mxu0
      %v5198 = vpop.f32.mrb[0].mxu0
      %v5199 = vadd.f32 %v5038, %v5198
      %v5200 = vpop.f32.mrb[0].mxu0
      %5201 = vmatprep.mubr.bf16.mxu0 %v4312
      %5202 = vmatmul.mubr.bf16.gmra.mrb[0].mxu0 %v4408
      %v5203 = vpop.f32.mrb[0].mxu0
      %v5204 = vadd.f32 %v5043, %v5203
      %v5205 = vpop.f32.mrb[0].mxu0
      %v5206 = vpop.f32.mrb[0].mxu0
      %v5207 = vadd.f32 %v5046, %v5206
      %v5208 = vpop.f32.mrb[0].mxu0
      %5209 = vmatprep.mubr.bf16.mxu0 %v4313
      %5210 = vmatmul.mubr.bf16.gmra.mrb[0].mxu0 %v4416
      %v5211 = vpop.f32.mrb[0].mxu0
      %v5212 = vadd.f32 %v5051, %v5211
      %v5213 = vpop.f32.mrb[0].mxu0
      %v5214 = vpop.f32.mrb[0].mxu0
      %v5215 = vadd.f32 %v5054, %v5214
      %v5216 = vpop.f32.mrb[0].mxu0
      %5217 = vmatprep.mubr.bf16.mxu0 %v4314
      %5218 = vmatmul.mubr.bf16.gmra.mrb[0].mxu0 %v4424
      %v5219 = vpop.f32.mrb[0].mxu0
      %v5220 = vadd.f32 %v5059, %v5219
      %v5221 = vpop.f32.mrb[0].mxu0
      %v5222 = vpop.f32.mrb[0].mxu0
      %v5223 = vadd.f32 %v5062, %v5222
      %v5224 = vpop.f32.mrb[0].mxu0
      %5225 = vmatprep.mubr.bf16.mxu0 %v4315
      %5226 = vmatmul.mubr.bf16.gmra.mrb[0].mxu0 %v4432
      %v5227 = vpop.f32.mrb[0].mxu0
      %v5228 = vadd.f32 %v5067, %v5227
      %v5229 = vpop.f32.mrb[0].mxu0
      %v5230 = vpop.f32.mrb[0].mxu0
      %v5231 = vadd.f32 %v5070, %v5230
      %v5232 = vpop.f32.mrb[0].mxu0
      %5233 = vmatprep.mubr.bf16.mxu0 %v4316
      %5234 = vmatmul.mubr.bf16.gmra.mrb[0].mxu0 %v4440
      %v5235 = vpop.f32.mrb[0].mxu0
      %v5236 = vadd.f32 %v5075, %v5235
      %v5237 = vpop.f32.mrb[0].mxu0
      %v5238 = vpop.f32.mrb[0].mxu0
      %v5239 = vadd.f32 %v5078, %v5238
      %v5240 = vpop.f32.mrb[0].mxu0
      %5241 = vmatprep.mubr.bf16.mxu0 %v4317
      %5242 = vmatmul.mubr.bf16.gmra.mrb[0].mxu0 %v4448
      %v5243 = vpop.f32.mrb[0].mxu0
      %v5244 = vadd.f32 %v5083, %v5243
      %v5245 = vpop.f32.mrb[0].mxu0
      %v5246 = vpop.f32.mrb[0].mxu0
      %v5247 = vadd.f32 %v5086, %v5246
      %v5248 = vpop.f32.mrb[0].mxu0
      %5249 = vmatprep.mubr.bf16.mxu0 %v4318
      %5250 = vmatmul.mubr.bf16.gmra.mrb[0].mxu0 %v4456
      %v5251 = vpop.f32.mrb[0].mxu0
      %v5252 = vadd.f32 %v5091, %v5251
      %v5253 = vpop.f32.mrb[0].mxu0
      %v5254 = vpop.f32.mrb[0].mxu0
      %v5255 = vadd.f32 %v5094, %v5254
      %v5256 = vpop.f32.mrb[0].mxu0
      %5257 = vmatprep.mubr.bf16.mxu0 %v4319
      %5258 = vmatmul.mubr.bf16.gmra.mrb[0].mxu0 %v4464
      %v5259 = vpop.f32.mrb[0].mxu0
      %v5260 = vadd.f32 %v5099, %v5259
      %v5261 = vpop.f32.mrb[0].mxu0
      %v5262 = vpop.f32.mrb[0].mxu0
      %v5263 = vadd.f32 %v5102, %v5262
      %v5264 = vpop.f32.mrb[0].mxu0
      %5265 = vmatprep.mubr.bf16.mxu0 %v4320
      %5266 = vmatmul.mubr.bf16.gmra.mrb[0].mxu0 %v4472
      %v5267 = vpop.f32.mrb[0].mxu0
      %v5268 = vadd.f32 %v5107, %v5267
      %v5269 = vpop.f32.mrb[0].mxu0
      %v5270 = vpop.f32.mrb[0].mxu0
      %v5271 = vadd.f32 %v5110, %v5270
      %v5272 = vpop.f32.mrb[0].mxu0
      %5273 = vmatprep.mubr.bf16.mxu0 %v4321
      %5274 = vmatmul.mubr.bf16.gmra.mrb[0].mxu0 %v4637
      %v5275 = vpop.f32.mrb[0].mxu0
      %v5276 = vadd.f32 %v5115, %v5275
      %v5277 = vpop.f32.mrb[0].mxu0
      %v5278 = vpop.f32.mrb[0].mxu0
      %v5279 = vadd.f32 %v5118, %v5278
      %v5280 = vpop.f32.mrb[0].mxu0
      %5281 = vmatprep.mubr.bf16.mxu0 0
      %5282 = vmatmul.mubr.bf16.gmra.mrb[0].mxu0 %v4645
      %v5283 = vpop.f32.mrb[0].mxu0
      %v5284 = vadd.f32 %v5123, %v5283
      %v5285 = vpop.f32.mrb[0].mxu0
      %v5286 = vpop.f32.mrb[0].mxu0
      %v5287 = vadd.f32 %v5126, %v5286
      %v5288 = vpop.f32.mrb[0].mxu0
      %5289 = vdwg.mxu0
      %5290 = vmatprep.subr.bf16.mxu0 0
      %5291 = vmatpush1.bf16.msra.mxu0 %v2148
      %5292 = vmatprep.subr.bf16.mxu0 0
      %5293 = vmatpush1.bf16.msra.mxu0 %v2149
      %5294 = vmatprep.subr.bf16.mxu0 0
      %5295 = vmatpush1.bf16.msra.mxu0 %v2150
      %5296 = vmatprep.subr.bf16.mxu0 0
      %5297 = vmatpush1.bf16.msra.mxu0 %v2151
      %5298 = vmatprep.subr.bf16.mxu0 0
      %5299 = vmatpush1.bf16.msra.mxu0 %v2152
      %5300 = vmatprep.subr.bf16.mxu0 0
      %5301 = vmatpush1.bf16.msra.mxu0 %v2153
      %5302 = vmatprep.subr.bf16.mxu0 0
      %5303 = vmatpush1.bf16.msra.mxu0 %v2154
      %5304 = vmatprep.subr.bf16.mxu0 0
      %5305 = vmatpush1.bf16.msra.mxu0 %v2155
      %5306 = vmatprep.subr.bf16.mxu0 0
      %5307 = vmatpush1.bf16.msra.mxu0 0
      %5308 = vmatprep.subr.bf16.mxu0 0
      %5309 = vmatpush1.bf16.msra.mxu0 0
      %5310 = vmatprep.subr.bf16.mxu0 0
      %5311 = vmatpush1.bf16.msra.mxu0 0
      %5312 = vmatprep.subr.bf16.mxu0 0
      %5313 = vmatpush1.bf16.msra.mxu0 0
      %5314 = vmatprep.subr.bf16.mxu0 0
      %5315 = vmatpush1.bf16.msra.mxu0 0
      %5316 = vmatprep.subr.bf16.mxu0 0
      %5317 = vmatpush1.bf16.msra.mxu0 0
      %5318 = vmatprep.subr.bf16.mxu0 0
      %5319 = vmatpush1.bf16.msra.mxu0 0
      %5320 = vmatprep.subr.bf16.mxu0 0
      %5321 = vmatpush1.bf16.msra.mxu0 0
      %5322 = vmatprep.mubr.bf16.mxu0 0
      %5323 = vmatmul.mubr.bf16.gmra.mrb[0].mxu0 %v4508
      %v5324 = vpop.f32.mrb[0].mxu0
      %v5325 = vadd.f32 %v5164, %v5324
      %v5326 = vpop.f32.mrb[0].mxu0
      %v5327 = vpop.f32.mrb[0].mxu0
      %v5328 = vadd.f32 %v5167, %v5327
      %v5329 = vpop.f32.mrb[0].mxu0
      %5330 = vmatprep.mubr.bf16.mxu0 0
      %5331 = vmatmul.mubr.bf16.gmra.mrb[0].mxu0 %v4516
      %v5332 = vpop.f32.mrb[0].mxu0
      %v5333 = vadd.f32 %v5172, %v5332
      %v5334 = vpop.f32.mrb[0].mxu0
      %v5335 = vpop.f32.mrb[0].mxu0
      %v5336 = vadd.f32 %v5175, %v5335
      %v5337 = vpop.f32.mrb[0].mxu0
      %5338 = vmatprep.mubr.bf16.mxu0 0
      %5339 = vmatmul.mubr.bf16.gmra.mrb[0].mxu0 %v4524
      %v5340 = vpop.f32.mrb[0].mxu0
      %v5341 = vadd.f32 %v5180, %v5340
      %v5342 = vpop.f32.mrb[0].mxu0
      %v5343 = vpop.f32.mrb[0].mxu0
      %v5344 = vadd.f32 %v5183, %v5343
      %v5345 = vpop.f32.mrb[0].mxu0
      %5346 = vmatprep.mubr.bf16.mxu0 0
      %5347 = vmatmul.mubr.bf16.gmra.mrb[0].mxu0 %v4532
      %v5348 = vpop.f32.mrb[0].mxu0
      %v5349 = vadd.f32 %v5188, %v5348
      %v5350 = vpop.f32.mrb[0].mxu0
      %v5351 = vpop.f32.mrb[0].mxu0
      %v5352 = vadd.f32 %v5191, %v5351
      %v5353 = vpop.f32.mrb[0].mxu0
      %5354 = vmatprep.mubr.bf16.mxu0 0
      %5355 = vmatmul.mubr.bf16.gmra.mrb[0].mxu0 %v4540
      %v5356 = vpop.f32.mrb[0].mxu0
      %v5357 = vadd.f32 %v5196, %v5356
      %v5358 = vpop.f32.mrb[0].mxu0
      %v5359 = vpop.f32.mrb[0].mxu0
      %v5360 = vadd.f32 %v5199, %v5359
      %v5361 = vpop.f32.mrb[0].mxu0
      %5362 = vmatprep.mubr.bf16.mxu0 0
      %5363 = vmatmul.mubr.bf16.gmra.mrb[0].mxu0 %v4548
      %v5364 = vpop.f32.mrb[0].mxu0
      %v5365 = vadd.f32 %v5204, %v5364
      %v5366 = vpop.f32.mrb[0].mxu0
      %v5367 = vpop.f32.mrb[0].mxu0
      %v5368 = vadd.f32 %v5207, %v5367
      %v5369 = vpop.f32.mrb[0].mxu0
      %5370 = vmatprep.mubr.bf16.mxu0 0
      %5371 = vmatmul.mubr.bf16.gmra.mrb[0].mxu0 %v4556
      %v5372 = vpop.f32.mrb[0].mxu0
      %v5373 = vadd.f32 %v5212, %v5372
      %v5374 = vpop.f32.mrb[0].mxu0
      %v5375 = vpop.f32.mrb[0].mxu0
      %v5376 = vadd.f32 %v5215, %v5375
      %v5377 = vpop.f32.mrb[0].mxu0
      %5378 = vmatprep.mubr.bf16.mxu0 0
      %5379 = vmatmul.mubr.bf16.gmra.mrb[0].mxu0 %v4564
      %v5380 = vpop.f32.mrb[0].mxu0
      %v5381 = vadd.f32 %v5220, %v5380
      %v5382 = vpop.f32.mrb[0].mxu0
      %v5383 = vpop.f32.mrb[0].mxu0
      %v5384 = vadd.f32 %v5223, %v5383
      %v5385 = vpop.f32.mrb[0].mxu0
      %5386 = vmatprep.mubr.bf16.mxu0 0
      %5387 = vmatmul.mubr.bf16.gmra.mrb[0].mxu0 %v4572
      %v5388 = vpop.f32.mrb[0].mxu0
      %v5389 = vadd.f32 %v5228, %v5388
      %v5390 = vpop.f32.mrb[0].mxu0
      %v5391 = vpop.f32.mrb[0].mxu0
      %v5392 = vadd.f32 %v5231, %v5391
      %v5393 = vpop.f32.mrb[0].mxu0
      %5394 = vmatprep.mubr.bf16.mxu0 0
      %5395 = vmatmul.mubr.bf16.gmra.mrb[0].mxu0 %v4580
      %v5396 = vpop.f32.mrb[0].mxu0
      %v5397 = vadd.f32 %v5236, %v5396
      %v5398 = vpop.f32.mrb[0].mxu0
      %v5399 = vpop.f32.mrb[0].mxu0
      %v5400 = vadd.f32 %v5239, %v5399
      %v5401 = vpop.f32.mrb[0].mxu0
      %5402 = vmatprep.mubr.bf16.mxu0 0
      %5403 = vmatmul.mubr.bf16.gmra.mrb[0].mxu0 %v4588
      %v5404 = vpop.f32.mrb[0].mxu0
      %v5405 = vadd.f32 %v5244, %v5404
      %v5406 = vpop.f32.mrb[0].mxu0
      %v5407 = vpop.f32.mrb[0].mxu0
      %v5408 = vadd.f32 %v5247, %v5407
      %v5409 = vpop.f32.mrb[0].mxu0
      %5410 = vmatprep.mubr.bf16.mxu0 0
      %5411 = vmatmul.mubr.bf16.gmra.mrb[0].mxu0 %v4596
      %v5412 = vpop.f32.mrb[0].mxu0
      %v5413 = vadd.f32 %v5252, %v5412
      %v5414 = vpop.f32.mrb[0].mxu0
      %v5415 = vpop.f32.mrb[0].mxu0
      %v5416 = vadd.f32 %v5255, %v5415
      %v5417 = vpop.f32.mrb[0].mxu0
      %5418 = vmatprep.mubr.bf16.mxu0 0
      %5419 = vmatmul.mubr.bf16.gmra.mrb[0].mxu0 %v4604
      %v5420 = vpop.f32.mrb[0].mxu0
      %v5421 = vadd.f32 %v5260, %v5420
      %v5422 = vpop.f32.mrb[0].mxu0
      %v5423 = vpop.f32.mrb[0].mxu0
      %v5424 = vadd.f32 %v5263, %v5423
      %v5425 = vpop.f32.mrb[0].mxu0
      %5426 = vmatprep.mubr.bf16.mxu0 0
      %5427 = vmatmul.mubr.bf16.gmra.mrb[0].mxu0 %v4612
      %v5428 = vpop.f32.mrb[0].mxu0
      %v5429 = vadd.f32 %v5268, %v5428
      %v5430 = vpop.f32.mrb[0].mxu0
      %v5431 = vpop.f32.mrb[0].mxu0
      %v5432 = vadd.f32 %v5271, %v5431
      %v5433 = vpop.f32.mrb[0].mxu0
      %5434 = vmatprep.mubr.bf16.mxu0 0
      %5435 = vmatmul.mubr.bf16.gmra.mrb[0].mxu0 %v4643
      %v5436 = vpop.f32.mrb[0].mxu0
      %v5437 = vadd.f32 %v5276, %v5436
      %v5438 = vpop.f32.mrb[0].mxu0
      %v5439 = vpop.f32.mrb[0].mxu0
      %v5440 = vadd.f32 %v5279, %v5439
      %v5441 = vpop.f32.mrb[0].mxu0
      %5442 = vmatprep.mubr.bf16.mxu0 0
      %5443 = vmatmul.mubr.bf16.gmra.mrb[0].mxu0 0
      %v5444 = vpop.f32.mrb[0].mxu0
      %v5445 = vadd.f32 %v5284, %v5444
      %v5446 = vpop.f32.mrb[0].mxu0
      %v5447 = vpop.f32.mrb[0].mxu0
      %v5448 = vadd.f32 %v5287, %v5447
      %v5449 = vpop.f32.mrb[0].mxu0
      %5450 = vdwg.mxu0
      %v5451 = vmax.f32 %v5325, 0.0
      %v5452 = vmax.f32 %v5328, 0.0
      %v5453 = vmax.f32 %v5333, 0.0
      %v5454 = vmax.f32 %v5336, 0.0
      %v5455 = vmax.f32 %v5341, 0.0
      %v5456 = vmax.f32 %v5344, 0.0
      %v5457 = vmax.f32 %v5349, 0.0
      %v5458 = vmax.f32 %v5352, 0.0
      %v5459 = vmax.f32 %v5357, 0.0
      %v5460 = vmax.f32 %v5360, 0.0
      %v5461 = vmax.f32 %v5365, 0.0
      %v5462 = vmax.f32 %v5368, 0.0
      %v5463 = vmax.f32 %v5373, 0.0
      %v5464 = vmax.f32 %v5376, 0.0
      %v5465 = vmax.f32 %v5381, 0.0
      %v5466 = vmax.f32 %v5384, 0.0
      %v5467 = vmax.f32 %v5389, 0.0
      %v5468 = vmax.f32 %v5392, 0.0
      %v5469 = vmax.f32 %v5397, 0.0
      %v5470 = vmax.f32 %v5400, 0.0
      %v5471 = vmax.f32 %v5405, 0.0
      %v5472 = vmax.f32 %v5408, 0.0
      %v5473 = vmax.f32 %v5413, 0.0
      %v5474 = vmax.f32 %v5416, 0.0
      %v5475 = vmax.f32 %v5421, 0.0
      %v5476 = vmax.f32 %v5424, 0.0
      %v5477 = vmax.f32 %v5429, 0.0
      %v5478 = vmax.f32 %v5432, 0.0
      %v5479 = vmax.f32 %v5437, 0.0
      %v5480 = vmax.f32 %v5440, 0.0
      %v5481 = vmax.f32 %v5445, 0.0
      %v5482 = vmax.f32 %v5448, 0.0
      %v5483 = vld [vmem:[%s6] sm:$0x1]
      %v5484 = vpack.c.bf16 %v5452, %v5451
      %v5485 = vpack.c.bf16 %v5454, %v5453
      %v5486 = vpack.c.bf16 %v5456, %v5455
      %v5487 = vpack.c.bf16 %v5458, %v5457
      %v5488 = vpack.c.bf16 %v5460, %v5459
      %v5489 = vpack.c.bf16 %v5462, %v5461
      %v5490 = vpack.c.bf16 %v5464, %v5463
      %v5491 = vpack.c.bf16 %v5466, %v5465
      %v5492 = vpack.c.bf16 %v5468, %v5467
      %v5493 = vpack.c.bf16 %v5470, %v5469
      %v5494 = vpack.c.bf16 %v5472, %v5471
      %v5495 = vpack.c.bf16 %v5474, %v5473
      %v5496 = vpack.c.bf16 %v5476, %v5475
      %v5497 = vpack.c.bf16 %v5478, %v5477
      %v5498 = vpack.c.bf16 %v5480, %v5479
      %v5499 = vpack.c.bf16 %v5482, %v5481
      %v5500 = vsel %vm1172, %v5484, 0
      %v5501 = vsel %vm1173, %v5485, 0
      %v5502 = vsel %vm1174, %v5486, 0
      %v5503 = vsel %vm1175, %v5487, 0
      %v5504 = vsel %vm1176, %v5488, 0
      %v5505 = vsel %vm1177, %v5489, 0
      %v5506 = vsel %vm1178, %v5490, 0
      %v5507 = vsel %vm1179, %v5491, 0
      %v5508 = vsel %vm1180, %v5492, 0
      %v5509 = vsel %vm1181, %v5493, 0
      %v5510 = vsel %vm1182, %v5494, 0
      %v5511 = vsel %vm1183, %v5495, 0
      %v5512 = vsel %vm1184, %v5496, 0
      %v5513 = vsel %vm1185, %v5497, 0
      %v5514 = vsel %vm1186, %v5498, 0
      %v5515 = vsel %vm1187, %v5499, 0
      %v5516 = vsel %vm1316, %v5484, 0
      %v5517 = vsel %vm1317, %v5485, 0
      %v5518 = vsel %vm1318, %v5486, 0
      %v5519 = vsel %vm1319, %v5487, 0
      %v5520 = vsel %vm1320, %v5488, 0
      %v5521 = vsel %vm1321, %v5489, 0
      %v5522 = vsel %vm1322, %v5490, 0
      %v5523 = vsel %vm1323, %v5491, 0
      %v5524 = vsel %vm1324, %v5492, 0
      %v5525 = vsel %vm1325, %v5493, 0
      %v5526 = vsel %vm1326, %v5494, 0
      %v5527 = vsel %vm1327, %v5495, 0
      %v5528 = vsel %vm1328, %v5496, 0
      %v5529 = vsel %vm1329, %v5497, 0
      %v5530 = vsel %vm1330, %v5498, 0
      %v5531 = vsel %vm1331, %v5499, 0
      %v5533 = vshrl.u32 %v5500, 16
      %v5535 = vrot.slane %v5533, 7
      %v5536 = vshll.u32 %v5500, 16
      %v5538 = vor.u32 %v5535, %v5536
      %v5540 = vshrl.u32 %v5501, 16
      %v5542 = vrot.slane %v5540, 7
      %v5543 = vshll.u32 %v5501, 16
      %v5545 = vor.u32 %v5542, %v5543
      %v5546 = vsel %vm1348, %v5535, %v5545
      %v5548 = vshrl.u32 %v5502, 16
      %v5550 = vrot.slane %v5548, 7
      %v5551 = vshll.u32 %v5502, 16
      %v5553 = vor.u32 %v5550, %v5551
      %v5554 = vsel %vm1348, %v5542, %v5553
      %v5556 = vshrl.u32 %v5503, 16
      %v5558 = vrot.slane %v5556, 7
      %v5559 = vshll.u32 %v5503, 16
      %v5561 = vor.u32 %v5558, %v5559
      %v5562 = vsel %vm1348, %v5550, %v5561
      %v5564 = vshrl.u32 %v5504, 16
      %v5566 = vrot.slane %v5564, 7
      %v5567 = vshll.u32 %v5504, 16
      %v5569 = vor.u32 %v5566, %v5567
      %v5570 = vsel %vm1348, %v5558, %v5569
      %v5572 = vshrl.u32 %v5505, 16
      %v5574 = vrot.slane %v5572, 7
      %v5575 = vshll.u32 %v5505, 16
      %v5577 = vor.u32 %v5574, %v5575
      %v5578 = vsel %vm1348, %v5566, %v5577
      %v5580 = vshrl.u32 %v5506, 16
      %v5582 = vrot.slane %v5580, 7
      %v5583 = vshll.u32 %v5506, 16
      %v5585 = vor.u32 %v5582, %v5583
      %v5586 = vsel %vm1348, %v5574, %v5585
      %v5588 = vshrl.u32 %v5507, 16
      %v5590 = vrot.slane %v5588, 7
      %v5591 = vshll.u32 %v5507, 16
      %v5593 = vor.u32 %v5590, %v5591
      %v5594 = vsel %vm1348, %v5582, %v5593
      %v5596 = vshrl.u32 %v5508, 16
      %v5598 = vrot.slane %v5596, 7
      %v5599 = vshll.u32 %v5508, 16
      %v5601 = vor.u32 %v5598, %v5599
      %v5602 = vsel %vm1348, %v5590, %v5601
      %v5604 = vshrl.u32 %v5509, 16
      %v5606 = vrot.slane %v5604, 7
      %v5607 = vshll.u32 %v5509, 16
      %v5609 = vor.u32 %v5606, %v5607
      %v5610 = vsel %vm1348, %v5598, %v5609
      %v5612 = vshrl.u32 %v5510, 16
      %v5614 = vrot.slane %v5612, 7
      %v5615 = vshll.u32 %v5510, 16
      %v5617 = vor.u32 %v5614, %v5615
      %v5618 = vsel %vm1348, %v5606, %v5617
      %v5620 = vshrl.u32 %v5511, 16
      %v5622 = vrot.slane %v5620, 7
      %v5623 = vshll.u32 %v5511, 16
      %v5625 = vor.u32 %v5622, %v5623
      %v5626 = vsel %vm1348, %v5614, %v5625
      %v5628 = vshrl.u32 %v5512, 16
      %v5630 = vrot.slane %v5628, 7
      %v5631 = vshll.u32 %v5512, 16
      %v5633 = vor.u32 %v5630, %v5631
      %v5634 = vsel %vm1348, %v5622, %v5633
      %v5636 = vshrl.u32 %v5513, 16
      %v5638 = vrot.slane %v5636, 7
      %v5639 = vshll.u32 %v5513, 16
      %v5641 = vor.u32 %v5638, %v5639
      %v5642 = vsel %vm1348, %v5630, %v5641
      %v5644 = vshrl.u32 %v5514, 16
      %v5646 = vrot.slane %v5644, 7
      %v5647 = vshll.u32 %v5514, 16
      %v5649 = vor.u32 %v5646, %v5647
      %v5650 = vsel %vm1348, %v5638, %v5649
      %v5666 = vsel %vm1484, 0, %v5538
      %v5668 = vshll.u32 %v5516, 16
      %v5670 = vrot.slane %v5668, 1
      %v5671 = vshrl.u32 %v5516, 16
      %v5673 = vor.u32 %v5671, %v5670
      %v5675 = vshll.u32 %v5517, 16
      %v5677 = vrot.slane %v5675, 1
      %v5678 = vsel %vm1486, %v5673, %v5677
      %v5679 = vshrl.u32 %v5517, 16
      %v5681 = vor.u32 %v5679, %v5677
      %v5683 = vshll.u32 %v5518, 16
      %v5685 = vrot.slane %v5683, 1
      %v5686 = vsel %vm1486, %v5681, %v5685
      %v5687 = vshrl.u32 %v5518, 16
      %v5689 = vor.u32 %v5687, %v5685
      %v5691 = vshll.u32 %v5519, 16
      %v5693 = vrot.slane %v5691, 1
      %v5694 = vsel %vm1486, %v5689, %v5693
      %v5695 = vshrl.u32 %v5519, 16
      %v5697 = vor.u32 %v5695, %v5693
      %v5699 = vshll.u32 %v5520, 16
      %v5701 = vrot.slane %v5699, 1
      %v5702 = vsel %vm1486, %v5697, %v5701
      %v5703 = vshrl.u32 %v5520, 16
      %v5705 = vor.u32 %v5703, %v5701
      %v5707 = vshll.u32 %v5521, 16
      %v5709 = vrot.slane %v5707, 1
      %v5710 = vsel %vm1486, %v5705, %v5709
      %v5711 = vshrl.u32 %v5521, 16
      %v5713 = vor.u32 %v5711, %v5709
      %v5715 = vshll.u32 %v5522, 16
      %v5717 = vrot.slane %v5715, 1
      %v5718 = vsel %vm1486, %v5713, %v5717
      %v5719 = vshrl.u32 %v5522, 16
      %v5721 = vor.u32 %v5719, %v5717
      %v5723 = vshll.u32 %v5523, 16
      %v5725 = vrot.slane %v5723, 1
      %v5726 = vsel %vm1486, %v5721, %v5725
      %v5727 = vshrl.u32 %v5523, 16
      %v5729 = vor.u32 %v5727, %v5725
      %v5731 = vshll.u32 %v5524, 16
      %v5733 = vrot.slane %v5731, 1
      %v5734 = vsel %vm1486, %v5729, %v5733
      %v5735 = vshrl.u32 %v5524, 16
      %v5737 = vor.u32 %v5735, %v5733
      %v5739 = vshll.u32 %v5525, 16
      %v5741 = vrot.slane %v5739, 1
      %v5742 = vsel %vm1486, %v5737, %v5741
      %v5743 = vshrl.u32 %v5525, 16
      %v5745 = vor.u32 %v5743, %v5741
      %v5747 = vshll.u32 %v5526, 16
      %v5749 = vrot.slane %v5747, 1
      %v5750 = vsel %vm1486, %v5745, %v5749
      %v5751 = vshrl.u32 %v5526, 16
      %v5753 = vor.u32 %v5751, %v5749
      %v5755 = vshll.u32 %v5527, 16
      %v5757 = vrot.slane %v5755, 1
      %v5758 = vsel %vm1486, %v5753, %v5757
      %v5759 = vshrl.u32 %v5527, 16
      %v5761 = vor.u32 %v5759, %v5757
      %v5763 = vshll.u32 %v5528, 16
      %v5765 = vrot.slane %v5763, 1
      %v5766 = vsel %vm1486, %v5761, %v5765
      %v5767 = vshrl.u32 %v5528, 16
      %v5769 = vor.u32 %v5767, %v5765
      %v5771 = vshll.u32 %v5529, 16
      %v5773 = vrot.slane %v5771, 1
      %v5774 = vsel %vm1486, %v5769, %v5773
      %v5775 = vshrl.u32 %v5529, 16
      %v5777 = vor.u32 %v5775, %v5773
      %v5779 = vshll.u32 %v5530, 16
      %v5781 = vrot.slane %v5779, 1
      %v5782 = vsel %vm1486, %v5777, %v5781
      %v5783 = vshrl.u32 %v5530, 16
      %v5785 = vor.u32 %v5783, %v5781
      %v5787 = vshll.u32 %v5531, 16
      %v5789 = vrot.slane %v5787, 1
      %v5790 = vsel %vm1486, %v5785, %v5789
      %v5807 = vsel %vm1628, 0, %v5670
      %v5809 = vshrl.u32 %v5515, 16
      %v5811 = vrot.slane %v5809, 7
      %v5812 = vshll.u32 %v5515, 16
      %v5814 = vor.u32 %v5811, %v5812
      %v5815 = vsel %vm1348, %v5646, %v5814
      %v5817 = vshrl.u32 %v5531, 16
      %v5819 = vor.u32 %v5817, %v5789
      %v5821 = vsel %vm1628, %v5819, 0
      %v5823 = vsel %vm1484, %v5811, 0
      %v5824 = vld [vmem:[%s5] sm:$0xf]
      %v5825 = vld [vmem:[%s5 + $0x4] sm:$0xf]
      %v5826 = vld [vmem:[%s5 + $0x8] sm:$0xf]
      %v5827 = vld [vmem:[%s5 + $0xc] sm:$0xf]
      %v5828 = vld [vmem:[%s5 + $0x10] sm:$0xf]
      %v5829 = vld [vmem:[%s5 + $0x14] sm:$0xf]
      %v5830 = vld [vmem:[%s5 + $0x18] sm:$0xf]
      %v5831 = vld [vmem:[%s5 + $0x1c] sm:$0xf]
      %v5832 = vld [vmem:[%s5 + $0x20] sm:$0xf]
      %v5833 = vld [vmem:[%s5 + $0x24] sm:$0xf]
      %v5834 = vld [vmem:[%s5 + $0x28] sm:$0xf]
      %v5835 = vld [vmem:[%s5 + $0x2c] sm:$0xf]
      %v5836 = vld [vmem:[%s5 + $0x30] sm:$0xf]
      %v5837 = vld [vmem:[%s5 + $0x34] sm:$0xf]
      %v5838 = vld [vmem:[%s5 + $0x38] sm:$0xf]
      %v5839 = vld [vmem:[%s5 + $0x3c] sm:$0xf]
      %v5840 = vld [vmem:[%s5 + $0x40] sm:$0xf]
      %v5841 = vld [vmem:[%s5 + $0x44] sm:$0xf]
      %v5842 = vld [vmem:[%s5 + $0x48] sm:$0xf]
      %v5843 = vld [vmem:[%s5 + $0x4c] sm:$0xf]
      %v5844 = vld [vmem:[%s5 + $0x50] sm:$0xf]
      %v5845 = vld [vmem:[%s5 + $0x54] sm:$0xf]
      %v5846 = vld [vmem:[%s5 + $0x58] sm:$0xf]
      %v5847 = vld [vmem:[%s5 + $0x5c] sm:$0xf]
      %v5848 = vld [vmem:[%s5 + $0x60] sm:$0xf]
      %v5849 = vld [vmem:[%s5 + $0x64] sm:$0xf]
      %v5850 = vld [vmem:[%s5 + $0x68] sm:$0xf]
      %v5851 = vld [vmem:[%s5 + $0x6c] sm:$0xf]
      %v5852 = vld [vmem:[%s5 + $0x70] sm:$0xf]
      %v5853 = vld [vmem:[%s5 + $0x74] sm:$0xf]
      %v5854 = vld [vmem:[%s5 + $0x78] sm:$0xf]
      %v5855 = vld [vmem:[%s5 + $0x7c] sm:$0xf]
      %v5856 = vld [vmem:[%s5 + $0x80] sm:$0xf]
      %v5857 = vld [vmem:[%s5 + $0x84] sm:$0xf]
      %v5858 = vld [vmem:[%s5 + $0x88] sm:$0xf]
      %v5859 = vld [vmem:[%s5 + $0x8c] sm:$0xf]
      %v5860 = vld [vmem:[%s5 + $0x90] sm:$0xf]
      %v5861 = vld [vmem:[%s5 + $0x94] sm:$0xf]
      %v5862 = vld [vmem:[%s5 + $0x98] sm:$0xf]
      %v5863 = vld [vmem:[%s5 + $0x9c] sm:$0xf]
      %v5864 = vld [vmem:[%s5 + $0xa0] sm:$0xf]
      %v5865 = vld [vmem:[%s5 + $0xa4] sm:$0xf]
      %v5866 = vld [vmem:[%s5 + $0xa8] sm:$0xf]
      %v5867 = vld [vmem:[%s5 + $0xac] sm:$0xf]
      %v5868 = vld [vmem:[%s5 + $0xb0] sm:$0xf]
      %v5869 = vld [vmem:[%s5 + $0xb4] sm:$0xf]
      %v5870 = vld [vmem:[%s5 + $0xb8] sm:$0xf]
      %v5871 = vld [vmem:[%s5 + $0xbc] sm:$0xf]
      %v5872 = vld [vmem:[%s5 + $0xc0] sm:$0xf]
      %v5873 = vld [vmem:[%s5 + $0xc4] sm:$0xf]
      %v5874 = vld [vmem:[%s5 + $0xc8] sm:$0xf]
      %v5875 = vld [vmem:[%s5 + $0xcc] sm:$0xf]
      %v5876 = vld [vmem:[%s5 + $0xd0] sm:$0xf]
      %v5877 = vld [vmem:[%s5 + $0xd4] sm:$0xf]
      %v5878 = vld [vmem:[%s5 + $0xd8] sm:$0xf]
      %v5879 = vld [vmem:[%s5 + $0xdc] sm:$0xf]
      %v5880 = vld [vmem:[%s5 + $0xe0] sm:$0xf]
      %v5881 = vld [vmem:[%s5 + $0xe4] sm:$0xf]
      %v5882 = vld [vmem:[%s5 + $0xe8] sm:$0xf]
      %v5883 = vld [vmem:[%s5 + $0xec] sm:$0xf]
      %v5884 = vld [vmem:[%s5 + $0xf0] sm:$0xf]
      %v5885 = vld [vmem:[%s5 + $0xf4] sm:$0xf]
      %v5886 = vld [vmem:[%s5 + $0xf8] sm:$0xf]
      %v5887 = vld [vmem:[%s5 + $0xfc] sm:$0xf]
      %v5888 = vld [vmem:[%s5 + $0x100] sm:$0xf]
      %v5889 = vld [vmem:[%s5 + $0x104] sm:$0xf]
      %v5890 = vld [vmem:[%s5 + $0x108] sm:$0xf]
      %v5891 = vld [vmem:[%s5 + $0x10c] sm:$0xf]
      %v5892 = vld [vmem:[%s5 + $0x110] sm:$0xf]
      %v5893 = vld [vmem:[%s5 + $0x114] sm:$0xf]
      %v5894 = vld [vmem:[%s5 + $0x118] sm:$0xf]
      %v5895 = vld [vmem:[%s5 + $0x11c] sm:$0xf]
      %v5896 = vld [vmem:[%s5 + $0x120] sm:$0xf]
      %v5897 = vld [vmem:[%s5 + $0x124] sm:$0xf]
      %v5898 = vld [vmem:[%s5 + $0x128] sm:$0xf]
      %v5899 = vld [vmem:[%s5 + $0x12c] sm:$0xf]
      %v5900 = vld [vmem:[%s5 + $0x130] sm:$0xf]
      %v5901 = vld [vmem:[%s5 + $0x134] sm:$0xf]
      %v5902 = vld [vmem:[%s5 + $0x138] sm:$0xf]
      %v5903 = vld [vmem:[%s5 + $0x13c] sm:$0xf]
      %v5904 = vld [vmem:[%s5 + $0x140] sm:$0xf]
      %v5905 = vld [vmem:[%s5 + $0x144] sm:$0xf]
      %v5906 = vld [vmem:[%s5 + $0x148] sm:$0xf]
      %v5907 = vld [vmem:[%s5 + $0x14c] sm:$0xf]
      %v5908 = vld [vmem:[%s5 + $0x150] sm:$0xf]
      %v5909 = vld [vmem:[%s5 + $0x154] sm:$0xf]
      %v5910 = vld [vmem:[%s5 + $0x158] sm:$0xf]
      %v5911 = vld [vmem:[%s5 + $0x15c] sm:$0xf]
      %v5912 = vld [vmem:[%s5 + $0x160] sm:$0xf]
      %v5913 = vld [vmem:[%s5 + $0x164] sm:$0xf]
      %v5914 = vld [vmem:[%s5 + $0x168] sm:$0xf]
      %v5915 = vld [vmem:[%s5 + $0x16c] sm:$0xf]
      %v5916 = vld [vmem:[%s5 + $0x170] sm:$0xf]
      %v5917 = vld [vmem:[%s5 + $0x174] sm:$0xf]
      %v5918 = vld [vmem:[%s5 + $0x178] sm:$0xf]
      %v5919 = vld [vmem:[%s5 + $0x17c] sm:$0xf]
      %v5920 = vld [vmem:[%s5 + $0x180] sm:$0xf]
      %v5921 = vld [vmem:[%s5 + $0x184] sm:$0xf]
      %v5922 = vld [vmem:[%s5 + $0x188] sm:$0xf]
      %v5923 = vld [vmem:[%s5 + $0x18c] sm:$0xf]
      %v5924 = vld [vmem:[%s5 + $0x190] sm:$0xf]
      %v5925 = vld [vmem:[%s5 + $0x194] sm:$0xf]
      %v5926 = vld [vmem:[%s5 + $0x198] sm:$0xf]
      %v5927 = vld [vmem:[%s5 + $0x19c] sm:$0xf]
      %v5928 = vld [vmem:[%s5 + $0x1a0] sm:$0xf]
      %v5929 = vld [vmem:[%s5 + $0x1a4] sm:$0xf]
      %v5930 = vld [vmem:[%s5 + $0x1a8] sm:$0xf]
      %v5931 = vld [vmem:[%s5 + $0x1ac] sm:$0xf]
      %v5932 = vld [vmem:[%s5 + $0x1b0] sm:$0xf]
      %v5933 = vld [vmem:[%s5 + $0x1b4] sm:$0xf]
      %v5934 = vld [vmem:[%s5 + $0x1b8] sm:$0xf]
      %v5935 = vld [vmem:[%s5 + $0x1bc] sm:$0xf]
      %v5936 = vld [vmem:[%s5 + $0x1c0] sm:$0xf]
      %v5937 = vld [vmem:[%s5 + $0x1c4] sm:$0xf]
      %v5938 = vld [vmem:[%s5 + $0x1c8] sm:$0xf]
      %v5939 = vld [vmem:[%s5 + $0x1cc] sm:$0xf]
      %v5940 = vld [vmem:[%s5 + $0x1d0] sm:$0xf]
      %v5941 = vld [vmem:[%s5 + $0x1d4] sm:$0xf]
      %v5942 = vld [vmem:[%s5 + $0x1d8] sm:$0xf]
      %v5943 = vld [vmem:[%s5 + $0x1dc] sm:$0xf]
      %v5944 = vld [vmem:[%s5 + $0x1e0] sm:$0xf]
      %v5945 = vld [vmem:[%s5 + $0x1e4] sm:$0xf]
      %v5946 = vld [vmem:[%s5 + $0x1e8] sm:$0xf]
      %v5947 = vld [vmem:[%s5 + $0x1ec] sm:$0xf]
      %v5948 = vld [vmem:[%s5 + $0x1f0] sm:$0xf]
      %v5949 = vld [vmem:[%s5 + $0x1f4] sm:$0xf]
      %v5950 = vld [vmem:[%s5 + $0x1f8] sm:$0xf]
      %v5951 = vld [vmem:[%s5 + $0x1fc] sm:$0xf]
      %v5952 = vld [vmem:[%s5 + $0x200] sm:$0xf]
      %v5953 = vld [vmem:[%s5 + $0x204] sm:$0xf]
      %v5954 = vld [vmem:[%s5 + $0x208] sm:$0xf]
      %v5955 = vld [vmem:[%s5 + $0x20c] sm:$0xf]
      %v5956 = vld [vmem:[%s5 + $0x210] sm:$0xf]
      %v5957 = vld [vmem:[%s5 + $0x214] sm:$0xf]
      %v5958 = vld [vmem:[%s5 + $0x218] sm:$0xf]
      %v5959 = vld [vmem:[%s5 + $0x21c] sm:$0xf]
      %v5960 = vld [vmem:[%s5 + $0x220] sm:$0xf]
      %v5961 = vld [vmem:[%s5 + $0x224] sm:$0xf]
      %v5962 = vld [vmem:[%s5 + $0x228] sm:$0xf]
      %v5963 = vld [vmem:[%s5 + $0x22c] sm:$0xf]
      %v5964 = vld [vmem:[%s5 + $0x230] sm:$0xf]
      %v5965 = vld [vmem:[%s5 + $0x234] sm:$0xf]
      %v5966 = vld [vmem:[%s5 + $0x238] sm:$0xf]
      %v5967 = vld [vmem:[%s5 + $0x23c] sm:$0xf]
      %v5969 = vlaneseq
      %v5970 = vshrl.u32 %v5969, 7
      %v5971 = vsub.s32 0, %v5970
      %v5972 = vrot.slane %v5483, %v5971
      %v6118 = vunpack.c.l.b16 %v5824
      %v6119 = vunpack.c.l.b16 %v5825
      %v6120 = vunpack.c.l.b16 %v5826
      %v6121 = vunpack.c.l.b16 %v5827
      %v6122 = vunpack.c.l.b16 %v5828
      %v6123 = vunpack.c.l.b16 %v5829
      %v6124 = vunpack.c.l.b16 %v5830
      %v6125 = vunpack.c.l.b16 %v5831
      %v6126 = vunpack.c.l.b16 %v5832
      %v6127 = vunpack.c.l.b16 %v5833
      %v6128 = vunpack.c.l.b16 %v5834
      %v6129 = vunpack.c.l.b16 %v5835
      %v6130 = vunpack.c.l.b16 %v5836
      %v6131 = vunpack.c.l.b16 %v5837
      %v6132 = vunpack.c.l.b16 %v5838
      %v6133 = vunpack.c.l.b16 %v5839
      %v6134 = vunpack.c.l.b16 %v5840
      %v6135 = vunpack.c.l.b16 %v5841
      %v6136 = vunpack.c.l.b16 %v5842
      %v6137 = vunpack.c.l.b16 %v5843
      %v6138 = vunpack.c.l.b16 %v5844
      %v6139 = vunpack.c.l.b16 %v5845
      %v6140 = vunpack.c.l.b16 %v5846
      %v6141 = vunpack.c.l.b16 %v5847
      %v6142 = vunpack.c.l.b16 %v5848
      %v6143 = vunpack.c.l.b16 %v5849
      %v6144 = vunpack.c.l.b16 %v5850
      %v6145 = vunpack.c.l.b16 %v5851
      %v6146 = vunpack.c.l.b16 %v5852
      %v6147 = vunpack.c.l.b16 %v5853
      %v6148 = vunpack.c.l.b16 %v5854
      %v6149 = vunpack.c.l.b16 %v5855
      %v6150 = vunpack.c.l.b16 %v5856
      %v6151 = vunpack.c.l.b16 %v5857
      %v6152 = vunpack.c.l.b16 %v5858
      %v6153 = vunpack.c.l.b16 %v5859
      %v6154 = vunpack.c.l.b16 %v5860
      %v6155 = vunpack.c.l.b16 %v5861
      %v6156 = vunpack.c.l.b16 %v5862
      %v6157 = vunpack.c.l.b16 %v5863
      %v6158 = vunpack.c.l.b16 %v5864
      %v6159 = vunpack.c.l.b16 %v5865
      %v6160 = vunpack.c.l.b16 %v5866
      %v6161 = vunpack.c.l.b16 %v5867
      %v6162 = vunpack.c.l.b16 %v5868
      %v6163 = vunpack.c.l.b16 %v5869
      %v6164 = vunpack.c.l.b16 %v5870
      %v6165 = vunpack.c.l.b16 %v5871
      %v6166 = vunpack.c.l.b16 %v5872
      %v6167 = vunpack.c.l.b16 %v5873
      %v6168 = vunpack.c.l.b16 %v5874
      %v6169 = vunpack.c.l.b16 %v5875
      %v6170 = vunpack.c.l.b16 %v5876
      %v6171 = vunpack.c.l.b16 %v5877
      %v6172 = vunpack.c.l.b16 %v5878
      %v6173 = vunpack.c.l.b16 %v5879
      %v6174 = vunpack.c.l.b16 %v5880
      %v6175 = vunpack.c.l.b16 %v5881
      %v6176 = vunpack.c.l.b16 %v5882
      %v6177 = vunpack.c.l.b16 %v5883
      %v6178 = vunpack.c.l.b16 %v5884
      %v6179 = vunpack.c.l.b16 %v5885
      %v6180 = vunpack.c.l.b16 %v5886
      %v6181 = vunpack.c.l.b16 %v5887
      %v6182 = vunpack.c.l.b16 %v5888
      %v6183 = vunpack.c.l.b16 %v5889
      %v6184 = vunpack.c.l.b16 %v5890
      %v6185 = vunpack.c.l.b16 %v5891
      %v6186 = vunpack.c.l.b16 %v5892
      %v6187 = vunpack.c.l.b16 %v5893
      %v6188 = vunpack.c.l.b16 %v5894
      %v6189 = vunpack.c.l.b16 %v5895
      %v6190 = vunpack.c.l.b16 %v5896
      %v6191 = vunpack.c.l.b16 %v5897
      %v6192 = vunpack.c.l.b16 %v5898
      %v6193 = vunpack.c.l.b16 %v5899
      %v6194 = vunpack.c.l.b16 %v5900
      %v6195 = vunpack.c.l.b16 %v5901
      %v6196 = vunpack.c.l.b16 %v5902
      %v6197 = vunpack.c.l.b16 %v5903
      %v6198 = vunpack.c.l.b16 %v5904
      %v6199 = vunpack.c.l.b16 %v5905
      %v6200 = vunpack.c.l.b16 %v5906
      %v6201 = vunpack.c.l.b16 %v5907
      %v6202 = vunpack.c.l.b16 %v5908
      %v6203 = vunpack.c.l.b16 %v5909
      %v6204 = vunpack.c.l.b16 %v5910
      %v6205 = vunpack.c.l.b16 %v5911
      %v6206 = vunpack.c.l.b16 %v5912
      %v6207 = vunpack.c.l.b16 %v5913
      %v6208 = vunpack.c.l.b16 %v5914
      %v6209 = vunpack.c.l.b16 %v5915
      %v6210 = vunpack.c.l.b16 %v5916
      %v6211 = vunpack.c.l.b16 %v5917
      %v6212 = vunpack.c.l.b16 %v5918
      %v6213 = vunpack.c.l.b16 %v5919
      %v6214 = vunpack.c.l.b16 %v5920
      %v6215 = vunpack.c.l.b16 %v5921
      %v6216 = vunpack.c.l.b16 %v5922
      %v6217 = vunpack.c.l.b16 %v5923
      %v6218 = vunpack.c.l.b16 %v5924
      %v6219 = vunpack.c.l.b16 %v5925
      %v6220 = vunpack.c.l.b16 %v5926
      %v6221 = vunpack.c.l.b16 %v5927
      %v6222 = vunpack.c.l.b16 %v5928
      %v6223 = vunpack.c.l.b16 %v5929
      %v6224 = vunpack.c.l.b16 %v5930
      %v6225 = vunpack.c.l.b16 %v5931
      %v6226 = vunpack.c.l.b16 %v5932
      %v6227 = vunpack.c.l.b16 %v5933
      %v6228 = vunpack.c.l.b16 %v5934
      %v6229 = vunpack.c.l.b16 %v5935
      %v6230 = vunpack.c.l.b16 %v5936
      %v6231 = vunpack.c.l.b16 %v5937
      %v6232 = vunpack.c.l.b16 %v5938
      %v6233 = vunpack.c.l.b16 %v5939
      %v6234 = vunpack.c.l.b16 %v5940
      %v6235 = vunpack.c.l.b16 %v5941
      %v6236 = vunpack.c.l.b16 %v5942
      %v6237 = vunpack.c.l.b16 %v5943
      %v6238 = vunpack.c.l.b16 %v5944
      %v6239 = vunpack.c.l.b16 %v5945
      %v6240 = vunpack.c.l.b16 %v5946
      %v6241 = vunpack.c.l.b16 %v5947
      %v6242 = vunpack.c.l.b16 %v5948
      %v6243 = vunpack.c.l.b16 %v5949
      %v6244 = vunpack.c.l.b16 %v5950
      %v6245 = vunpack.c.l.b16 %v5951
      %v6246 = vunpack.c.l.b16 %v5952
      %v6247 = vunpack.c.l.b16 %v5953
      %v6248 = vunpack.c.l.b16 %v5954
      %v6249 = vunpack.c.l.b16 %v5955
      %v6250 = vunpack.c.l.b16 %v5956
      %v6251 = vunpack.c.l.b16 %v5957
      %v6252 = vunpack.c.l.b16 %v5958
      %v6253 = vunpack.c.l.b16 %v5959
      %v6254 = vunpack.c.l.b16 %v5960
      %v6255 = vunpack.c.l.b16 %v5961
      %v6256 = vunpack.c.l.b16 %v5962
      %v6257 = vunpack.c.l.b16 %v5963
      %v6258 = vunpack.c.l.b16 %v5964
      %v6259 = vunpack.c.l.b16 %v5965
      %v6260 = vunpack.c.l.b16 %v5966
      %v6261 = vunpack.c.l.b16 %v5967
      %v6262 = vpack.c.b16 %v6119, %v6118
      %v6263 = vpack.c.b16 %v6121, %v6120
      %v6264 = vpack.c.b16 %v6123, %v6122
      %v6265 = vpack.c.b16 %v6125, %v6124
      %v6266 = vpack.c.b16 %v6127, %v6126
      %v6267 = vpack.c.b16 %v6129, %v6128
      %v6268 = vpack.c.b16 %v6131, %v6130
      %v6269 = vpack.c.b16 %v6133, %v6132
      %v6270 = vpack.c.b16 %v6135, %v6134
      %v6271 = vpack.c.b16 %v6137, %v6136
      %v6272 = vpack.c.b16 %v6139, %v6138
      %v6273 = vpack.c.b16 %v6141, %v6140
      %v6274 = vpack.c.b16 %v6143, %v6142
      %v6275 = vpack.c.b16 %v6145, %v6144
      %v6276 = vpack.c.b16 %v6147, %v6146
      %v6277 = vpack.c.b16 %v6149, %v6148
      %v6278 = vpack.c.b16 %v6151, %v6150
      %v6279 = vpack.c.b16 %v6153, %v6152
      %v6280 = vpack.c.b16 %v6155, %v6154
      %v6281 = vpack.c.b16 %v6157, %v6156
      %v6282 = vpack.c.b16 %v6159, %v6158
      %v6283 = vpack.c.b16 %v6161, %v6160
      %v6284 = vpack.c.b16 %v6163, %v6162
      %v6285 = vpack.c.b16 %v6165, %v6164
      %v6286 = vpack.c.b16 %v6167, %v6166
      %v6287 = vpack.c.b16 %v6169, %v6168
      %v6288 = vpack.c.b16 %v6171, %v6170
      %v6289 = vpack.c.b16 %v6173, %v6172
      %v6290 = vpack.c.b16 %v6175, %v6174
      %v6291 = vpack.c.b16 %v6177, %v6176
      %v6292 = vpack.c.b16 %v6179, %v6178
      %v6293 = vpack.c.b16 %v6181, %v6180
      %v6294 = vpack.c.b16 %v6183, %v6182
      %v6295 = vpack.c.b16 %v6185, %v6184
      %v6296 = vpack.c.b16 %v6187, %v6186
      %v6297 = vpack.c.b16 %v6189, %v6188
      %v6298 = vpack.c.b16 %v6191, %v6190
      %v6299 = vpack.c.b16 %v6193, %v6192
      %v6300 = vpack.c.b16 %v6195, %v6194
      %v6301 = vpack.c.b16 %v6197, %v6196
      %v6302 = vpack.c.b16 %v6199, %v6198
      %v6303 = vpack.c.b16 %v6201, %v6200
      %v6304 = vpack.c.b16 %v6203, %v6202
      %v6305 = vpack.c.b16 %v6205, %v6204
      %v6306 = vpack.c.b16 %v6207, %v6206
      %v6307 = vpack.c.b16 %v6209, %v6208
      %v6308 = vpack.c.b16 %v6211, %v6210
      %v6309 = vpack.c.b16 %v6213, %v6212
      %v6310 = vpack.c.b16 %v6215, %v6214
      %v6311 = vpack.c.b16 %v6217, %v6216
      %v6312 = vpack.c.b16 %v6219, %v6218
      %v6313 = vpack.c.b16 %v6221, %v6220
      %v6314 = vpack.c.b16 %v6223, %v6222
      %v6315 = vpack.c.b16 %v6225, %v6224
      %v6316 = vpack.c.b16 %v6227, %v6226
      %v6317 = vpack.c.b16 %v6229, %v6228
      %v6318 = vpack.c.b16 %v6231, %v6230
      %v6319 = vpack.c.b16 %v6233, %v6232
      %v6320 = vpack.c.b16 %v6235, %v6234
      %v6321 = vpack.c.b16 %v6237, %v6236
      %v6322 = vpack.c.b16 %v6239, %v6238
      %v6323 = vpack.c.b16 %v6241, %v6240
      %v6324 = vpack.c.b16 %v6243, %v6242
      %v6325 = vpack.c.b16 %v6245, %v6244
      %v6326 = vpack.c.b16 %v6247, %v6246
      %v6327 = vpack.c.b16 %v6249, %v6248
      %v6328 = vpack.c.b16 %v6251, %v6250
      %v6329 = vpack.c.b16 %v6253, %v6252
      %v6330 = vpack.c.b16 %v6255, %v6254
      %v6331 = vpack.c.b16 %v6257, %v6256
      %v6332 = vpack.c.b16 %v6259, %v6258
      %v6333 = vpack.c.b16 %v6261, %v6260
      %6406 = vmatprep.subr.bf16.mxu0 0
      %6407 = vmatpush1.bf16.msra.mxu0 %v6262
      %6408 = vmatprep.subr.bf16.mxu0 0
      %6409 = vmatpush1.bf16.msra.mxu0 %v6263
      %6410 = vmatprep.subr.bf16.mxu0 0
      %6411 = vmatpush1.bf16.msra.mxu0 %v6264
      %6412 = vmatprep.subr.bf16.mxu0 0
      %6413 = vmatpush1.bf16.msra.mxu0 %v6265
      %6414 = vmatprep.subr.bf16.mxu0 0
      %6415 = vmatpush1.bf16.msra.mxu0 %v6266
      %6416 = vmatprep.subr.bf16.mxu0 0
      %6417 = vmatpush1.bf16.msra.mxu0 %v6267
      %6418 = vmatprep.subr.bf16.mxu0 0
      %6419 = vmatpush1.bf16.msra.mxu0 %v6268
      %6420 = vmatprep.subr.bf16.mxu0 0
      %6421 = vmatpush1.bf16.msra.mxu0 %v6269
      %6422 = vmatprep.subr.bf16.mxu0 0
      %6423 = vmatpush1.bf16.msra.mxu0 %v6270
      %6424 = vmatprep.subr.bf16.mxu0 0
      %6425 = vmatpush1.bf16.msra.mxu0 %v6271
      %6426 = vmatprep.subr.bf16.mxu0 0
      %6427 = vmatpush1.bf16.msra.mxu0 %v6272
      %6428 = vmatprep.subr.bf16.mxu0 0
      %6429 = vmatpush1.bf16.msra.mxu0 %v6273
      %6430 = vmatprep.subr.bf16.mxu0 0
      %6431 = vmatpush1.bf16.msra.mxu0 %v6274
      %6432 = vmatprep.subr.bf16.mxu0 0
      %6433 = vmatpush1.bf16.msra.mxu0 %v6275
      %6434 = vmatprep.subr.bf16.mxu0 0
      %6435 = vmatpush1.bf16.msra.mxu0 %v6276
      %6436 = vmatprep.subr.bf16.mxu0 0
      %6437 = vmatpush1.bf16.msra.mxu0 %v6277
      %6438 = vmatprep.mubr.bf16.mxu0 0
      %6439 = vmatmul.mubr.bf16.gmra.mrb[0].mxu0 0
      %v6440 = vpop.f32.mrb[0].mxu0
      %v6441 = vadd.f32 %v5972, %v6440
      %v6442 = vpop.f32.mrb[0].mxu0
      %v6443 = vpop.f32.mrb[0].mxu0
      %v6444 = vadd.f32 %v5972, %v6443
      %v6445 = vpop.f32.mrb[0].mxu0
      %6446 = vmatprep.mubr.bf16.mxu0 %v5484
      %6447 = vmatmul.mubr.bf16.gmra.mrb[0].mxu0 %v5666
      %v6448 = vpop.f32.mrb[0].mxu0
      %v6449 = vadd.f32 %v5972, %v6448
      %v6450 = vpop.f32.mrb[0].mxu0
      %v6451 = vpop.f32.mrb[0].mxu0
      %v6452 = vadd.f32 %v5972, %v6451
      %v6453 = vpop.f32.mrb[0].mxu0
      %6454 = vmatprep.mubr.bf16.mxu0 %v5485
      %6455 = vmatmul.mubr.bf16.gmra.mrb[0].mxu0 %v5546
      %v6456 = vpop.f32.mrb[0].mxu0
      %v6457 = vadd.f32 %v5972, %v6456
      %v6458 = vpop.f32.mrb[0].mxu0
      %v6459 = vpop.f32.mrb[0].mxu0
      %v6460 = vadd.f32 %v5972, %v6459
      %v6461 = vpop.f32.mrb[0].mxu0
      %6462 = vmatprep.mubr.bf16.mxu0 %v5486
      %6463 = vmatmul.mubr.bf16.gmra.mrb[0].mxu0 %v5554
      %v6464 = vpop.f32.mrb[0].mxu0
      %v6465 = vadd.f32 %v5972, %v6464
      %v6466 = vpop.f32.mrb[0].mxu0
      %v6467 = vpop.f32.mrb[0].mxu0
      %v6468 = vadd.f32 %v5972, %v6467
      %v6469 = vpop.f32.mrb[0].mxu0
      %6470 = vmatprep.mubr.bf16.mxu0 %v5487
      %6471 = vmatmul.mubr.bf16.gmra.mrb[0].mxu0 %v5562
      %v6472 = vpop.f32.mrb[0].mxu0
      %v6473 = vadd.f32 %v5972, %v6472
      %v6474 = vpop.f32.mrb[0].mxu0
      %v6475 = vpop.f32.mrb[0].mxu0
      %v6476 = vadd.f32 %v5972, %v6475
      %v6477 = vpop.f32.mrb[0].mxu0
      %6478 = vmatprep.mubr.bf16.mxu0 %v5488
      %6479 = vmatmul.mubr.bf16.gmra.mrb[0].mxu0 %v5570
      %v6480 = vpop.f32.mrb[0].mxu0
      %v6481 = vadd.f32 %v5972, %v6480
      %v6482 = vpop.f32.mrb[0].mxu0
      %v6483 = vpop.f32.mrb[0].mxu0
      %v6484 = vadd.f32 %v5972, %v6483
      %v6485 = vpop.f32.mrb[0].mxu0
      %6486 = vmatprep.mubr.bf16.mxu0 %v5489
      %6487 = vmatmul.mubr.bf16.gmra.mrb[0].mxu0 %v5578
      %v6488 = vpop.f32.mrb[0].mxu0
      %v6489 = vadd.f32 %v5972, %v6488
      %v6490 = vpop.f32.mrb[0].mxu0
      %v6491 = vpop.f32.mrb[0].mxu0
      %v6492 = vadd.f32 %v5972, %v6491
      %v6493 = vpop.f32.mrb[0].mxu0
      %6494 = vmatprep.mubr.bf16.mxu0 %v5490
      %6495 = vmatmul.mubr.bf16.gmra.mrb[0].mxu0 %v5586
      %v6496 = vpop.f32.mrb[0].mxu0
      %v6497 = vadd.f32 %v5972, %v6496
      %v6498 = vpop.f32.mrb[0].mxu0
      %v6499 = vpop.f32.mrb[0].mxu0
      %v6500 = vadd.f32 %v5972, %v6499
      %v6501 = vpop.f32.mrb[0].mxu0
      %6502 = vmatprep.mubr.bf16.mxu0 %v5491
      %6503 = vmatmul.mubr.bf16.gmra.mrb[0].mxu0 %v5594
      %v6504 = vpop.f32.mrb[0].mxu0
      %v6505 = vadd.f32 %v5972, %v6504
      %v6506 = vpop.f32.mrb[0].mxu0
      %v6507 = vpop.f32.mrb[0].mxu0
      %v6508 = vadd.f32 %v5972, %v6507
      %v6509 = vpop.f32.mrb[0].mxu0
      %6510 = vmatprep.mubr.bf16.mxu0 %v5492
      %6511 = vmatmul.mubr.bf16.gmra.mrb[0].mxu0 %v5602
      %v6512 = vpop.f32.mrb[0].mxu0
      %v6513 = vadd.f32 %v5972, %v6512
      %v6514 = vpop.f32.mrb[0].mxu0
      %v6515 = vpop.f32.mrb[0].mxu0
      %v6516 = vadd.f32 %v5972, %v6515
      %v6517 = vpop.f32.mrb[0].mxu0
      %6518 = vmatprep.mubr.bf16.mxu0 %v5493
      %6519 = vmatmul.mubr.bf16.gmra.mrb[0].mxu0 %v5610
      %v6520 = vpop.f32.mrb[0].mxu0
      %v6521 = vadd.f32 %v5972, %v6520
      %v6522 = vpop.f32.mrb[0].mxu0
      %v6523 = vpop.f32.mrb[0].mxu0
      %v6524 = vadd.f32 %v5972, %v6523
      %v6525 = vpop.f32.mrb[0].mxu0
      %6526 = vmatprep.mubr.bf16.mxu0 %v5494
      %6527 = vmatmul.mubr.bf16.gmra.mrb[0].mxu0 %v5618
      %v6528 = vpop.f32.mrb[0].mxu0
      %v6529 = vadd.f32 %v5972, %v6528
      %v6530 = vpop.f32.mrb[0].mxu0
      %v6531 = vpop.f32.mrb[0].mxu0
      %v6532 = vadd.f32 %v5972, %v6531
      %v6533 = vpop.f32.mrb[0].mxu0
      %6534 = vmatprep.mubr.bf16.mxu0 %v5495
      %6535 = vmatmul.mubr.bf16.gmra.mrb[0].mxu0 %v5626
      %v6536 = vpop.f32.mrb[0].mxu0
      %v6537 = vadd.f32 %v5972, %v6536
      %v6538 = vpop.f32.mrb[0].mxu0
      %v6539 = vpop.f32.mrb[0].mxu0
      %v6540 = vadd.f32 %v5972, %v6539
      %v6541 = vpop.f32.mrb[0].mxu0
      %6542 = vmatprep.mubr.bf16.mxu0 %v5496
      %6543 = vmatmul.mubr.bf16.gmra.mrb[0].mxu0 %v5634
      %v6544 = vpop.f32.mrb[0].mxu0
      %v6545 = vadd.f32 %v5972, %v6544
      %v6546 = vpop.f32.mrb[0].mxu0
      %v6547 = vpop.f32.mrb[0].mxu0
      %v6548 = vadd.f32 %v5972, %v6547
      %v6549 = vpop.f32.mrb[0].mxu0
      %6550 = vmatprep.mubr.bf16.mxu0 %v5497
      %6551 = vmatmul.mubr.bf16.gmra.mrb[0].mxu0 %v5642
      %v6552 = vpop.f32.mrb[0].mxu0
      %v6553 = vadd.f32 %v5972, %v6552
      %v6554 = vpop.f32.mrb[0].mxu0
      %v6555 = vpop.f32.mrb[0].mxu0
      %v6556 = vadd.f32 %v5972, %v6555
      %v6557 = vpop.f32.mrb[0].mxu0
      %6558 = vmatprep.mubr.bf16.mxu0 %v5498
      %6559 = vmatmul.mubr.bf16.gmra.mrb[0].mxu0 %v5650
      %v6560 = vpop.f32.mrb[0].mxu0
      %v6561 = vadd.f32 %v5972, %v6560
      %v6562 = vpop.f32.mrb[0].mxu0
      %v6563 = vpop.f32.mrb[0].mxu0
      %v6564 = vadd.f32 %v5972, %v6563
      %v6565 = vpop.f32.mrb[0].mxu0
      %6566 = vdwg.mxu0
      %6567 = vmatprep.subr.bf16.mxu0 0
      %6568 = vmatpush1.bf16.msra.mxu0 %v6278
      %6569 = vmatprep.subr.bf16.mxu0 0
      %6570 = vmatpush1.bf16.msra.mxu0 %v6279
      %6571 = vmatprep.subr.bf16.mxu0 0
      %6572 = vmatpush1.bf16.msra.mxu0 %v6280
      %6573 = vmatprep.subr.bf16.mxu0 0
      %6574 = vmatpush1.bf16.msra.mxu0 %v6281
      %6575 = vmatprep.subr.bf16.mxu0 0
      %6576 = vmatpush1.bf16.msra.mxu0 %v6282
      %6577 = vmatprep.subr.bf16.mxu0 0
      %6578 = vmatpush1.bf16.msra.mxu0 %v6283
      %6579 = vmatprep.subr.bf16.mxu0 0
      %6580 = vmatpush1.bf16.msra.mxu0 %v6284
      %6581 = vmatprep.subr.bf16.mxu0 0
      %6582 = vmatpush1.bf16.msra.mxu0 %v6285
      %6583 = vmatprep.subr.bf16.mxu0 0
      %6584 = vmatpush1.bf16.msra.mxu0 %v6286
      %6585 = vmatprep.subr.bf16.mxu0 0
      %6586 = vmatpush1.bf16.msra.mxu0 %v6287
      %6587 = vmatprep.subr.bf16.mxu0 0
      %6588 = vmatpush1.bf16.msra.mxu0 %v6288
      %6589 = vmatprep.subr.bf16.mxu0 0
      %6590 = vmatpush1.bf16.msra.mxu0 %v6289
      %6591 = vmatprep.subr.bf16.mxu0 0
      %6592 = vmatpush1.bf16.msra.mxu0 %v6290
      %6593 = vmatprep.subr.bf16.mxu0 0
      %6594 = vmatpush1.bf16.msra.mxu0 %v6291
      %6595 = vmatprep.subr.bf16.mxu0 0
      %6596 = vmatpush1.bf16.msra.mxu0 %v6292
      %6597 = vmatprep.subr.bf16.mxu0 0
      %6598 = vmatpush1.bf16.msra.mxu0 %v6293
      %6599 = vmatprep.mubr.bf16.mxu0 %v5666
      %6600 = vmatmul.mubr.bf16.gmra.mrb[0].mxu0 %v5807
      %v6601 = vpop.f32.mrb[0].mxu0
      %v6602 = vadd.f32 %v6441, %v6601
      %v6603 = vpop.f32.mrb[0].mxu0
      %v6604 = vpop.f32.mrb[0].mxu0
      %v6605 = vadd.f32 %v6444, %v6604
      %v6606 = vpop.f32.mrb[0].mxu0
      %6607 = vmatprep.mubr.bf16.mxu0 %v5546
      %6608 = vmatmul.mubr.bf16.gmra.mrb[0].mxu0 %v5678
      %v6609 = vpop.f32.mrb[0].mxu0
      %v6610 = vadd.f32 %v6449, %v6609
      %v6611 = vpop.f32.mrb[0].mxu0
      %v6612 = vpop.f32.mrb[0].mxu0
      %v6613 = vadd.f32 %v6452, %v6612
      %v6614 = vpop.f32.mrb[0].mxu0
      %6615 = vmatprep.mubr.bf16.mxu0 %v5554
      %6616 = vmatmul.mubr.bf16.gmra.mrb[0].mxu0 %v5686
      %v6617 = vpop.f32.mrb[0].mxu0
      %v6618 = vadd.f32 %v6457, %v6617
      %v6619 = vpop.f32.mrb[0].mxu0
      %v6620 = vpop.f32.mrb[0].mxu0
      %v6621 = vadd.f32 %v6460, %v6620
      %v6622 = vpop.f32.mrb[0].mxu0
      %6623 = vmatprep.mubr.bf16.mxu0 %v5562
      %6624 = vmatmul.mubr.bf16.gmra.mrb[0].mxu0 %v5694
      %v6625 = vpop.f32.mrb[0].mxu0
      %v6626 = vadd.f32 %v6465, %v6625
      %v6627 = vpop.f32.mrb[0].mxu0
      %v6628 = vpop.f32.mrb[0].mxu0
      %v6629 = vadd.f32 %v6468, %v6628
      %v6630 = vpop.f32.mrb[0].mxu0
      %6631 = vmatprep.mubr.bf16.mxu0 %v5570
      %6632 = vmatmul.mubr.bf16.gmra.mrb[0].mxu0 %v5702
      %v6633 = vpop.f32.mrb[0].mxu0
      %v6634 = vadd.f32 %v6473, %v6633
      %v6635 = vpop.f32.mrb[0].mxu0
      %v6636 = vpop.f32.mrb[0].mxu0
      %v6637 = vadd.f32 %v6476, %v6636
      %v6638 = vpop.f32.mrb[0].mxu0
      %6639 = vmatprep.mubr.bf16.mxu0 %v5578
      %6640 = vmatmul.mubr.bf16.gmra.mrb[0].mxu0 %v5710
      %v6641 = vpop.f32.mrb[0].mxu0
      %v6642 = vadd.f32 %v6481, %v6641
      %v6643 = vpop.f32.mrb[0].mxu0
      %v6644 = vpop.f32.mrb[0].mxu0
      %v6645 = vadd.f32 %v6484, %v6644
      %v6646 = vpop.f32.mrb[0].mxu0
      %6647 = vmatprep.mubr.bf16.mxu0 %v5586
      %6648 = vmatmul.mubr.bf16.gmra.mrb[0].mxu0 %v5718
      %v6649 = vpop.f32.mrb[0].mxu0
      %v6650 = vadd.f32 %v6489, %v6649
      %v6651 = vpop.f32.mrb[0].mxu0
      %v6652 = vpop.f32.mrb[0].mxu0
      %v6653 = vadd.f32 %v6492, %v6652
      %v6654 = vpop.f32.mrb[0].mxu0
      %6655 = vmatprep.mubr.bf16.mxu0 %v5594
      %6656 = vmatmul.mubr.bf16.gmra.mrb[0].mxu0 %v5726
      %v6657 = vpop.f32.mrb[0].mxu0
      %v6658 = vadd.f32 %v6497, %v6657
      %v6659 = vpop.f32.mrb[0].mxu0
      %v6660 = vpop.f32.mrb[0].mxu0
      %v6661 = vadd.f32 %v6500, %v6660
      %v6662 = vpop.f32.mrb[0].mxu0
      %6663 = vmatprep.mubr.bf16.mxu0 %v5602
      %6664 = vmatmul.mubr.bf16.gmra.mrb[0].mxu0 %v5734
      %v6665 = vpop.f32.mrb[0].mxu0
      %v6666 = vadd.f32 %v6505, %v6665
      %v6667 = vpop.f32.mrb[0].mxu0
      %v6668 = vpop.f32.mrb[0].mxu0
      %v6669 = vadd.f32 %v6508, %v6668
      %v6670 = vpop.f32.mrb[0].mxu0
      %6671 = vmatprep.mubr.bf16.mxu0 %v5610
      %6672 = vmatmul.mubr.bf16.gmra.mrb[0].mxu0 %v5742
      %v6673 = vpop.f32.mrb[0].mxu0
      %v6674 = vadd.f32 %v6513, %v6673
      %v6675 = vpop.f32.mrb[0].mxu0
      %v6676 = vpop.f32.mrb[0].mxu0
      %v6677 = vadd.f32 %v6516, %v6676
      %v6678 = vpop.f32.mrb[0].mxu0
      %6679 = vmatprep.mubr.bf16.mxu0 %v5618
      %6680 = vmatmul.mubr.bf16.gmra.mrb[0].mxu0 %v5750
      %v6681 = vpop.f32.mrb[0].mxu0
      %v6682 = vadd.f32 %v6521, %v6681
      %v6683 = vpop.f32.mrb[0].mxu0
      %v6684 = vpop.f32.mrb[0].mxu0
      %v6685 = vadd.f32 %v6524, %v6684
      %v6686 = vpop.f32.mrb[0].mxu0
      %6687 = vmatprep.mubr.bf16.mxu0 %v5626
      %6688 = vmatmul.mubr.bf16.gmra.mrb[0].mxu0 %v5758
      %v6689 = vpop.f32.mrb[0].mxu0
      %v6690 = vadd.f32 %v6529, %v6689
      %v6691 = vpop.f32.mrb[0].mxu0
      %v6692 = vpop.f32.mrb[0].mxu0
      %v6693 = vadd.f32 %v6532, %v6692
      %v6694 = vpop.f32.mrb[0].mxu0
      %6695 = vmatprep.mubr.bf16.mxu0 %v5634
      %6696 = vmatmul.mubr.bf16.gmra.mrb[0].mxu0 %v5766
      %v6697 = vpop.f32.mrb[0].mxu0
      %v6698 = vadd.f32 %v6537, %v6697
      %v6699 = vpop.f32.mrb[0].mxu0
      %v6700 = vpop.f32.mrb[0].mxu0
      %v6701 = vadd.f32 %v6540, %v6700
      %v6702 = vpop.f32.mrb[0].mxu0
      %6703 = vmatprep.mubr.bf16.mxu0 %v5642
      %6704 = vmatmul.mubr.bf16.gmra.mrb[0].mxu0 %v5774
      %v6705 = vpop.f32.mrb[0].mxu0
      %v6706 = vadd.f32 %v6545, %v6705
      %v6707 = vpop.f32.mrb[0].mxu0
      %v6708 = vpop.f32.mrb[0].mxu0
      %v6709 = vadd.f32 %v6548, %v6708
      %v6710 = vpop.f32.mrb[0].mxu0
      %6711 = vmatprep.mubr.bf16.mxu0 %v5650
      %6712 = vmatmul.mubr.bf16.gmra.mrb[0].mxu0 %v5782
      %v6713 = vpop.f32.mrb[0].mxu0
      %v6714 = vadd.f32 %v6553, %v6713
      %v6715 = vpop.f32.mrb[0].mxu0
      %v6716 = vpop.f32.mrb[0].mxu0
      %v6717 = vadd.f32 %v6556, %v6716
      %v6718 = vpop.f32.mrb[0].mxu0
      %6719 = vmatprep.mubr.bf16.mxu0 %v5815
      %6720 = vmatmul.mubr.bf16.gmra.mrb[0].mxu0 %v5790
      %v6721 = vpop.f32.mrb[0].mxu0
      %v6722 = vadd.f32 %v6561, %v6721
      %v6723 = vpop.f32.mrb[0].mxu0
      %v6724 = vpop.f32.mrb[0].mxu0
      %v6725 = vadd.f32 %v6564, %v6724
      %v6726 = vpop.f32.mrb[0].mxu0
      %6727 = vdwg.mxu0
      %6728 = vmatprep.subr.bf16.mxu0 0
      %6729 = vmatpush1.bf16.msra.mxu0 %v6294
      %6730 = vmatprep.subr.bf16.mxu0 0
      %6731 = vmatpush1.bf16.msra.mxu0 %v6295
      %6732 = vmatprep.subr.bf16.mxu0 0
      %6733 = vmatpush1.bf16.msra.mxu0 %v6296
      %6734 = vmatprep.subr.bf16.mxu0 0
      %6735 = vmatpush1.bf16.msra.mxu0 %v6297
      %6736 = vmatprep.subr.bf16.mxu0 0
      %6737 = vmatpush1.bf16.msra.mxu0 %v6298
      %6738 = vmatprep.subr.bf16.mxu0 0
      %6739 = vmatpush1.bf16.msra.mxu0 %v6299
      %6740 = vmatprep.subr.bf16.mxu0 0
      %6741 = vmatpush1.bf16.msra.mxu0 %v6300
      %6742 = vmatprep.subr.bf16.mxu0 0
      %6743 = vmatpush1.bf16.msra.mxu0 %v6301
      %6744 = vmatprep.subr.bf16.mxu0 0
      %6745 = vmatpush1.bf16.msra.mxu0 %v6302
      %6746 = vmatprep.subr.bf16.mxu0 0
      %6747 = vmatpush1.bf16.msra.mxu0 %v6303
      %6748 = vmatprep.subr.bf16.mxu0 0
      %6749 = vmatpush1.bf16.msra.mxu0 %v6304
      %6750 = vmatprep.subr.bf16.mxu0 0
      %6751 = vmatpush1.bf16.msra.mxu0 %v6305
      %6752 = vmatprep.subr.bf16.mxu0 0
      %6753 = vmatpush1.bf16.msra.mxu0 %v6306
      %6754 = vmatprep.subr.bf16.mxu0 0
      %6755 = vmatpush1.bf16.msra.mxu0 %v6307
      %6756 = vmatprep.subr.bf16.mxu0 0
      %6757 = vmatpush1.bf16.msra.mxu0 %v6308
      %6758 = vmatprep.subr.bf16.mxu0 0
      %6759 = vmatpush1.bf16.msra.mxu0 %v6309
      %6760 = vmatprep.mubr.bf16.mxu0 %v5678
      %6761 = vmatmul.mubr.bf16.gmra.mrb[0].mxu0 %v5484
      %v6762 = vpop.f32.mrb[0].mxu0
      %v6763 = vadd.f32 %v6602, %v6762
      %v6764 = vpop.f32.mrb[0].mxu0
      %v6765 = vpop.f32.mrb[0].mxu0
      %v6766 = vadd.f32 %v6605, %v6765
      %v6767 = vpop.f32.mrb[0].mxu0
      %6768 = vmatprep.mubr.bf16.mxu0 %v5686
      %6769 = vmatmul.mubr.bf16.gmra.mrb[0].mxu0 %v5485
      %v6770 = vpop.f32.mrb[0].mxu0
      %v6771 = vadd.f32 %v6610, %v6770
      %v6772 = vpop.f32.mrb[0].mxu0
      %v6773 = vpop.f32.mrb[0].mxu0
      %v6774 = vadd.f32 %v6613, %v6773
      %v6775 = vpop.f32.mrb[0].mxu0
      %6776 = vmatprep.mubr.bf16.mxu0 %v5694
      %6777 = vmatmul.mubr.bf16.gmra.mrb[0].mxu0 %v5486
      %v6778 = vpop.f32.mrb[0].mxu0
      %v6779 = vadd.f32 %v6618, %v6778
      %v6780 = vpop.f32.mrb[0].mxu0
      %v6781 = vpop.f32.mrb[0].mxu0
      %v6782 = vadd.f32 %v6621, %v6781
      %v6783 = vpop.f32.mrb[0].mxu0
      %6784 = vmatprep.mubr.bf16.mxu0 %v5702
      %6785 = vmatmul.mubr.bf16.gmra.mrb[0].mxu0 %v5487
      %v6786 = vpop.f32.mrb[0].mxu0
      %v6787 = vadd.f32 %v6626, %v6786
      %v6788 = vpop.f32.mrb[0].mxu0
      %v6789 = vpop.f32.mrb[0].mxu0
      %v6790 = vadd.f32 %v6629, %v6789
      %v6791 = vpop.f32.mrb[0].mxu0
      %6792 = vmatprep.mubr.bf16.mxu0 %v5710
      %6793 = vmatmul.mubr.bf16.gmra.mrb[0].mxu0 %v5488
      %v6794 = vpop.f32.mrb[0].mxu0
      %v6795 = vadd.f32 %v6634, %v6794
      %v6796 = vpop.f32.mrb[0].mxu0
      %v6797 = vpop.f32.mrb[0].mxu0
      %v6798 = vadd.f32 %v6637, %v6797
      %v6799 = vpop.f32.mrb[0].mxu0
      %6800 = vmatprep.mubr.bf16.mxu0 %v5718
      %6801 = vmatmul.mubr.bf16.gmra.mrb[0].mxu0 %v5489
      %v6802 = vpop.f32.mrb[0].mxu0
      %v6803 = vadd.f32 %v6642, %v6802
      %v6804 = vpop.f32.mrb[0].mxu0
      %v6805 = vpop.f32.mrb[0].mxu0
      %v6806 = vadd.f32 %v6645, %v6805
      %v6807 = vpop.f32.mrb[0].mxu0
      %6808 = vmatprep.mubr.bf16.mxu0 %v5726
      %6809 = vmatmul.mubr.bf16.gmra.mrb[0].mxu0 %v5490
      %v6810 = vpop.f32.mrb[0].mxu0
      %v6811 = vadd.f32 %v6650, %v6810
      %v6812 = vpop.f32.mrb[0].mxu0
      %v6813 = vpop.f32.mrb[0].mxu0
      %v6814 = vadd.f32 %v6653, %v6813
      %v6815 = vpop.f32.mrb[0].mxu0
      %6816 = vmatprep.mubr.bf16.mxu0 %v5734
      %6817 = vmatmul.mubr.bf16.gmra.mrb[0].mxu0 %v5491
      %v6818 = vpop.f32.mrb[0].mxu0
      %v6819 = vadd.f32 %v6658, %v6818
      %v6820 = vpop.f32.mrb[0].mxu0
      %v6821 = vpop.f32.mrb[0].mxu0
      %v6822 = vadd.f32 %v6661, %v6821
      %v6823 = vpop.f32.mrb[0].mxu0
      %6824 = vmatprep.mubr.bf16.mxu0 %v5742
      %6825 = vmatmul.mubr.bf16.gmra.mrb[0].mxu0 %v5492
      %v6826 = vpop.f32.mrb[0].mxu0
      %v6827 = vadd.f32 %v6666, %v6826
      %v6828 = vpop.f32.mrb[0].mxu0
      %v6829 = vpop.f32.mrb[0].mxu0
      %v6830 = vadd.f32 %v6669, %v6829
      %v6831 = vpop.f32.mrb[0].mxu0
      %6832 = vmatprep.mubr.bf16.mxu0 %v5750
      %6833 = vmatmul.mubr.bf16.gmra.mrb[0].mxu0 %v5493
      %v6834 = vpop.f32.mrb[0].mxu0
      %v6835 = vadd.f32 %v6674, %v6834
      %v6836 = vpop.f32.mrb[0].mxu0
      %v6837 = vpop.f32.mrb[0].mxu0
      %v6838 = vadd.f32 %v6677, %v6837
      %v6839 = vpop.f32.mrb[0].mxu0
      %6840 = vmatprep.mubr.bf16.mxu0 %v5758
      %6841 = vmatmul.mubr.bf16.gmra.mrb[0].mxu0 %v5494
      %v6842 = vpop.f32.mrb[0].mxu0
      %v6843 = vadd.f32 %v6682, %v6842
      %v6844 = vpop.f32.mrb[0].mxu0
      %v6845 = vpop.f32.mrb[0].mxu0
      %v6846 = vadd.f32 %v6685, %v6845
      %v6847 = vpop.f32.mrb[0].mxu0
      %6848 = vmatprep.mubr.bf16.mxu0 %v5766
      %6849 = vmatmul.mubr.bf16.gmra.mrb[0].mxu0 %v5495
      %v6850 = vpop.f32.mrb[0].mxu0
      %v6851 = vadd.f32 %v6690, %v6850
      %v6852 = vpop.f32.mrb[0].mxu0
      %v6853 = vpop.f32.mrb[0].mxu0
      %v6854 = vadd.f32 %v6693, %v6853
      %v6855 = vpop.f32.mrb[0].mxu0
      %6856 = vmatprep.mubr.bf16.mxu0 %v5774
      %6857 = vmatmul.mubr.bf16.gmra.mrb[0].mxu0 %v5496
      %v6858 = vpop.f32.mrb[0].mxu0
      %v6859 = vadd.f32 %v6698, %v6858
      %v6860 = vpop.f32.mrb[0].mxu0
      %v6861 = vpop.f32.mrb[0].mxu0
      %v6862 = vadd.f32 %v6701, %v6861
      %v6863 = vpop.f32.mrb[0].mxu0
      %6864 = vmatprep.mubr.bf16.mxu0 %v5782
      %6865 = vmatmul.mubr.bf16.gmra.mrb[0].mxu0 %v5497
      %v6866 = vpop.f32.mrb[0].mxu0
      %v6867 = vadd.f32 %v6706, %v6866
      %v6868 = vpop.f32.mrb[0].mxu0
      %v6869 = vpop.f32.mrb[0].mxu0
      %v6870 = vadd.f32 %v6709, %v6869
      %v6871 = vpop.f32.mrb[0].mxu0
      %6872 = vmatprep.mubr.bf16.mxu0 %v5790
      %6873 = vmatmul.mubr.bf16.gmra.mrb[0].mxu0 %v5498
      %v6874 = vpop.f32.mrb[0].mxu0
      %v6875 = vadd.f32 %v6714, %v6874
      %v6876 = vpop.f32.mrb[0].mxu0
      %v6877 = vpop.f32.mrb[0].mxu0
      %v6878 = vadd.f32 %v6717, %v6877
      %v6879 = vpop.f32.mrb[0].mxu0
      %6880 = vmatprep.mubr.bf16.mxu0 %v5821
      %6881 = vmatmul.mubr.bf16.gmra.mrb[0].mxu0 %v5499
      %v6882 = vpop.f32.mrb[0].mxu0
      %v6883 = vadd.f32 %v6722, %v6882
      %v6884 = vpop.f32.mrb[0].mxu0
      %v6885 = vpop.f32.mrb[0].mxu0
      %v6886 = vadd.f32 %v6725, %v6885
      %v6887 = vpop.f32.mrb[0].mxu0
      %6888 = vdwg.mxu0
      %6889 = vmatprep.subr.bf16.mxu0 0
      %6890 = vmatpush1.bf16.msra.mxu0 %v6310
      %6891 = vmatprep.subr.bf16.mxu0 0
      %6892 = vmatpush1.bf16.msra.mxu0 %v6311
      %6893 = vmatprep.subr.bf16.mxu0 0
      %6894 = vmatpush1.bf16.msra.mxu0 %v6312
      %6895 = vmatprep.subr.bf16.mxu0 0
      %6896 = vmatpush1.bf16.msra.mxu0 %v6313
      %6897 = vmatprep.subr.bf16.mxu0 0
      %6898 = vmatpush1.bf16.msra.mxu0 %v6314
      %6899 = vmatprep.subr.bf16.mxu0 0
      %6900 = vmatpush1.bf16.msra.mxu0 %v6315
      %6901 = vmatprep.subr.bf16.mxu0 0
      %6902 = vmatpush1.bf16.msra.mxu0 %v6316
      %6903 = vmatprep.subr.bf16.mxu0 0
      %6904 = vmatpush1.bf16.msra.mxu0 %v6317
      %6905 = vmatprep.subr.bf16.mxu0 0
      %6906 = vmatpush1.bf16.msra.mxu0 %v6318
      %6907 = vmatprep.subr.bf16.mxu0 0
      %6908 = vmatpush1.bf16.msra.mxu0 %v6319
      %6909 = vmatprep.subr.bf16.mxu0 0
      %6910 = vmatpush1.bf16.msra.mxu0 %v6320
      %6911 = vmatprep.subr.bf16.mxu0 0
      %6912 = vmatpush1.bf16.msra.mxu0 %v6321
      %6913 = vmatprep.subr.bf16.mxu0 0
      %6914 = vmatpush1.bf16.msra.mxu0 %v6322
      %6915 = vmatprep.subr.bf16.mxu0 0
      %6916 = vmatpush1.bf16.msra.mxu0 %v6323
      %6917 = vmatprep.subr.bf16.mxu0 0
      %6918 = vmatpush1.bf16.msra.mxu0 %v6324
      %6919 = vmatprep.subr.bf16.mxu0 0
      %6920 = vmatpush1.bf16.msra.mxu0 %v6325
      %6921 = vmatprep.mubr.bf16.mxu0 %v5485
      %6922 = vmatmul.mubr.bf16.gmra.mrb[0].mxu0 %v5546
      %v6923 = vpop.f32.mrb[0].mxu0
      %v6924 = vadd.f32 %v6763, %v6923
      %v6925 = vpop.f32.mrb[0].mxu0
      %v6926 = vpop.f32.mrb[0].mxu0
      %v6927 = vadd.f32 %v6766, %v6926
      %v6928 = vpop.f32.mrb[0].mxu0
      %6929 = vmatprep.mubr.bf16.mxu0 %v5486
      %6930 = vmatmul.mubr.bf16.gmra.mrb[0].mxu0 %v5554
      %v6931 = vpop.f32.mrb[0].mxu0
      %v6932 = vadd.f32 %v6771, %v6931
      %v6933 = vpop.f32.mrb[0].mxu0
      %v6934 = vpop.f32.mrb[0].mxu0
      %v6935 = vadd.f32 %v6774, %v6934
      %v6936 = vpop.f32.mrb[0].mxu0
      %6937 = vmatprep.mubr.bf16.mxu0 %v5487
      %6938 = vmatmul.mubr.bf16.gmra.mrb[0].mxu0 %v5562
      %v6939 = vpop.f32.mrb[0].mxu0
      %v6940 = vadd.f32 %v6779, %v6939
      %v6941 = vpop.f32.mrb[0].mxu0
      %v6942 = vpop.f32.mrb[0].mxu0
      %v6943 = vadd.f32 %v6782, %v6942
      %v6944 = vpop.f32.mrb[0].mxu0
      %6945 = vmatprep.mubr.bf16.mxu0 %v5488
      %6946 = vmatmul.mubr.bf16.gmra.mrb[0].mxu0 %v5570
      %v6947 = vpop.f32.mrb[0].mxu0
      %v6948 = vadd.f32 %v6787, %v6947
      %v6949 = vpop.f32.mrb[0].mxu0
      %v6950 = vpop.f32.mrb[0].mxu0
      %v6951 = vadd.f32 %v6790, %v6950
      %v6952 = vpop.f32.mrb[0].mxu0
      %6953 = vmatprep.mubr.bf16.mxu0 %v5489
      %6954 = vmatmul.mubr.bf16.gmra.mrb[0].mxu0 %v5578
      %v6955 = vpop.f32.mrb[0].mxu0
      %v6956 = vadd.f32 %v6795, %v6955
      %v6957 = vpop.f32.mrb[0].mxu0
      %v6958 = vpop.f32.mrb[0].mxu0
      %v6959 = vadd.f32 %v6798, %v6958
      %v6960 = vpop.f32.mrb[0].mxu0
      %6961 = vmatprep.mubr.bf16.mxu0 %v5490
      %6962 = vmatmul.mubr.bf16.gmra.mrb[0].mxu0 %v5586
      %v6963 = vpop.f32.mrb[0].mxu0
      %v6964 = vadd.f32 %v6803, %v6963
      %v6965 = vpop.f32.mrb[0].mxu0
      %v6966 = vpop.f32.mrb[0].mxu0
      %v6967 = vadd.f32 %v6806, %v6966
      %v6968 = vpop.f32.mrb[0].mxu0
      %6969 = vmatprep.mubr.bf16.mxu0 %v5491
      %6970 = vmatmul.mubr.bf16.gmra.mrb[0].mxu0 %v5594
      %v6971 = vpop.f32.mrb[0].mxu0
      %v6972 = vadd.f32 %v6811, %v6971
      %v6973 = vpop.f32.mrb[0].mxu0
      %v6974 = vpop.f32.mrb[0].mxu0
      %v6975 = vadd.f32 %v6814, %v6974
      %v6976 = vpop.f32.mrb[0].mxu0
      %6977 = vmatprep.mubr.bf16.mxu0 %v5492
      %6978 = vmatmul.mubr.bf16.gmra.mrb[0].mxu0 %v5602
      %v6979 = vpop.f32.mrb[0].mxu0
      %v6980 = vadd.f32 %v6819, %v6979
      %v6981 = vpop.f32.mrb[0].mxu0
      %v6982 = vpop.f32.mrb[0].mxu0
      %v6983 = vadd.f32 %v6822, %v6982
      %v6984 = vpop.f32.mrb[0].mxu0
      %6985 = vmatprep.mubr.bf16.mxu0 %v5493
      %6986 = vmatmul.mubr.bf16.gmra.mrb[0].mxu0 %v5610
      %v6987 = vpop.f32.mrb[0].mxu0
      %v6988 = vadd.f32 %v6827, %v6987
      %v6989 = vpop.f32.mrb[0].mxu0
      %v6990 = vpop.f32.mrb[0].mxu0
      %v6991 = vadd.f32 %v6830, %v6990
      %v6992 = vpop.f32.mrb[0].mxu0
      %6993 = vmatprep.mubr.bf16.mxu0 %v5494
      %6994 = vmatmul.mubr.bf16.gmra.mrb[0].mxu0 %v5618
      %v6995 = vpop.f32.mrb[0].mxu0
      %v6996 = vadd.f32 %v6835, %v6995
      %v6997 = vpop.f32.mrb[0].mxu0
      %v6998 = vpop.f32.mrb[0].mxu0
      %v6999 = vadd.f32 %v6838, %v6998
      %v7000 = vpop.f32.mrb[0].mxu0
      %7001 = vmatprep.mubr.bf16.mxu0 %v5495
      %7002 = vmatmul.mubr.bf16.gmra.mrb[0].mxu0 %v5626
      %v7003 = vpop.f32.mrb[0].mxu0
      %v7004 = vadd.f32 %v6843, %v7003
      %v7005 = vpop.f32.mrb[0].mxu0
      %v7006 = vpop.f32.mrb[0].mxu0
      %v7007 = vadd.f32 %v6846, %v7006
      %v7008 = vpop.f32.mrb[0].mxu0
      %7009 = vmatprep.mubr.bf16.mxu0 %v5496
      %7010 = vmatmul.mubr.bf16.gmra.mrb[0].mxu0 %v5634
      %v7011 = vpop.f32.mrb[0].mxu0
      %v7012 = vadd.f32 %v6851, %v7011
      %v7013 = vpop.f32.mrb[0].mxu0
      %v7014 = vpop.f32.mrb[0].mxu0
      %v7015 = vadd.f32 %v6854, %v7014
      %v7016 = vpop.f32.mrb[0].mxu0
      %7017 = vmatprep.mubr.bf16.mxu0 %v5497
      %7018 = vmatmul.mubr.bf16.gmra.mrb[0].mxu0 %v5642
      %v7019 = vpop.f32.mrb[0].mxu0
      %v7020 = vadd.f32 %v6859, %v7019
      %v7021 = vpop.f32.mrb[0].mxu0
      %v7022 = vpop.f32.mrb[0].mxu0
      %v7023 = vadd.f32 %v6862, %v7022
      %v7024 = vpop.f32.mrb[0].mxu0
      %7025 = vmatprep.mubr.bf16.mxu0 %v5498
      %7026 = vmatmul.mubr.bf16.gmra.mrb[0].mxu0 %v5650
      %v7027 = vpop.f32.mrb[0].mxu0
      %v7028 = vadd.f32 %v6867, %v7027
      %v7029 = vpop.f32.mrb[0].mxu0
      %v7030 = vpop.f32.mrb[0].mxu0
      %v7031 = vadd.f32 %v6870, %v7030
      %v7032 = vpop.f32.mrb[0].mxu0
      %7033 = vmatprep.mubr.bf16.mxu0 %v5499
      %7034 = vmatmul.mubr.bf16.gmra.mrb[0].mxu0 %v5815
      %v7035 = vpop.f32.mrb[0].mxu0
      %v7036 = vadd.f32 %v6875, %v7035
      %v7037 = vpop.f32.mrb[0].mxu0
      %v7038 = vpop.f32.mrb[0].mxu0
      %v7039 = vadd.f32 %v6878, %v7038
      %v7040 = vpop.f32.mrb[0].mxu0
      %7041 = vmatprep.mubr.bf16.mxu0 0
      %7042 = vmatmul.mubr.bf16.gmra.mrb[0].mxu0 %v5823
      %v7043 = vpop.f32.mrb[0].mxu0
      %v7044 = vadd.f32 %v6883, %v7043
      %v7045 = vpop.f32.mrb[0].mxu0
      %v7046 = vpop.f32.mrb[0].mxu0
      %v7047 = vadd.f32 %v6886, %v7046
      %v7048 = vpop.f32.mrb[0].mxu0
      %7049 = vdwg.mxu0
      %7050 = vmatprep.subr.bf16.mxu0 0
      %7051 = vmatpush1.bf16.msra.mxu0 %v6326
      %7052 = vmatprep.subr.bf16.mxu0 0
      %7053 = vmatpush1.bf16.msra.mxu0 %v6327
      %7054 = vmatprep.subr.bf16.mxu0 0
      %7055 = vmatpush1.bf16.msra.mxu0 %v6328
      %7056 = vmatprep.subr.bf16.mxu0 0
      %7057 = vmatpush1.bf16.msra.mxu0 %v6329
      %7058 = vmatprep.subr.bf16.mxu0 0
      %7059 = vmatpush1.bf16.msra.mxu0 %v6330
      %7060 = vmatprep.subr.bf16.mxu0 0
      %7061 = vmatpush1.bf16.msra.mxu0 %v6331
      %7062 = vmatprep.subr.bf16.mxu0 0
      %7063 = vmatpush1.bf16.msra.mxu0 %v6332
      %7064 = vmatprep.subr.bf16.mxu0 0
      %7065 = vmatpush1.bf16.msra.mxu0 %v6333
      %7066 = vmatprep.subr.bf16.mxu0 0
      %7067 = vmatpush1.bf16.msra.mxu0 0
      %7068 = vmatprep.subr.bf16.mxu0 0
      %7069 = vmatpush1.bf16.msra.mxu0 0
      %7070 = vmatprep.subr.bf16.mxu0 0
      %7071 = vmatpush1.bf16.msra.mxu0 0
      %7072 = vmatprep.subr.bf16.mxu0 0
      %7073 = vmatpush1.bf16.msra.mxu0 0
      %7074 = vmatprep.subr.bf16.mxu0 0
      %7075 = vmatpush1.bf16.msra.mxu0 0
      %7076 = vmatprep.subr.bf16.mxu0 0
      %7077 = vmatpush1.bf16.msra.mxu0 0
      %7078 = vmatprep.subr.bf16.mxu0 0
      %7079 = vmatpush1.bf16.msra.mxu0 0
      %7080 = vmatprep.subr.bf16.mxu0 0
      %7081 = vmatpush1.bf16.msra.mxu0 0
      %7082 = vmatprep.mubr.bf16.mxu0 0
      %7083 = vmatmul.mubr.bf16.gmra.mrb[0].mxu0 %v5686
      %v7084 = vpop.f32.mrb[0].mxu0
      %v7085 = vadd.f32 %v6924, %v7084
      %v7086 = vpop.f32.mrb[0].mxu0
      %v7087 = vpop.f32.mrb[0].mxu0
      %v7088 = vadd.f32 %v6927, %v7087
      %v7089 = vpop.f32.mrb[0].mxu0
      %7090 = vmatprep.mubr.bf16.mxu0 0
      %7091 = vmatmul.mubr.bf16.gmra.mrb[0].mxu0 %v5694
      %v7092 = vpop.f32.mrb[0].mxu0
      %v7093 = vadd.f32 %v6932, %v7092
      %v7094 = vpop.f32.mrb[0].mxu0
      %v7095 = vpop.f32.mrb[0].mxu0
      %v7096 = vadd.f32 %v6935, %v7095
      %v7097 = vpop.f32.mrb[0].mxu0
      %7098 = vmatprep.mubr.bf16.mxu0 0
      %7099 = vmatmul.mubr.bf16.gmra.mrb[0].mxu0 %v5702
      %v7100 = vpop.f32.mrb[0].mxu0
      %v7101 = vadd.f32 %v6940, %v7100
      %v7102 = vpop.f32.mrb[0].mxu0
      %v7103 = vpop.f32.mrb[0].mxu0
      %v7104 = vadd.f32 %v6943, %v7103
      %v7105 = vpop.f32.mrb[0].mxu0
      %7106 = vmatprep.mubr.bf16.mxu0 0
      %7107 = vmatmul.mubr.bf16.gmra.mrb[0].mxu0 %v5710
      %v7108 = vpop.f32.mrb[0].mxu0
      %v7109 = vadd.f32 %v6948, %v7108
      %v7110 = vpop.f32.mrb[0].mxu0
      %v7111 = vpop.f32.mrb[0].mxu0
      %v7112 = vadd.f32 %v6951, %v7111
      %v7113 = vpop.f32.mrb[0].mxu0
      %7114 = vmatprep.mubr.bf16.mxu0 0
      %7115 = vmatmul.mubr.bf16.gmra.mrb[0].mxu0 %v5718
      %v7116 = vpop.f32.mrb[0].mxu0
      %v7117 = vadd.f32 %v6956, %v7116
      %v7118 = vpop.f32.mrb[0].mxu0
      %v7119 = vpop.f32.mrb[0].mxu0
      %v7120 = vadd.f32 %v6959, %v7119
      %v7121 = vpop.f32.mrb[0].mxu0
      %7122 = vmatprep.mubr.bf16.mxu0 0
      %7123 = vmatmul.mubr.bf16.gmra.mrb[0].mxu0 %v5726
      %v7124 = vpop.f32.mrb[0].mxu0
      %v7125 = vadd.f32 %v6964, %v7124
      %v7126 = vpop.f32.mrb[0].mxu0
      %v7127 = vpop.f32.mrb[0].mxu0
      %v7128 = vadd.f32 %v6967, %v7127
      %v7129 = vpop.f32.mrb[0].mxu0
      %7130 = vmatprep.mubr.bf16.mxu0 0
      %7131 = vmatmul.mubr.bf16.gmra.mrb[0].mxu0 %v5734
      %v7132 = vpop.f32.mrb[0].mxu0
      %v7133 = vadd.f32 %v6972, %v7132
      %v7134 = vpop.f32.mrb[0].mxu0
      %v7135 = vpop.f32.mrb[0].mxu0
      %v7136 = vadd.f32 %v6975, %v7135
      %v7137 = vpop.f32.mrb[0].mxu0
      %7138 = vmatprep.mubr.bf16.mxu0 0
      %7139 = vmatmul.mubr.bf16.gmra.mrb[0].mxu0 %v5742
      %v7140 = vpop.f32.mrb[0].mxu0
      %v7141 = vadd.f32 %v6980, %v7140
      %v7142 = vpop.f32.mrb[0].mxu0
      %v7143 = vpop.f32.mrb[0].mxu0
      %v7144 = vadd.f32 %v6983, %v7143
      %v7145 = vpop.f32.mrb[0].mxu0
      %7146 = vmatprep.mubr.bf16.mxu0 0
      %7147 = vmatmul.mubr.bf16.gmra.mrb[0].mxu0 %v5750
      %v7148 = vpop.f32.mrb[0].mxu0
      %v7149 = vadd.f32 %v6988, %v7148
      %v7150 = vpop.f32.mrb[0].mxu0
      %v7151 = vpop.f32.mrb[0].mxu0
      %v7152 = vadd.f32 %v6991, %v7151
      %v7153 = vpop.f32.mrb[0].mxu0
      %7154 = vmatprep.mubr.bf16.mxu0 0
      %7155 = vmatmul.mubr.bf16.gmra.mrb[0].mxu0 %v5758
      %v7156 = vpop.f32.mrb[0].mxu0
      %v7157 = vadd.f32 %v6996, %v7156
      %v7158 = vpop.f32.mrb[0].mxu0
      %v7159 = vpop.f32.mrb[0].mxu0
      %v7160 = vadd.f32 %v6999, %v7159
      %v7161 = vpop.f32.mrb[0].mxu0
      %7162 = vmatprep.mubr.bf16.mxu0 0
      %7163 = vmatmul.mubr.bf16.gmra.mrb[0].mxu0 %v5766
      %v7164 = vpop.f32.mrb[0].mxu0
      %v7165 = vadd.f32 %v7004, %v7164
      %v7166 = vpop.f32.mrb[0].mxu0
      %v7167 = vpop.f32.mrb[0].mxu0
      %v7168 = vadd.f32 %v7007, %v7167
      %v7169 = vpop.f32.mrb[0].mxu0
      %7170 = vmatprep.mubr.bf16.mxu0 0
      %7171 = vmatmul.mubr.bf16.gmra.mrb[0].mxu0 %v5774
      %v7172 = vpop.f32.mrb[0].mxu0
      %v7173 = vadd.f32 %v7012, %v7172
      %v7174 = vpop.f32.mrb[0].mxu0
      %v7175 = vpop.f32.mrb[0].mxu0
      %v7176 = vadd.f32 %v7015, %v7175
      %v7177 = vpop.f32.mrb[0].mxu0
      %7178 = vmatprep.mubr.bf16.mxu0 0
      %7179 = vmatmul.mubr.bf16.gmra.mrb[0].mxu0 %v5782
      %v7180 = vpop.f32.mrb[0].mxu0
      %v7181 = vadd.f32 %v7020, %v7180
      %v7182 = vpop.f32.mrb[0].mxu0
      %v7183 = vpop.f32.mrb[0].mxu0
      %v7184 = vadd.f32 %v7023, %v7183
      %v7185 = vpop.f32.mrb[0].mxu0
      %7186 = vmatprep.mubr.bf16.mxu0 0
      %7187 = vmatmul.mubr.bf16.gmra.mrb[0].mxu0 %v5790
      %v7188 = vpop.f32.mrb[0].mxu0
      %v7189 = vadd.f32 %v7028, %v7188
      %v7190 = vpop.f32.mrb[0].mxu0
      %v7191 = vpop.f32.mrb[0].mxu0
      %v7192 = vadd.f32 %v7031, %v7191
      %v7193 = vpop.f32.mrb[0].mxu0
      %7194 = vmatprep.mubr.bf16.mxu0 0
      %7195 = vmatmul.mubr.bf16.gmra.mrb[0].mxu0 %v5821
      %v7196 = vpop.f32.mrb[0].mxu0
      %v7197 = vadd.f32 %v7036, %v7196
      %v7198 = vpop.f32.mrb[0].mxu0
      %v7199 = vpop.f32.mrb[0].mxu0
      %v7200 = vadd.f32 %v7039, %v7199
      %v7201 = vpop.f32.mrb[0].mxu0
      %7202 = vmatprep.mubr.bf16.mxu0 0
      %7203 = vmatmul.mubr.bf16.gmra.mrb[0].mxu0 0
      %v7204 = vpop.f32.mrb[0].mxu0
      %v7205 = vadd.f32 %v7044, %v7204
      %v7206 = vpop.f32.mrb[0].mxu0
      %v7207 = vpop.f32.mrb[0].mxu0
      %v7208 = vadd.f32 %v7047, %v7207
      %v7209 = vpop.f32.mrb[0].mxu0
      %7210 = vdwg.mxu0
      %v7211 = vmax.f32 %v7085, 0.0
      %v7212 = vmax.f32 %v7088, 0.0
      %v7213 = vmax.f32 %v7093, 0.0
      %v7214 = vmax.f32 %v7096, 0.0
      %v7215 = vmax.f32 %v7101, 0.0
      %v7216 = vmax.f32 %v7104, 0.0
      %v7217 = vmax.f32 %v7109, 0.0
      %v7218 = vmax.f32 %v7112, 0.0
      %v7219 = vmax.f32 %v7117, 0.0
      %v7220 = vmax.f32 %v7120, 0.0
      %v7221 = vmax.f32 %v7125, 0.0
      %v7222 = vmax.f32 %v7128, 0.0
      %v7223 = vmax.f32 %v7133, 0.0
      %v7224 = vmax.f32 %v7136, 0.0
      %v7225 = vmax.f32 %v7141, 0.0
      %v7226 = vmax.f32 %v7144, 0.0
      %v7227 = vmax.f32 %v7149, 0.0
      %v7228 = vmax.f32 %v7152, 0.0
      %v7229 = vmax.f32 %v7157, 0.0
      %v7230 = vmax.f32 %v7160, 0.0
      %v7231 = vmax.f32 %v7165, 0.0
      %v7232 = vmax.f32 %v7168, 0.0
      %v7233 = vmax.f32 %v7173, 0.0
      %v7234 = vmax.f32 %v7176, 0.0
      %v7235 = vmax.f32 %v7181, 0.0
      %v7236 = vmax.f32 %v7184, 0.0
      %v7237 = vmax.f32 %v7189, 0.0
      %v7238 = vmax.f32 %v7192, 0.0
      %v7239 = vmax.f32 %v7197, 0.0
      %v7240 = vmax.f32 %v7200, 0.0
      %v7241 = vmax.f32 %v7205, 0.0
      %v7242 = vmax.f32 %v7208, 0.0
      %v7243 = vadd.f32 %v5451, %v7211
      %v7244 = vadd.f32 %v5452, %v7212
      %v7245 = vadd.f32 %v5453, %v7213
      %v7246 = vadd.f32 %v5454, %v7214
      %v7247 = vadd.f32 %v5455, %v7215
      %v7248 = vadd.f32 %v5456, %v7216
      %v7249 = vadd.f32 %v5457, %v7217
      %v7250 = vadd.f32 %v5458, %v7218
      %v7251 = vadd.f32 %v5459, %v7219
      %v7252 = vadd.f32 %v5460, %v7220
      %v7253 = vadd.f32 %v5461, %v7221
      %v7254 = vadd.f32 %v5462, %v7222
      %v7255 = vadd.f32 %v5463, %v7223
      %v7256 = vadd.f32 %v5464, %v7224
      %v7257 = vadd.f32 %v5465, %v7225
      %v7258 = vadd.f32 %v5466, %v7226
      %v7259 = vadd.f32 %v5467, %v7227
      %v7260 = vadd.f32 %v5468, %v7228
      %v7261 = vadd.f32 %v5469, %v7229
      %v7262 = vadd.f32 %v5470, %v7230
      %v7263 = vadd.f32 %v5471, %v7231
      %v7264 = vadd.f32 %v5472, %v7232
      %v7265 = vadd.f32 %v5473, %v7233
      %v7266 = vadd.f32 %v5474, %v7234
      %v7267 = vadd.f32 %v5475, %v7235
      %v7268 = vadd.f32 %v5476, %v7236
      %v7269 = vadd.f32 %v5477, %v7237
      %v7270 = vadd.f32 %v5478, %v7238
      %v7271 = vadd.f32 %v5479, %v7239
      %v7272 = vadd.f32 %v5480, %v7240
      %v7273 = vadd.f32 %v5481, %v7241
      %v7274 = vadd.f32 %v5482, %v7242
      %v7275 = vpack.c.bf16 %v7244, %v7243
      %v7276 = vpack.c.bf16 %v7246, %v7245
      %v7277 = vpack.c.bf16 %v7248, %v7247
      %v7278 = vpack.c.bf16 %v7250, %v7249
      %v7279 = vpack.c.bf16 %v7252, %v7251
      %v7280 = vpack.c.bf16 %v7254, %v7253
      %v7281 = vpack.c.bf16 %v7256, %v7255
      %v7282 = vpack.c.bf16 %v7258, %v7257
      %v7283 = vpack.c.bf16 %v7260, %v7259
      %v7284 = vpack.c.bf16 %v7262, %v7261
      %v7285 = vpack.c.bf16 %v7264, %v7263
      %v7286 = vpack.c.bf16 %v7266, %v7265
      %v7287 = vpack.c.bf16 %v7268, %v7267
      %v7288 = vpack.c.bf16 %v7270, %v7269
      %v7289 = vpack.c.bf16 %v7272, %v7271
      %v7290 = vpack.c.bf16 %v7274, %v7273
      %v7291 = vsel %vm1172, %v7275, 0
      %v7292 = vsel %vm1173, %v7276, 0
      %v7293 = vsel %vm1174, %v7277, 0
      %v7294 = vsel %vm1175, %v7278, 0
      %v7295 = vsel %vm1176, %v7279, 0
      %v7296 = vsel %vm1177, %v7280, 0
      %v7297 = vsel %vm1178, %v7281, 0
      %v7298 = vsel %vm1179, %v7282, 0
      %v7299 = vsel %vm1180, %v7283, 0
      %v7300 = vsel %vm1181, %v7284, 0
      %v7301 = vsel %vm1182, %v7285, 0
      %v7302 = vsel %vm1183, %v7286, 0
      %v7303 = vsel %vm1184, %v7287, 0
      %v7304 = vsel %vm1185, %v7288, 0
      %v7305 = vsel %vm1186, %v7289, 0
      %v7306 = vsel %vm1187, %v7290, 0
      %v7307 = vsel %vm1316, %v7275, 0
      %v7308 = vsel %vm1317, %v7276, 0
      %v7309 = vsel %vm1318, %v7277, 0
      %v7310 = vsel %vm1319, %v7278, 0
      %v7311 = vsel %vm1320, %v7279, 0
      %v7312 = vsel %vm1321, %v7280, 0
      %v7313 = vsel %vm1322, %v7281, 0
      %v7314 = vsel %vm1323, %v7282, 0
      %v7315 = vsel %vm1324, %v7283, 0
      %v7316 = vsel %vm1325, %v7284, 0
      %v7317 = vsel %vm1326, %v7285, 0
      %v7318 = vsel %vm1327, %v7286, 0
      %v7319 = vsel %vm1328, %v7287, 0
      %v7320 = vsel %vm1329, %v7288, 0
      %v7321 = vsel %vm1330, %v7289, 0
      %v7322 = vsel %vm1331, %v7290, 0
      %v7324 = vshrl.u32 %v7291, 16
      %v7326 = vrot.slane %v7324, 7
      %v7327 = vshll.u32 %v7291, 16
      %v7329 = vor.u32 %v7326, %v7327
      %v7331 = vshrl.u32 %v7292, 16
      %v7333 = vrot.slane %v7331, 7
      %v7334 = vshll.u32 %v7292, 16
      %v7336 = vor.u32 %v7333, %v7334
      %v7337 = vsel %vm1348, %v7326, %v7336
      %v7339 = vshrl.u32 %v7293, 16
      %v7341 = vrot.slane %v7339, 7
      %v7342 = vshll.u32 %v7293, 16
      %v7344 = vor.u32 %v7341, %v7342
      %v7345 = vsel %vm1348, %v7333, %v7344
      %v7347 = vshrl.u32 %v7294, 16
      %v7349 = vrot.slane %v7347, 7
      %v7350 = vshll.u32 %v7294, 16
      %v7352 = vor.u32 %v7349, %v7350
      %v7353 = vsel %vm1348, %v7341, %v7352
      %v7355 = vshrl.u32 %v7295, 16
      %v7357 = vrot.slane %v7355, 7
      %v7358 = vshll.u32 %v7295, 16
      %v7360 = vor.u32 %v7357, %v7358
      %v7361 = vsel %vm1348, %v7349, %v7360
      %v7363 = vshrl.u32 %v7296, 16
      %v7365 = vrot.slane %v7363, 7
      %v7366 = vshll.u32 %v7296, 16
      %v7368 = vor.u32 %v7365, %v7366
      %v7369 = vsel %vm1348, %v7357, %v7368
      %v7371 = vshrl.u32 %v7297, 16
      %v7373 = vrot.slane %v7371, 7
      %v7374 = vshll.u32 %v7297, 16
      %v7376 = vor.u32 %v7373, %v7374
      %v7377 = vsel %vm1348, %v7365, %v7376
      %v7379 = vshrl.u32 %v7298, 16
      %v7381 = vrot.slane %v7379, 7
      %v7382 = vshll.u32 %v7298, 16
      %v7384 = vor.u32 %v7381, %v7382
      %v7385 = vsel %vm1348, %v7373, %v7384
      %v7387 = vshrl.u32 %v7299, 16
      %v7389 = vrot.slane %v7387, 7
      %v7390 = vshll.u32 %v7299, 16
      %v7392 = vor.u32 %v7389, %v7390
      %v7393 = vsel %vm1348, %v7381, %v7392
      %v7395 = vshrl.u32 %v7300, 16
      %v7397 = vrot.slane %v7395, 7
      %v7398 = vshll.u32 %v7300, 16
      %v7400 = vor.u32 %v7397, %v7398
      %v7401 = vsel %vm1348, %v7389, %v7400
      %v7403 = vshrl.u32 %v7301, 16
      %v7405 = vrot.slane %v7403, 7
      %v7406 = vshll.u32 %v7301, 16
      %v7408 = vor.u32 %v7405, %v7406
      %v7409 = vsel %vm1348, %v7397, %v7408
      %v7411 = vshrl.u32 %v7302, 16
      %v7413 = vrot.slane %v7411, 7
      %v7414 = vshll.u32 %v7302, 16
      %v7416 = vor.u32 %v7413, %v7414
      %v7417 = vsel %vm1348, %v7405, %v7416
      %v7419 = vshrl.u32 %v7303, 16
      %v7421 = vrot.slane %v7419, 7
      %v7422 = vshll.u32 %v7303, 16
      %v7424 = vor.u32 %v7421, %v7422
      %v7425 = vsel %vm1348, %v7413, %v7424
      %v7427 = vshrl.u32 %v7304, 16
      %v7429 = vrot.slane %v7427, 7
      %v7430 = vshll.u32 %v7304, 16
      %v7432 = vor.u32 %v7429, %v7430
      %v7433 = vsel %vm1348, %v7421, %v7432
      %v7435 = vshrl.u32 %v7305, 16
      %v7437 = vrot.slane %v7435, 7
      %v7438 = vshll.u32 %v7305, 16
      %v7440 = vor.u32 %v7437, %v7438
      %v7441 = vsel %vm1348, %v7429, %v7440
      %v7457 = vsel %vm1484, 0, %v7329
      %v7459 = vshll.u32 %v7307, 16
      %v7461 = vrot.slane %v7459, 1
      %v7462 = vshrl.u32 %v7307, 16
      %v7464 = vor.u32 %v7462, %v7461
      %v7466 = vshll.u32 %v7308, 16
      %v7468 = vrot.slane %v7466, 1
      %v7469 = vsel %vm1486, %v7464, %v7468
      %v7470 = vshrl.u32 %v7308, 16
      %v7472 = vor.u32 %v7470, %v7468
      %v7474 = vshll.u32 %v7309, 16
      %v7476 = vrot.slane %v7474, 1
      %v7477 = vsel %vm1486, %v7472, %v7476
      %v7478 = vshrl.u32 %v7309, 16
      %v7480 = vor.u32 %v7478, %v7476
      %v7482 = vshll.u32 %v7310, 16
      %v7484 = vrot.slane %v7482, 1
      %v7485 = vsel %vm1486, %v7480, %v7484
      %v7486 = vshrl.u32 %v7310, 16
      %v7488 = vor.u32 %v7486, %v7484
      %v7490 = vshll.u32 %v7311, 16
      %v7492 = vrot.slane %v7490, 1
      %v7493 = vsel %vm1486, %v7488, %v7492
      %v7494 = vshrl.u32 %v7311, 16
      %v7496 = vor.u32 %v7494, %v7492
      %v7498 = vshll.u32 %v7312, 16
      %v7500 = vrot.slane %v7498, 1
      %v7501 = vsel %vm1486, %v7496, %v7500
      %v7502 = vshrl.u32 %v7312, 16
      %v7504 = vor.u32 %v7502, %v7500
      %v7506 = vshll.u32 %v7313, 16
      %v7508 = vrot.slane %v7506, 1
      %v7509 = vsel %vm1486, %v7504, %v7508
      %v7510 = vshrl.u32 %v7313, 16
      %v7512 = vor.u32 %v7510, %v7508
      %v7514 = vshll.u32 %v7314, 16
      %v7516 = vrot.slane %v7514, 1
      %v7517 = vsel %vm1486, %v7512, %v7516
      %v7518 = vshrl.u32 %v7314, 16
      %v7520 = vor.u32 %v7518, %v7516
      %v7522 = vshll.u32 %v7315, 16
      %v7524 = vrot.slane %v7522, 1
      %v7525 = vsel %vm1486, %v7520, %v7524
      %v7526 = vshrl.u32 %v7315, 16
      %v7528 = vor.u32 %v7526, %v7524
      %v7530 = vshll.u32 %v7316, 16
      %v7532 = vrot.slane %v7530, 1
      %v7533 = vsel %vm1486, %v7528, %v7532
      %v7534 = vshrl.u32 %v7316, 16
      %v7536 = vor.u32 %v7534, %v7532
      %v7538 = vshll.u32 %v7317, 16
      %v7540 = vrot.slane %v7538, 1
      %v7541 = vsel %vm1486, %v7536, %v7540
      %v7542 = vshrl.u32 %v7317, 16
      %v7544 = vor.u32 %v7542, %v7540
      %v7546 = vshll.u32 %v7318, 16
      %v7548 = vrot.slane %v7546, 1
      %v7549 = vsel %vm1486, %v7544, %v7548
      %v7550 = vshrl.u32 %v7318, 16
      %v7552 = vor.u32 %v7550, %v7548
      %v7554 = vshll.u32 %v7319, 16
      %v7556 = vrot.slane %v7554, 1
      %v7557 = vsel %vm1486, %v7552, %v7556
      %v7558 = vshrl.u32 %v7319, 16
      %v7560 = vor.u32 %v7558, %v7556
      %v7562 = vshll.u32 %v7320, 16
      %v7564 = vrot.slane %v7562, 1
      %v7565 = vsel %vm1486, %v7560, %v7564
      %v7566 = vshrl.u32 %v7320, 16
      %v7568 = vor.u32 %v7566, %v7564
      %v7570 = vshll.u32 %v7321, 16
      %v7572 = vrot.slane %v7570, 1
      %v7573 = vsel %vm1486, %v7568, %v7572
      %v7574 = vshrl.u32 %v7321, 16
      %v7576 = vor.u32 %v7574, %v7572
      %v7578 = vshll.u32 %v7322, 16
      %v7580 = vrot.slane %v7578, 1
      %v7581 = vsel %vm1486, %v7576, %v7580
      %v7598 = vsel %vm1628, 0, %v7461
      %v7600 = vshrl.u32 %v7306, 16
      %v7602 = vrot.slane %v7600, 7
      %v7603 = vshll.u32 %v7306, 16
      %v7605 = vor.u32 %v7602, %v7603
      %v7606 = vsel %vm1348, %v7437, %v7605
      %v7608 = vshrl.u32 %v7322, 16
      %v7610 = vor.u32 %v7608, %v7580
      %v7612 = vsel %vm1628, %v7610, 0
      %v7614 = vsel %vm1484, %v7602, 0
      %7615 = vmatprep.subr.bf16.mxu0 0
      %7616 = vmatpush1.bf16.msra.mxu0 %v6262
      %7617 = vmatprep.subr.bf16.mxu0 0
      %7618 = vmatpush1.bf16.msra.mxu0 %v6263
      %7619 = vmatprep.subr.bf16.mxu0 0
      %7620 = vmatpush1.bf16.msra.mxu0 %v6264
      %7621 = vmatprep.subr.bf16.mxu0 0
      %7622 = vmatpush1.bf16.msra.mxu0 %v6265
      %7623 = vmatprep.subr.bf16.mxu0 0
      %7624 = vmatpush1.bf16.msra.mxu0 %v6266
      %7625 = vmatprep.subr.bf16.mxu0 0
      %7626 = vmatpush1.bf16.msra.mxu0 %v6267
      %7627 = vmatprep.subr.bf16.mxu0 0
      %7628 = vmatpush1.bf16.msra.mxu0 %v6268
      %7629 = vmatprep.subr.bf16.mxu0 0
      %7630 = vmatpush1.bf16.msra.mxu0 %v6269
      %7631 = vmatprep.subr.bf16.mxu0 0
      %7632 = vmatpush1.bf16.msra.mxu0 %v6270
      %7633 = vmatprep.subr.bf16.mxu0 0
      %7634 = vmatpush1.bf16.msra.mxu0 %v6271
      %7635 = vmatprep.subr.bf16.mxu0 0
      %7636 = vmatpush1.bf16.msra.mxu0 %v6272
      %7637 = vmatprep.subr.bf16.mxu0 0
      %7638 = vmatpush1.bf16.msra.mxu0 %v6273
      %7639 = vmatprep.subr.bf16.mxu0 0
      %7640 = vmatpush1.bf16.msra.mxu0 %v6274
      %7641 = vmatprep.subr.bf16.mxu0 0
      %7642 = vmatpush1.bf16.msra.mxu0 %v6275
      %7643 = vmatprep.subr.bf16.mxu0 0
      %7644 = vmatpush1.bf16.msra.mxu0 %v6276
      %7645 = vmatprep.subr.bf16.mxu0 0
      %7646 = vmatpush1.bf16.msra.mxu0 %v6277
      %7647 = vmatprep.mubr.bf16.mxu0 0
      %7648 = vmatmul.mubr.bf16.gmra.mrb[0].mxu0 0
      %v7649 = vpop.f32.mrb[0].mxu0
      %v7650 = vadd.f32 %v5972, %v7649
      %v7651 = vpop.f32.mrb[0].mxu0
      %v7652 = vpop.f32.mrb[0].mxu0
      %v7653 = vadd.f32 %v5972, %v7652
      %v7654 = vpop.f32.mrb[0].mxu0
      %7655 = vmatprep.mubr.bf16.mxu0 %v7275
      %7656 = vmatmul.mubr.bf16.gmra.mrb[0].mxu0 %v7457
      %v7657 = vpop.f32.mrb[0].mxu0
      %v7658 = vadd.f32 %v5972, %v7657
      %v7659 = vpop.f32.mrb[0].mxu0
      %v7660 = vpop.f32.mrb[0].mxu0
      %v7661 = vadd.f32 %v5972, %v7660
      %v7662 = vpop.f32.mrb[0].mxu0
      %7663 = vmatprep.mubr.bf16.mxu0 %v7276
      %7664 = vmatmul.mubr.bf16.gmra.mrb[0].mxu0 %v7337
      %v7665 = vpop.f32.mrb[0].mxu0
      %v7666 = vadd.f32 %v5972, %v7665
      %v7667 = vpop.f32.mrb[0].mxu0
      %v7668 = vpop.f32.mrb[0].mxu0
      %v7669 = vadd.f32 %v5972, %v7668
      %v7670 = vpop.f32.mrb[0].mxu0
      %7671 = vmatprep.mubr.bf16.mxu0 %v7277
      %7672 = vmatmul.mubr.bf16.gmra.mrb[0].mxu0 %v7345
      %v7673 = vpop.f32.mrb[0].mxu0
      %v7674 = vadd.f32 %v5972, %v7673
      %v7675 = vpop.f32.mrb[0].mxu0
      %v7676 = vpop.f32.mrb[0].mxu0
      %v7677 = vadd.f32 %v5972, %v7676
      %v7678 = vpop.f32.mrb[0].mxu0
      %7679 = vmatprep.mubr.bf16.mxu0 %v7278
      %7680 = vmatmul.mubr.bf16.gmra.mrb[0].mxu0 %v7353
      %v7681 = vpop.f32.mrb[0].mxu0
      %v7682 = vadd.f32 %v5972, %v7681
      %v7683 = vpop.f32.mrb[0].mxu0
      %v7684 = vpop.f32.mrb[0].mxu0
      %v7685 = vadd.f32 %v5972, %v7684
      %v7686 = vpop.f32.mrb[0].mxu0
      %7687 = vmatprep.mubr.bf16.mxu0 %v7279
      %7688 = vmatmul.mubr.bf16.gmra.mrb[0].mxu0 %v7361
      %v7689 = vpop.f32.mrb[0].mxu0
      %v7690 = vadd.f32 %v5972, %v7689
      %v7691 = vpop.f32.mrb[0].mxu0
      %v7692 = vpop.f32.mrb[0].mxu0
      %v7693 = vadd.f32 %v5972, %v7692
      %v7694 = vpop.f32.mrb[0].mxu0
      %7695 = vmatprep.mubr.bf16.mxu0 %v7280
      %7696 = vmatmul.mubr.bf16.gmra.mrb[0].mxu0 %v7369
      %v7697 = vpop.f32.mrb[0].mxu0
      %v7698 = vadd.f32 %v5972, %v7697
      %v7699 = vpop.f32.mrb[0].mxu0
      %v7700 = vpop.f32.mrb[0].mxu0
      %v7701 = vadd.f32 %v5972, %v7700
      %v7702 = vpop.f32.mrb[0].mxu0
      %7703 = vmatprep.mubr.bf16.mxu0 %v7281
      %7704 = vmatmul.mubr.bf16.gmra.mrb[0].mxu0 %v7377
      %v7705 = vpop.f32.mrb[0].mxu0
      %v7706 = vadd.f32 %v5972, %v7705
      %v7707 = vpop.f32.mrb[0].mxu0
      %v7708 = vpop.f32.mrb[0].mxu0
      %v7709 = vadd.f32 %v5972, %v7708
      %v7710 = vpop.f32.mrb[0].mxu0
      %7711 = vmatprep.mubr.bf16.mxu0 %v7282
      %7712 = vmatmul.mubr.bf16.gmra.mrb[0].mxu0 %v7385
      %v7713 = vpop.f32.mrb[0].mxu0
      %v7714 = vadd.f32 %v5972, %v7713
      %v7715 = vpop.f32.mrb[0].mxu0
      %v7716 = vpop.f32.mrb[0].mxu0
      %v7717 = vadd.f32 %v5972, %v7716
      %v7718 = vpop.f32.mrb[0].mxu0
      %7719 = vmatprep.mubr.bf16.mxu0 %v7283
      %7720 = vmatmul.mubr.bf16.gmra.mrb[0].mxu0 %v7393
      %v7721 = vpop.f32.mrb[0].mxu0
      %v7722 = vadd.f32 %v5972, %v7721
      %v7723 = vpop.f32.mrb[0].mxu0
      %v7724 = vpop.f32.mrb[0].mxu0
      %v7725 = vadd.f32 %v5972, %v7724
      %v7726 = vpop.f32.mrb[0].mxu0
      %7727 = vmatprep.mubr.bf16.mxu0 %v7284
      %7728 = vmatmul.mubr.bf16.gmra.mrb[0].mxu0 %v7401
      %v7729 = vpop.f32.mrb[0].mxu0
      %v7730 = vadd.f32 %v5972, %v7729
      %v7731 = vpop.f32.mrb[0].mxu0
      %v7732 = vpop.f32.mrb[0].mxu0
      %v7733 = vadd.f32 %v5972, %v7732
      %v7734 = vpop.f32.mrb[0].mxu0
      %7735 = vmatprep.mubr.bf16.mxu0 %v7285
      %7736 = vmatmul.mubr.bf16.gmra.mrb[0].mxu0 %v7409
      %v7737 = vpop.f32.mrb[0].mxu0
      %v7738 = vadd.f32 %v5972, %v7737
      %v7739 = vpop.f32.mrb[0].mxu0
      %v7740 = vpop.f32.mrb[0].mxu0
      %v7741 = vadd.f32 %v5972, %v7740
      %v7742 = vpop.f32.mrb[0].mxu0
      %7743 = vmatprep.mubr.bf16.mxu0 %v7286
      %7744 = vmatmul.mubr.bf16.gmra.mrb[0].mxu0 %v7417
      %v7745 = vpop.f32.mrb[0].mxu0
      %v7746 = vadd.f32 %v5972, %v7745
      %v7747 = vpop.f32.mrb[0].mxu0
      %v7748 = vpop.f32.mrb[0].mxu0
      %v7749 = vadd.f32 %v5972, %v7748
      %v7750 = vpop.f32.mrb[0].mxu0
      %7751 = vmatprep.mubr.bf16.mxu0 %v7287
      %7752 = vmatmul.mubr.bf16.gmra.mrb[0].mxu0 %v7425
      %v7753 = vpop.f32.mrb[0].mxu0
      %v7754 = vadd.f32 %v5972, %v7753
      %v7755 = vpop.f32.mrb[0].mxu0
      %v7756 = vpop.f32.mrb[0].mxu0
      %v7757 = vadd.f32 %v5972, %v7756
      %v7758 = vpop.f32.mrb[0].mxu0
      %7759 = vmatprep.mubr.bf16.mxu0 %v7288
      %7760 = vmatmul.mubr.bf16.gmra.mrb[0].mxu0 %v7433
      %v7761 = vpop.f32.mrb[0].mxu0
      %v7762 = vadd.f32 %v5972, %v7761
      %v7763 = vpop.f32.mrb[0].mxu0
      %v7764 = vpop.f32.mrb[0].mxu0
      %v7765 = vadd.f32 %v5972, %v7764
      %v7766 = vpop.f32.mrb[0].mxu0
      %7767 = vmatprep.mubr.bf16.mxu0 %v7289
      %7768 = vmatmul.mubr.bf16.gmra.mrb[0].mxu0 %v7441
      %v7769 = vpop.f32.mrb[0].mxu0
      %v7770 = vadd.f32 %v5972, %v7769
      %v7771 = vpop.f32.mrb[0].mxu0
      %v7772 = vpop.f32.mrb[0].mxu0
      %v7773 = vadd.f32 %v5972, %v7772
      %v7774 = vpop.f32.mrb[0].mxu0
      %7775 = vdwg.mxu0
      %7776 = vmatprep.subr.bf16.mxu0 0
      %7777 = vmatpush1.bf16.msra.mxu0 %v6278
      %7778 = vmatprep.subr.bf16.mxu0 0
      %7779 = vmatpush1.bf16.msra.mxu0 %v6279
      %7780 = vmatprep.subr.bf16.mxu0 0
      %7781 = vmatpush1.bf16.msra.mxu0 %v6280
      %7782 = vmatprep.subr.bf16.mxu0 0
      %7783 = vmatpush1.bf16.msra.mxu0 %v6281
      %7784 = vmatprep.subr.bf16.mxu0 0
      %7785 = vmatpush1.bf16.msra.mxu0 %v6282
      %7786 = vmatprep.subr.bf16.mxu0 0
      %7787 = vmatpush1.bf16.msra.mxu0 %v6283
      %7788 = vmatprep.subr.bf16.mxu0 0
      %7789 = vmatpush1.bf16.msra.mxu0 %v6284
      %7790 = vmatprep.subr.bf16.mxu0 0
      %7791 = vmatpush1.bf16.msra.mxu0 %v6285
      %7792 = vmatprep.subr.bf16.mxu0 0
      %7793 = vmatpush1.bf16.msra.mxu0 %v6286
      %7794 = vmatprep.subr.bf16.mxu0 0
      %7795 = vmatpush1.bf16.msra.mxu0 %v6287
      %7796 = vmatprep.subr.bf16.mxu0 0
      %7797 = vmatpush1.bf16.msra.mxu0 %v6288
      %7798 = vmatprep.subr.bf16.mxu0 0
      %7799 = vmatpush1.bf16.msra.mxu0 %v6289
      %7800 = vmatprep.subr.bf16.mxu0 0
      %7801 = vmatpush1.bf16.msra.mxu0 %v6290
      %7802 = vmatprep.subr.bf16.mxu0 0
      %7803 = vmatpush1.bf16.msra.mxu0 %v6291
      %7804 = vmatprep.subr.bf16.mxu0 0
      %7805 = vmatpush1.bf16.msra.mxu0 %v6292
      %7806 = vmatprep.subr.bf16.mxu0 0
      %7807 = vmatpush1.bf16.msra.mxu0 %v6293
      %7808 = vmatprep.mubr.bf16.mxu0 %v7457
      %7809 = vmatmul.mubr.bf16.gmra.mrb[0].mxu0 %v7598
      %v7810 = vpop.f32.mrb[0].mxu0
      %v7811 = vadd.f32 %v7650, %v7810
      %v7812 = vpop.f32.mrb[0].mxu0
      %v7813 = vpop.f32.mrb[0].mxu0
      %v7814 = vadd.f32 %v7653, %v7813
      %v7815 = vpop.f32.mrb[0].mxu0
      %7816 = vmatprep.mubr.bf16.mxu0 %v7337
      %7817 = vmatmul.mubr.bf16.gmra.mrb[0].mxu0 %v7469
      %v7818 = vpop.f32.mrb[0].mxu0
      %v7819 = vadd.f32 %v7658, %v7818
      %v7820 = vpop.f32.mrb[0].mxu0
      %v7821 = vpop.f32.mrb[0].mxu0
      %v7822 = vadd.f32 %v7661, %v7821
      %v7823 = vpop.f32.mrb[0].mxu0
      %7824 = vmatprep.mubr.bf16.mxu0 %v7345
      %7825 = vmatmul.mubr.bf16.gmra.mrb[0].mxu0 %v7477
      %v7826 = vpop.f32.mrb[0].mxu0
      %v7827 = vadd.f32 %v7666, %v7826
      %v7828 = vpop.f32.mrb[0].mxu0
      %v7829 = vpop.f32.mrb[0].mxu0
      %v7830 = vadd.f32 %v7669, %v7829
      %v7831 = vpop.f32.mrb[0].mxu0
      %7832 = vmatprep.mubr.bf16.mxu0 %v7353
      %7833 = vmatmul.mubr.bf16.gmra.mrb[0].mxu0 %v7485
      %v7834 = vpop.f32.mrb[0].mxu0
      %v7835 = vadd.f32 %v7674, %v7834
      %v7836 = vpop.f32.mrb[0].mxu0
      %v7837 = vpop.f32.mrb[0].mxu0
      %v7838 = vadd.f32 %v7677, %v7837
      %v7839 = vpop.f32.mrb[0].mxu0
      %7840 = vmatprep.mubr.bf16.mxu0 %v7361
      %7841 = vmatmul.mubr.bf16.gmra.mrb[0].mxu0 %v7493
      %v7842 = vpop.f32.mrb[0].mxu0
      %v7843 = vadd.f32 %v7682, %v7842
      %v7844 = vpop.f32.mrb[0].mxu0
      %v7845 = vpop.f32.mrb[0].mxu0
      %v7846 = vadd.f32 %v7685, %v7845
      %v7847 = vpop.f32.mrb[0].mxu0
      %7848 = vmatprep.mubr.bf16.mxu0 %v7369
      %7849 = vmatmul.mubr.bf16.gmra.mrb[0].mxu0 %v7501
      %v7850 = vpop.f32.mrb[0].mxu0
      %v7851 = vadd.f32 %v7690, %v7850
      %v7852 = vpop.f32.mrb[0].mxu0
      %v7853 = vpop.f32.mrb[0].mxu0
      %v7854 = vadd.f32 %v7693, %v7853
      %v7855 = vpop.f32.mrb[0].mxu0
      %7856 = vmatprep.mubr.bf16.mxu0 %v7377
      %7857 = vmatmul.mubr.bf16.gmra.mrb[0].mxu0 %v7509
      %v7858 = vpop.f32.mrb[0].mxu0
      %v7859 = vadd.f32 %v7698, %v7858
      %v7860 = vpop.f32.mrb[0].mxu0
      %v7861 = vpop.f32.mrb[0].mxu0
      %v7862 = vadd.f32 %v7701, %v7861
      %v7863 = vpop.f32.mrb[0].mxu0
      %7864 = vmatprep.mubr.bf16.mxu0 %v7385
      %7865 = vmatmul.mubr.bf16.gmra.mrb[0].mxu0 %v7517
      %v7866 = vpop.f32.mrb[0].mxu0
      %v7867 = vadd.f32 %v7706, %v7866
      %v7868 = vpop.f32.mrb[0].mxu0
      %v7869 = vpop.f32.mrb[0].mxu0
      %v7870 = vadd.f32 %v7709, %v7869
      %v7871 = vpop.f32.mrb[0].mxu0
      %7872 = vmatprep.mubr.bf16.mxu0 %v7393
      %7873 = vmatmul.mubr.bf16.gmra.mrb[0].mxu0 %v7525
      %v7874 = vpop.f32.mrb[0].mxu0
      %v7875 = vadd.f32 %v7714, %v7874
      %v7876 = vpop.f32.mrb[0].mxu0
      %v7877 = vpop.f32.mrb[0].mxu0
      %v7878 = vadd.f32 %v7717, %v7877
      %v7879 = vpop.f32.mrb[0].mxu0
      %7880 = vmatprep.mubr.bf16.mxu0 %v7401
      %7881 = vmatmul.mubr.bf16.gmra.mrb[0].mxu0 %v7533
      %v7882 = vpop.f32.mrb[0].mxu0
      %v7883 = vadd.f32 %v7722, %v7882
      %v7884 = vpop.f32.mrb[0].mxu0
      %v7885 = vpop.f32.mrb[0].mxu0
      %v7886 = vadd.f32 %v7725, %v7885
      %v7887 = vpop.f32.mrb[0].mxu0
      %7888 = vmatprep.mubr.bf16.mxu0 %v7409
      %7889 = vmatmul.mubr.bf16.gmra.mrb[0].mxu0 %v7541
      %v7890 = vpop.f32.mrb[0].mxu0
      %v7891 = vadd.f32 %v7730, %v7890
      %v7892 = vpop.f32.mrb[0].mxu0
      %v7893 = vpop.f32.mrb[0].mxu0
      %v7894 = vadd.f32 %v7733, %v7893
      %v7895 = vpop.f32.mrb[0].mxu0
      %7896 = vmatprep.mubr.bf16.mxu0 %v7417
      %7897 = vmatmul.mubr.bf16.gmra.mrb[0].mxu0 %v7549
      %v7898 = vpop.f32.mrb[0].mxu0
      %v7899 = vadd.f32 %v7738, %v7898
      %v7900 = vpop.f32.mrb[0].mxu0
      %v7901 = vpop.f32.mrb[0].mxu0
      %v7902 = vadd.f32 %v7741, %v7901
      %v7903 = vpop.f32.mrb[0].mxu0
      %7904 = vmatprep.mubr.bf16.mxu0 %v7425
      %7905 = vmatmul.mubr.bf16.gmra.mrb[0].mxu0 %v7557
      %v7906 = vpop.f32.mrb[0].mxu0
      %v7907 = vadd.f32 %v7746, %v7906
      %v7908 = vpop.f32.mrb[0].mxu0
      %v7909 = vpop.f32.mrb[0].mxu0
      %v7910 = vadd.f32 %v7749, %v7909
      %v7911 = vpop.f32.mrb[0].mxu0
      %7912 = vmatprep.mubr.bf16.mxu0 %v7433
      %7913 = vmatmul.mubr.bf16.gmra.mrb[0].mxu0 %v7565
      %v7914 = vpop.f32.mrb[0].mxu0
      %v7915 = vadd.f32 %v7754, %v7914
      %v7916 = vpop.f32.mrb[0].mxu0
      %v7917 = vpop.f32.mrb[0].mxu0
      %v7918 = vadd.f32 %v7757, %v7917
      %v7919 = vpop.f32.mrb[0].mxu0
      %7920 = vmatprep.mubr.bf16.mxu0 %v7441
      %7921 = vmatmul.mubr.bf16.gmra.mrb[0].mxu0 %v7573
      %v7922 = vpop.f32.mrb[0].mxu0
      %v7923 = vadd.f32 %v7762, %v7922
      %v7924 = vpop.f32.mrb[0].mxu0
      %v7925 = vpop.f32.mrb[0].mxu0
      %v7926 = vadd.f32 %v7765, %v7925
      %v7927 = vpop.f32.mrb[0].mxu0
      %7928 = vmatprep.mubr.bf16.mxu0 %v7606
      %7929 = vmatmul.mubr.bf16.gmra.mrb[0].mxu0 %v7581
      %v7930 = vpop.f32.mrb[0].mxu0
      %v7931 = vadd.f32 %v7770, %v7930
      %v7932 = vpop.f32.mrb[0].mxu0
      %v7933 = vpop.f32.mrb[0].mxu0
      %v7934 = vadd.f32 %v7773, %v7933
      %v7935 = vpop.f32.mrb[0].mxu0
      %7936 = vdwg.mxu0
      %7937 = vmatprep.subr.bf16.mxu0 0
      %7938 = vmatpush1.bf16.msra.mxu0 %v6294
      %7939 = vmatprep.subr.bf16.mxu0 0
      %7940 = vmatpush1.bf16.msra.mxu0 %v6295
      %7941 = vmatprep.subr.bf16.mxu0 0
      %7942 = vmatpush1.bf16.msra.mxu0 %v6296
      %7943 = vmatprep.subr.bf16.mxu0 0
      %7944 = vmatpush1.bf16.msra.mxu0 %v6297
      %7945 = vmatprep.subr.bf16.mxu0 0
      %7946 = vmatpush1.bf16.msra.mxu0 %v6298
      %7947 = vmatprep.subr.bf16.mxu0 0
      %7948 = vmatpush1.bf16.msra.mxu0 %v6299
      %7949 = vmatprep.subr.bf16.mxu0 0
      %7950 = vmatpush1.bf16.msra.mxu0 %v6300
      %7951 = vmatprep.subr.bf16.mxu0 0
      %7952 = vmatpush1.bf16.msra.mxu0 %v6301
      %7953 = vmatprep.subr.bf16.mxu0 0
      %7954 = vmatpush1.bf16.msra.mxu0 %v6302
      %7955 = vmatprep.subr.bf16.mxu0 0
      %7956 = vmatpush1.bf16.msra.mxu0 %v6303
      %7957 = vmatprep.subr.bf16.mxu0 0
      %7958 = vmatpush1.bf16.msra.mxu0 %v6304
      %7959 = vmatprep.subr.bf16.mxu0 0
      %7960 = vmatpush1.bf16.msra.mxu0 %v6305
      %7961 = vmatprep.subr.bf16.mxu0 0
      %7962 = vmatpush1.bf16.msra.mxu0 %v6306
      %7963 = vmatprep.subr.bf16.mxu0 0
      %7964 = vmatpush1.bf16.msra.mxu0 %v6307
      %7965 = vmatprep.subr.bf16.mxu0 0
      %7966 = vmatpush1.bf16.msra.mxu0 %v6308
      %7967 = vmatprep.subr.bf16.mxu0 0
      %7968 = vmatpush1.bf16.msra.mxu0 %v6309
      %7969 = vmatprep.mubr.bf16.mxu0 %v7469
      %7970 = vmatmul.mubr.bf16.gmra.mrb[0].mxu0 %v7275
      %v7971 = vpop.f32.mrb[0].mxu0
      %v7972 = vadd.f32 %v7811, %v7971
      %v7973 = vpop.f32.mrb[0].mxu0
      %v7974 = vpop.f32.mrb[0].mxu0
      %v7975 = vadd.f32 %v7814, %v7974
      %v7976 = vpop.f32.mrb[0].mxu0
      %7977 = vmatprep.mubr.bf16.mxu0 %v7477
      %7978 = vmatmul.mubr.bf16.gmra.mrb[0].mxu0 %v7276
      %v7979 = vpop.f32.mrb[0].mxu0
      %v7980 = vadd.f32 %v7819, %v7979
      %v7981 = vpop.f32.mrb[0].mxu0
      %v7982 = vpop.f32.mrb[0].mxu0
      %v7983 = vadd.f32 %v7822, %v7982
      %v7984 = vpop.f32.mrb[0].mxu0
      %7985 = vmatprep.mubr.bf16.mxu0 %v7485
      %7986 = vmatmul.mubr.bf16.gmra.mrb[0].mxu0 %v7277
      %v7987 = vpop.f32.mrb[0].mxu0
      %v7988 = vadd.f32 %v7827, %v7987
      %v7989 = vpop.f32.mrb[0].mxu0
      %v7990 = vpop.f32.mrb[0].mxu0
      %v7991 = vadd.f32 %v7830, %v7990
      %v7992 = vpop.f32.mrb[0].mxu0
      %7993 = vmatprep.mubr.bf16.mxu0 %v7493
      %7994 = vmatmul.mubr.bf16.gmra.mrb[0].mxu0 %v7278
      %v7995 = vpop.f32.mrb[0].mxu0
      %v7996 = vadd.f32 %v7835, %v7995
      %v7997 = vpop.f32.mrb[0].mxu0
      %v7998 = vpop.f32.mrb[0].mxu0
      %v7999 = vadd.f32 %v7838, %v7998
      %v8000 = vpop.f32.mrb[0].mxu0
      %8001 = vmatprep.mubr.bf16.mxu0 %v7501
      %8002 = vmatmul.mubr.bf16.gmra.mrb[0].mxu0 %v7279
      %v8003 = vpop.f32.mrb[0].mxu0
      %v8004 = vadd.f32 %v7843, %v8003
      %v8005 = vpop.f32.mrb[0].mxu0
      %v8006 = vpop.f32.mrb[0].mxu0
      %v8007 = vadd.f32 %v7846, %v8006
      %v8008 = vpop.f32.mrb[0].mxu0
      %8009 = vmatprep.mubr.bf16.mxu0 %v7509
      %8010 = vmatmul.mubr.bf16.gmra.mrb[0].mxu0 %v7280
      %v8011 = vpop.f32.mrb[0].mxu0
      %v8012 = vadd.f32 %v7851, %v8011
      %v8013 = vpop.f32.mrb[0].mxu0
      %v8014 = vpop.f32.mrb[0].mxu0
      %v8015 = vadd.f32 %v7854, %v8014
      %v8016 = vpop.f32.mrb[0].mxu0
      %8017 = vmatprep.mubr.bf16.mxu0 %v7517
      %8018 = vmatmul.mubr.bf16.gmra.mrb[0].mxu0 %v7281
      %v8019 = vpop.f32.mrb[0].mxu0
      %v8020 = vadd.f32 %v7859, %v8019
      %v8021 = vpop.f32.mrb[0].mxu0
      %v8022 = vpop.f32.mrb[0].mxu0
      %v8023 = vadd.f32 %v7862, %v8022
      %v8024 = vpop.f32.mrb[0].mxu0
      %8025 = vmatprep.mubr.bf16.mxu0 %v7525
      %8026 = vmatmul.mubr.bf16.gmra.mrb[0].mxu0 %v7282
      %v8027 = vpop.f32.mrb[0].mxu0
      %v8028 = vadd.f32 %v7867, %v8027
      %v8029 = vpop.f32.mrb[0].mxu0
      %v8030 = vpop.f32.mrb[0].mxu0
      %v8031 = vadd.f32 %v7870, %v8030
      %v8032 = vpop.f32.mrb[0].mxu0
      %8033 = vmatprep.mubr.bf16.mxu0 %v7533
      %8034 = vmatmul.mubr.bf16.gmra.mrb[0].mxu0 %v7283
      %v8035 = vpop.f32.mrb[0].mxu0
      %v8036 = vadd.f32 %v7875, %v8035
      %v8037 = vpop.f32.mrb[0].mxu0
      %v8038 = vpop.f32.mrb[0].mxu0
      %v8039 = vadd.f32 %v7878, %v8038
      %v8040 = vpop.f32.mrb[0].mxu0
      %8041 = vmatprep.mubr.bf16.mxu0 %v7541
      %8042 = vmatmul.mubr.bf16.gmra.mrb[0].mxu0 %v7284
      %v8043 = vpop.f32.mrb[0].mxu0
      %v8044 = vadd.f32 %v7883, %v8043
      %v8045 = vpop.f32.mrb[0].mxu0
      %v8046 = vpop.f32.mrb[0].mxu0
      %v8047 = vadd.f32 %v7886, %v8046
      %v8048 = vpop.f32.mrb[0].mxu0
      %8049 = vmatprep.mubr.bf16.mxu0 %v7549
      %8050 = vmatmul.mubr.bf16.gmra.mrb[0].mxu0 %v7285
      %v8051 = vpop.f32.mrb[0].mxu0
      %v8052 = vadd.f32 %v7891, %v8051
      %v8053 = vpop.f32.mrb[0].mxu0
      %v8054 = vpop.f32.mrb[0].mxu0
      %v8055 = vadd.f32 %v7894, %v8054
      %v8056 = vpop.f32.mrb[0].mxu0
      %8057 = vmatprep.mubr.bf16.mxu0 %v7557
      %8058 = vmatmul.mubr.bf16.gmra.mrb[0].mxu0 %v7286
      %v8059 = vpop.f32.mrb[0].mxu0
      %v8060 = vadd.f32 %v7899, %v8059
      %v8061 = vpop.f32.mrb[0].mxu0
      %v8062 = vpop.f32.mrb[0].mxu0
      %v8063 = vadd.f32 %v7902, %v8062
      %v8064 = vpop.f32.mrb[0].mxu0
      %8065 = vmatprep.mubr.bf16.mxu0 %v7565
      %8066 = vmatmul.mubr.bf16.gmra.mrb[0].mxu0 %v7287
      %v8067 = vpop.f32.mrb[0].mxu0
      %v8068 = vadd.f32 %v7907, %v8067
      %v8069 = vpop.f32.mrb[0].mxu0
      %v8070 = vpop.f32.mrb[0].mxu0
      %v8071 = vadd.f32 %v7910, %v8070
      %v8072 = vpop.f32.mrb[0].mxu0
      %8073 = vmatprep.mubr.bf16.mxu0 %v7573
      %8074 = vmatmul.mubr.bf16.gmra.mrb[0].mxu0 %v7288
      %v8075 = vpop.f32.mrb[0].mxu0
      %v8076 = vadd.f32 %v7915, %v8075
      %v8077 = vpop.f32.mrb[0].mxu0
      %v8078 = vpop.f32.mrb[0].mxu0
      %v8079 = vadd.f32 %v7918, %v8078
      %v8080 = vpop.f32.mrb[0].mxu0
      %8081 = vmatprep.mubr.bf16.mxu0 %v7581
      %8082 = vmatmul.mubr.bf16.gmra.mrb[0].mxu0 %v7289
      %v8083 = vpop.f32.mrb[0].mxu0
      %v8084 = vadd.f32 %v7923, %v8083
      %v8085 = vpop.f32.mrb[0].mxu0
      %v8086 = vpop.f32.mrb[0].mxu0
      %v8087 = vadd.f32 %v7926, %v8086
      %v8088 = vpop.f32.mrb[0].mxu0
      %8089 = vmatprep.mubr.bf16.mxu0 %v7612
      %8090 = vmatmul.mubr.bf16.gmra.mrb[0].mxu0 %v7290
      %v8091 = vpop.f32.mrb[0].mxu0
      %v8092 = vadd.f32 %v7931, %v8091
      %v8093 = vpop.f32.mrb[0].mxu0
      %v8094 = vpop.f32.mrb[0].mxu0
      %v8095 = vadd.f32 %v7934, %v8094
      %v8096 = vpop.f32.mrb[0].mxu0
      %8097 = vdwg.mxu0
      %8098 = vmatprep.subr.bf16.mxu0 0
      %8099 = vmatpush1.bf16.msra.mxu0 %v6310
      %8100 = vmatprep.subr.bf16.mxu0 0
      %8101 = vmatpush1.bf16.msra.mxu0 %v6311
      %8102 = vmatprep.subr.bf16.mxu0 0
      %8103 = vmatpush1.bf16.msra.mxu0 %v6312
      %8104 = vmatprep.subr.bf16.mxu0 0
      %8105 = vmatpush1.bf16.msra.mxu0 %v6313
      %8106 = vmatprep.subr.bf16.mxu0 0
      %8107 = vmatpush1.bf16.msra.mxu0 %v6314
      %8108 = vmatprep.subr.bf16.mxu0 0
      %8109 = vmatpush1.bf16.msra.mxu0 %v6315
      %8110 = vmatprep.subr.bf16.mxu0 0
      %8111 = vmatpush1.bf16.msra.mxu0 %v6316
      %8112 = vmatprep.subr.bf16.mxu0 0
      %8113 = vmatpush1.bf16.msra.mxu0 %v6317
      %8114 = vmatprep.subr.bf16.mxu0 0
      %8115 = vmatpush1.bf16.msra.mxu0 %v6318
      %8116 = vmatprep.subr.bf16.mxu0 0
      %8117 = vmatpush1.bf16.msra.mxu0 %v6319
      %8118 = vmatprep.subr.bf16.mxu0 0
      %8119 = vmatpush1.bf16.msra.mxu0 %v6320
      %8120 = vmatprep.subr.bf16.mxu0 0
      %8121 = vmatpush1.bf16.msra.mxu0 %v6321
      %8122 = vmatprep.subr.bf16.mxu0 0
      %8123 = vmatpush1.bf16.msra.mxu0 %v6322
      %8124 = vmatprep.subr.bf16.mxu0 0
      %8125 = vmatpush1.bf16.msra.mxu0 %v6323
      %8126 = vmatprep.subr.bf16.mxu0 0
      %8127 = vmatpush1.bf16.msra.mxu0 %v6324
      %8128 = vmatprep.subr.bf16.mxu0 0
      %8129 = vmatpush1.bf16.msra.mxu0 %v6325
      %8130 = vmatprep.mubr.bf16.mxu0 %v7276
      %8131 = vmatmul.mubr.bf16.gmra.mrb[0].mxu0 %v7337
      %v8132 = vpop.f32.mrb[0].mxu0
      %v8133 = vadd.f32 %v7972, %v8132
      %v8134 = vpop.f32.mrb[0].mxu0
      %v8135 = vpop.f32.mrb[0].mxu0
      %v8136 = vadd.f32 %v7975, %v8135
      %v8137 = vpop.f32.mrb[0].mxu0
      %8138 = vmatprep.mubr.bf16.mxu0 %v7277
      %8139 = vmatmul.mubr.bf16.gmra.mrb[0].mxu0 %v7345
      %v8140 = vpop.f32.mrb[0].mxu0
      %v8141 = vadd.f32 %v7980, %v8140
      %v8142 = vpop.f32.mrb[0].mxu0
      %v8143 = vpop.f32.mrb[0].mxu0
      %v8144 = vadd.f32 %v7983, %v8143
      %v8145 = vpop.f32.mrb[0].mxu0
      %8146 = vmatprep.mubr.bf16.mxu0 %v7278
      %8147 = vmatmul.mubr.bf16.gmra.mrb[0].mxu0 %v7353
      %v8148 = vpop.f32.mrb[0].mxu0
      %v8149 = vadd.f32 %v7988, %v8148
      %v8150 = vpop.f32.mrb[0].mxu0
      %v8151 = vpop.f32.mrb[0].mxu0
      %v8152 = vadd.f32 %v7991, %v8151
      %v8153 = vpop.f32.mrb[0].mxu0
      %8154 = vmatprep.mubr.bf16.mxu0 %v7279
      %8155 = vmatmul.mubr.bf16.gmra.mrb[0].mxu0 %v7361
      %v8156 = vpop.f32.mrb[0].mxu0
      %v8157 = vadd.f32 %v7996, %v8156
      %v8158 = vpop.f32.mrb[0].mxu0
      %v8159 = vpop.f32.mrb[0].mxu0
      %v8160 = vadd.f32 %v7999, %v8159
      %v8161 = vpop.f32.mrb[0].mxu0
      %8162 = vmatprep.mubr.bf16.mxu0 %v7280
      %8163 = vmatmul.mubr.bf16.gmra.mrb[0].mxu0 %v7369
      %v8164 = vpop.f32.mrb[0].mxu0
      %v8165 = vadd.f32 %v8004, %v8164
      %v8166 = vpop.f32.mrb[0].mxu0
      %v8167 = vpop.f32.mrb[0].mxu0
      %v8168 = vadd.f32 %v8007, %v8167
      %v8169 = vpop.f32.mrb[0].mxu0
      %8170 = vmatprep.mubr.bf16.mxu0 %v7281
      %8171 = vmatmul.mubr.bf16.gmra.mrb[0].mxu0 %v7377
      %v8172 = vpop.f32.mrb[0].mxu0
      %v8173 = vadd.f32 %v8012, %v8172
      %v8174 = vpop.f32.mrb[0].mxu0
      %v8175 = vpop.f32.mrb[0].mxu0
      %v8176 = vadd.f32 %v8015, %v8175
      %v8177 = vpop.f32.mrb[0].mxu0
      %8178 = vmatprep.mubr.bf16.mxu0 %v7282
      %8179 = vmatmul.mubr.bf16.gmra.mrb[0].mxu0 %v7385
      %v8180 = vpop.f32.mrb[0].mxu0
      %v8181 = vadd.f32 %v8020, %v8180
      %v8182 = vpop.f32.mrb[0].mxu0
      %v8183 = vpop.f32.mrb[0].mxu0
      %v8184 = vadd.f32 %v8023, %v8183
      %v8185 = vpop.f32.mrb[0].mxu0
      %8186 = vmatprep.mubr.bf16.mxu0 %v7283
      %8187 = vmatmul.mubr.bf16.gmra.mrb[0].mxu0 %v7393
      %v8188 = vpop.f32.mrb[0].mxu0
      %v8189 = vadd.f32 %v8028, %v8188
      %v8190 = vpop.f32.mrb[0].mxu0
      %v8191 = vpop.f32.mrb[0].mxu0
      %v8192 = vadd.f32 %v8031, %v8191
      %v8193 = vpop.f32.mrb[0].mxu0
      %8194 = vmatprep.mubr.bf16.mxu0 %v7284
      %8195 = vmatmul.mubr.bf16.gmra.mrb[0].mxu0 %v7401
      %v8196 = vpop.f32.mrb[0].mxu0
      %v8197 = vadd.f32 %v8036, %v8196
      %v8198 = vpop.f32.mrb[0].mxu0
      %v8199 = vpop.f32.mrb[0].mxu0
      %v8200 = vadd.f32 %v8039, %v8199
      %v8201 = vpop.f32.mrb[0].mxu0
      %8202 = vmatprep.mubr.bf16.mxu0 %v7285
      %8203 = vmatmul.mubr.bf16.gmra.mrb[0].mxu0 %v7409
      %v8204 = vpop.f32.mrb[0].mxu0
      %v8205 = vadd.f32 %v8044, %v8204
      %v8206 = vpop.f32.mrb[0].mxu0
      %v8207 = vpop.f32.mrb[0].mxu0
      %v8208 = vadd.f32 %v8047, %v8207
      %v8209 = vpop.f32.mrb[0].mxu0
      %8210 = vmatprep.mubr.bf16.mxu0 %v7286
      %8211 = vmatmul.mubr.bf16.gmra.mrb[0].mxu0 %v7417
      %v8212 = vpop.f32.mrb[0].mxu0
      %v8213 = vadd.f32 %v8052, %v8212
      %v8214 = vpop.f32.mrb[0].mxu0
      %v8215 = vpop.f32.mrb[0].mxu0
      %v8216 = vadd.f32 %v8055, %v8215
      %v8217 = vpop.f32.mrb[0].mxu0
      %8218 = vmatprep.mubr.bf16.mxu0 %v7287
      %8219 = vmatmul.mubr.bf16.gmra.mrb[0].mxu0 %v7425
      %v8220 = vpop.f32.mrb[0].mxu0
      %v8221 = vadd.f32 %v8060, %v8220
      %v8222 = vpop.f32.mrb[0].mxu0
      %v8223 = vpop.f32.mrb[0].mxu0
      %v8224 = vadd.f32 %v8063, %v8223
      %v8225 = vpop.f32.mrb[0].mxu0
      %8226 = vmatprep.mubr.bf16.mxu0 %v7288
      %8227 = vmatmul.mubr.bf16.gmra.mrb[0].mxu0 %v7433
      %v8228 = vpop.f32.mrb[0].mxu0
      %v8229 = vadd.f32 %v8068, %v8228
      %v8230 = vpop.f32.mrb[0].mxu0
      %v8231 = vpop.f32.mrb[0].mxu0
      %v8232 = vadd.f32 %v8071, %v8231
      %v8233 = vpop.f32.mrb[0].mxu0
      %8234 = vmatprep.mubr.bf16.mxu0 %v7289
      %8235 = vmatmul.mubr.bf16.gmra.mrb[0].mxu0 %v7441
      %v8236 = vpop.f32.mrb[0].mxu0
      %v8237 = vadd.f32 %v8076, %v8236
      %v8238 = vpop.f32.mrb[0].mxu0
      %v8239 = vpop.f32.mrb[0].mxu0
      %v8240 = vadd.f32 %v8079, %v8239
      %v8241 = vpop.f32.mrb[0].mxu0
      %8242 = vmatprep.mubr.bf16.mxu0 %v7290
      %8243 = vmatmul.mubr.bf16.gmra.mrb[0].mxu0 %v7606
      %v8244 = vpop.f32.mrb[0].mxu0
      %v8245 = vadd.f32 %v8084, %v8244
      %v8246 = vpop.f32.mrb[0].mxu0
      %v8247 = vpop.f32.mrb[0].mxu0
      %v8248 = vadd.f32 %v8087, %v8247
      %v8249 = vpop.f32.mrb[0].mxu0
      %8250 = vmatprep.mubr.bf16.mxu0 0
      %8251 = vmatmul.mubr.bf16.gmra.mrb[0].mxu0 %v7614
      %v8252 = vpop.f32.mrb[0].mxu0
      %v8253 = vadd.f32 %v8092, %v8252
      %v8254 = vpop.f32.mrb[0].mxu0
      %v8255 = vpop.f32.mrb[0].mxu0
      %v8256 = vadd.f32 %v8095, %v8255
      %v8257 = vpop.f32.mrb[0].mxu0
      %8258 = vdwg.mxu0
      %8259 = vmatprep.subr.bf16.mxu0 0
      %8260 = vmatpush1.bf16.msra.mxu0 %v6326
      %8261 = vmatprep.subr.bf16.mxu0 0
      %8262 = vmatpush1.bf16.msra.mxu0 %v6327
      %8263 = vmatprep.subr.bf16.mxu0 0
      %8264 = vmatpush1.bf16.msra.mxu0 %v6328
      %8265 = vmatprep.subr.bf16.mxu0 0
      %8266 = vmatpush1.bf16.msra.mxu0 %v6329
      %8267 = vmatprep.subr.bf16.mxu0 0
      %8268 = vmatpush1.bf16.msra.mxu0 %v6330
      %8269 = vmatprep.subr.bf16.mxu0 0
      %8270 = vmatpush1.bf16.msra.mxu0 %v6331
      %8271 = vmatprep.subr.bf16.mxu0 0
      %8272 = vmatpush1.bf16.msra.mxu0 %v6332
      %8273 = vmatprep.subr.bf16.mxu0 0
      %8274 = vmatpush1.bf16.msra.mxu0 %v6333
      %8275 = vmatprep.subr.bf16.mxu0 0
      %8276 = vmatpush1.bf16.msra.mxu0 0
      %8277 = vmatprep.subr.bf16.mxu0 0
      %8278 = vmatpush1.bf16.msra.mxu0 0
      %8279 = vmatprep.subr.bf16.mxu0 0
      %8280 = vmatpush1.bf16.msra.mxu0 0
      %8281 = vmatprep.subr.bf16.mxu0 0
      %8282 = vmatpush1.bf16.msra.mxu0 0
      %8283 = vmatprep.subr.bf16.mxu0 0
      %8284 = vmatpush1.bf16.msra.mxu0 0
      %8285 = vmatprep.subr.bf16.mxu0 0
      %8286 = vmatpush1.bf16.msra.mxu0 0
      %8287 = vmatprep.subr.bf16.mxu0 0
      %8288 = vmatpush1.bf16.msra.mxu0 0
      %8289 = vmatprep.subr.bf16.mxu0 0
      %8290 = vmatpush1.bf16.msra.mxu0 0
      %8291 = vmatprep.mubr.bf16.mxu0 0
      %8292 = vmatmul.mubr.bf16.gmra.mrb[0].mxu0 %v7477
      %v8293 = vpop.f32.mrb[0].mxu0
      %v8294 = vadd.f32 %v8133, %v8293
      %v8295 = vpop.f32.mrb[0].mxu0
      %v8296 = vpop.f32.mrb[0].mxu0
      %v8297 = vadd.f32 %v8136, %v8296
      %v8298 = vpop.f32.mrb[0].mxu0
      %8299 = vmatprep.mubr.bf16.mxu0 0
      %8300 = vmatmul.mubr.bf16.gmra.mrb[0].mxu0 %v7485
      %v8301 = vpop.f32.mrb[0].mxu0
      %v8302 = vadd.f32 %v8141, %v8301
      %v8303 = vpop.f32.mrb[0].mxu0
      %v8304 = vpop.f32.mrb[0].mxu0
      %v8305 = vadd.f32 %v8144, %v8304
      %v8306 = vpop.f32.mrb[0].mxu0
      %8307 = vmatprep.mubr.bf16.mxu0 0
      %8308 = vmatmul.mubr.bf16.gmra.mrb[0].mxu0 %v7493
      %v8309 = vpop.f32.mrb[0].mxu0
      %v8310 = vadd.f32 %v8149, %v8309
      %v8311 = vpop.f32.mrb[0].mxu0
      %v8312 = vpop.f32.mrb[0].mxu0
      %v8313 = vadd.f32 %v8152, %v8312
      %v8314 = vpop.f32.mrb[0].mxu0
      %8315 = vmatprep.mubr.bf16.mxu0 0
      %8316 = vmatmul.mubr.bf16.gmra.mrb[0].mxu0 %v7501
      %v8317 = vpop.f32.mrb[0].mxu0
      %v8318 = vadd.f32 %v8157, %v8317
      %v8319 = vpop.f32.mrb[0].mxu0
      %v8320 = vpop.f32.mrb[0].mxu0
      %v8321 = vadd.f32 %v8160, %v8320
      %v8322 = vpop.f32.mrb[0].mxu0
      %8323 = vmatprep.mubr.bf16.mxu0 0
      %8324 = vmatmul.mubr.bf16.gmra.mrb[0].mxu0 %v7509
      %v8325 = vpop.f32.mrb[0].mxu0
      %v8326 = vadd.f32 %v8165, %v8325
      %v8327 = vpop.f32.mrb[0].mxu0
      %v8328 = vpop.f32.mrb[0].mxu0
      %v8329 = vadd.f32 %v8168, %v8328
      %v8330 = vpop.f32.mrb[0].mxu0
      %8331 = vmatprep.mubr.bf16.mxu0 0
      %8332 = vmatmul.mubr.bf16.gmra.mrb[0].mxu0 %v7517
      %v8333 = vpop.f32.mrb[0].mxu0
      %v8334 = vadd.f32 %v8173, %v8333
      %v8335 = vpop.f32.mrb[0].mxu0
      %v8336 = vpop.f32.mrb[0].mxu0
      %v8337 = vadd.f32 %v8176, %v8336
      %v8338 = vpop.f32.mrb[0].mxu0
      %8339 = vmatprep.mubr.bf16.mxu0 0
      %8340 = vmatmul.mubr.bf16.gmra.mrb[0].mxu0 %v7525
      %v8341 = vpop.f32.mrb[0].mxu0
      %v8342 = vadd.f32 %v8181, %v8341
      %v8343 = vpop.f32.mrb[0].mxu0
      %v8344 = vpop.f32.mrb[0].mxu0
      %v8345 = vadd.f32 %v8184, %v8344
      %v8346 = vpop.f32.mrb[0].mxu0
      %8347 = vmatprep.mubr.bf16.mxu0 0
      %8348 = vmatmul.mubr.bf16.gmra.mrb[0].mxu0 %v7533
      %v8349 = vpop.f32.mrb[0].mxu0
      %v8350 = vadd.f32 %v8189, %v8349
      %v8351 = vpop.f32.mrb[0].mxu0
      %v8352 = vpop.f32.mrb[0].mxu0
      %v8353 = vadd.f32 %v8192, %v8352
      %v8354 = vpop.f32.mrb[0].mxu0
      %8355 = vmatprep.mubr.bf16.mxu0 0
      %8356 = vmatmul.mubr.bf16.gmra.mrb[0].mxu0 %v7541
      %v8357 = vpop.f32.mrb[0].mxu0
      %v8358 = vadd.f32 %v8197, %v8357
      %v8359 = vpop.f32.mrb[0].mxu0
      %v8360 = vpop.f32.mrb[0].mxu0
      %v8361 = vadd.f32 %v8200, %v8360
      %v8362 = vpop.f32.mrb[0].mxu0
      %8363 = vmatprep.mubr.bf16.mxu0 0
      %8364 = vmatmul.mubr.bf16.gmra.mrb[0].mxu0 %v7549
      %v8365 = vpop.f32.mrb[0].mxu0
      %v8366 = vadd.f32 %v8205, %v8365
      %v8367 = vpop.f32.mrb[0].mxu0
      %v8368 = vpop.f32.mrb[0].mxu0
      %v8369 = vadd.f32 %v8208, %v8368
      %v8370 = vpop.f32.mrb[0].mxu0
      %8371 = vmatprep.mubr.bf16.mxu0 0
      %8372 = vmatmul.mubr.bf16.gmra.mrb[0].mxu0 %v7557
      %v8373 = vpop.f32.mrb[0].mxu0
      %v8374 = vadd.f32 %v8213, %v8373
      %v8375 = vpop.f32.mrb[0].mxu0
      %v8376 = vpop.f32.mrb[0].mxu0
      %v8377 = vadd.f32 %v8216, %v8376
      %v8378 = vpop.f32.mrb[0].mxu0
      %8379 = vmatprep.mubr.bf16.mxu0 0
      %8380 = vmatmul.mubr.bf16.gmra.mrb[0].mxu0 %v7565
      %v8381 = vpop.f32.mrb[0].mxu0
      %v8382 = vadd.f32 %v8221, %v8381
      %v8383 = vpop.f32.mrb[0].mxu0
      %v8384 = vpop.f32.mrb[0].mxu0
      %v8385 = vadd.f32 %v8224, %v8384
      %v8386 = vpop.f32.mrb[0].mxu0
      %8387 = vmatprep.mubr.bf16.mxu0 0
      %8388 = vmatmul.mubr.bf16.gmra.mrb[0].mxu0 %v7573
      %v8389 = vpop.f32.mrb[0].mxu0
      %v8390 = vadd.f32 %v8229, %v8389
      %v8391 = vpop.f32.mrb[0].mxu0
      %v8392 = vpop.f32.mrb[0].mxu0
      %v8393 = vadd.f32 %v8232, %v8392
      %v8394 = vpop.f32.mrb[0].mxu0
      %8395 = vmatprep.mubr.bf16.mxu0 0
      %8396 = vmatmul.mubr.bf16.gmra.mrb[0].mxu0 %v7581
      %v8397 = vpop.f32.mrb[0].mxu0
      %v8398 = vadd.f32 %v8237, %v8397
      %v8399 = vpop.f32.mrb[0].mxu0
      %v8400 = vpop.f32.mrb[0].mxu0
      %v8401 = vadd.f32 %v8240, %v8400
      %v8402 = vpop.f32.mrb[0].mxu0
      %8403 = vmatprep.mubr.bf16.mxu0 0
      %8404 = vmatmul.mubr.bf16.gmra.mrb[0].mxu0 %v7612
      %v8405 = vpop.f32.mrb[0].mxu0
      %v8406 = vadd.f32 %v8245, %v8405
      %v8407 = vpop.f32.mrb[0].mxu0
      %v8408 = vpop.f32.mrb[0].mxu0
      %v8409 = vadd.f32 %v8248, %v8408
      %v8410 = vpop.f32.mrb[0].mxu0
      %8411 = vmatprep.mubr.bf16.mxu0 0
      %8412 = vmatmul.mubr.bf16.gmra.mrb[0].mxu0 0
      %v8413 = vpop.f32.mrb[0].mxu0
      %v8414 = vadd.f32 %v8253, %v8413
      %v8415 = vpop.f32.mrb[0].mxu0
      %v8416 = vpop.f32.mrb[0].mxu0
      %v8417 = vadd.f32 %v8256, %v8416
      %v8418 = vpop.f32.mrb[0].mxu0
      %8419 = vdwg.mxu0
      %v8420 = vmax.f32 %v8294, 0.0
      %v8421 = vmax.f32 %v8297, 0.0
      %v8422 = vmax.f32 %v8302, 0.0
      %v8423 = vmax.f32 %v8305, 0.0
      %v8424 = vmax.f32 %v8310, 0.0
      %v8425 = vmax.f32 %v8313, 0.0
      %v8426 = vmax.f32 %v8318, 0.0
      %v8427 = vmax.f32 %v8321, 0.0
      %v8428 = vmax.f32 %v8326, 0.0
      %v8429 = vmax.f32 %v8329, 0.0
      %v8430 = vmax.f32 %v8334, 0.0
      %v8431 = vmax.f32 %v8337, 0.0
      %v8432 = vmax.f32 %v8342, 0.0
      %v8433 = vmax.f32 %v8345, 0.0
      %v8434 = vmax.f32 %v8350, 0.0
      %v8435 = vmax.f32 %v8353, 0.0
      %v8436 = vmax.f32 %v8358, 0.0
      %v8437 = vmax.f32 %v8361, 0.0
      %v8438 = vmax.f32 %v8366, 0.0
      %v8439 = vmax.f32 %v8369, 0.0
      %v8440 = vmax.f32 %v8374, 0.0
      %v8441 = vmax.f32 %v8377, 0.0
      %v8442 = vmax.f32 %v8382, 0.0
      %v8443 = vmax.f32 %v8385, 0.0
      %v8444 = vmax.f32 %v8390, 0.0
      %v8445 = vmax.f32 %v8393, 0.0
      %v8446 = vmax.f32 %v8398, 0.0
      %v8447 = vmax.f32 %v8401, 0.0
      %v8448 = vmax.f32 %v8406, 0.0
      %v8449 = vmax.f32 %v8409, 0.0
      %v8450 = vmax.f32 %v8414, 0.0
      %v8451 = vmax.f32 %v8417, 0.0
      %v8452 = vadd.f32 %v5451, %v8420
      %v8453 = vadd.f32 %v5452, %v8421
      %v8454 = vadd.f32 %v5453, %v8422
      %v8455 = vadd.f32 %v5454, %v8423
      %v8456 = vadd.f32 %v5455, %v8424
      %v8457 = vadd.f32 %v5456, %v8425
      %v8458 = vadd.f32 %v5457, %v8426
      %v8459 = vadd.f32 %v5458, %v8427
      %v8460 = vadd.f32 %v5459, %v8428
      %v8461 = vadd.f32 %v5460, %v8429
      %v8462 = vadd.f32 %v5461, %v8430
      %v8463 = vadd.f32 %v5462, %v8431
      %v8464 = vadd.f32 %v5463, %v8432
      %v8465 = vadd.f32 %v5464, %v8433
      %v8466 = vadd.f32 %v5465, %v8434
      %v8467 = vadd.f32 %v5466, %v8435
      %v8468 = vadd.f32 %v5467, %v8436
      %v8469 = vadd.f32 %v5468, %v8437
      %v8470 = vadd.f32 %v5469, %v8438
      %v8471 = vadd.f32 %v5470, %v8439
      %v8472 = vadd.f32 %v5471, %v8440
      %v8473 = vadd.f32 %v5472, %v8441
      %v8474 = vadd.f32 %v5473, %v8442
      %v8475 = vadd.f32 %v5474, %v8443
      %v8476 = vadd.f32 %v5475, %v8444
      %v8477 = vadd.f32 %v5476, %v8445
      %v8478 = vadd.f32 %v5477, %v8446
      %v8479 = vadd.f32 %v5478, %v8447
      %v8480 = vadd.f32 %v5479, %v8448
      %v8481 = vadd.f32 %v5480, %v8449
      %v8482 = vadd.f32 %v5481, %v8450
      %v8483 = vadd.f32 %v5482, %v8451
      %v8484 = vpack.c.bf16 %v8453, %v8452
      %v8485 = vpack.c.bf16 %v8455, %v8454
      %v8486 = vpack.c.bf16 %v8457, %v8456
      %v8487 = vpack.c.bf16 %v8459, %v8458
      %v8488 = vpack.c.bf16 %v8461, %v8460
      %v8489 = vpack.c.bf16 %v8463, %v8462
      %v8490 = vpack.c.bf16 %v8465, %v8464
      %v8491 = vpack.c.bf16 %v8467, %v8466
      %v8492 = vpack.c.bf16 %v8469, %v8468
      %v8493 = vpack.c.bf16 %v8471, %v8470
      %v8494 = vpack.c.bf16 %v8473, %v8472
      %v8495 = vpack.c.bf16 %v8475, %v8474
      %v8496 = vpack.c.bf16 %v8477, %v8476
      %v8497 = vpack.c.bf16 %v8479, %v8478
      %v8498 = vpack.c.bf16 %v8481, %v8480
      %v8499 = vpack.c.bf16 %v8483, %v8482
      %v8500 = vsel %vm1172, %v8484, 0
      %v8501 = vsel %vm1173, %v8485, 0
      %v8502 = vsel %vm1174, %v8486, 0
      %v8503 = vsel %vm1175, %v8487, 0
      %v8504 = vsel %vm1176, %v8488, 0
      %v8505 = vsel %vm1177, %v8489, 0
      %v8506 = vsel %vm1178, %v8490, 0
      %v8507 = vsel %vm1179, %v8491, 0
      %v8508 = vsel %vm1180, %v8492, 0
      %v8509 = vsel %vm1181, %v8493, 0
      %v8510 = vsel %vm1182, %v8494, 0
      %v8511 = vsel %vm1183, %v8495, 0
      %v8512 = vsel %vm1184, %v8496, 0
      %v8513 = vsel %vm1185, %v8497, 0
      %v8514 = vsel %vm1186, %v8498, 0
      %v8515 = vsel %vm1187, %v8499, 0
      %v8516 = vsel %vm1316, %v8484, 0
      %v8517 = vsel %vm1317, %v8485, 0
      %v8518 = vsel %vm1318, %v8486, 0
      %v8519 = vsel %vm1319, %v8487, 0
      %v8520 = vsel %vm1320, %v8488, 0
      %v8521 = vsel %vm1321, %v8489, 0
      %v8522 = vsel %vm1322, %v8490, 0
      %v8523 = vsel %vm1323, %v8491, 0
      %v8524 = vsel %vm1324, %v8492, 0
      %v8525 = vsel %vm1325, %v8493, 0
      %v8526 = vsel %vm1326, %v8494, 0
      %v8527 = vsel %vm1327, %v8495, 0
      %v8528 = vsel %vm1328, %v8496, 0
      %v8529 = vsel %vm1329, %v8497, 0
      %v8530 = vsel %vm1330, %v8498, 0
      %v8531 = vsel %vm1331, %v8499, 0
      %v8533 = vshrl.u32 %v8500, 16
      %v8535 = vrot.slane %v8533, 7
      %v8536 = vshll.u32 %v8500, 16
      %v8538 = vor.u32 %v8535, %v8536
      %v8540 = vshrl.u32 %v8501, 16
      %v8542 = vrot.slane %v8540, 7
      %v8543 = vshll.u32 %v8501, 16
      %v8545 = vor.u32 %v8542, %v8543
      %v8546 = vsel %vm1348, %v8535, %v8545
      %v8548 = vshrl.u32 %v8502, 16
      %v8550 = vrot.slane %v8548, 7
      %v8551 = vshll.u32 %v8502, 16
      %v8553 = vor.u32 %v8550, %v8551
      %v8554 = vsel %vm1348, %v8542, %v8553
      %v8556 = vshrl.u32 %v8503, 16
      %v8558 = vrot.slane %v8556, 7
      %v8559 = vshll.u32 %v8503, 16
      %v8561 = vor.u32 %v8558, %v8559
      %v8562 = vsel %vm1348, %v8550, %v8561
      %v8564 = vshrl.u32 %v8504, 16
      %v8566 = vrot.slane %v8564, 7
      %v8567 = vshll.u32 %v8504, 16
      %v8569 = vor.u32 %v8566, %v8567
      %v8570 = vsel %vm1348, %v8558, %v8569
      %v8572 = vshrl.u32 %v8505, 16
      %v8574 = vrot.slane %v8572, 7
      %v8575 = vshll.u32 %v8505, 16
      %v8577 = vor.u32 %v8574, %v8575
      %v8578 = vsel %vm1348, %v8566, %v8577
      %v8580 = vshrl.u32 %v8506, 16
      %v8582 = vrot.slane %v8580, 7
      %v8583 = vshll.u32 %v8506, 16
      %v8585 = vor.u32 %v8582, %v8583
      %v8586 = vsel %vm1348, %v8574, %v8585
      %v8588 = vshrl.u32 %v8507, 16
      %v8590 = vrot.slane %v8588, 7
      %v8591 = vshll.u32 %v8507, 16
      %v8593 = vor.u32 %v8590, %v8591
      %v8594 = vsel %vm1348, %v8582, %v8593
      %v8596 = vshrl.u32 %v8508, 16
      %v8598 = vrot.slane %v8596, 7
      %v8599 = vshll.u32 %v8508, 16
      %v8601 = vor.u32 %v8598, %v8599
      %v8602 = vsel %vm1348, %v8590, %v8601
      %v8604 = vshrl.u32 %v8509, 16
      %v8606 = vrot.slane %v8604, 7
      %v8607 = vshll.u32 %v8509, 16
      %v8609 = vor.u32 %v8606, %v8607
      %v8610 = vsel %vm1348, %v8598, %v8609
      %v8612 = vshrl.u32 %v8510, 16
      %v8614 = vrot.slane %v8612, 7
      %v8615 = vshll.u32 %v8510, 16
      %v8617 = vor.u32 %v8614, %v8615
      %v8618 = vsel %vm1348, %v8606, %v8617
      %v8620 = vshrl.u32 %v8511, 16
      %v8622 = vrot.slane %v8620, 7
      %v8623 = vshll.u32 %v8511, 16
      %v8625 = vor.u32 %v8622, %v8623
      %v8626 = vsel %vm1348, %v8614, %v8625
      %v8628 = vshrl.u32 %v8512, 16
      %v8630 = vrot.slane %v8628, 7
      %v8631 = vshll.u32 %v8512, 16
      %v8633 = vor.u32 %v8630, %v8631
      %v8634 = vsel %vm1348, %v8622, %v8633
      %v8636 = vshrl.u32 %v8513, 16
      %v8638 = vrot.slane %v8636, 7
      %v8639 = vshll.u32 %v8513, 16
      %v8641 = vor.u32 %v8638, %v8639
      %v8642 = vsel %vm1348, %v8630, %v8641
      %v8644 = vshrl.u32 %v8514, 16
      %v8646 = vrot.slane %v8644, 7
      %v8647 = vshll.u32 %v8514, 16
      %v8649 = vor.u32 %v8646, %v8647
      %v8650 = vsel %vm1348, %v8638, %v8649
      %v8666 = vsel %vm1484, 0, %v8538
      %v8668 = vshll.u32 %v8516, 16
      %v8670 = vrot.slane %v8668, 1
      %v8671 = vshrl.u32 %v8516, 16
      %v8673 = vor.u32 %v8671, %v8670
      %v8675 = vshll.u32 %v8517, 16
      %v8677 = vrot.slane %v8675, 1
      %v8678 = vsel %vm1486, %v8673, %v8677
      %v8679 = vshrl.u32 %v8517, 16
      %v8681 = vor.u32 %v8679, %v8677
      %v8683 = vshll.u32 %v8518, 16
      %v8685 = vrot.slane %v8683, 1
      %v8686 = vsel %vm1486, %v8681, %v8685
      %v8687 = vshrl.u32 %v8518, 16
      %v8689 = vor.u32 %v8687, %v8685
      %v8691 = vshll.u32 %v8519, 16
      %v8693 = vrot.slane %v8691, 1
      %v8694 = vsel %vm1486, %v8689, %v8693
      %v8695 = vshrl.u32 %v8519, 16
      %v8697 = vor.u32 %v8695, %v8693
      %v8699 = vshll.u32 %v8520, 16
      %v8701 = vrot.slane %v8699, 1
      %v8702 = vsel %vm1486, %v8697, %v8701
      %v8703 = vshrl.u32 %v8520, 16
      %v8705 = vor.u32 %v8703, %v8701
      %v8707 = vshll.u32 %v8521, 16
      %v8709 = vrot.slane %v8707, 1
      %v8710 = vsel %vm1486, %v8705, %v8709
      %v8711 = vshrl.u32 %v8521, 16
      %v8713 = vor.u32 %v8711, %v8709
      %v8715 = vshll.u32 %v8522, 16
      %v8717 = vrot.slane %v8715, 1
      %v8718 = vsel %vm1486, %v8713, %v8717
      %v8719 = vshrl.u32 %v8522, 16
      %v8721 = vor.u32 %v8719, %v8717
      %v8723 = vshll.u32 %v8523, 16
      %v8725 = vrot.slane %v8723, 1
      %v8726 = vsel %vm1486, %v8721, %v8725
      %v8727 = vshrl.u32 %v8523, 16
      %v8729 = vor.u32 %v8727, %v8725
      %v8731 = vshll.u32 %v8524, 16
      %v8733 = vrot.slane %v8731, 1
      %v8734 = vsel %vm1486, %v8729, %v8733
      %v8735 = vshrl.u32 %v8524, 16
      %v8737 = vor.u32 %v8735, %v8733
      %v8739 = vshll.u32 %v8525, 16
      %v8741 = vrot.slane %v8739, 1
      %v8742 = vsel %vm1486, %v8737, %v8741
      %v8743 = vshrl.u32 %v8525, 16
      %v8745 = vor.u32 %v8743, %v8741
      %v8747 = vshll.u32 %v8526, 16
      %v8749 = vrot.slane %v8747, 1
      %v8750 = vsel %vm1486, %v8745, %v8749
      %v8751 = vshrl.u32 %v8526, 16
      %v8753 = vor.u32 %v8751, %v8749
      %v8755 = vshll.u32 %v8527, 16
      %v8757 = vrot.slane %v8755, 1
      %v8758 = vsel %vm1486, %v8753, %v8757
      %v8759 = vshrl.u32 %v8527, 16
      %v8761 = vor.u32 %v8759, %v8757
      %v8763 = vshll.u32 %v8528, 16
      %v8765 = vrot.slane %v8763, 1
      %v8766 = vsel %vm1486, %v8761, %v8765
      %v8767 = vshrl.u32 %v8528, 16
      %v8769 = vor.u32 %v8767, %v8765
      %v8771 = vshll.u32 %v8529, 16
      %v8773 = vrot.slane %v8771, 1
      %v8774 = vsel %vm1486, %v8769, %v8773
      %v8775 = vshrl.u32 %v8529, 16
      %v8777 = vor.u32 %v8775, %v8773
      %v8779 = vshll.u32 %v8530, 16
      %v8781 = vrot.slane %v8779, 1
      %v8782 = vsel %vm1486, %v8777, %v8781
      %v8783 = vshrl.u32 %v8530, 16
      %v8785 = vor.u32 %v8783, %v8781
      %v8787 = vshll.u32 %v8531, 16
      %v8789 = vrot.slane %v8787, 1
      %v8790 = vsel %vm1486, %v8785, %v8789
      %v8807 = vsel %vm1628, 0, %v8670
      %v8809 = vshrl.u32 %v8515, 16
      %v8811 = vrot.slane %v8809, 7
      %v8812 = vshll.u32 %v8515, 16
      %v8814 = vor.u32 %v8811, %v8812
      %v8815 = vsel %vm1348, %v8646, %v8814
      %v8817 = vshrl.u32 %v8531, 16
      %v8819 = vor.u32 %v8817, %v8789
      %v8821 = vsel %vm1628, %v8819, 0
      %v8823 = vsel %vm1484, %v8811, 0
      %8824 = vmatprep.subr.bf16.mxu0 0
      %8825 = vmatpush1.bf16.msra.mxu0 %v6262
      %8826 = vmatprep.subr.bf16.mxu0 0
      %8827 = vmatpush1.bf16.msra.mxu0 %v6263
      %8828 = vmatprep.subr.bf16.mxu0 0
      %8829 = vmatpush1.bf16.msra.mxu0 %v6264
      %8830 = vmatprep.subr.bf16.mxu0 0
      %8831 = vmatpush1.bf16.msra.mxu0 %v6265
      %8832 = vmatprep.subr.bf16.mxu0 0
      %8833 = vmatpush1.bf16.msra.mxu0 %v6266
      %8834 = vmatprep.subr.bf16.mxu0 0
      %8835 = vmatpush1.bf16.msra.mxu0 %v6267
      %8836 = vmatprep.subr.bf16.mxu0 0
      %8837 = vmatpush1.bf16.msra.mxu0 %v6268
      %8838 = vmatprep.subr.bf16.mxu0 0
      %8839 = vmatpush1.bf16.msra.mxu0 %v6269
      %8840 = vmatprep.subr.bf16.mxu0 0
      %8841 = vmatpush1.bf16.msra.mxu0 %v6270
      %8842 = vmatprep.subr.bf16.mxu0 0
      %8843 = vmatpush1.bf16.msra.mxu0 %v6271
      %8844 = vmatprep.subr.bf16.mxu0 0
      %8845 = vmatpush1.bf16.msra.mxu0 %v6272
      %8846 = vmatprep.subr.bf16.mxu0 0
      %8847 = vmatpush1.bf16.msra.mxu0 %v6273
      %8848 = vmatprep.subr.bf16.mxu0 0
      %8849 = vmatpush1.bf16.msra.mxu0 %v6274
      %8850 = vmatprep.subr.bf16.mxu0 0
      %8851 = vmatpush1.bf16.msra.mxu0 %v6275
      %8852 = vmatprep.subr.bf16.mxu0 0
      %8853 = vmatpush1.bf16.msra.mxu0 %v6276
      %8854 = vmatprep.subr.bf16.mxu0 0
      %8855 = vmatpush1.bf16.msra.mxu0 %v6277
      %8856 = vmatprep.mubr.bf16.mxu0 0
      %8857 = vmatmul.mubr.bf16.gmra.mrb[0].mxu0 0
      %v8858 = vpop.f32.mrb[0].mxu0
      %v8859 = vadd.f32 %v5972, %v8858
      %v8860 = vpop.f32.mrb[0].mxu0
      %v8861 = vpop.f32.mrb[0].mxu0
      %v8862 = vadd.f32 %v5972, %v8861
      %v8863 = vpop.f32.mrb[0].mxu0
      %8864 = vmatprep.mubr.bf16.mxu0 %v8484
      %8865 = vmatmul.mubr.bf16.gmra.mrb[0].mxu0 %v8666
      %v8866 = vpop.f32.mrb[0].mxu0
      %v8867 = vadd.f32 %v5972, %v8866
      %v8868 = vpop.f32.mrb[0].mxu0
      %v8869 = vpop.f32.mrb[0].mxu0
      %v8870 = vadd.f32 %v5972, %v8869
      %v8871 = vpop.f32.mrb[0].mxu0
      %8872 = vmatprep.mubr.bf16.mxu0 %v8485
      %8873 = vmatmul.mubr.bf16.gmra.mrb[0].mxu0 %v8546
      %v8874 = vpop.f32.mrb[0].mxu0
      %v8875 = vadd.f32 %v5972, %v8874
      %v8876 = vpop.f32.mrb[0].mxu0
      %v8877 = vpop.f32.mrb[0].mxu0
      %v8878 = vadd.f32 %v5972, %v8877
      %v8879 = vpop.f32.mrb[0].mxu0
      %8880 = vmatprep.mubr.bf16.mxu0 %v8486
      %8881 = vmatmul.mubr.bf16.gmra.mrb[0].mxu0 %v8554
      %v8882 = vpop.f32.mrb[0].mxu0
      %v8883 = vadd.f32 %v5972, %v8882
      %v8884 = vpop.f32.mrb[0].mxu0
      %v8885 = vpop.f32.mrb[0].mxu0
      %v8886 = vadd.f32 %v5972, %v8885
      %v8887 = vpop.f32.mrb[0].mxu0
      %8888 = vmatprep.mubr.bf16.mxu0 %v8487
      %8889 = vmatmul.mubr.bf16.gmra.mrb[0].mxu0 %v8562
      %v8890 = vpop.f32.mrb[0].mxu0
      %v8891 = vadd.f32 %v5972, %v8890
      %v8892 = vpop.f32.mrb[0].mxu0
      %v8893 = vpop.f32.mrb[0].mxu0
      %v8894 = vadd.f32 %v5972, %v8893
      %v8895 = vpop.f32.mrb[0].mxu0
      %8896 = vmatprep.mubr.bf16.mxu0 %v8488
      %8897 = vmatmul.mubr.bf16.gmra.mrb[0].mxu0 %v8570
      %v8898 = vpop.f32.mrb[0].mxu0
      %v8899 = vadd.f32 %v5972, %v8898
      %v8900 = vpop.f32.mrb[0].mxu0
      %v8901 = vpop.f32.mrb[0].mxu0
      %v8902 = vadd.f32 %v5972, %v8901
      %v8903 = vpop.f32.mrb[0].mxu0
      %8904 = vmatprep.mubr.bf16.mxu0 %v8489
      %8905 = vmatmul.mubr.bf16.gmra.mrb[0].mxu0 %v8578
      %v8906 = vpop.f32.mrb[0].mxu0
      %v8907 = vadd.f32 %v5972, %v8906
      %v8908 = vpop.f32.mrb[0].mxu0
      %v8909 = vpop.f32.mrb[0].mxu0
      %v8910 = vadd.f32 %v5972, %v8909
      %v8911 = vpop.f32.mrb[0].mxu0
      %8912 = vmatprep.mubr.bf16.mxu0 %v8490
      %8913 = vmatmul.mubr.bf16.gmra.mrb[0].mxu0 %v8586
      %v8914 = vpop.f32.mrb[0].mxu0
      %v8915 = vadd.f32 %v5972, %v8914
      %v8916 = vpop.f32.mrb[0].mxu0
      %v8917 = vpop.f32.mrb[0].mxu0
      %v8918 = vadd.f32 %v5972, %v8917
      %v8919 = vpop.f32.mrb[0].mxu0
      %8920 = vmatprep.mubr.bf16.mxu0 %v8491
      %8921 = vmatmul.mubr.bf16.gmra.mrb[0].mxu0 %v8594
      %v8922 = vpop.f32.mrb[0].mxu0
      %v8923 = vadd.f32 %v5972, %v8922
      %v8924 = vpop.f32.mrb[0].mxu0
      %v8925 = vpop.f32.mrb[0].mxu0
      %v8926 = vadd.f32 %v5972, %v8925
      %v8927 = vpop.f32.mrb[0].mxu0
      %8928 = vmatprep.mubr.bf16.mxu0 %v8492
      %8929 = vmatmul.mubr.bf16.gmra.mrb[0].mxu0 %v8602
      %v8930 = vpop.f32.mrb[0].mxu0
      %v8931 = vadd.f32 %v5972, %v8930
      %v8932 = vpop.f32.mrb[0].mxu0
      %v8933 = vpop.f32.mrb[0].mxu0
      %v8934 = vadd.f32 %v5972, %v8933
      %v8935 = vpop.f32.mrb[0].mxu0
      %8936 = vmatprep.mubr.bf16.mxu0 %v8493
      %8937 = vmatmul.mubr.bf16.gmra.mrb[0].mxu0 %v8610
      %v8938 = vpop.f32.mrb[0].mxu0
      %v8939 = vadd.f32 %v5972, %v8938
      %v8940 = vpop.f32.mrb[0].mxu0
      %v8941 = vpop.f32.mrb[0].mxu0
      %v8942 = vadd.f32 %v5972, %v8941
      %v8943 = vpop.f32.mrb[0].mxu0
      %8944 = vmatprep.mubr.bf16.mxu0 %v8494
      %8945 = vmatmul.mubr.bf16.gmra.mrb[0].mxu0 %v8618
      %v8946 = vpop.f32.mrb[0].mxu0
      %v8947 = vadd.f32 %v5972, %v8946
      %v8948 = vpop.f32.mrb[0].mxu0
      %v8949 = vpop.f32.mrb[0].mxu0
      %v8950 = vadd.f32 %v5972, %v8949
      %v8951 = vpop.f32.mrb[0].mxu0
      %8952 = vmatprep.mubr.bf16.mxu0 %v8495
      %8953 = vmatmul.mubr.bf16.gmra.mrb[0].mxu0 %v8626
      %v8954 = vpop.f32.mrb[0].mxu0
      %v8955 = vadd.f32 %v5972, %v8954
      %v8956 = vpop.f32.mrb[0].mxu0
      %v8957 = vpop.f32.mrb[0].mxu0
      %v8958 = vadd.f32 %v5972, %v8957
      %v8959 = vpop.f32.mrb[0].mxu0
      %8960 = vmatprep.mubr.bf16.mxu0 %v8496
      %8961 = vmatmul.mubr.bf16.gmra.mrb[0].mxu0 %v8634
      %v8962 = vpop.f32.mrb[0].mxu0
      %v8963 = vadd.f32 %v5972, %v8962
      %v8964 = vpop.f32.mrb[0].mxu0
      %v8965 = vpop.f32.mrb[0].mxu0
      %v8966 = vadd.f32 %v5972, %v8965
      %v8967 = vpop.f32.mrb[0].mxu0
      %8968 = vmatprep.mubr.bf16.mxu0 %v8497
      %8969 = vmatmul.mubr.bf16.gmra.mrb[0].mxu0 %v8642
      %v8970 = vpop.f32.mrb[0].mxu0
      %v8971 = vadd.f32 %v5972, %v8970
      %v8972 = vpop.f32.mrb[0].mxu0
      %v8973 = vpop.f32.mrb[0].mxu0
      %v8974 = vadd.f32 %v5972, %v8973
      %v8975 = vpop.f32.mrb[0].mxu0
      %8976 = vmatprep.mubr.bf16.mxu0 %v8498
      %8977 = vmatmul.mubr.bf16.gmra.mrb[0].mxu0 %v8650
      %v8978 = vpop.f32.mrb[0].mxu0
      %v8979 = vadd.f32 %v5972, %v8978
      %v8980 = vpop.f32.mrb[0].mxu0
      %v8981 = vpop.f32.mrb[0].mxu0
      %v8982 = vadd.f32 %v5972, %v8981
      %v8983 = vpop.f32.mrb[0].mxu0
      %8984 = vdwg.mxu0
      %8985 = vmatprep.subr.bf16.mxu0 0
      %8986 = vmatpush1.bf16.msra.mxu0 %v6278
      %8987 = vmatprep.subr.bf16.mxu0 0
      %8988 = vmatpush1.bf16.msra.mxu0 %v6279
      %8989 = vmatprep.subr.bf16.mxu0 0
      %8990 = vmatpush1.bf16.msra.mxu0 %v6280
      %8991 = vmatprep.subr.bf16.mxu0 0
      %8992 = vmatpush1.bf16.msra.mxu0 %v6281
      %8993 = vmatprep.subr.bf16.mxu0 0
      %8994 = vmatpush1.bf16.msra.mxu0 %v6282
      %8995 = vmatprep.subr.bf16.mxu0 0
      %8996 = vmatpush1.bf16.msra.mxu0 %v6283
      %8997 = vmatprep.subr.bf16.mxu0 0
      %8998 = vmatpush1.bf16.msra.mxu0 %v6284
      %8999 = vmatprep.subr.bf16.mxu0 0
      %9000 = vmatpush1.bf16.msra.mxu0 %v6285
      %9001 = vmatprep.subr.bf16.mxu0 0
      %9002 = vmatpush1.bf16.msra.mxu0 %v6286
      %9003 = vmatprep.subr.bf16.mxu0 0
      %9004 = vmatpush1.bf16.msra.mxu0 %v6287
      %9005 = vmatprep.subr.bf16.mxu0 0
      %9006 = vmatpush1.bf16.msra.mxu0 %v6288
      %9007 = vmatprep.subr.bf16.mxu0 0
      %9008 = vmatpush1.bf16.msra.mxu0 %v6289
      %9009 = vmatprep.subr.bf16.mxu0 0
      %9010 = vmatpush1.bf16.msra.mxu0 %v6290
      %9011 = vmatprep.subr.bf16.mxu0 0
      %9012 = vmatpush1.bf16.msra.mxu0 %v6291
      %9013 = vmatprep.subr.bf16.mxu0 0
      %9014 = vmatpush1.bf16.msra.mxu0 %v6292
      %9015 = vmatprep.subr.bf16.mxu0 0
      %9016 = vmatpush1.bf16.msra.mxu0 %v6293
      %9017 = vmatprep.mubr.bf16.mxu0 %v8666
      %9018 = vmatmul.mubr.bf16.gmra.mrb[0].mxu0 %v8807
      %v9019 = vpop.f32.mrb[0].mxu0
      %v9020 = vadd.f32 %v8859, %v9019
      %v9021 = vpop.f32.mrb[0].mxu0
      %v9022 = vpop.f32.mrb[0].mxu0
      %v9023 = vadd.f32 %v8862, %v9022
      %v9024 = vpop.f32.mrb[0].mxu0
      %9025 = vmatprep.mubr.bf16.mxu0 %v8546
      %9026 = vmatmul.mubr.bf16.gmra.mrb[0].mxu0 %v8678
      %v9027 = vpop.f32.mrb[0].mxu0
      %v9028 = vadd.f32 %v8867, %v9027
      %v9029 = vpop.f32.mrb[0].mxu0
      %v9030 = vpop.f32.mrb[0].mxu0
      %v9031 = vadd.f32 %v8870, %v9030
      %v9032 = vpop.f32.mrb[0].mxu0
      %9033 = vmatprep.mubr.bf16.mxu0 %v8554
      %9034 = vmatmul.mubr.bf16.gmra.mrb[0].mxu0 %v8686
      %v9035 = vpop.f32.mrb[0].mxu0
      %v9036 = vadd.f32 %v8875, %v9035
      %v9037 = vpop.f32.mrb[0].mxu0
      %v9038 = vpop.f32.mrb[0].mxu0
      %v9039 = vadd.f32 %v8878, %v9038
      %v9040 = vpop.f32.mrb[0].mxu0
      %9041 = vmatprep.mubr.bf16.mxu0 %v8562
      %9042 = vmatmul.mubr.bf16.gmra.mrb[0].mxu0 %v8694
      %v9043 = vpop.f32.mrb[0].mxu0
      %v9044 = vadd.f32 %v8883, %v9043
      %v9045 = vpop.f32.mrb[0].mxu0
      %v9046 = vpop.f32.mrb[0].mxu0
      %v9047 = vadd.f32 %v8886, %v9046
      %v9048 = vpop.f32.mrb[0].mxu0
      %9049 = vmatprep.mubr.bf16.mxu0 %v8570
      %9050 = vmatmul.mubr.bf16.gmra.mrb[0].mxu0 %v8702
      %v9051 = vpop.f32.mrb[0].mxu0
      %v9052 = vadd.f32 %v8891, %v9051
      %v9053 = vpop.f32.mrb[0].mxu0
      %v9054 = vpop.f32.mrb[0].mxu0
      %v9055 = vadd.f32 %v8894, %v9054
      %v9056 = vpop.f32.mrb[0].mxu0
      %9057 = vmatprep.mubr.bf16.mxu0 %v8578
      %9058 = vmatmul.mubr.bf16.gmra.mrb[0].mxu0 %v8710
      %v9059 = vpop.f32.mrb[0].mxu0
      %v9060 = vadd.f32 %v8899, %v9059
      %v9061 = vpop.f32.mrb[0].mxu0
      %v9062 = vpop.f32.mrb[0].mxu0
      %v9063 = vadd.f32 %v8902, %v9062
      %v9064 = vpop.f32.mrb[0].mxu0
      %9065 = vmatprep.mubr.bf16.mxu0 %v8586
      %9066 = vmatmul.mubr.bf16.gmra.mrb[0].mxu0 %v8718
      %v9067 = vpop.f32.mrb[0].mxu0
      %v9068 = vadd.f32 %v8907, %v9067
      %v9069 = vpop.f32.mrb[0].mxu0
      %v9070 = vpop.f32.mrb[0].mxu0
      %v9071 = vadd.f32 %v8910, %v9070
      %v9072 = vpop.f32.mrb[0].mxu0
      %9073 = vmatprep.mubr.bf16.mxu0 %v8594
      %9074 = vmatmul.mubr.bf16.gmra.mrb[0].mxu0 %v8726
      %v9075 = vpop.f32.mrb[0].mxu0
      %v9076 = vadd.f32 %v8915, %v9075
      %v9077 = vpop.f32.mrb[0].mxu0
      %v9078 = vpop.f32.mrb[0].mxu0
      %v9079 = vadd.f32 %v8918, %v9078
      %v9080 = vpop.f32.mrb[0].mxu0
      %9081 = vmatprep.mubr.bf16.mxu0 %v8602
      %9082 = vmatmul.mubr.bf16.gmra.mrb[0].mxu0 %v8734
      %v9083 = vpop.f32.mrb[0].mxu0
      %v9084 = vadd.f32 %v8923, %v9083
      %v9085 = vpop.f32.mrb[0].mxu0
      %v9086 = vpop.f32.mrb[0].mxu0
      %v9087 = vadd.f32 %v8926, %v9086
      %v9088 = vpop.f32.mrb[0].mxu0
      %9089 = vmatprep.mubr.bf16.mxu0 %v8610
      %9090 = vmatmul.mubr.bf16.gmra.mrb[0].mxu0 %v8742
      %v9091 = vpop.f32.mrb[0].mxu0
      %v9092 = vadd.f32 %v8931, %v9091
      %v9093 = vpop.f32.mrb[0].mxu0
      %v9094 = vpop.f32.mrb[0].mxu0
      %v9095 = vadd.f32 %v8934, %v9094
      %v9096 = vpop.f32.mrb[0].mxu0
      %9097 = vmatprep.mubr.bf16.mxu0 %v8618
      %9098 = vmatmul.mubr.bf16.gmra.mrb[0].mxu0 %v8750
      %v9099 = vpop.f32.mrb[0].mxu0
      %v9100 = vadd.f32 %v8939, %v9099
      %v9101 = vpop.f32.mrb[0].mxu0
      %v9102 = vpop.f32.mrb[0].mxu0
      %v9103 = vadd.f32 %v8942, %v9102
      %v9104 = vpop.f32.mrb[0].mxu0
      %9105 = vmatprep.mubr.bf16.mxu0 %v8626
      %9106 = vmatmul.mubr.bf16.gmra.mrb[0].mxu0 %v8758
      %v9107 = vpop.f32.mrb[0].mxu0
      %v9108 = vadd.f32 %v8947, %v9107
      %v9109 = vpop.f32.mrb[0].mxu0
      %v9110 = vpop.f32.mrb[0].mxu0
      %v9111 = vadd.f32 %v8950, %v9110
      %v9112 = vpop.f32.mrb[0].mxu0
      %9113 = vmatprep.mubr.bf16.mxu0 %v8634
      %9114 = vmatmul.mubr.bf16.gmra.mrb[0].mxu0 %v8766
      %v9115 = vpop.f32.mrb[0].mxu0
      %v9116 = vadd.f32 %v8955, %v9115
      %v9117 = vpop.f32.mrb[0].mxu0
      %v9118 = vpop.f32.mrb[0].mxu0
      %v9119 = vadd.f32 %v8958, %v9118
      %v9120 = vpop.f32.mrb[0].mxu0
      %9121 = vmatprep.mubr.bf16.mxu0 %v8642
      %9122 = vmatmul.mubr.bf16.gmra.mrb[0].mxu0 %v8774
      %v9123 = vpop.f32.mrb[0].mxu0
      %v9124 = vadd.f32 %v8963, %v9123
      %v9125 = vpop.f32.mrb[0].mxu0
      %v9126 = vpop.f32.mrb[0].mxu0
      %v9127 = vadd.f32 %v8966, %v9126
      %v9128 = vpop.f32.mrb[0].mxu0
      %9129 = vmatprep.mubr.bf16.mxu0 %v8650
      %9130 = vmatmul.mubr.bf16.gmra.mrb[0].mxu0 %v8782
      %v9131 = vpop.f32.mrb[0].mxu0
      %v9132 = vadd.f32 %v8971, %v9131
      %v9133 = vpop.f32.mrb[0].mxu0
      %v9134 = vpop.f32.mrb[0].mxu0
      %v9135 = vadd.f32 %v8974, %v9134
      %v9136 = vpop.f32.mrb[0].mxu0
      %9137 = vmatprep.mubr.bf16.mxu0 %v8815
      %9138 = vmatmul.mubr.bf16.gmra.mrb[0].mxu0 %v8790
      %v9139 = vpop.f32.mrb[0].mxu0
      %v9140 = vadd.f32 %v8979, %v9139
      %v9141 = vpop.f32.mrb[0].mxu0
      %v9142 = vpop.f32.mrb[0].mxu0
      %v9143 = vadd.f32 %v8982, %v9142
      %v9144 = vpop.f32.mrb[0].mxu0
      %9145 = vdwg.mxu0
      %9146 = vmatprep.subr.bf16.mxu0 0
      %9147 = vmatpush1.bf16.msra.mxu0 %v6294
      %9148 = vmatprep.subr.bf16.mxu0 0
      %9149 = vmatpush1.bf16.msra.mxu0 %v6295
      %9150 = vmatprep.subr.bf16.mxu0 0
      %9151 = vmatpush1.bf16.msra.mxu0 %v6296
      %9152 = vmatprep.subr.bf16.mxu0 0
      %9153 = vmatpush1.bf16.msra.mxu0 %v6297
      %9154 = vmatprep.subr.bf16.mxu0 0
      %9155 = vmatpush1.bf16.msra.mxu0 %v6298
      %9156 = vmatprep.subr.bf16.mxu0 0
      %9157 = vmatpush1.bf16.msra.mxu0 %v6299
      %9158 = vmatprep.subr.bf16.mxu0 0
      %9159 = vmatpush1.bf16.msra.mxu0 %v6300
      %9160 = vmatprep.subr.bf16.mxu0 0
      %9161 = vmatpush1.bf16.msra.mxu0 %v6301
      %9162 = vmatprep.subr.bf16.mxu0 0
      %9163 = vmatpush1.bf16.msra.mxu0 %v6302
      %9164 = vmatprep.subr.bf16.mxu0 0
      %9165 = vmatpush1.bf16.msra.mxu0 %v6303
      %9166 = vmatprep.subr.bf16.mxu0 0
      %9167 = vmatpush1.bf16.msra.mxu0 %v6304
      %9168 = vmatprep.subr.bf16.mxu0 0
      %9169 = vmatpush1.bf16.msra.mxu0 %v6305
      %9170 = vmatprep.subr.bf16.mxu0 0
      %9171 = vmatpush1.bf16.msra.mxu0 %v6306
      %9172 = vmatprep.subr.bf16.mxu0 0
      %9173 = vmatpush1.bf16.msra.mxu0 %v6307
      %9174 = vmatprep.subr.bf16.mxu0 0
      %9175 = vmatpush1.bf16.msra.mxu0 %v6308
      %9176 = vmatprep.subr.bf16.mxu0 0
      %9177 = vmatpush1.bf16.msra.mxu0 %v6309
      %9178 = vmatprep.mubr.bf16.mxu0 %v8678
      %9179 = vmatmul.mubr.bf16.gmra.mrb[0].mxu0 %v8484
      %v9180 = vpop.f32.mrb[0].mxu0
      %v9181 = vadd.f32 %v9020, %v9180
      %v9182 = vpop.f32.mrb[0].mxu0
      %v9183 = vpop.f32.mrb[0].mxu0
      %v9184 = vadd.f32 %v9023, %v9183
      %v9185 = vpop.f32.mrb[0].mxu0
      %9186 = vmatprep.mubr.bf16.mxu0 %v8686
      %9187 = vmatmul.mubr.bf16.gmra.mrb[0].mxu0 %v8485
      %v9188 = vpop.f32.mrb[0].mxu0
      %v9189 = vadd.f32 %v9028, %v9188
      %v9190 = vpop.f32.mrb[0].mxu0
      %v9191 = vpop.f32.mrb[0].mxu0
      %v9192 = vadd.f32 %v9031, %v9191
      %v9193 = vpop.f32.mrb[0].mxu0
      %9194 = vmatprep.mubr.bf16.mxu0 %v8694
      %9195 = vmatmul.mubr.bf16.gmra.mrb[0].mxu0 %v8486
      %v9196 = vpop.f32.mrb[0].mxu0
      %v9197 = vadd.f32 %v9036, %v9196
      %v9198 = vpop.f32.mrb[0].mxu0
      %v9199 = vpop.f32.mrb[0].mxu0
      %v9200 = vadd.f32 %v9039, %v9199
      %v9201 = vpop.f32.mrb[0].mxu0
      %9202 = vmatprep.mubr.bf16.mxu0 %v8702
      %9203 = vmatmul.mubr.bf16.gmra.mrb[0].mxu0 %v8487
      %v9204 = vpop.f32.mrb[0].mxu0
      %v9205 = vadd.f32 %v9044, %v9204
      %v9206 = vpop.f32.mrb[0].mxu0
      %v9207 = vpop.f32.mrb[0].mxu0
      %v9208 = vadd.f32 %v9047, %v9207
      %v9209 = vpop.f32.mrb[0].mxu0
      %9210 = vmatprep.mubr.bf16.mxu0 %v8710
      %9211 = vmatmul.mubr.bf16.gmra.mrb[0].mxu0 %v8488
      %v9212 = vpop.f32.mrb[0].mxu0
      %v9213 = vadd.f32 %v9052, %v9212
      %v9214 = vpop.f32.mrb[0].mxu0
      %v9215 = vpop.f32.mrb[0].mxu0
      %v9216 = vadd.f32 %v9055, %v9215
      %v9217 = vpop.f32.mrb[0].mxu0
      %9218 = vmatprep.mubr.bf16.mxu0 %v8718
      %9219 = vmatmul.mubr.bf16.gmra.mrb[0].mxu0 %v8489
      %v9220 = vpop.f32.mrb[0].mxu0
      %v9221 = vadd.f32 %v9060, %v9220
      %v9222 = vpop.f32.mrb[0].mxu0
      %v9223 = vpop.f32.mrb[0].mxu0
      %v9224 = vadd.f32 %v9063, %v9223
      %v9225 = vpop.f32.mrb[0].mxu0
      %9226 = vmatprep.mubr.bf16.mxu0 %v8726
      %9227 = vmatmul.mubr.bf16.gmra.mrb[0].mxu0 %v8490
      %v9228 = vpop.f32.mrb[0].mxu0
      %v9229 = vadd.f32 %v9068, %v9228
      %v9230 = vpop.f32.mrb[0].mxu0
      %v9231 = vpop.f32.mrb[0].mxu0
      %v9232 = vadd.f32 %v9071, %v9231
      %v9233 = vpop.f32.mrb[0].mxu0
      %9234 = vmatprep.mubr.bf16.mxu0 %v8734
      %9235 = vmatmul.mubr.bf16.gmra.mrb[0].mxu0 %v8491
      %v9236 = vpop.f32.mrb[0].mxu0
      %v9237 = vadd.f32 %v9076, %v9236
      %v9238 = vpop.f32.mrb[0].mxu0
      %v9239 = vpop.f32.mrb[0].mxu0
      %v9240 = vadd.f32 %v9079, %v9239
      %v9241 = vpop.f32.mrb[0].mxu0
      %9242 = vmatprep.mubr.bf16.mxu0 %v8742
      %9243 = vmatmul.mubr.bf16.gmra.mrb[0].mxu0 %v8492
      %v9244 = vpop.f32.mrb[0].mxu0
      %v9245 = vadd.f32 %v9084, %v9244
      %v9246 = vpop.f32.mrb[0].mxu0
      %v9247 = vpop.f32.mrb[0].mxu0
      %v9248 = vadd.f32 %v9087, %v9247
      %v9249 = vpop.f32.mrb[0].mxu0
      %9250 = vmatprep.mubr.bf16.mxu0 %v8750
      %9251 = vmatmul.mubr.bf16.gmra.mrb[0].mxu0 %v8493
      %v9252 = vpop.f32.mrb[0].mxu0
      %v9253 = vadd.f32 %v9092, %v9252
      %v9254 = vpop.f32.mrb[0].mxu0
      %v9255 = vpop.f32.mrb[0].mxu0
      %v9256 = vadd.f32 %v9095, %v9255
      %v9257 = vpop.f32.mrb[0].mxu0
      %9258 = vmatprep.mubr.bf16.mxu0 %v8758
      %9259 = vmatmul.mubr.bf16.gmra.mrb[0].mxu0 %v8494
      %v9260 = vpop.f32.mrb[0].mxu0
      %v9261 = vadd.f32 %v9100, %v9260
      %v9262 = vpop.f32.mrb[0].mxu0
      %v9263 = vpop.f32.mrb[0].mxu0
      %v9264 = vadd.f32 %v9103, %v9263
      %v9265 = vpop.f32.mrb[0].mxu0
      %9266 = vmatprep.mubr.bf16.mxu0 %v8766
      %9267 = vmatmul.mubr.bf16.gmra.mrb[0].mxu0 %v8495
      %v9268 = vpop.f32.mrb[0].mxu0
      %v9269 = vadd.f32 %v9108, %v9268
      %v9270 = vpop.f32.mrb[0].mxu0
      %v9271 = vpop.f32.mrb[0].mxu0
      %v9272 = vadd.f32 %v9111, %v9271
      %v9273 = vpop.f32.mrb[0].mxu0
      %9274 = vmatprep.mubr.bf16.mxu0 %v8774
      %9275 = vmatmul.mubr.bf16.gmra.mrb[0].mxu0 %v8496
      %v9276 = vpop.f32.mrb[0].mxu0
      %v9277 = vadd.f32 %v9116, %v9276
      %v9278 = vpop.f32.mrb[0].mxu0
      %v9279 = vpop.f32.mrb[0].mxu0
      %v9280 = vadd.f32 %v9119, %v9279
      %v9281 = vpop.f32.mrb[0].mxu0
      %9282 = vmatprep.mubr.bf16.mxu0 %v8782
      %9283 = vmatmul.mubr.bf16.gmra.mrb[0].mxu0 %v8497
      %v9284 = vpop.f32.mrb[0].mxu0
      %v9285 = vadd.f32 %v9124, %v9284
      %v9286 = vpop.f32.mrb[0].mxu0
      %v9287 = vpop.f32.mrb[0].mxu0
      %v9288 = vadd.f32 %v9127, %v9287
      %v9289 = vpop.f32.mrb[0].mxu0
      %9290 = vmatprep.mubr.bf16.mxu0 %v8790
      %9291 = vmatmul.mubr.bf16.gmra.mrb[0].mxu0 %v8498
      %v9292 = vpop.f32.mrb[0].mxu0
      %v9293 = vadd.f32 %v9132, %v9292
      %v9294 = vpop.f32.mrb[0].mxu0
      %v9295 = vpop.f32.mrb[0].mxu0
      %v9296 = vadd.f32 %v9135, %v9295
      %v9297 = vpop.f32.mrb[0].mxu0
      %9298 = vmatprep.mubr.bf16.mxu0 %v8821
      %9299 = vmatmul.mubr.bf16.gmra.mrb[0].mxu0 %v8499
      %v9300 = vpop.f32.mrb[0].mxu0
      %v9301 = vadd.f32 %v9140, %v9300
      %v9302 = vpop.f32.mrb[0].mxu0
      %v9303 = vpop.f32.mrb[0].mxu0
      %v9304 = vadd.f32 %v9143, %v9303
      %v9305 = vpop.f32.mrb[0].mxu0
      %9306 = vdwg.mxu0
      %9307 = vmatprep.subr.bf16.mxu0 0
      %9308 = vmatpush1.bf16.msra.mxu0 %v6310
      %9309 = vmatprep.subr.bf16.mxu0 0
      %9310 = vmatpush1.bf16.msra.mxu0 %v6311
      %9311 = vmatprep.subr.bf16.mxu0 0
      %9312 = vmatpush1.bf16.msra.mxu0 %v6312
      %9313 = vmatprep.subr.bf16.mxu0 0
      %9314 = vmatpush1.bf16.msra.mxu0 %v6313
      %9315 = vmatprep.subr.bf16.mxu0 0
      %9316 = vmatpush1.bf16.msra.mxu0 %v6314
      %9317 = vmatprep.subr.bf16.mxu0 0
      %9318 = vmatpush1.bf16.msra.mxu0 %v6315
      %9319 = vmatprep.subr.bf16.mxu0 0
      %9320 = vmatpush1.bf16.msra.mxu0 %v6316
      %9321 = vmatprep.subr.bf16.mxu0 0
      %9322 = vmatpush1.bf16.msra.mxu0 %v6317
      %9323 = vmatprep.subr.bf16.mxu0 0
      %9324 = vmatpush1.bf16.msra.mxu0 %v6318
      %9325 = vmatprep.subr.bf16.mxu0 0
      %9326 = vmatpush1.bf16.msra.mxu0 %v6319
      %9327 = vmatprep.subr.bf16.mxu0 0
      %9328 = vmatpush1.bf16.msra.mxu0 %v6320
      %9329 = vmatprep.subr.bf16.mxu0 0
      %9330 = vmatpush1.bf16.msra.mxu0 %v6321
      %9331 = vmatprep.subr.bf16.mxu0 0
      %9332 = vmatpush1.bf16.msra.mxu0 %v6322
      %9333 = vmatprep.subr.bf16.mxu0 0
      %9334 = vmatpush1.bf16.msra.mxu0 %v6323
      %9335 = vmatprep.subr.bf16.mxu0 0
      %9336 = vmatpush1.bf16.msra.mxu0 %v6324
      %9337 = vmatprep.subr.bf16.mxu0 0
      %9338 = vmatpush1.bf16.msra.mxu0 %v6325
      %9339 = vmatprep.mubr.bf16.mxu0 %v8485
      %9340 = vmatmul.mubr.bf16.gmra.mrb[0].mxu0 %v8546
      %v9341 = vpop.f32.mrb[0].mxu0
      %v9342 = vadd.f32 %v9181, %v9341
      %v9343 = vpop.f32.mrb[0].mxu0
      %v9344 = vpop.f32.mrb[0].mxu0
      %v9345 = vadd.f32 %v9184, %v9344
      %v9346 = vpop.f32.mrb[0].mxu0
      %9347 = vmatprep.mubr.bf16.mxu0 %v8486
      %9348 = vmatmul.mubr.bf16.gmra.mrb[0].mxu0 %v8554
      %v9349 = vpop.f32.mrb[0].mxu0
      %v9350 = vadd.f32 %v9189, %v9349
      %v9351 = vpop.f32.mrb[0].mxu0
      %v9352 = vpop.f32.mrb[0].mxu0
      %v9353 = vadd.f32 %v9192, %v9352
      %v9354 = vpop.f32.mrb[0].mxu0
      %9355 = vmatprep.mubr.bf16.mxu0 %v8487
      %9356 = vmatmul.mubr.bf16.gmra.mrb[0].mxu0 %v8562
      %v9357 = vpop.f32.mrb[0].mxu0
      %v9358 = vadd.f32 %v9197, %v9357
      %v9359 = vpop.f32.mrb[0].mxu0
      %v9360 = vpop.f32.mrb[0].mxu0
      %v9361 = vadd.f32 %v9200, %v9360
      %v9362 = vpop.f32.mrb[0].mxu0
      %9363 = vmatprep.mubr.bf16.mxu0 %v8488
      %9364 = vmatmul.mubr.bf16.gmra.mrb[0].mxu0 %v8570
      %v9365 = vpop.f32.mrb[0].mxu0
      %v9366 = vadd.f32 %v9205, %v9365
      %v9367 = vpop.f32.mrb[0].mxu0
      %v9368 = vpop.f32.mrb[0].mxu0
      %v9369 = vadd.f32 %v9208, %v9368
      %v9370 = vpop.f32.mrb[0].mxu0
      %9371 = vmatprep.mubr.bf16.mxu0 %v8489
      %9372 = vmatmul.mubr.bf16.gmra.mrb[0].mxu0 %v8578
      %v9373 = vpop.f32.mrb[0].mxu0
      %v9374 = vadd.f32 %v9213, %v9373
      %v9375 = vpop.f32.mrb[0].mxu0
      %v9376 = vpop.f32.mrb[0].mxu0
      %v9377 = vadd.f32 %v9216, %v9376
      %v9378 = vpop.f32.mrb[0].mxu0
      %9379 = vmatprep.mubr.bf16.mxu0 %v8490
      %9380 = vmatmul.mubr.bf16.gmra.mrb[0].mxu0 %v8586
      %v9381 = vpop.f32.mrb[0].mxu0
      %v9382 = vadd.f32 %v9221, %v9381
      %v9383 = vpop.f32.mrb[0].mxu0
      %v9384 = vpop.f32.mrb[0].mxu0
      %v9385 = vadd.f32 %v9224, %v9384
      %v9386 = vpop.f32.mrb[0].mxu0
      %9387 = vmatprep.mubr.bf16.mxu0 %v8491
      %9388 = vmatmul.mubr.bf16.gmra.mrb[0].mxu0 %v8594
      %v9389 = vpop.f32.mrb[0].mxu0
      %v9390 = vadd.f32 %v9229, %v9389
      %v9391 = vpop.f32.mrb[0].mxu0
      %v9392 = vpop.f32.mrb[0].mxu0
      %v9393 = vadd.f32 %v9232, %v9392
      %v9394 = vpop.f32.mrb[0].mxu0
      %9395 = vmatprep.mubr.bf16.mxu0 %v8492
      %9396 = vmatmul.mubr.bf16.gmra.mrb[0].mxu0 %v8602
      %v9397 = vpop.f32.mrb[0].mxu0
      %v9398 = vadd.f32 %v9237, %v9397
      %v9399 = vpop.f32.mrb[0].mxu0
      %v9400 = vpop.f32.mrb[0].mxu0
      %v9401 = vadd.f32 %v9240, %v9400
      %v9402 = vpop.f32.mrb[0].mxu0
      %9403 = vmatprep.mubr.bf16.mxu0 %v8493
      %9404 = vmatmul.mubr.bf16.gmra.mrb[0].mxu0 %v8610
      %v9405 = vpop.f32.mrb[0].mxu0
      %v9406 = vadd.f32 %v9245, %v9405
      %v9407 = vpop.f32.mrb[0].mxu0
      %v9408 = vpop.f32.mrb[0].mxu0
      %v9409 = vadd.f32 %v9248, %v9408
      %v9410 = vpop.f32.mrb[0].mxu0
      %9411 = vmatprep.mubr.bf16.mxu0 %v8494
      %9412 = vmatmul.mubr.bf16.gmra.mrb[0].mxu0 %v8618
      %v9413 = vpop.f32.mrb[0].mxu0
      %v9414 = vadd.f32 %v9253, %v9413
      %v9415 = vpop.f32.mrb[0].mxu0
      %v9416 = vpop.f32.mrb[0].mxu0
      %v9417 = vadd.f32 %v9256, %v9416
      %v9418 = vpop.f32.mrb[0].mxu0
      %9419 = vmatprep.mubr.bf16.mxu0 %v8495
      %9420 = vmatmul.mubr.bf16.gmra.mrb[0].mxu0 %v8626
      %v9421 = vpop.f32.mrb[0].mxu0
      %v9422 = vadd.f32 %v9261, %v9421
      %v9423 = vpop.f32.mrb[0].mxu0
      %v9424 = vpop.f32.mrb[0].mxu0
      %v9425 = vadd.f32 %v9264, %v9424
      %v9426 = vpop.f32.mrb[0].mxu0
      %9427 = vmatprep.mubr.bf16.mxu0 %v8496
      %9428 = vmatmul.mubr.bf16.gmra.mrb[0].mxu0 %v8634
      %v9429 = vpop.f32.mrb[0].mxu0
      %v9430 = vadd.f32 %v9269, %v9429
      %v9431 = vpop.f32.mrb[0].mxu0
      %v9432 = vpop.f32.mrb[0].mxu0
      %v9433 = vadd.f32 %v9272, %v9432
      %v9434 = vpop.f32.mrb[0].mxu0
      %9435 = vmatprep.mubr.bf16.mxu0 %v8497
      %9436 = vmatmul.mubr.bf16.gmra.mrb[0].mxu0 %v8642
      %v9437 = vpop.f32.mrb[0].mxu0
      %v9438 = vadd.f32 %v9277, %v9437
      %v9439 = vpop.f32.mrb[0].mxu0
      %v9440 = vpop.f32.mrb[0].mxu0
      %v9441 = vadd.f32 %v9280, %v9440
      %v9442 = vpop.f32.mrb[0].mxu0
      %9443 = vmatprep.mubr.bf16.mxu0 %v8498
      %9444 = vmatmul.mubr.bf16.gmra.mrb[0].mxu0 %v8650
      %v9445 = vpop.f32.mrb[0].mxu0
      %v9446 = vadd.f32 %v9285, %v9445
      %v9447 = vpop.f32.mrb[0].mxu0
      %v9448 = vpop.f32.mrb[0].mxu0
      %v9449 = vadd.f32 %v9288, %v9448
      %v9450 = vpop.f32.mrb[0].mxu0
      %9451 = vmatprep.mubr.bf16.mxu0 %v8499
      %9452 = vmatmul.mubr.bf16.gmra.mrb[0].mxu0 %v8815
      %v9453 = vpop.f32.mrb[0].mxu0
      %v9454 = vadd.f32 %v9293, %v9453
      %v9455 = vpop.f32.mrb[0].mxu0
      %v9456 = vpop.f32.mrb[0].mxu0
      %v9457 = vadd.f32 %v9296, %v9456
      %v9458 = vpop.f32.mrb[0].mxu0
      %9459 = vmatprep.mubr.bf16.mxu0 0
      %9460 = vmatmul.mubr.bf16.gmra.mrb[0].mxu0 %v8823
      %v9461 = vpop.f32.mrb[0].mxu0
      %v9462 = vadd.f32 %v9301, %v9461
      %v9463 = vpop.f32.mrb[0].mxu0
      %v9464 = vpop.f32.mrb[0].mxu0
      %v9465 = vadd.f32 %v9304, %v9464
      %v9466 = vpop.f32.mrb[0].mxu0
      %9467 = vdwg.mxu0
      %9468 = vmatprep.subr.bf16.mxu0 0
      %9469 = vmatpush1.bf16.msra.mxu0 %v6326
      %9470 = vmatprep.subr.bf16.mxu0 0
      %9471 = vmatpush1.bf16.msra.mxu0 %v6327
      %9472 = vmatprep.subr.bf16.mxu0 0
      %9473 = vmatpush1.bf16.msra.mxu0 %v6328
      %9474 = vmatprep.subr.bf16.mxu0 0
      %9475 = vmatpush1.bf16.msra.mxu0 %v6329
      %9476 = vmatprep.subr.bf16.mxu0 0
      %9477 = vmatpush1.bf16.msra.mxu0 %v6330
      %9478 = vmatprep.subr.bf16.mxu0 0
      %9479 = vmatpush1.bf16.msra.mxu0 %v6331
      %9480 = vmatprep.subr.bf16.mxu0 0
      %9481 = vmatpush1.bf16.msra.mxu0 %v6332
      %9482 = vmatprep.subr.bf16.mxu0 0
      %9483 = vmatpush1.bf16.msra.mxu0 %v6333
      %9484 = vmatprep.subr.bf16.mxu0 0
      %9485 = vmatpush1.bf16.msra.mxu0 0
      %9486 = vmatprep.subr.bf16.mxu0 0
      %9487 = vmatpush1.bf16.msra.mxu0 0
      %9488 = vmatprep.subr.bf16.mxu0 0
      %9489 = vmatpush1.bf16.msra.mxu0 0
      %9490 = vmatprep.subr.bf16.mxu0 0
      %9491 = vmatpush1.bf16.msra.mxu0 0
      %9492 = vmatprep.subr.bf16.mxu0 0
      %9493 = vmatpush1.bf16.msra.mxu0 0
      %9494 = vmatprep.subr.bf16.mxu0 0
      %9495 = vmatpush1.bf16.msra.mxu0 0
      %9496 = vmatprep.subr.bf16.mxu0 0
      %9497 = vmatpush1.bf16.msra.mxu0 0
      %9498 = vmatprep.subr.bf16.mxu0 0
      %9499 = vmatpush1.bf16.msra.mxu0 0
      %9500 = vmatprep.mubr.bf16.mxu0 0
      %9501 = vmatmul.mubr.bf16.gmra.mrb[0].mxu0 %v8686
      %v9502 = vpop.f32.mrb[0].mxu0
      %v9503 = vadd.f32 %v9342, %v9502
      %v9504 = vpop.f32.mrb[0].mxu0
      %v9505 = vpop.f32.mrb[0].mxu0
      %v9506 = vadd.f32 %v9345, %v9505
      %v9507 = vpop.f32.mrb[0].mxu0
      %9508 = vmatprep.mubr.bf16.mxu0 0
      %9509 = vmatmul.mubr.bf16.gmra.mrb[0].mxu0 %v8694
      %v9510 = vpop.f32.mrb[0].mxu0
      %v9511 = vadd.f32 %v9350, %v9510
      %v9512 = vpop.f32.mrb[0].mxu0
      %v9513 = vpop.f32.mrb[0].mxu0
      %v9514 = vadd.f32 %v9353, %v9513
      %v9515 = vpop.f32.mrb[0].mxu0
      %9516 = vmatprep.mubr.bf16.mxu0 0
      %9517 = vmatmul.mubr.bf16.gmra.mrb[0].mxu0 %v8702
      %v9518 = vpop.f32.mrb[0].mxu0
      %v9519 = vadd.f32 %v9358, %v9518
      %v9520 = vpop.f32.mrb[0].mxu0
      %v9521 = vpop.f32.mrb[0].mxu0
      %v9522 = vadd.f32 %v9361, %v9521
      %v9523 = vpop.f32.mrb[0].mxu0
      %9524 = vmatprep.mubr.bf16.mxu0 0
      %9525 = vmatmul.mubr.bf16.gmra.mrb[0].mxu0 %v8710
      %v9526 = vpop.f32.mrb[0].mxu0
      %v9527 = vadd.f32 %v9366, %v9526
      %v9528 = vpop.f32.mrb[0].mxu0
      %v9529 = vpop.f32.mrb[0].mxu0
      %v9530 = vadd.f32 %v9369, %v9529
      %v9531 = vpop.f32.mrb[0].mxu0
      %9532 = vmatprep.mubr.bf16.mxu0 0
      %9533 = vmatmul.mubr.bf16.gmra.mrb[0].mxu0 %v8718
      %v9534 = vpop.f32.mrb[0].mxu0
      %v9535 = vadd.f32 %v9374, %v9534
      %v9536 = vpop.f32.mrb[0].mxu0
      %v9537 = vpop.f32.mrb[0].mxu0
      %v9538 = vadd.f32 %v9377, %v9537
      %v9539 = vpop.f32.mrb[0].mxu0
      %9540 = vmatprep.mubr.bf16.mxu0 0
      %9541 = vmatmul.mubr.bf16.gmra.mrb[0].mxu0 %v8726
      %v9542 = vpop.f32.mrb[0].mxu0
      %v9543 = vadd.f32 %v9382, %v9542
      %v9544 = vpop.f32.mrb[0].mxu0
      %v9545 = vpop.f32.mrb[0].mxu0
      %v9546 = vadd.f32 %v9385, %v9545
      %v9547 = vpop.f32.mrb[0].mxu0
      %9548 = vmatprep.mubr.bf16.mxu0 0
      %9549 = vmatmul.mubr.bf16.gmra.mrb[0].mxu0 %v8734
      %v9550 = vpop.f32.mrb[0].mxu0
      %v9551 = vadd.f32 %v9390, %v9550
      %v9552 = vpop.f32.mrb[0].mxu0
      %v9553 = vpop.f32.mrb[0].mxu0
      %v9554 = vadd.f32 %v9393, %v9553
      %v9555 = vpop.f32.mrb[0].mxu0
      %9556 = vmatprep.mubr.bf16.mxu0 0
      %9557 = vmatmul.mubr.bf16.gmra.mrb[0].mxu0 %v8742
      %v9558 = vpop.f32.mrb[0].mxu0
      %v9559 = vadd.f32 %v9398, %v9558
      %v9560 = vpop.f32.mrb[0].mxu0
      %v9561 = vpop.f32.mrb[0].mxu0
      %v9562 = vadd.f32 %v9401, %v9561
      %v9563 = vpop.f32.mrb[0].mxu0
      %9564 = vmatprep.mubr.bf16.mxu0 0
      %9565 = vmatmul.mubr.bf16.gmra.mrb[0].mxu0 %v8750
      %v9566 = vpop.f32.mrb[0].mxu0
      %v9567 = vadd.f32 %v9406, %v9566
      %v9568 = vpop.f32.mrb[0].mxu0
      %v9569 = vpop.f32.mrb[0].mxu0
      %v9570 = vadd.f32 %v9409, %v9569
      %v9571 = vpop.f32.mrb[0].mxu0
      %9572 = vmatprep.mubr.bf16.mxu0 0
      %9573 = vmatmul.mubr.bf16.gmra.mrb[0].mxu0 %v8758
      %v9574 = vpop.f32.mrb[0].mxu0
      %v9575 = vadd.f32 %v9414, %v9574
      %v9576 = vpop.f32.mrb[0].mxu0
      %v9577 = vpop.f32.mrb[0].mxu0
      %v9578 = vadd.f32 %v9417, %v9577
      %v9579 = vpop.f32.mrb[0].mxu0
      %9580 = vmatprep.mubr.bf16.mxu0 0
      %9581 = vmatmul.mubr.bf16.gmra.mrb[0].mxu0 %v8766
      %v9582 = vpop.f32.mrb[0].mxu0
      %v9583 = vadd.f32 %v9422, %v9582
      %v9584 = vpop.f32.mrb[0].mxu0
      %v9585 = vpop.f32.mrb[0].mxu0
      %v9586 = vadd.f32 %v9425, %v9585
      %v9587 = vpop.f32.mrb[0].mxu0
      %9588 = vmatprep.mubr.bf16.mxu0 0
      %9589 = vmatmul.mubr.bf16.gmra.mrb[0].mxu0 %v8774
      %v9590 = vpop.f32.mrb[0].mxu0
      %v9591 = vadd.f32 %v9430, %v9590
      %v9592 = vpop.f32.mrb[0].mxu0
      %v9593 = vpop.f32.mrb[0].mxu0
      %v9594 = vadd.f32 %v9433, %v9593
      %v9595 = vpop.f32.mrb[0].mxu0
      %9596 = vmatprep.mubr.bf16.mxu0 0
      %9597 = vmatmul.mubr.bf16.gmra.mrb[0].mxu0 %v8782
      %v9598 = vpop.f32.mrb[0].mxu0
      %v9599 = vadd.f32 %v9438, %v9598
      %v9600 = vpop.f32.mrb[0].mxu0
      %v9601 = vpop.f32.mrb[0].mxu0
      %v9602 = vadd.f32 %v9441, %v9601
      %v9603 = vpop.f32.mrb[0].mxu0
      %9604 = vmatprep.mubr.bf16.mxu0 0
      %9605 = vmatmul.mubr.bf16.gmra.mrb[0].mxu0 %v8790
      %v9606 = vpop.f32.mrb[0].mxu0
      %v9607 = vadd.f32 %v9446, %v9606
      %v9608 = vpop.f32.mrb[0].mxu0
      %v9609 = vpop.f32.mrb[0].mxu0
      %v9610 = vadd.f32 %v9449, %v9609
      %v9611 = vpop.f32.mrb[0].mxu0
      %9612 = vmatprep.mubr.bf16.mxu0 0
      %9613 = vmatmul.mubr.bf16.gmra.mrb[0].mxu0 %v8821
      %v9614 = vpop.f32.mrb[0].mxu0
      %v9615 = vadd.f32 %v9454, %v9614
      %v9616 = vpop.f32.mrb[0].mxu0
      %v9617 = vpop.f32.mrb[0].mxu0
      %v9618 = vadd.f32 %v9457, %v9617
      %v9619 = vpop.f32.mrb[0].mxu0
      %9620 = vmatprep.mubr.bf16.mxu0 0
      %9621 = vmatmul.mubr.bf16.gmra.mrb[0].mxu0 0
      %v9622 = vpop.f32.mrb[0].mxu0
      %v9623 = vadd.f32 %v9462, %v9622
      %v9624 = vpop.f32.mrb[0].mxu0
      %v9625 = vpop.f32.mrb[0].mxu0
      %v9626 = vadd.f32 %v9465, %v9625
      %v9627 = vpop.f32.mrb[0].mxu0
      %9628 = vdwg.mxu0
      %v9629 = vmax.f32 %v9503, 0.0
      %v9630 = vmax.f32 %v9506, 0.0
      %v9631 = vmax.f32 %v9511, 0.0
      %v9632 = vmax.f32 %v9514, 0.0
      %v9633 = vmax.f32 %v9519, 0.0
      %v9634 = vmax.f32 %v9522, 0.0
      %v9635 = vmax.f32 %v9527, 0.0
      %v9636 = vmax.f32 %v9530, 0.0
      %v9637 = vmax.f32 %v9535, 0.0
      %v9638 = vmax.f32 %v9538, 0.0
      %v9639 = vmax.f32 %v9543, 0.0
      %v9640 = vmax.f32 %v9546, 0.0
      %v9641 = vmax.f32 %v9551, 0.0
      %v9642 = vmax.f32 %v9554, 0.0
      %v9643 = vmax.f32 %v9559, 0.0
      %v9644 = vmax.f32 %v9562, 0.0
      %v9645 = vmax.f32 %v9567, 0.0
      %v9646 = vmax.f32 %v9570, 0.0
      %v9647 = vmax.f32 %v9575, 0.0
      %v9648 = vmax.f32 %v9578, 0.0
      %v9649 = vmax.f32 %v9583, 0.0
      %v9650 = vmax.f32 %v9586, 0.0
      %v9651 = vmax.f32 %v9591, 0.0
      %v9652 = vmax.f32 %v9594, 0.0
      %v9653 = vmax.f32 %v9599, 0.0
      %v9654 = vmax.f32 %v9602, 0.0
      %v9655 = vmax.f32 %v9607, 0.0
      %v9656 = vmax.f32 %v9610, 0.0
      %v9657 = vmax.f32 %v9615, 0.0
      %v9658 = vmax.f32 %v9618, 0.0
      %v9659 = vmax.f32 %v9623, 0.0
      %v9660 = vmax.f32 %v9626, 0.0
      %v9661 = vadd.f32 %v917, %v9629
      %v9662 = vadd.f32 %v920, %v9630
      %v9663 = vadd.f32 %v925, %v9631
      %v9664 = vadd.f32 %v928, %v9632
      %v9665 = vadd.f32 %v933, %v9633
      %v9666 = vadd.f32 %v936, %v9634
      %v9667 = vadd.f32 %v941, %v9635
      %v9668 = vadd.f32 %v944, %v9636
      %v9669 = vadd.f32 %v949, %v9637
      %v9670 = vadd.f32 %v952, %v9638
      %v9671 = vadd.f32 %v957, %v9639
      %v9672 = vadd.f32 %v960, %v9640
      %v9673 = vadd.f32 %v965, %v9641
      %v9674 = vadd.f32 %v968, %v9642
      %v9675 = vadd.f32 %v973, %v9643
      %v9676 = vadd.f32 %v976, %v9644
      %v9677 = vadd.f32 %v981, %v9645
      %v9678 = vadd.f32 %v984, %v9646
      %v9679 = vadd.f32 %v989, %v9647
      %v9680 = vadd.f32 %v992, %v9648
      %v9681 = vadd.f32 %v997, %v9649
      %v9682 = vadd.f32 %v1000, %v9650
      %v9683 = vadd.f32 %v1005, %v9651
      %v9684 = vadd.f32 %v1008, %v9652
      %v9685 = vadd.f32 %v1013, %v9653
      %v9686 = vadd.f32 %v1016, %v9654
      %v9687 = vadd.f32 %v1021, %v9655
      %v9688 = vadd.f32 %v1024, %v9656
      %v9689 = vadd.f32 %v1029, %v9657
      %v9690 = vadd.f32 %v1032, %v9658
      %v9691 = vadd.f32 %v1037, %v9659
      %v9692 = vadd.f32 %v1040, %v9660
      %9693 = vst [vmem:[%s278] sm:$0xff] %v9661
      %9694 = vst [vmem:[%s278 + $0x8] sm:$0xff] %v9662
      %9695 = vst [vmem:[%s278 + $0x10] sm:$0xff] %v9663
      %9696 = vst [vmem:[%s278 + $0x18] sm:$0xff] %v9664
      %9697 = vst [vmem:[%s278 + $0x20] sm:$0xff] %v9665
      %9698 = vst [vmem:[%s278 + $0x28] sm:$0xff] %v9666
      %9699 = vst [vmem:[%s278 + $0x30] sm:$0xff] %v9667
      %9700 = vst [vmem:[%s278 + $0x38] sm:$0xff] %v9668
      %9701 = vst [vmem:[%s278 + $0x40] sm:$0xff] %v9669
      %9702 = vst [vmem:[%s278 + $0x48] sm:$0xff] %v9670
      %9703 = vst [vmem:[%s278 + $0x50] sm:$0xff] %v9671
      %9704 = vst [vmem:[%s278 + $0x58] sm:$0xff] %v9672
      %9705 = vst [vmem:[%s278 + $0x60] sm:$0xff] %v9673
      %9706 = vst [vmem:[%s278 + $0x68] sm:$0xff] %v9674
      %9707 = vst [vmem:[%s278 + $0x70] sm:$0xff] %v9675
      %9708 = vst [vmem:[%s278 + $0x78] sm:$0xff] %v9676
      %9709 = vst [vmem:[%s278 + $0x80] sm:$0xff] %v9677
      %9710 = vst [vmem:[%s278 + $0x88] sm:$0xff] %v9678
      %9711 = vst [vmem:[%s278 + $0x90] sm:$0xff] %v9679
      %9712 = vst [vmem:[%s278 + $0x98] sm:$0xff] %v9680
      %9713 = vst [vmem:[%s278 + $0xa0] sm:$0xff] %v9681
      %9714 = vst [vmem:[%s278 + $0xa8] sm:$0xff] %v9682
      %9715 = vst [vmem:[%s278 + $0xb0] sm:$0xff] %v9683
      %9716 = vst [vmem:[%s278 + $0xb8] sm:$0xff] %v9684
      %9717 = vst [vmem:[%s278 + $0xc0] sm:$0xff] %v9685
      %9718 = vst [vmem:[%s278 + $0xc8] sm:$0xff] %v9686
      %9719 = vst [vmem:[%s278 + $0xd0] sm:$0xff] %v9687
      %9720 = vst [vmem:[%s278 + $0xd8] sm:$0xff] %v9688
      %9721 = vst [vmem:[%s278 + $0xe0] sm:$0xff] %v9689
      %9722 = vst [vmem:[%s278 + $0xe8] sm:$0xff] %v9690
      %9723 = vst [vmem:[%s278 + $0xf0] sm:$0xff] %v9691
      %9724 = vst [vmem:[%s278 + $0xf8] sm:$0xff] %v9692
      %p9725 = scmp.lt.s32.totalorder %s18, 1
      %s9726 = scalar_select %p9725, %s18, 1
      %s9727 = smul.addr %s9726, 32
      %s9728 = smul.addr %s9727, 8
      %s9729 = scalar_lea.vmem %s7, %s9728
      // Predicated region
      $region49: #{rrcnn_block.1} parent=47 // pred_check
        %p9730 = pneg %p188
      $region50: #{rrcnn_block.1} parent=47 // pred_check_branch
        %9732 = sbr.rel (%p9730) target = $region52
      $region51: #{rrcnn_block.1} parent=47 // pred_region
        _
      $region52: #{rrcnn_block.1} parent=47 // pred_fallthru
        _
    $region48: #{rrcnn_block.1} parent=5 // pred_fallthru
      _
    %p9733 = scmp.le.s32.totalorder 2, %s13
    // Predicated region
    $region53: #{rrcnn_block.1} parent=5 // pred_check
      %p9734 = pneg %p9733
    $region54: #{rrcnn_block.1} parent=5 // pred_check_branch
      %9736 = sbr.rel (%p9734) target = $region56
    $region55: #{rrcnn_block.1} parent=5 // pred_region
      %s9737 = ssub.s32 %s13, 2
      // Predicated region
      $region57: #{rrcnn_block.1} parent=55 // pred_check
        %p9738 = pneg %p194
      $region58: #{rrcnn_block.1} parent=55 // pred_check_branch
        %9740 = sbr.rel (%p9738) target = $region60
      $region59: #{rrcnn_block.1} parent=55 // pred_region
        %p9741 = scmp.lt.s32.totalorder %s19, 1
        %s9742 = scalar_select %p9741, %s19, 1
        %s9743 = smul.addr %s9742, 32
        %s9744 = smul.addr %s9743, 8
        %s9745 = scalar_lea.vmem %s7, %s9744
      $region60: #{rrcnn_block.1} parent=55 // pred_fallthru
        _
    $region56: #{rrcnn_block.1} parent=5 // pred_fallthru
      _
  $region6: #{rrcnn_block.1} parent=0 // loop_footer
    %s17 = sadd.s32 1, %s13
  $region7: #{rrcnn_block.1} parent=0 // loop_footer_branch
    %12 = sbr.rel target = $region3
  $region8: #{rrcnn_block.1} parent=0 // loop_exit
    _

</llo_original>
